<compile_context>
chip_gen: v5e
topology: v5e:2x2
jax: 0.10.0
libtpu: 0.0.40
codegen_flags: <defaults>
</compile_context>

<pallas_src>
import functools
import math

import jax
import jax.numpy as jnp
import numpy as np
from jax.experimental import pallas as pl
from jax.experimental.pallas import tpu as pltpu

EPS = 1e-5  # nn.LayerNorm default eps


# --------------------------------------------------------------------------
# Fused decoder-layer kernel: one (batch, query-block) tile per grid step.
# --------------------------------------------------------------------------
def _decoder_layer_kernel(tgt_ref, mem_ref, pos_ref,
                          sa_w_ref, sa_b_ref, sa_wo_ref, sa_bo_ref,
                          ca_w_ref, ca_b_ref, ca_wo_ref, ca_bo_ref,
                          ln_g_ref, ln_b_ref,
                          w1_ref, b1_ref, w2_ref, b2_ref,
                          out_ref, *, nhead, q_block):
    f32 = jnp.float32
    bf16 = jnp.bfloat16
    L = tgt_ref.shape[1]
    E = tgt_ref.shape[2]
    dh = E // nhead

    tgt_full = tgt_ref[0]          # (L, E) f32 — self-attn keys/values
    pos_full = pos_ref[0]          # (L, E)
    mem = mem_ref[0]               # (S, E)

    if q_block == L:               # single query block (test config)
        tgt_q, pos_q = tgt_full, pos_full
    else:                          # query-tiled path (long sequences)
        q0 = pl.multiple_of(pl.program_id(1) * q_block, q_block)
        tgt_q = jax.lax.dynamic_slice_in_dim(tgt_full, q0, q_block, axis=0)
        pos_q = jax.lax.dynamic_slice_in_dim(pos_full, q0, q_block, axis=0)

    def layer_norm(x, idx):        # f32 statistics
        mean = jnp.mean(x, axis=-1, keepdims=True)
        xc = x - mean
        var = jnp.mean(xc * xc, axis=-1, keepdims=True)
        return xc * jax.lax.rsqrt(var + EPS) * ln_g_ref[idx] + ln_b_ref[idx]

    def mha(q_in, k_in, v_in, w_ref, b_ref, wo_ref, bo_ref):
        Lq = q_in.shape[0]
        Sk = k_in.shape[0]
        q_bf = q_in.astype(bf16)
        k_bf = q_bf if k_in is q_in else k_in.astype(bf16)
        v_bf = k_bf if v_in is k_in else v_in.astype(bf16)
        # Input projections: bf16 operands, f32 MXU accumulation.
        # (1/sqrt(dh) is already folded into w_ref[0] / b_ref[0].)
        qp = jnp.dot(q_bf, w_ref[0], preferred_element_type=f32) + b_ref[0]
        kp = jnp.dot(k_bf, w_ref[1], preferred_element_type=f32) + b_ref[1]
        vp = jnp.dot(v_bf, w_ref[2], preferred_element_type=f32) + b_ref[2]
        # One head-batched attention instead of nhead lane-sliced matmuls.
        qh = qp.reshape(Lq, nhead, dh).astype(bf16)
        kh = kp.reshape(Sk, nhead, dh).astype(bf16)
        vh = vp.reshape(Sk, nhead, dh).astype(bf16)
        scores = jnp.einsum("qhd,khd->hqk", qh, kh,
                            preferred_element_type=f32)        # (H, Lq, Sk)
        scores = scores - jnp.max(scores, axis=-1, keepdims=True)
        p = jnp.exp(scores)                                    # unnormalized
        inv = pl.reciprocal(jnp.sum(p, axis=-1), approx=True)  # (H, Lq), EUP
        ho = jnp.einsum("hqk,khd->qhd", p.astype(bf16), vh,
                        preferred_element_type=f32)            # (Lq, H, dh)
        ho = ho * jnp.transpose(inv)[:, :, None]               # softmax norm
        o = ho.reshape(Lq, E)
        # Single full-depth output projection.
        return jnp.dot(o.astype(bf16), wo_ref[...],
                       preferred_element_type=f32) + bo_ref[...]

    # --- self-attention block (dropout = identity, eval mode) --------------
    k_self = tgt_full + pos_full
    q_self = k_self if q_block == L else (tgt_q + pos_q)
    sa = mha(q_self, k_self, tgt_full, sa_w_ref, sa_b_ref, sa_wo_ref, sa_bo_ref)
    x = layer_norm(tgt_q + sa, 0)

    # --- cross-attention block (key = memory, matching the reference module)
    ca = mha(x + pos_q, mem, mem, ca_w_ref, ca_b_ref, ca_wo_ref, ca_bo_ref)
    x = layer_norm(x + ca, 1)

    # --- feed-forward block -------------------------------------------------
    h1 = jnp.dot(x.astype(bf16), w1_ref[...],
                 preferred_element_type=f32) + b1_ref[...]
    h1 = jnp.maximum(h1, 0.0)                                  # relu
    ff = jnp.dot(h1.astype(bf16), w2_ref[...],
                 preferred_element_type=f32) + b2_ref[...]
    x = layer_norm(x + ff, 2)

    out_ref[...] = x[None].astype(out_ref.dtype)


# --------------------------------------------------------------------------
# One-time parameter prep: fold 1/sqrt(dh) into the Q projection and cast all
# matmul weights to bf16 (biases / LayerNorm params stay f32).
# --------------------------------------------------------------------------
def prepare_params(params, nhead):
    E = params["sa_w"].shape[-1]
    scale = 1.0 / math.sqrt(E // nhead)
    bf16 = jnp.bfloat16

    def fold(w, b):
        return w.at[0].multiply(scale), b.at[0].multiply(scale)

    sa_w, sa_b = fold(params["sa_w"], params["sa_b"])
    ca_w, ca_b = fold(params["ca_w"], params["ca_b"])
    return dict(
        sa_w=sa_w.astype(bf16), sa_b=sa_b,
        sa_wo=params["sa_wo"].astype(bf16), sa_bo=params["sa_bo"],
        ca_w=ca_w.astype(bf16), ca_b=ca_b,
        ca_wo=params["ca_wo"].astype(bf16), ca_bo=params["ca_bo"],
        ln_g=params["ln_g"], ln_b=params["ln_b"],
        w1=params["w1"].astype(bf16), b1=params["b1"],
        w2=params["w2"].astype(bf16), b2=params["b2"],
    )


# --------------------------------------------------------------------------
# Wrapper
# --------------------------------------------------------------------------
def decoder_layer_forward(tgt, memory, params, query_pos=None, *, nhead,
                          q_block=None):
    """tgt: (L, B, E), memory: (S, B, E), query_pos: (L, B, E) or None.
    Returns (L, B, E) f32, matching TransformerDecoderLayer.forward_post in
    eval mode with no masks."""
    L, B, E = tgt.shape
    S = memory.shape[0]
    Fd = params["w1"].shape[-1]
    if query_pos is None:
        query_pos = jnp.zeros_like(tgt)

    prepped = prepare_params(params, nhead)   # in real use: prepare once, reuse

    # Query-block tiling: extra 'parallel' grid axis when L is long; at the
    # test shape this degenerates to a single block.
    if q_block is None:
        q_block = L
        for cand in (256, 128):
            if L > cand and L % cand == 0:
                q_block = cand
                break
    assert L % q_block == 0 and (q_block % 8 == 0 or q_block == L)
    nq = L // q_block

    # Batch-major for per-batch blocks; tiny relayout, negligible cost.
    tgt_b = jnp.transpose(tgt, (1, 0, 2))
    mem_b = jnp.transpose(memory, (1, 0, 2))
    pos_b = jnp.transpose(query_pos, (1, 0, 2))

    def const_spec(shape, buffering):
        nd = len(shape)
        if buffering is None:
            return pl.BlockSpec(shape, lambda b, q: (0,) * nd)
        return pl.BlockSpec(shape, lambda b, q: (0,) * nd,
                            pipeline_mode=buffering)

    # Rough VMEM footprint (bf16 weights single-buffered, f32 activation
    # blocks double-buffered, in-kernel temporaries) -> explicit limit only
    # when it exceeds v5e's 16 MiB default scoped VMEM.
    weight_bytes = 2 * (2 * 3 * E * E + 2 * E * E + 2 * E * Fd)
    misc_bytes = 4 * (10 * E + 3 * E + Fd)
    act_bytes = 4 * 2 * ((2 * L + S + q_block) * E)
    tmp_bytes = 4 * (2 * nhead * q_block * max(L, S) + q_block * Fd
                     + 8 * q_block * E)
    est = weight_bytes + misc_bytes + act_bytes + tmp_bytes
    comp_kwargs = dict(dimension_semantics=("parallel", "parallel"))
    if 2 * est > 16 * 1024 * 1024:
        comp_kwargs["vmem_limit_bytes"] = int(min(2 * est, 100 * 1024 * 1024))

    kernel = functools.partial(_decoder_layer_kernel, nhead=nhead,
                               q_block=q_block)

    def build(weight_buffering):
        return pl.pallas_call(
            kernel,
            grid=(B, nq),
            in_specs=[
                pl.BlockSpec((1, L, E), lambda b, q: (b, 0, 0)),
                pl.BlockSpec((1, S, E), lambda b, q: (b, 0, 0)),
                pl.BlockSpec((1, L, E), lambda b, q: (b, 0, 0)),
                const_spec((3, E, E), weight_buffering),
                const_spec((3, 1, E), weight_buffering),
                const_spec((E, E), weight_buffering),
                const_spec((1, E), weight_buffering),
                const_spec((3, E, E), weight_buffering),
                const_spec((3, 1, E), weight_buffering),
                const_spec((E, E), weight_buffering),
                const_spec((1, E), weight_buffering),
                const_spec((3, 1, E), weight_buffering),
                const_spec((3, 1, E), weight_buffering),
                const_spec((E, Fd), weight_buffering),
                const_spec((1, Fd), weight_buffering),
                const_spec((Fd, E), weight_buffering),
                const_spec((1, E), weight_buffering),
            ],
            out_specs=pl.BlockSpec((1, q_block, E), lambda b, q: (b, q, 0)),
            out_shape=jax.ShapeDtypeStruct((B, L, E), jnp.float32),
            compiler_params=pltpu.CompilerParams(**comp_kwargs),
        )

    args = (tgt_b, mem_b, pos_b,
            prepped["sa_w"], prepped["sa_b"], prepped["sa_wo"], prepped["sa_bo"],
            prepped["ca_w"], prepped["ca_b"], prepped["ca_wo"], prepped["ca_bo"],
            prepped["ln_g"], prepped["ln_b"],
            prepped["w1"], prepped["b1"], prepped["w2"], prepped["b2"])

    try:
        # Single-buffer the grid-invariant weight blocks (halves weight VMEM).
        out = build(pl.Buffered(1))(*args)
    except Exception:
        # Fallback for JAX versions without pipeline_mode / Buffered(1).
        out = build(None)(*args)

    return jnp.transpose(out, (1, 0, 2))


# --------------------------------------------------------------------------
# Deterministic parameter init. Weights are stored already transposed so the
# kernel computes x @ W (= PyTorch's x @ W_linear.T).
# --------------------------------------------------------------------------
def init_params(key, d_model, dim_feedforward):
    E, Fd = d_model, dim_feedforward
    ks = jax.random.split(key, 12)

    def xavier(k, shape):
        fan_in, fan_out = shape[-2], shape[-1]
        bound = math.sqrt(6.0 / (fan_in + fan_out))
        return jax.random.uniform(k, shape, jnp.float32, -bound, bound)

    def small(k, shape, b=0.05):
        return jax.random.uniform(k, shape, jnp.float32, -b, b)

    return dict(
        sa_w=xavier(ks[0], (3, E, E)),
        sa_b=small(ks[1], (3, 1, E)),
        sa_wo=xavier(ks[2], (E, E)),
        sa_bo=small(ks[3], (1, E)),
        ca_w=xavier(ks[4], (3, E, E)),
        ca_b=small(ks[5], (3, 1, E)),
        ca_wo=xavier(ks[6], (E, E)),
        ca_bo=small(ks[7], (1, E)),
        ln_g=1.0 + small(ks[8], (3, 1, E)),
        ln_b=small(ks[9], (3, 1, E)),
        w1=xavier(ks[10], (E, Fd)),
        b1=small(ks[11], (1, Fd)),
        w2=xavier(jax.random.fold_in(key, 99), (Fd, E)),
        b2=small(jax.random.fold_in(key, 100), (1, E)),
    )


# --------------------------------------------------------------------------
# Pure-JAX reference (mirrors PyTorch forward_post, dropout = identity).
# mm_dtype controls the matmul-operand dtype so the same function can serve
# both as the f32 PyTorch-semantics reference and as a reference that mirrors
# the kernel's bf16-operand / f32-accumulation policy.
# --------------------------------------------------------------------------
def reference_forward(tgt, memory, params, query_pos, *, nhead,
                      mm_dtype=jnp.float32, queries_prescaled=False):
    f32 = jnp.float32
    E = tgt.shape[-1]
    dh = E // nhead
    scale = 1.0 if queries_prescaled else 1.0 / math.sqrt(dh)
    cast = lambda a: a.astype(mm_dtype)

    def ln(x, i):
        g = params["ln_g"][i, 0].astype(f32)
        b = params["ln_b"][i, 0].astype(f32)
        mean = jnp.mean(x, -1, keepdims=True)
        var = jnp.mean((x - mean) ** 2, -1, keepdims=True)
        return (x - mean) / jnp.sqrt(var + EPS) * g + b

    def mha(q, k, v, w, b, wo, bo):
        Lq, B, _ = q.shape
        S = k.shape[0]
        qp = jnp.einsum("lbe,ef->lbf", cast(q), cast(w[0]),
                        preferred_element_type=f32) + b[0, 0].astype(f32)
        kp = jnp.einsum("lbe,ef->lbf", cast(k), cast(w[1]),
                        preferred_element_type=f32) + b[1, 0].astype(f32)
        vp = jnp.einsum("lbe,ef->lbf", cast(v), cast(w[2]),
                        preferred_element_type=f32) + b[2, 0].astype(f32)
        qh = (qp * scale).reshape(Lq, B, nhead, dh)
        kh = kp.reshape(S, B, nhead, dh)
        vh = vp.reshape(S, B, nhead, dh)
        sc = jnp.einsum("qbhd,kbhd->bhqk", cast(qh), cast(kh),
                        preferred_element_type=f32)
        p = jax.nn.softmax(sc, axis=-1)
        o = jnp.einsum("bhqk,kbhd->qbhd", cast(p), cast(vh),
                       preferred_element_type=f32).reshape(Lq, B, E)
        return jnp.einsum("lbe,ef->lbf", cast(o), cast(wo),
                          preferred_element_type=f32) + bo[0].astype(f32)

    q = tgt + query_pos
    x = ln(tgt + mha(q, q, tgt, params["sa_w"], params["sa_b"],
                     params["sa_wo"], params["sa_bo"]), 0)
    x = ln(x + mha(x + query_pos, memory, memory, params["ca_w"],
                   params["ca_b"], params["ca_wo"], params["ca_bo"]), 1)
    h = jnp.maximum(jnp.einsum("lbe,ef->lbf", cast(x), cast(params["w1"]),
                               preferred_element_type=f32)
                    + params["b1"][0].astype(f32), 0.0)
    ff = jnp.einsum("lbf,fe->lbe", cast(h), cast(params["w2"]),
                    preferred_element_type=f32) + params["b2"][0].astype(f32)
    return ln(x + ff, 2)


if __name__ == "__main__":
    d_model, nhead, dim_feedforward = 32, 4, 64
    L, S, B = 8, 16, 2

    key = jax.random.PRNGKey(0)
    k_t, k_m, k_q, k_p = jax.random.split(key, 4)
    tgt = jax.random.normal(k_t, (L, B, d_model), jnp.float32)
    memory = jax.random.normal(k_m, (S, B, d_model), jnp.float32)
    query_pos = jax.random.normal(k_q, (L, B, d_model), jnp.float32)
    params = init_params(k_p, d_model, dim_feedforward)

    out = jax.block_until_ready(
        decoder_layer_forward(tgt, memory, params, query_pos, nhead=nhead))
    assert out.shape == (L, B, d_model), out.shape

    # (1) Tight check vs. a reference that mirrors the kernel's precision
    #     policy (bf16 MXU operands, f32 accumulation / LN / softmax).
    ref_policy = reference_forward(tgt, memory, prepare_params(params, nhead),
                                   query_pos, nhead=nhead,
                                   mm_dtype=jnp.bfloat16,
                                   queries_prescaled=True)
    np.testing.assert_allclose(np.asarray(out), np.asarray(ref_policy),
                               rtol=2e-2, atol=2e-2)

    # (2) Looser check vs. the pure-f32 PyTorch-semantics reference
    #     (tolerance widened because the kernel feeds bf16 operands to the MXU).
    ref_f32 = reference_forward(tgt, memory, params, query_pos, nhead=nhead)
    np.testing.assert_allclose(np.asarray(out), np.asarray(ref_f32),
                               rtol=1e-1, atol=1e-1)

    print("KERNEL_OK")
</pallas_src>

<mosaic_0001>
module attributes {stable_mosaic.version = 11 : i64} {
  func.func @_decoder_layer_kernel(%arg0: i32, %arg1: i32, %arg2: memref<1x8x32xf32, #tpu.memory_space<vmem>>, %arg3: memref<1x16x32xf32, #tpu.memory_space<vmem>>, %arg4: memref<1x8x32xf32, #tpu.memory_space<vmem>>, %arg5: memref<3x32x32xbf16, #tpu.memory_space<vmem>>, %arg6: memref<3x1x32xf32, #tpu.memory_space<vmem>>, %arg7: memref<32x32xbf16, #tpu.memory_space<vmem>>, %arg8: memref<1x32xf32, #tpu.memory_space<vmem>>, %arg9: memref<3x32x32xbf16, #tpu.memory_space<vmem>>, %arg10: memref<3x1x32xf32, #tpu.memory_space<vmem>>, %arg11: memref<32x32xbf16, #tpu.memory_space<vmem>>, %arg12: memref<1x32xf32, #tpu.memory_space<vmem>>, %arg13: memref<3x1x32xf32, #tpu.memory_space<vmem>>, %arg14: memref<3x1x32xf32, #tpu.memory_space<vmem>>, %arg15: memref<32x64xbf16, #tpu.memory_space<vmem>>, %arg16: memref<1x64xf32, #tpu.memory_space<vmem>>, %arg17: memref<64x32xbf16, #tpu.memory_space<vmem>>, %arg18: memref<1x32xf32, #tpu.memory_space<vmem>>, %arg19: memref<1x8x32xf32, #tpu.memory_space<vmem>>) attributes {dimension_semantics = [#tpu.dimension_semantics<parallel>, #tpu.dimension_semantics<parallel>], iteration_bounds = array<i64: 2, 1>, scalar_prefetch = 0 : i64, scratch_operands = 0 : i64, tpu.core_type = #tpu.core_type<tc>, window_params = [{transform_indices = @transform_0, window_bounds = array<i64: 1, 8, 32>}, {transform_indices = @transform_1, window_bounds = array<i64: 1, 16, 32>}, {transform_indices = @transform_2, window_bounds = array<i64: 1, 8, 32>}, {pipeline_mode = #tpu.pipeline_mode<synchronous>, transform_indices = @transform_3, window_bounds = array<i64: 3, 32, 32>}, {pipeline_mode = #tpu.pipeline_mode<synchronous>, transform_indices = @transform_4, window_bounds = array<i64: 3, 1, 32>}, {pipeline_mode = #tpu.pipeline_mode<synchronous>, transform_indices = @transform_5, window_bounds = array<i64: 32, 32>}, {pipeline_mode = #tpu.pipeline_mode<synchronous>, transform_indices = @transform_6, window_bounds = array<i64: 1, 32>}, {pipeline_mode = #tpu.pipeline_mode<synchronous>, transform_indices = @transform_7, window_bounds = array<i64: 3, 32, 32>}, {pipeline_mode = #tpu.pipeline_mode<synchronous>, transform_indices = @transform_8, window_bounds = array<i64: 3, 1, 32>}, {pipeline_mode = #tpu.pipeline_mode<synchronous>, transform_indices = @transform_9, window_bounds = array<i64: 32, 32>}, {pipeline_mode = #tpu.pipeline_mode<synchronous>, transform_indices = @transform_10, window_bounds = array<i64: 1, 32>}, {pipeline_mode = #tpu.pipeline_mode<synchronous>, transform_indices = @transform_11, window_bounds = array<i64: 3, 1, 32>}, {pipeline_mode = #tpu.pipeline_mode<synchronous>, transform_indices = @transform_12, window_bounds = array<i64: 3, 1, 32>}, {pipeline_mode = #tpu.pipeline_mode<synchronous>, transform_indices = @transform_13, window_bounds = array<i64: 32, 64>}, {pipeline_mode = #tpu.pipeline_mode<synchronous>, transform_indices = @transform_14, window_bounds = array<i64: 1, 64>}, {pipeline_mode = #tpu.pipeline_mode<synchronous>, transform_indices = @transform_15, window_bounds = array<i64: 64, 32>}, {pipeline_mode = #tpu.pipeline_mode<synchronous>, transform_indices = @transform_16, window_bounds = array<i64: 1, 32>}, {transform_indices = @transform_17, window_bounds = array<i64: 1, 8, 32>}]} {
    %c0 = arith.constant 0 : index
    %c0_0 = arith.constant 0 : index
    %c0_1 = arith.constant 0 : index
    %0 = vector.load %arg2[%c0, %c0_0, %c0_1] : memref<1x8x32xf32, #tpu.memory_space<vmem>>, vector<1x8x32xf32>
    %1 = vector.shape_cast %0 : vector<1x8x32xf32> to vector<8x32xf32>
    %c0_2 = arith.constant 0 : index
    %c0_3 = arith.constant 0 : index
    %c0_4 = arith.constant 0 : index
    %2 = vector.load %arg4[%c0_2, %c0_3, %c0_4] : memref<1x8x32xf32, #tpu.memory_space<vmem>>, vector<1x8x32xf32>
    %3 = vector.shape_cast %2 : vector<1x8x32xf32> to vector<8x32xf32>
    %c0_5 = arith.constant 0 : index
    %c0_6 = arith.constant 0 : index
    %c0_7 = arith.constant 0 : index
    %4 = vector.load %arg3[%c0_5, %c0_6, %c0_7] : memref<1x16x32xf32, #tpu.memory_space<vmem>>, vector<1x16x32xf32>
    %5 = vector.shape_cast %4 : vector<1x16x32xf32> to vector<16x32xf32>
    %6 = arith.addf %1, %3 : vector<8x32xf32>
    %7 = arith.truncf %6 : vector<8x32xf32> to vector<8x32xbf16>
    %8 = arith.truncf %1 : vector<8x32xf32> to vector<8x32xbf16>
    %c0_8 = arith.constant 0 : index
    %c0_9 = arith.constant 0 : index
    %c0_10 = arith.constant 0 : index
    %9 = vector.load %arg5[%c0_8, %c0_9, %c0_10] : memref<3x32x32xbf16, #tpu.memory_space<vmem>>, vector<1x32x32xbf16>
    %10 = vector.shape_cast %9 : vector<1x32x32xbf16> to vector<32x32xbf16>
    %cst = arith.constant dense<0.000000e+00> : vector<8x32xf32>
    %11 = tpu.matmul %7, %10, %cst {dimension_numbers = #tpu.dot_dimension_numbers<[1], [0], [0], [1], [0, 0, 1, 1], [], []>} : vector<8x32xbf16>, vector<32x32xbf16>, vector<8x32xf32> -> vector<8x32xf32>
    %c0_11 = arith.constant 0 : index
    %c0_12 = arith.constant 0 : index
    %c0_13 = arith.constant 0 : index
    %12 = vector.load %arg6[%c0_11, %c0_12, %c0_13] : memref<3x1x32xf32, #tpu.memory_space<vmem>>, vector<1x1x32xf32>
    %13 = vector.shape_cast %12 : vector<1x1x32xf32> to vector<1x32xf32>
    %14 = vector.broadcast %13 : vector<1x32xf32> to vector<8x32xf32>
    %15 = arith.addf %11, %14 : vector<8x32xf32>
    %c1 = arith.constant 1 : index
    %c0_14 = arith.constant 0 : index
    %c0_15 = arith.constant 0 : index
    %16 = vector.load %arg5[%c1, %c0_14, %c0_15] : memref<3x32x32xbf16, #tpu.memory_space<vmem>>, vector<1x32x32xbf16>
    %17 = vector.shape_cast %16 : vector<1x32x32xbf16> to vector<32x32xbf16>
    %cst_16 = arith.constant dense<0.000000e+00> : vector<8x32xf32>
    %18 = tpu.matmul %7, %17, %cst_16 {dimension_numbers = #tpu.dot_dimension_numbers<[1], [0], [0], [1], [0, 0, 1, 1], [], []>} : vector<8x32xbf16>, vector<32x32xbf16>, vector<8x32xf32> -> vector<8x32xf32>
    %c1_17 = arith.constant 1 : index
    %c0_18 = arith.constant 0 : index
    %c0_19 = arith.constant 0 : index
    %19 = vector.load %arg6[%c1_17, %c0_18, %c0_19] : memref<3x1x32xf32, #tpu.memory_space<vmem>>, vector<1x1x32xf32>
    %20 = vector.shape_cast %19 : vector<1x1x32xf32> to vector<1x32xf32>
    %21 = vector.broadcast %20 : vector<1x32xf32> to vector<8x32xf32>
    %22 = arith.addf %18, %21 : vector<8x32xf32>
    %c2 = arith.constant 2 : index
    %c0_20 = arith.constant 0 : index
    %c0_21 = arith.constant 0 : index
    %23 = vector.load %arg5[%c2, %c0_20, %c0_21] : memref<3x32x32xbf16, #tpu.memory_space<vmem>>, vector<1x32x32xbf16>
    %24 = vector.shape_cast %23 : vector<1x32x32xbf16> to vector<32x32xbf16>
    %cst_22 = arith.constant dense<0.000000e+00> : vector<8x32xf32>
    %25 = tpu.matmul %8, %24, %cst_22 {dimension_numbers = #tpu.dot_dimension_numbers<[1], [0], [0], [1], [0, 0, 1, 1], [], []>} : vector<8x32xbf16>, vector<32x32xbf16>, vector<8x32xf32> -> vector<8x32xf32>
    %c2_23 = arith.constant 2 : index
    %c0_24 = arith.constant 0 : index
    %c0_25 = arith.constant 0 : index
    %26 = vector.load %arg6[%c2_23, %c0_24, %c0_25] : memref<3x1x32xf32, #tpu.memory_space<vmem>>, vector<1x1x32xf32>
    %27 = vector.shape_cast %26 : vector<1x1x32xf32> to vector<1x32xf32>
    %28 = vector.broadcast %27 : vector<1x32xf32> to vector<8x32xf32>
    %29 = arith.addf %25, %28 : vector<8x32xf32>
    %30 = vector.shape_cast %15 : vector<8x32xf32> to vector<8x4x8xf32>
    %31 = arith.truncf %30 : vector<8x4x8xf32> to vector<8x4x8xbf16>
    %32 = vector.shape_cast %22 : vector<8x32xf32> to vector<8x4x8xf32>
    %33 = arith.truncf %32 : vector<8x4x8xf32> to vector<8x4x8xbf16>
    %34 = vector.shape_cast %29 : vector<8x32xf32> to vector<8x4x8xf32>
    %35 = arith.truncf %34 : vector<8x4x8xf32> to vector<8x4x8xbf16>
    "tpu.trace_start"() <{level = 10 : i32, message = "qhd,khd->hqk"}> : () -> ()
    %cst_26 = arith.constant dense<0.000000e+00> : vector<4x8x8xf32>
    %36 = tpu.matmul %31, %33, %cst_26 {dimension_numbers = #tpu.dot_dimension_numbers<[2], [2], [0], [0], [0, 1, 0, 0, 1, 0], [1], [1]>} : vector<8x4x8xbf16>, vector<8x4x8xbf16>, vector<4x8x8xf32> -> vector<4x8x8xf32>
    "tpu.trace_stop"() : () -> ()
    %cst_27 = arith.constant dense<0xFF800000> : vector<4x8xf32>
    %37 = vector.multi_reduction <maximumf>, %36, %cst_27 [2] : vector<4x8x8xf32> to vector<4x8xf32>
    %38 = vector.shape_cast %37 : vector<4x8xf32> to vector<4x8x1xf32>
    %39 = vector.broadcast %38 : vector<4x8x1xf32> to vector<4x8x8xf32>
    %40 = arith.subf %36, %39 : vector<4x8x8xf32>
    %41 = math.exp %40 : vector<4x8x8xf32>
    %cst_28 = arith.constant dense<0.000000e+00> : vector<4x8xf32>
    %42 = vector.multi_reduction <add>, %41, %cst_28 [2] : vector<4x8x8xf32> to vector<4x8xf32>
    %43 = tpu.reciprocal %42 {approx = true} : vector<4x8xf32> -> vector<4x8xf32>
    %44 = arith.truncf %41 : vector<4x8x8xf32> to vector<4x8x8xbf16>
    "tpu.trace_start"() <{level = 10 : i32, message = "hqk,khd->qhd"}> : () -> ()
    %cst_29 = arith.constant dense<0.000000e+00> : vector<4x8x8xf32>
    %45 = tpu.matmul %35, %44, %cst_29 {dimension_numbers = #tpu.dot_dimension_numbers<[0], [2], [2], [1], [0, 1, 0, 2, 1, 1], [1], [0]>} : vector<8x4x8xbf16>, vector<4x8x8xbf16>, vector<4x8x8xf32> -> vector<4x8x8xf32>
    %46 = tpu.transpose %45, [2, 0, 1] : vector<4x8x8xf32> -> vector<8x4x8xf32>
    "tpu.trace_stop"() : () -> ()
    %47 = tpu.transpose %43, [1, 0] : vector<4x8xf32> -> vector<8x4xf32>
    %48 = vector.shape_cast %47 : vector<8x4xf32> to vector<8x4x1xf32>
    %49 = vector.broadcast %48 : vector<8x4x1xf32> to vector<8x4x8xf32>
    %50 = arith.mulf %46, %49 : vector<8x4x8xf32>
    %51 = vector.shape_cast %50 : vector<8x4x8xf32> to vector<8x32xf32>
    %52 = arith.truncf %51 : vector<8x32xf32> to vector<8x32xbf16>
    %c0_30 = arith.constant 0 : index
    %c0_31 = arith.constant 0 : index
    %53 = vector.load %arg7[%c0_30, %c0_31] : memref<32x32xbf16, #tpu.memory_space<vmem>>, vector<32x32xbf16>
    %cst_32 = arith.constant dense<0.000000e+00> : vector<8x32xf32>
    %54 = tpu.matmul %52, %53, %cst_32 {dimension_numbers = #tpu.dot_dimension_numbers<[1], [0], [0], [1], [0, 0, 1, 1], [], []>} : vector<8x32xbf16>, vector<32x32xbf16>, vector<8x32xf32> -> vector<8x32xf32>
    %c0_33 = arith.constant 0 : index
    %c0_34 = arith.constant 0 : index
    %55 = vector.load %arg8[%c0_33, %c0_34] : memref<1x32xf32, #tpu.memory_space<vmem>>, vector<1x32xf32>
    %56 = vector.broadcast %55 : vector<1x32xf32> to vector<8x32xf32>
    %57 = arith.addf %54, %56 : vector<8x32xf32>
    %58 = arith.addf %1, %57 : vector<8x32xf32>
    %cst_35 = arith.constant dense<0.000000e+00> : vector<8xf32>
    %59 = vector.multi_reduction <add>, %58, %cst_35 [1] : vector<8x32xf32> to vector<8xf32>
    %60 = vector.shape_cast %59 : vector<8xf32> to vector<8x1xf32>
    %cst_36 = arith.constant 3.200000e+01 : f32
    %61 = vector.broadcast %cst_36 : f32 to vector<8x1xf32>
    %62 = arith.divf %60, %61 : vector<8x1xf32>
    %63 = vector.broadcast %62 : vector<8x1xf32> to vector<8x32xf32>
    %64 = arith.subf %58, %63 : vector<8x32xf32>
    %65 = arith.mulf %64, %64 : vector<8x32xf32>
    %cst_37 = arith.constant dense<0.000000e+00> : vector<8xf32>
    %66 = vector.multi_reduction <add>, %65, %cst_37 [1] : vector<8x32xf32> to vector<8xf32>
    %67 = vector.shape_cast %66 : vector<8xf32> to vector<8x1xf32>
    %cst_38 = arith.constant 3.200000e+01 : f32
    %68 = vector.broadcast %cst_38 : f32 to vector<8x1xf32>
    %69 = arith.divf %67, %68 : vector<8x1xf32>
    %cst_39 = arith.constant 9.99999974E-6 : f32
    %70 = vector.broadcast %cst_39 : f32 to vector<8x1xf32>
    %71 = arith.addf %69, %70 : vector<8x1xf32>
    %72 = math.rsqrt %71 : vector<8x1xf32>
    %73 = vector.broadcast %72 : vector<8x1xf32> to vector<8x32xf32>
    %74 = arith.mulf %64, %73 : vector<8x32xf32>
    %c0_40 = arith.constant 0 : index
    %c0_41 = arith.constant 0 : index
    %c0_42 = arith.constant 0 : index
    %75 = vector.load %arg13[%c0_40, %c0_41, %c0_42] : memref<3x1x32xf32, #tpu.memory_space<vmem>>, vector<1x1x32xf32>
    %76 = vector.shape_cast %75 : vector<1x1x32xf32> to vector<1x32xf32>
    %77 = vector.broadcast %76 : vector<1x32xf32> to vector<8x32xf32>
    %78 = arith.mulf %74, %77 : vector<8x32xf32>
    %c0_43 = arith.constant 0 : index
    %c0_44 = arith.constant 0 : index
    %c0_45 = arith.constant 0 : index
    %79 = vector.load %arg14[%c0_43, %c0_44, %c0_45] : memref<3x1x32xf32, #tpu.memory_space<vmem>>, vector<1x1x32xf32>
    %80 = vector.shape_cast %79 : vector<1x1x32xf32> to vector<1x32xf32>
    %81 = vector.broadcast %80 : vector<1x32xf32> to vector<8x32xf32>
    %82 = arith.addf %78, %81 : vector<8x32xf32>
    %83 = arith.addf %82, %3 : vector<8x32xf32>
    %84 = arith.truncf %83 : vector<8x32xf32> to vector<8x32xbf16>
    %85 = arith.truncf %5 : vector<16x32xf32> to vector<16x32xbf16>
    %c0_46 = arith.constant 0 : index
    %c0_47 = arith.constant 0 : index
    %c0_48 = arith.constant 0 : index
    %86 = vector.load %arg9[%c0_46, %c0_47, %c0_48] : memref<3x32x32xbf16, #tpu.memory_space<vmem>>, vector<1x32x32xbf16>
    %87 = vector.shape_cast %86 : vector<1x32x32xbf16> to vector<32x32xbf16>
    %cst_49 = arith.constant dense<0.000000e+00> : vector<8x32xf32>
    %88 = tpu.matmul %84, %87, %cst_49 {dimension_numbers = #tpu.dot_dimension_numbers<[1], [0], [0], [1], [0, 0, 1, 1], [], []>} : vector<8x32xbf16>, vector<32x32xbf16>, vector<8x32xf32> -> vector<8x32xf32>
    %c0_50 = arith.constant 0 : index
    %c0_51 = arith.constant 0 : index
    %c0_52 = arith.constant 0 : index
    %89 = vector.load %arg10[%c0_50, %c0_51, %c0_52] : memref<3x1x32xf32, #tpu.memory_space<vmem>>, vector<1x1x32xf32>
    %90 = vector.shape_cast %89 : vector<1x1x32xf32> to vector<1x32xf32>
    %91 = vector.broadcast %90 : vector<1x32xf32> to vector<8x32xf32>
    %92 = arith.addf %88, %91 : vector<8x32xf32>
    %c1_53 = arith.constant 1 : index
    %c0_54 = arith.constant 0 : index
    %c0_55 = arith.constant 0 : index
    %93 = vector.load %arg9[%c1_53, %c0_54, %c0_55] : memref<3x32x32xbf16, #tpu.memory_space<vmem>>, vector<1x32x32xbf16>
    %94 = vector.shape_cast %93 : vector<1x32x32xbf16> to vector<32x32xbf16>
    %cst_56 = arith.constant dense<0.000000e+00> : vector<16x32xf32>
    %95 = tpu.matmul %85, %94, %cst_56 {dimension_numbers = #tpu.dot_dimension_numbers<[1], [0], [0], [1], [0, 0, 1, 1], [], []>} : vector<16x32xbf16>, vector<32x32xbf16>, vector<16x32xf32> -> vector<16x32xf32>
    %c1_57 = arith.constant 1 : index
    %c0_58 = arith.constant 0 : index
    %c0_59 = arith.constant 0 : index
    %96 = vector.load %arg10[%c1_57, %c0_58, %c0_59] : memref<3x1x32xf32, #tpu.memory_space<vmem>>, vector<1x1x32xf32>
    %97 = vector.shape_cast %96 : vector<1x1x32xf32> to vector<1x32xf32>
    %98 = vector.broadcast %97 : vector<1x32xf32> to vector<16x32xf32>
    %99 = arith.addf %95, %98 : vector<16x32xf32>
    %c2_60 = arith.constant 2 : index
    %c0_61 = arith.constant 0 : index
    %c0_62 = arith.constant 0 : index
    %100 = vector.load %arg9[%c2_60, %c0_61, %c0_62] : memref<3x32x32xbf16, #tpu.memory_space<vmem>>, vector<1x32x32xbf16>
    %101 = vector.shape_cast %100 : vector<1x32x32xbf16> to vector<32x32xbf16>
    %cst_63 = arith.constant dense<0.000000e+00> : vector<16x32xf32>
    %102 = tpu.matmul %85, %101, %cst_63 {dimension_numbers = #tpu.dot_dimension_numbers<[1], [0], [0], [1], [0, 0, 1, 1], [], []>} : vector<16x32xbf16>, vector<32x32xbf16>, vector<16x32xf32> -> vector<16x32xf32>
    %c2_64 = arith.constant 2 : index
    %c0_65 = arith.constant 0 : index
    %c0_66 = arith.constant 0 : index
    %103 = vector.load %arg10[%c2_64, %c0_65, %c0_66] : memref<3x1x32xf32, #tpu.memory_space<vmem>>, vector<1x1x32xf32>
    %104 = vector.shape_cast %103 : vector<1x1x32xf32> to vector<1x32xf32>
    %105 = vector.broadcast %104 : vector<1x32xf32> to vector<16x32xf32>
    %106 = arith.addf %102, %105 : vector<16x32xf32>
    %107 = vector.shape_cast %92 : vector<8x32xf32> to vector<8x4x8xf32>
    %108 = arith.truncf %107 : vector<8x4x8xf32> to vector<8x4x8xbf16>
    %109 = vector.shape_cast %99 : vector<16x32xf32> to vector<16x4x8xf32>
    %110 = arith.truncf %109 : vector<16x4x8xf32> to vector<16x4x8xbf16>
    %111 = vector.shape_cast %106 : vector<16x32xf32> to vector<16x4x8xf32>
    %112 = arith.truncf %111 : vector<16x4x8xf32> to vector<16x4x8xbf16>
    "tpu.trace_start"() <{level = 10 : i32, message = "qhd,khd->hqk"}> : () -> ()
    %cst_67 = arith.constant dense<0.000000e+00> : vector<4x8x16xf32>
    %113 = tpu.matmul %108, %110, %cst_67 {dimension_numbers = #tpu.dot_dimension_numbers<[2], [2], [0], [0], [0, 1, 0, 0, 1, 0], [1], [1]>} : vector<8x4x8xbf16>, vector<16x4x8xbf16>, vector<4x8x16xf32> -> vector<4x8x16xf32>
    "tpu.trace_stop"() : () -> ()
    %cst_68 = arith.constant dense<0xFF800000> : vector<4x8xf32>
    %114 = vector.multi_reduction <maximumf>, %113, %cst_68 [2] : vector<4x8x16xf32> to vector<4x8xf32>
    %115 = vector.shape_cast %114 : vector<4x8xf32> to vector<4x8x1xf32>
    %116 = vector.broadcast %115 : vector<4x8x1xf32> to vector<4x8x16xf32>
    %117 = arith.subf %113, %116 : vector<4x8x16xf32>
    %118 = math.exp %117 : vector<4x8x16xf32>
    %cst_69 = arith.constant dense<0.000000e+00> : vector<4x8xf32>
    %119 = vector.multi_reduction <add>, %118, %cst_69 [2] : vector<4x8x16xf32> to vector<4x8xf32>
    %120 = tpu.reciprocal %119 {approx = true} : vector<4x8xf32> -> vector<4x8xf32>
    %121 = arith.truncf %118 : vector<4x8x16xf32> to vector<4x8x16xbf16>
    "tpu.trace_start"() <{level = 10 : i32, message = "hqk,khd->qhd"}> : () -> ()
    %cst_70 = arith.constant dense<0.000000e+00> : vector<4x8x8xf32>
    %122 = tpu.matmul %112, %121, %cst_70 {dimension_numbers = #tpu.dot_dimension_numbers<[0], [2], [2], [1], [0, 1, 0, 2, 1, 1], [1], [0]>} : vector<16x4x8xbf16>, vector<4x8x16xbf16>, vector<4x8x8xf32> -> vector<4x8x8xf32>
    %123 = tpu.transpose %122, [2, 0, 1] : vector<4x8x8xf32> -> vector<8x4x8xf32>
    "tpu.trace_stop"() : () -> ()
    %124 = tpu.transpose %120, [1, 0] : vector<4x8xf32> -> vector<8x4xf32>
    %125 = vector.shape_cast %124 : vector<8x4xf32> to vector<8x4x1xf32>
    %126 = vector.broadcast %125 : vector<8x4x1xf32> to vector<8x4x8xf32>
    %127 = arith.mulf %123, %126 : vector<8x4x8xf32>
    %128 = vector.shape_cast %127 : vector<8x4x8xf32> to vector<8x32xf32>
    %129 = arith.truncf %128 : vector<8x32xf32> to vector<8x32xbf16>
    %c0_71 = arith.constant 0 : index
    %c0_72 = arith.constant 0 : index
    %130 = vector.load %arg11[%c0_71, %c0_72] : memref<32x32xbf16, #tpu.memory_space<vmem>>, vector<32x32xbf16>
    %cst_73 = arith.constant dense<0.000000e+00> : vector<8x32xf32>
    %131 = tpu.matmul %129, %130, %cst_73 {dimension_numbers = #tpu.dot_dimension_numbers<[1], [0], [0], [1], [0, 0, 1, 1], [], []>} : vector<8x32xbf16>, vector<32x32xbf16>, vector<8x32xf32> -> vector<8x32xf32>
    %c0_74 = arith.constant 0 : index
    %c0_75 = arith.constant 0 : index
    %132 = vector.load %arg12[%c0_74, %c0_75] : memref<1x32xf32, #tpu.memory_space<vmem>>, vector<1x32xf32>
    %133 = vector.broadcast %132 : vector<1x32xf32> to vector<8x32xf32>
    %134 = arith.addf %131, %133 : vector<8x32xf32>
    %135 = arith.addf %82, %134 : vector<8x32xf32>
    %cst_76 = arith.constant dense<0.000000e+00> : vector<8xf32>
    %136 = vector.multi_reduction <add>, %135, %cst_76 [1] : vector<8x32xf32> to vector<8xf32>
    %137 = vector.shape_cast %136 : vector<8xf32> to vector<8x1xf32>
    %cst_77 = arith.constant 3.200000e+01 : f32
    %138 = vector.broadcast %cst_77 : f32 to vector<8x1xf32>
    %139 = arith.divf %137, %138 : vector<8x1xf32>
    %140 = vector.broadcast %139 : vector<8x1xf32> to vector<8x32xf32>
    %141 = arith.subf %135, %140 : vector<8x32xf32>
    %142 = arith.mulf %141, %141 : vector<8x32xf32>
    %cst_78 = arith.constant dense<0.000000e+00> : vector<8xf32>
    %143 = vector.multi_reduction <add>, %142, %cst_78 [1] : vector<8x32xf32> to vector<8xf32>
    %144 = vector.shape_cast %143 : vector<8xf32> to vector<8x1xf32>
    %cst_79 = arith.constant 3.200000e+01 : f32
    %145 = vector.broadcast %cst_79 : f32 to vector<8x1xf32>
    %146 = arith.divf %144, %145 : vector<8x1xf32>
    %cst_80 = arith.constant 9.99999974E-6 : f32
    %147 = vector.broadcast %cst_80 : f32 to vector<8x1xf32>
    %148 = arith.addf %146, %147 : vector<8x1xf32>
    %149 = math.rsqrt %148 : vector<8x1xf32>
    %150 = vector.broadcast %149 : vector<8x1xf32> to vector<8x32xf32>
    %151 = arith.mulf %141, %150 : vector<8x32xf32>
    %c1_81 = arith.constant 1 : index
    %c0_82 = arith.constant 0 : index
    %c0_83 = arith.constant 0 : index
    %152 = vector.load %arg13[%c1_81, %c0_82, %c0_83] : memref<3x1x32xf32, #tpu.memory_space<vmem>>, vector<1x1x32xf32>
    %153 = vector.shape_cast %152 : vector<1x1x32xf32> to vector<1x32xf32>
    %154 = vector.broadcast %153 : vector<1x32xf32> to vector<8x32xf32>
    %155 = arith.mulf %151, %154 : vector<8x32xf32>
    %c1_84 = arith.constant 1 : index
    %c0_85 = arith.constant 0 : index
    %c0_86 = arith.constant 0 : index
    %156 = vector.load %arg14[%c1_84, %c0_85, %c0_86] : memref<3x1x32xf32, #tpu.memory_space<vmem>>, vector<1x1x32xf32>
    %157 = vector.shape_cast %156 : vector<1x1x32xf32> to vector<1x32xf32>
    %158 = vector.broadcast %157 : vector<1x32xf32> to vector<8x32xf32>
    %159 = arith.addf %155, %158 : vector<8x32xf32>
    %160 = arith.truncf %159 : vector<8x32xf32> to vector<8x32xbf16>
    %c0_87 = arith.constant 0 : index
    %c0_88 = arith.constant 0 : index
    %161 = vector.load %arg15[%c0_87, %c0_88] : memref<32x64xbf16, #tpu.memory_space<vmem>>, vector<32x64xbf16>
    %cst_89 = arith.constant dense<0.000000e+00> : vector<8x64xf32>
    %162 = tpu.matmul %160, %161, %cst_89 {dimension_numbers = #tpu.dot_dimension_numbers<[1], [0], [0], [1], [0, 0, 1, 1], [], []>} : vector<8x32xbf16>, vector<32x64xbf16>, vector<8x64xf32> -> vector<8x64xf32>
    %c0_90 = arith.constant 0 : index
    %c0_91 = arith.constant 0 : index
    %163 = vector.load %arg16[%c0_90, %c0_91] : memref<1x64xf32, #tpu.memory_space<vmem>>, vector<1x64xf32>
    %164 = vector.broadcast %163 : vector<1x64xf32> to vector<8x64xf32>
    %165 = arith.addf %162, %164 : vector<8x64xf32>
    %cst_92 = arith.constant 0.000000e+00 : f32
    %166 = vector.broadcast %cst_92 : f32 to vector<8x64xf32>
    %167 = arith.maximumf %165, %166 : vector<8x64xf32>
    %168 = arith.truncf %167 : vector<8x64xf32> to vector<8x64xbf16>
    %c0_93 = arith.constant 0 : index
    %c0_94 = arith.constant 0 : index
    %169 = vector.load %arg17[%c0_93, %c0_94] : memref<64x32xbf16, #tpu.memory_space<vmem>>, vector<64x32xbf16>
    %cst_95 = arith.constant dense<0.000000e+00> : vector<8x32xf32>
    %170 = tpu.matmul %168, %169, %cst_95 {dimension_numbers = #tpu.dot_dimension_numbers<[1], [0], [0], [1], [0, 0, 1, 1], [], []>} : vector<8x64xbf16>, vector<64x32xbf16>, vector<8x32xf32> -> vector<8x32xf32>
    %c0_96 = arith.constant 0 : index
    %c0_97 = arith.constant 0 : index
    %171 = vector.load %arg18[%c0_96, %c0_97] : memref<1x32xf32, #tpu.memory_space<vmem>>, vector<1x32xf32>
    %172 = vector.broadcast %171 : vector<1x32xf32> to vector<8x32xf32>
    %173 = arith.addf %170, %172 : vector<8x32xf32>
    %174 = arith.addf %159, %173 : vector<8x32xf32>
    %cst_98 = arith.constant dense<0.000000e+00> : vector<8xf32>
    %175 = vector.multi_reduction <add>, %174, %cst_98 [1] : vector<8x32xf32> to vector<8xf32>
    %176 = vector.shape_cast %175 : vector<8xf32> to vector<8x1xf32>
    %cst_99 = arith.constant 3.200000e+01 : f32
    %177 = vector.broadcast %cst_99 : f32 to vector<8x1xf32>
    %178 = arith.divf %176, %177 : vector<8x1xf32>
    %179 = vector.broadcast %178 : vector<8x1xf32> to vector<8x32xf32>
    %180 = arith.subf %174, %179 : vector<8x32xf32>
    %181 = arith.mulf %180, %180 : vector<8x32xf32>
    %cst_100 = arith.constant dense<0.000000e+00> : vector<8xf32>
    %182 = vector.multi_reduction <add>, %181, %cst_100 [1] : vector<8x32xf32> to vector<8xf32>
    %183 = vector.shape_cast %182 : vector<8xf32> to vector<8x1xf32>
    %cst_101 = arith.constant 3.200000e+01 : f32
    %184 = vector.broadcast %cst_101 : f32 to vector<8x1xf32>
    %185 = arith.divf %183, %184 : vector<8x1xf32>
    %cst_102 = arith.constant 9.99999974E-6 : f32
    %186 = vector.broadcast %cst_102 : f32 to vector<8x1xf32>
    %187 = arith.addf %185, %186 : vector<8x1xf32>
    %188 = math.rsqrt %187 : vector<8x1xf32>
    %189 = vector.broadcast %188 : vector<8x1xf32> to vector<8x32xf32>
    %190 = arith.mulf %180, %189 : vector<8x32xf32>
    %c2_103 = arith.constant 2 : index
    %c0_104 = arith.constant 0 : index
    %c0_105 = arith.constant 0 : index
    %191 = vector.load %arg13[%c2_103, %c0_104, %c0_105] : memref<3x1x32xf32, #tpu.memory_space<vmem>>, vector<1x1x32xf32>
    %192 = vector.shape_cast %191 : vector<1x1x32xf32> to vector<1x32xf32>
    %193 = vector.broadcast %192 : vector<1x32xf32> to vector<8x32xf32>
    %194 = arith.mulf %190, %193 : vector<8x32xf32>
    %c2_106 = arith.constant 2 : index
    %c0_107 = arith.constant 0 : index
    %c0_108 = arith.constant 0 : index
    %195 = vector.load %arg14[%c2_106, %c0_107, %c0_108] : memref<3x1x32xf32, #tpu.memory_space<vmem>>, vector<1x1x32xf32>
    %196 = vector.shape_cast %195 : vector<1x1x32xf32> to vector<1x32xf32>
    %197 = vector.broadcast %196 : vector<1x32xf32> to vector<8x32xf32>
    %198 = arith.addf %194, %197 : vector<8x32xf32>
    %199 = vector.shape_cast %198 : vector<8x32xf32> to vector<1x8x32xf32>
    %c0_109 = arith.constant 0 : index
    %c0_110 = arith.constant 0 : index
    %c0_111 = arith.constant 0 : index
    %200 = vector.load %arg19[%c0_109, %c0_110, %c0_111] : memref<1x8x32xf32, #tpu.memory_space<vmem>>, vector<1x8x32xf32>
    tpu.vector_store %arg19[%c0_109, %c0_110, %c0_111], %199 {strides = array<i32>} : memref<1x8x32xf32, #tpu.memory_space<vmem>>, vector<1x8x32xf32>,
    return
  }
  func.func @transform_0(%arg0: i32, %arg1: i32) -> (i32, i32, i32) {
    %c0_i32 = arith.constant 0 : i32
    %c0_i32_0 = arith.constant 0 : i32
    %c0_i32_1 = arith.constant 0 : i32
    return %arg0, %c0_i32, %c0_i32_0 : i32, i32, i32
  }
  func.func @transform_1(%arg0: i32, %arg1: i32) -> (i32, i32, i32) {
    %c0_i32 = arith.constant 0 : i32
    %c0_i32_0 = arith.constant 0 : i32
    %c0_i32_1 = arith.constant 0 : i32
    return %arg0, %c0_i32, %c0_i32_0 : i32, i32, i32
  }
  func.func @transform_2(%arg0: i32, %arg1: i32) -> (i32, i32, i32) {
    %c0_i32 = arith.constant 0 : i32
    %c0_i32_0 = arith.constant 0 : i32
    %c0_i32_1 = arith.constant 0 : i32
    return %arg0, %c0_i32, %c0_i32_0 : i32, i32, i32
  }
  func.func @transform_3(%arg0: i32, %arg1: i32) -> (i32, i32, i32) {
    %c0_i32 = arith.constant 0 : i32
    %c0_i32_0 = arith.constant 0 : i32
    %c0_i32_1 = arith.constant 0 : i32
    %c0_i32_2 = arith.constant 0 : i32
    return %c0_i32, %c0_i32_0, %c0_i32_1 : i32, i32, i32
  }
  func.func @transform_4(%arg0: i32, %arg1: i32) -> (i32, i32, i32) {
    %c0_i32 = arith.constant 0 : i32
    %c0_i32_0 = arith.constant 0 : i32
    %c0_i32_1 = arith.constant 0 : i32
    %c0_i32_2 = arith.constant 0 : i32
    return %c0_i32, %c0_i32_0, %c0_i32_1 : i32, i32, i32
  }
  func.func @transform_5(%arg0: i32, %arg1: i32) -> (i32, i32) {
    %c0_i32 = arith.constant 0 : i32
    %c0_i32_0 = arith.constant 0 : i32
    %c0_i32_1 = arith.constant 0 : i32
    return %c0_i32, %c0_i32_0 : i32, i32
  }
  func.func @transform_6(%arg0: i32, %arg1: i32) -> (i32, i32) {
    %c0_i32 = arith.constant 0 : i32
    %c0_i32_0 = arith.constant 0 : i32
    %c0_i32_1 = arith.constant 0 : i32
    return %c0_i32, %c0_i32_0 : i32, i32
  }
  func.func @transform_7(%arg0: i32, %arg1: i32) -> (i32, i32, i32) {
    %c0_i32 = arith.constant 0 : i32
    %c0_i32_0 = arith.constant 0 : i32
    %c0_i32_1 = arith.constant 0 : i32
    %c0_i32_2 = arith.constant 0 : i32
    return %c0_i32, %c0_i32_0, %c0_i32_1 : i32, i32, i32
  }
  func.func @transform_8(%arg0: i32, %arg1: i32) -> (i32, i32, i32) {
    %c0_i32 = arith.constant 0 : i32
    %c0_i32_0 = arith.constant 0 : i32
    %c0_i32_1 = arith.constant 0 : i32
    %c0_i32_2 = arith.constant 0 : i32
    return %c0_i32, %c0_i32_0, %c0_i32_1 : i32, i32, i32
  }
  func.func @transform_9(%arg0: i32, %arg1: i32) -> (i32, i32) {
    %c0_i32 = arith.constant 0 : i32
    %c0_i32_0 = arith.constant 0 : i32
    %c0_i32_1 = arith.constant 0 : i32
    return %c0_i32, %c0_i32_0 : i32, i32
  }
  func.func @transform_10(%arg0: i32, %arg1: i32) -> (i32, i32) {
    %c0_i32 = arith.constant 0 : i32
    %c0_i32_0 = arith.constant 0 : i32
    %c0_i32_1 = arith.constant 0 : i32
    return %c0_i32, %c0_i32_0 : i32, i32
  }
  func.func @transform_11(%arg0: i32, %arg1: i32) -> (i32, i32, i32) {
    %c0_i32 = arith.constant 0 : i32
    %c0_i32_0 = arith.constant 0 : i32
    %c0_i32_1 = arith.constant 0 : i32
    %c0_i32_2 = arith.constant 0 : i32
    return %c0_i32, %c0_i32_0, %c0_i32_1 : i32, i32, i32
  }
  func.func @transform_12(%arg0: i32, %arg1: i32) -> (i32, i32, i32) {
    %c0_i32 = arith.constant 0 : i32
    %c0_i32_0 = arith.constant 0 : i32
    %c0_i32_1 = arith.constant 0 : i32
    %c0_i32_2 = arith.constant 0 : i32
    return %c0_i32, %c0_i32_0, %c0_i32_1 : i32, i32, i32
  }
  func.func @transform_13(%arg0: i32, %arg1: i32) -> (i32, i32) {
    %c0_i32 = arith.constant 0 : i32
    %c0_i32_0 = arith.constant 0 : i32
    %c0_i32_1 = arith.constant 0 : i32
    return %c0_i32, %c0_i32_0 : i32, i32
  }
  func.func @transform_14(%arg0: i32, %arg1: i32) -> (i32, i32) {
    %c0_i32 = arith.constant 0 : i32
    %c0_i32_0 = arith.constant 0 : i32
    %c0_i32_1 = arith.constant 0 : i32
    return %c0_i32, %c0_i32_0 : i32, i32
  }
  func.func @transform_15(%arg0: i32, %arg1: i32) -> (i32, i32) {
    %c0_i32 = arith.constant 0 : i32
    %c0_i32_0 = arith.constant 0 : i32
    %c0_i32_1 = arith.constant 0 : i32
    return %c0_i32, %c0_i32_0 : i32, i32
  }
  func.func @transform_16(%arg0: i32, %arg1: i32) -> (i32, i32) {
    %c0_i32 = arith.constant 0 : i32
    %c0_i32_0 = arith.constant 0 : i32
    %c0_i32_1 = arith.constant 0 : i32
    return %c0_i32, %c0_i32_0 : i32, i32
  }
  func.func @transform_17(%arg0: i32, %arg1: i32) -> (i32, i32, i32) {
    %c0_i32 = arith.constant 0 : i32
    %c0_i32_0 = arith.constant 0 : i32
    return %arg0, %arg1, %c0_i32 : i32, i32, i32
  }
}

module attributes {stable_mosaic.version = 11 : i64} {
  func.func @_decoder_layer_kernel(%arg0: i32, %arg1: i32, %arg2: memref<1x8x32xf32, #tpu.memory_space<vmem>>, %arg3: memref<1x16x32xf32, #tpu.memory_space<vmem>>, %arg4: memref<1x8x32xf32, #tpu.memory_space<vmem>>, %arg5: memref<3x32x32xbf16, #tpu.memory_space<vmem>>, %arg6: memref<3x1x32xf32, #tpu.memory_space<vmem>>, %arg7: memref<32x32xbf16, #tpu.memory_space<vmem>>, %arg8: memref<1x32xf32, #tpu.memory_space<vmem>>, %arg9: memref<3x32x32xbf16, #tpu.memory_space<vmem>>, %arg10: memref<3x1x32xf32, #tpu.memory_space<vmem>>, %arg11: memref<32x32xbf16, #tpu.memory_space<vmem>>, %arg12: memref<1x32xf32, #tpu.memory_space<vmem>>, %arg13: memref<3x1x32xf32, #tpu.memory_space<vmem>>, %arg14: memref<3x1x32xf32, #tpu.memory_space<vmem>>, %arg15: memref<32x64xbf16, #tpu.memory_space<vmem>>, %arg16: memref<1x64xf32, #tpu.memory_space<vmem>>, %arg17: memref<64x32xbf16, #tpu.memory_space<vmem>>, %arg18: memref<1x32xf32, #tpu.memory_space<vmem>>, %arg19: memref<1x8x32xf32, #tpu.memory_space<vmem>>) attributes {dimension_semantics = [#tpu.dimension_semantics<parallel>, #tpu.dimension_semantics<parallel>], iteration_bounds = array<i64: 2, 1>, scalar_prefetch = 0 : i64, scratch_operands = 0 : i64, tpu.core_type = #tpu.core_type<tc>, window_params = [{transform_indices = @transform_0, window_bounds = array<i64: 1, 8, 32>}, {transform_indices = @transform_1, window_bounds = array<i64: 1, 16, 32>}, {transform_indices = @transform_2, window_bounds = array<i64: 1, 8, 32>}, {pipeline_mode = #tpu.pipeline_mode<synchronous>, transform_indices = @transform_3, window_bounds = array<i64: 3, 32, 32>}, {pipeline_mode = #tpu.pipeline_mode<synchronous>, transform_indices = @transform_4, window_bounds = array<i64: 3, 1, 32>}, {pipeline_mode = #tpu.pipeline_mode<synchronous>, transform_indices = @transform_5, window_bounds = array<i64: 32, 32>}, {pipeline_mode = #tpu.pipeline_mode<synchronous>, transform_indices = @transform_6, window_bounds = array<i64: 1, 32>}, {pipeline_mode = #tpu.pipeline_mode<synchronous>, transform_indices = @transform_7, window_bounds = array<i64: 3, 32, 32>}, {pipeline_mode = #tpu.pipeline_mode<synchronous>, transform_indices = @transform_8, window_bounds = array<i64: 3, 1, 32>}, {pipeline_mode = #tpu.pipeline_mode<synchronous>, transform_indices = @transform_9, window_bounds = array<i64: 32, 32>}, {pipeline_mode = #tpu.pipeline_mode<synchronous>, transform_indices = @transform_10, window_bounds = array<i64: 1, 32>}, {pipeline_mode = #tpu.pipeline_mode<synchronous>, transform_indices = @transform_11, window_bounds = array<i64: 3, 1, 32>}, {pipeline_mode = #tpu.pipeline_mode<synchronous>, transform_indices = @transform_12, window_bounds = array<i64: 3, 1, 32>}, {pipeline_mode = #tpu.pipeline_mode<synchronous>, transform_indices = @transform_13, window_bounds = array<i64: 32, 64>}, {pipeline_mode = #tpu.pipeline_mode<synchronous>, transform_indices = @transform_14, window_bounds = array<i64: 1, 64>}, {pipeline_mode = #tpu.pipeline_mode<synchronous>, transform_indices = @transform_15, window_bounds = array<i64: 64, 32>}, {pipeline_mode = #tpu.pipeline_mode<synchronous>, transform_indices = @transform_16, window_bounds = array<i64: 1, 32>}, {transform_indices = @transform_17, window_bounds = array<i64: 1, 8, 32>}]} {
    %c0 = arith.constant 0 : index
    %c0_0 = arith.constant 0 : index
    %c0_1 = arith.constant 0 : index
    %0 = vector.load %arg2[%c0, %c0_0, %c0_1] : memref<1x8x32xf32, #tpu.memory_space<vmem>>, vector<1x8x32xf32>
    %1 = vector.shape_cast %0 : vector<1x8x32xf32> to vector<8x32xf32>
    %c0_2 = arith.constant 0 : index
    %c0_3 = arith.constant 0 : index
    %c0_4 = arith.constant 0 : index
    %2 = vector.load %arg4[%c0_2, %c0_3, %c0_4] : memref<1x8x32xf32, #tpu.memory_space<vmem>>, vector<1x8x32xf32>
    %3 = vector.shape_cast %2 : vector<1x8x32xf32> to vector<8x32xf32>
    %c0_5 = arith.constant 0 : index
    %c0_6 = arith.constant 0 : index
    %c0_7 = arith.constant 0 : index
    %4 = vector.load %arg3[%c0_5, %c0_6, %c0_7] : memref<1x16x32xf32, #tpu.memory_space<vmem>>, vector<1x16x32xf32>
    %5 = vector.shape_cast %4 : vector<1x16x32xf32> to vector<16x32xf32>
    %6 = arith.addf %1, %3 : vector<8x32xf32>
    %7 = arith.truncf %6 : vector<8x32xf32> to vector<8x32xbf16>
    %8 = arith.truncf %1 : vector<8x32xf32> to vector<8x32xbf16>
    %c0_8 = arith.constant 0 : index
    %c0_9 = arith.constant 0 : index
    %c0_10 = arith.constant 0 : index
    %9 = vector.load %arg5[%c0_8, %c0_9, %c0_10] : memref<3x32x32xbf16, #tpu.memory_space<vmem>>, vector<1x32x32xbf16>
    %10 = vector.shape_cast %9 : vector<1x32x32xbf16> to vector<32x32xbf16>
    %cst = arith.constant dense<0.000000e+00> : vector<8x32xf32>
    %11 = tpu.matmul %7, %10, %cst {dimension_numbers = #tpu.dot_dimension_numbers<[1], [0], [0], [1], [0, 0, 1, 1], [], []>} : vector<8x32xbf16>, vector<32x32xbf16>, vector<8x32xf32> -> vector<8x32xf32>
    %c0_11 = arith.constant 0 : index
    %c0_12 = arith.constant 0 : index
    %c0_13 = arith.constant 0 : index
    %12 = vector.load %arg6[%c0_11, %c0_12, %c0_13] : memref<3x1x32xf32, #tpu.memory_space<vmem>>, vector<1x1x32xf32>
    %13 = vector.shape_cast %12 : vector<1x1x32xf32> to vector<1x32xf32>
    %14 = vector.broadcast %13 : vector<1x32xf32> to vector<8x32xf32>
    %15 = arith.addf %11, %14 : vector<8x32xf32>
    %c1 = arith.constant 1 : index
    %c0_14 = arith.constant 0 : index
    %c0_15 = arith.constant 0 : index
    %16 = vector.load %arg5[%c1, %c0_14, %c0_15] : memref<3x32x32xbf16, #tpu.memory_space<vmem>>, vector<1x32x32xbf16>
    %17 = vector.shape_cast %16 : vector<1x32x32xbf16> to vector<32x32xbf16>
    %cst_16 = arith.constant dense<0.000000e+00> : vector<8x32xf32>
    %18 = tpu.matmul %7, %17, %cst_16 {dimension_numbers = #tpu.dot_dimension_numbers<[1], [0], [0], [1], [0, 0, 1, 1], [], []>} : vector<8x32xbf16>, vector<32x32xbf16>, vector<8x32xf32> -> vector<8x32xf32>
    %c1_17 = arith.constant 1 : index
    %c0_18 = arith.constant 0 : index
    %c0_19 = arith.constant 0 : index
    %19 = vector.load %arg6[%c1_17, %c0_18, %c0_19] : memref<3x1x32xf32, #tpu.memory_space<vmem>>, vector<1x1x32xf32>
    %20 = vector.shape_cast %19 : vector<1x1x32xf32> to vector<1x32xf32>
    %21 = vector.broadcast %20 : vector<1x32xf32> to vector<8x32xf32>
    %22 = arith.addf %18, %21 : vector<8x32xf32>
    %c2 = arith.constant 2 : index
    %c0_20 = arith.constant 0 : index
    %c0_21 = arith.constant 0 : index
    %23 = vector.load %arg5[%c2, %c0_20, %c0_21] : memref<3x32x32xbf16, #tpu.memory_space<vmem>>, vector<1x32x32xbf16>
    %24 = vector.shape_cast %23 : vector<1x32x32xbf16> to vector<32x32xbf16>
    %cst_22 = arith.constant dense<0.000000e+00> : vector<8x32xf32>
    %25 = tpu.matmul %8, %24, %cst_22 {dimension_numbers = #tpu.dot_dimension_numbers<[1], [0], [0], [1], [0, 0, 1, 1], [], []>} : vector<8x32xbf16>, vector<32x32xbf16>, vector<8x32xf32> -> vector<8x32xf32>
    %c2_23 = arith.constant 2 : index
    %c0_24 = arith.constant 0 : index
    %c0_25 = arith.constant 0 : index
    %26 = vector.load %arg6[%c2_23, %c0_24, %c0_25] : memref<3x1x32xf32, #tpu.memory_space<vmem>>, vector<1x1x32xf32>
    %27 = vector.shape_cast %26 : vector<1x1x32xf32> to vector<1x32xf32>
    %28 = vector.broadcast %27 : vector<1x32xf32> to vector<8x32xf32>
    %29 = arith.addf %25, %28 : vector<8x32xf32>
    %30 = vector.shape_cast %15 : vector<8x32xf32> to vector<8x4x8xf32>
    %31 = arith.truncf %30 : vector<8x4x8xf32> to vector<8x4x8xbf16>
    %32 = vector.shape_cast %22 : vector<8x32xf32> to vector<8x4x8xf32>
    %33 = arith.truncf %32 : vector<8x4x8xf32> to vector<8x4x8xbf16>
    %34 = vector.shape_cast %29 : vector<8x32xf32> to vector<8x4x8xf32>
    %35 = arith.truncf %34 : vector<8x4x8xf32> to vector<8x4x8xbf16>
    "tpu.trace_start"() <{level = 10 : i32, message = "qhd,khd->hqk"}> : () -> ()
    %cst_26 = arith.constant dense<0.000000e+00> : vector<4x8x8xf32>
    %36 = tpu.matmul %31, %33, %cst_26 {dimension_numbers = #tpu.dot_dimension_numbers<[2], [2], [0], [0], [0, 1, 0, 0, 1, 0], [1], [1]>} : vector<8x4x8xbf16>, vector<8x4x8xbf16>, vector<4x8x8xf32> -> vector<4x8x8xf32>
    "tpu.trace_stop"() : () -> ()
    %cst_27 = arith.constant dense<0xFF800000> : vector<4x8xf32>
    %37 = vector.multi_reduction <maximumf>, %36, %cst_27 [2] : vector<4x8x8xf32> to vector<4x8xf32>
    %38 = vector.shape_cast %37 : vector<4x8xf32> to vector<4x8x1xf32>
    %39 = vector.broadcast %38 : vector<4x8x1xf32> to vector<4x8x8xf32>
    %40 = arith.subf %36, %39 : vector<4x8x8xf32>
    %41 = math.exp %40 : vector<4x8x8xf32>
    %cst_28 = arith.constant dense<0.000000e+00> : vector<4x8xf32>
    %42 = vector.multi_reduction <add>, %41, %cst_28 [2] : vector<4x8x8xf32> to vector<4x8xf32>
    %43 = tpu.reciprocal %42 {approx = true} : vector<4x8xf32> -> vector<4x8xf32>
    %44 = arith.truncf %41 : vector<4x8x8xf32> to vector<4x8x8xbf16>
    "tpu.trace_start"() <{level = 10 : i32, message = "hqk,khd->qhd"}> : () -> ()
    %cst_29 = arith.constant dense<0.000000e+00> : vector<4x8x8xf32>
    %45 = tpu.matmul %35, %44, %cst_29 {dimension_numbers = #tpu.dot_dimension_numbers<[0], [2], [2], [1], [0, 1, 0, 2, 1, 1], [1], [0]>} : vector<8x4x8xbf16>, vector<4x8x8xbf16>, vector<4x8x8xf32> -> vector<4x8x8xf32>
    %46 = tpu.transpose %45, [2, 0, 1] : vector<4x8x8xf32> -> vector<8x4x8xf32>
    "tpu.trace_stop"() : () -> ()
    %47 = tpu.transpose %43, [1, 0] : vector<4x8xf32> -> vector<8x4xf32>
    %48 = vector.shape_cast %47 : vector<8x4xf32> to vector<8x4x1xf32>
    %49 = vector.broadcast %48 : vector<8x4x1xf32> to vector<8x4x8xf32>
    %50 = arith.mulf %46, %49 : vector<8x4x8xf32>
    %51 = vector.shape_cast %50 : vector<8x4x8xf32> to vector<8x32xf32>
    %52 = arith.truncf %51 : vector<8x32xf32> to vector<8x32xbf16>
    %c0_30 = arith.constant 0 : index
    %c0_31 = arith.constant 0 : index
    %53 = vector.load %arg7[%c0_30, %c0_31] : memref<32x32xbf16, #tpu.memory_space<vmem>>, vector<32x32xbf16>
    %cst_32 = arith.constant dense<0.000000e+00> : vector<8x32xf32>
    %54 = tpu.matmul %52, %53, %cst_32 {dimension_numbers = #tpu.dot_dimension_numbers<[1], [0], [0], [1], [0, 0, 1, 1], [], []>} : vector<8x32xbf16>, vector<32x32xbf16>, vector<8x32xf32> -> vector<8x32xf32>
    %c0_33 = arith.constant 0 : index
    %c0_34 = arith.constant 0 : index
    %55 = vector.load %arg8[%c0_33, %c0_34] : memref<1x32xf32, #tpu.memory_space<vmem>>, vector<1x32xf32>
    %56 = vector.broadcast %55 : vector<1x32xf32> to vector<8x32xf32>
    %57 = arith.addf %54, %56 : vector<8x32xf32>
    %58 = arith.addf %1, %57 : vector<8x32xf32>
    %cst_35 = arith.constant dense<0.000000e+00> : vector<8xf32>
    %59 = vector.multi_reduction <add>, %58, %cst_35 [1] : vector<8x32xf32> to vector<8xf32>
    %60 = vector.shape_cast %59 : vector<8xf32> to vector<8x1xf32>
    %cst_36 = arith.constant 3.200000e+01 : f32
    %61 = vector.broadcast %cst_36 : f32 to vector<8x1xf32>
    %62 = arith.divf %60, %61 : vector<8x1xf32>
    %63 = vector.broadcast %62 : vector<8x1xf32> to vector<8x32xf32>
    %64 = arith.subf %58, %63 : vector<8x32xf32>
    %65 = arith.mulf %64, %64 : vector<8x32xf32>
    %cst_37 = arith.constant dense<0.000000e+00> : vector<8xf32>
    %66 = vector.multi_reduction <add>, %65, %cst_37 [1] : vector<8x32xf32> to vector<8xf32>
    %67 = vector.shape_cast %66 : vector<8xf32> to vector<8x1xf32>
    %cst_38 = arith.constant 3.200000e+01 : f32
    %68 = vector.broadcast %cst_38 : f32 to vector<8x1xf32>
    %69 = arith.divf %67, %68 : vector<8x1xf32>
    %cst_39 = arith.constant 9.99999974E-6 : f32
    %70 = vector.broadcast %cst_39 : f32 to vector<8x1xf32>
    %71 = arith.addf %69, %70 : vector<8x1xf32>
    %72 = math.rsqrt %71 : vector<8x1xf32>
    %73 = vector.broadcast %72 : vector<8x1xf32> to vector<8x32xf32>
    %74 = arith.mulf %64, %73 : vector<8x32xf32>
    %c0_40 = arith.constant 0 : index
    %c0_41 = arith.constant 0 : index
    %c0_42 = arith.constant 0 : index
    %75 = vector.load %arg13[%c0_40, %c0_41, %c0_42] : memref<3x1x32xf32, #tpu.memory_space<vmem>>, vector<1x1x32xf32>
    %76 = vector.shape_cast %75 : vector<1x1x32xf32> to vector<1x32xf32>
    %77 = vector.broadcast %76 : vector<1x32xf32> to vector<8x32xf32>
    %78 = arith.mulf %74, %77 : vector<8x32xf32>
    %c0_43 = arith.constant 0 : index
    %c0_44 = arith.constant 0 : index
    %c0_45 = arith.constant 0 : index
    %79 = vector.load %arg14[%c0_43, %c0_44, %c0_45] : memref<3x1x32xf32, #tpu.memory_space<vmem>>, vector<1x1x32xf32>
    %80 = vector.shape_cast %79 : vector<1x1x32xf32> to vector<1x32xf32>
    %81 = vector.broadcast %80 : vector<1x32xf32> to vector<8x32xf32>
    %82 = arith.addf %78, %81 : vector<8x32xf32>
    %83 = arith.addf %82, %3 : vector<8x32xf32>
    %84 = arith.truncf %83 : vector<8x32xf32> to vector<8x32xbf16>
    %85 = arith.truncf %5 : vector<16x32xf32> to vector<16x32xbf16>
    %c0_46 = arith.constant 0 : index
    %c0_47 = arith.constant 0 : index
    %c0_48 = arith.constant 0 : index
    %86 = vector.load %arg9[%c0_46, %c0_47, %c0_48] : memref<3x32x32xbf16, #tpu.memory_space<vmem>>, vector<1x32x32xbf16>
    %87 = vector.shape_cast %86 : vector<1x32x32xbf16> to vector<32x32xbf16>
    %cst_49 = arith.constant dense<0.000000e+00> : vector<8x32xf32>
    %88 = tpu.matmul %84, %87, %cst_49 {dimension_numbers = #tpu.dot_dimension_numbers<[1], [0], [0], [1], [0, 0, 1, 1], [], []>} : vector<8x32xbf16>, vector<32x32xbf16>, vector<8x32xf32> -> vector<8x32xf32>
    %c0_50 = arith.constant 0 : index
    %c0_51 = arith.constant 0 : index
    %c0_52 = arith.constant 0 : index
    %89 = vector.load %arg10[%c0_50, %c0_51, %c0_52] : memref<3x1x32xf32, #tpu.memory_space<vmem>>, vector<1x1x32xf32>
    %90 = vector.shape_cast %89 : vector<1x1x32xf32> to vector<1x32xf32>
    %91 = vector.broadcast %90 : vector<1x32xf32> to vector<8x32xf32>
    %92 = arith.addf %88, %91 : vector<8x32xf32>
    %c1_53 = arith.constant 1 : index
    %c0_54 = arith.constant 0 : index
    %c0_55 = arith.constant 0 : index
    %93 = vector.load %arg9[%c1_53, %c0_54, %c0_55] : memref<3x32x32xbf16, #tpu.memory_space<vmem>>, vector<1x32x32xbf16>
    %94 = vector.shape_cast %93 : vector<1x32x32xbf16> to vector<32x32xbf16>
    %cst_56 = arith.constant dense<0.000000e+00> : vector<16x32xf32>
    %95 = tpu.matmul %85, %94, %cst_56 {dimension_numbers = #tpu.dot_dimension_numbers<[1], [0], [0], [1], [0, 0, 1, 1], [], []>} : vector<16x32xbf16>, vector<32x32xbf16>, vector<16x32xf32> -> vector<16x32xf32>
    %c1_57 = arith.constant 1 : index
    %c0_58 = arith.constant 0 : index
    %c0_59 = arith.constant 0 : index
    %96 = vector.load %arg10[%c1_57, %c0_58, %c0_59] : memref<3x1x32xf32, #tpu.memory_space<vmem>>, vector<1x1x32xf32>
    %97 = vector.shape_cast %96 : vector<1x1x32xf32> to vector<1x32xf32>
    %98 = vector.broadcast %97 : vector<1x32xf32> to vector<16x32xf32>
    %99 = arith.addf %95, %98 : vector<16x32xf32>
    %c2_60 = arith.constant 2 : index
    %c0_61 = arith.constant 0 : index
    %c0_62 = arith.constant 0 : index
    %100 = vector.load %arg9[%c2_60, %c0_61, %c0_62] : memref<3x32x32xbf16, #tpu.memory_space<vmem>>, vector<1x32x32xbf16>
    %101 = vector.shape_cast %100 : vector<1x32x32xbf16> to vector<32x32xbf16>
    %cst_63 = arith.constant dense<0.000000e+00> : vector<16x32xf32>
    %102 = tpu.matmul %85, %101, %cst_63 {dimension_numbers = #tpu.dot_dimension_numbers<[1], [0], [0], [1], [0, 0, 1, 1], [], []>} : vector<16x32xbf16>, vector<32x32xbf16>, vector<16x32xf32> -> vector<16x32xf32>
    %c2_64 = arith.constant 2 : index
    %c0_65 = arith.constant 0 : index
    %c0_66 = arith.constant 0 : index
    %103 = vector.load %arg10[%c2_64, %c0_65, %c0_66] : memref<3x1x32xf32, #tpu.memory_space<vmem>>, vector<1x1x32xf32>
    %104 = vector.shape_cast %103 : vector<1x1x32xf32> to vector<1x32xf32>
    %105 = vector.broadcast %104 : vector<1x32xf32> to vector<16x32xf32>
    %106 = arith.addf %102, %105 : vector<16x32xf32>
    %107 = vector.shape_cast %92 : vector<8x32xf32> to vector<8x4x8xf32>
    %108 = arith.truncf %107 : vector<8x4x8xf32> to vector<8x4x8xbf16>
    %109 = vector.shape_cast %99 : vector<16x32xf32> to vector<16x4x8xf32>
    %110 = arith.truncf %109 : vector<16x4x8xf32> to vector<16x4x8xbf16>
    %111 = vector.shape_cast %106 : vector<16x32xf32> to vector<16x4x8xf32>
    %112 = arith.truncf %111 : vector<16x4x8xf32> to vector<16x4x8xbf16>
    "tpu.trace_start"() <{level = 10 : i32, message = "qhd,khd->hqk"}> : () -> ()
    %cst_67 = arith.constant dense<0.000000e+00> : vector<4x8x16xf32>
    %113 = tpu.matmul %108, %110, %cst_67 {dimension_numbers = #tpu.dot_dimension_numbers<[2], [2], [0], [0], [0, 1, 0, 0, 1, 0], [1], [1]>} : vector<8x4x8xbf16>, vector<16x4x8xbf16>, vector<4x8x16xf32> -> vector<4x8x16xf32>
    "tpu.trace_stop"() : () -> ()
    %cst_68 = arith.constant dense<0xFF800000> : vector<4x8xf32>
    %114 = vector.multi_reduction <maximumf>, %113, %cst_68 [2] : vector<4x8x16xf32> to vector<4x8xf32>
    %115 = vector.shape_cast %114 : vector<4x8xf32> to vector<4x8x1xf32>
    %116 = vector.broadcast %115 : vector<4x8x1xf32> to vector<4x8x16xf32>
    %117 = arith.subf %113, %116 : vector<4x8x16xf32>
    %118 = math.exp %117 : vector<4x8x16xf32>
    %cst_69 = arith.constant dense<0.000000e+00> : vector<4x8xf32>
    %119 = vector.multi_reduction <add>, %118, %cst_69 [2] : vector<4x8x16xf32> to vector<4x8xf32>
    %120 = tpu.reciprocal %119 {approx = true} : vector<4x8xf32> -> vector<4x8xf32>
    %121 = arith.truncf %118 : vector<4x8x16xf32> to vector<4x8x16xbf16>
    "tpu.trace_start"() <{level = 10 : i32, message = "hqk,khd->qhd"}> : () -> ()
    %cst_70 = arith.constant dense<0.000000e+00> : vector<4x8x8xf32>
    %122 = tpu.matmul %112, %121, %cst_70 {dimension_numbers = #tpu.dot_dimension_numbers<[0], [2], [2], [1], [0, 1, 0, 2, 1, 1], [1], [0]>} : vector<16x4x8xbf16>, vector<4x8x16xbf16>, vector<4x8x8xf32> -> vector<4x8x8xf32>
    %123 = tpu.transpose %122, [2, 0, 1] : vector<4x8x8xf32> -> vector<8x4x8xf32>
    "tpu.trace_stop"() : () -> ()
    %124 = tpu.transpose %120, [1, 0] : vector<4x8xf32> -> vector<8x4xf32>
    %125 = vector.shape_cast %124 : vector<8x4xf32> to vector<8x4x1xf32>
    %126 = vector.broadcast %125 : vector<8x4x1xf32> to vector<8x4x8xf32>
    %127 = arith.mulf %123, %126 : vector<8x4x8xf32>
    %128 = vector.shape_cast %127 : vector<8x4x8xf32> to vector<8x32xf32>
    %129 = arith.truncf %128 : vector<8x32xf32> to vector<8x32xbf16>
    %c0_71 = arith.constant 0 : index
    %c0_72 = arith.constant 0 : index
    %130 = vector.load %arg11[%c0_71, %c0_72] : memref<32x32xbf16, #tpu.memory_space<vmem>>, vector<32x32xbf16>
    %cst_73 = arith.constant dense<0.000000e+00> : vector<8x32xf32>
    %131 = tpu.matmul %129, %130, %cst_73 {dimension_numbers = #tpu.dot_dimension_numbers<[1], [0], [0], [1], [0, 0, 1, 1], [], []>} : vector<8x32xbf16>, vector<32x32xbf16>, vector<8x32xf32> -> vector<8x32xf32>
    %c0_74 = arith.constant 0 : index
    %c0_75 = arith.constant 0 : index
    %132 = vector.load %arg12[%c0_74, %c0_75] : memref<1x32xf32, #tpu.memory_space<vmem>>, vector<1x32xf32>
    %133 = vector.broadcast %132 : vector<1x32xf32> to vector<8x32xf32>
    %134 = arith.addf %131, %133 : vector<8x32xf32>
    %135 = arith.addf %82, %134 : vector<8x32xf32>
    %cst_76 = arith.constant dense<0.000000e+00> : vector<8xf32>
    %136 = vector.multi_reduction <add>, %135, %cst_76 [1] : vector<8x32xf32> to vector<8xf32>
    %137 = vector.shape_cast %136 : vector<8xf32> to vector<8x1xf32>
    %cst_77 = arith.constant 3.200000e+01 : f32
    %138 = vector.broadcast %cst_77 : f32 to vector<8x1xf32>
    %139 = arith.divf %137, %138 : vector<8x1xf32>
    %140 = vector.broadcast %139 : vector<8x1xf32> to vector<8x32xf32>
    %141 = arith.subf %135, %140 : vector<8x32xf32>
    %142 = arith.mulf %141, %141 : vector<8x32xf32>
    %cst_78 = arith.constant dense<0.000000e+00> : vector<8xf32>
    %143 = vector.multi_reduction <add>, %142, %cst_78 [1] : vector<8x32xf32> to vector<8xf32>
    %144 = vector.shape_cast %143 : vector<8xf32> to vector<8x1xf32>
    %cst_79 = arith.constant 3.200000e+01 : f32
    %145 = vector.broadcast %cst_79 : f32 to vector<8x1xf32>
    %146 = arith.divf %144, %145 : vector<8x1xf32>
    %cst_80 = arith.constant 9.99999974E-6 : f32
    %147 = vector.broadcast %cst_80 : f32 to vector<8x1xf32>
    %148 = arith.addf %146, %147 : vector<8x1xf32>
    %149 = math.rsqrt %148 : vector<8x1xf32>
    %150 = vector.broadcast %149 : vector<8x1xf32> to vector<8x32xf32>
    %151 = arith.mulf %141, %150 : vector<8x32xf32>
    %c1_81 = arith.constant 1 : index
    %c0_82 = arith.constant 0 : index
    %c0_83 = arith.constant 0 : index
    %152 = vector.load %arg13[%c1_81, %c0_82, %c0_83] : memref<3x1x32xf32, #tpu.memory_space<vmem>>, vector<1x1x32xf32>
    %153 = vector.shape_cast %152 : vector<1x1x32xf32> to vector<1x32xf32>
    %154 = vector.broadcast %153 : vector<1x32xf32> to vector<8x32xf32>
    %155 = arith.mulf %151, %154 : vector<8x32xf32>
    %c1_84 = arith.constant 1 : index
    %c0_85 = arith.constant 0 : index
    %c0_86 = arith.constant 0 : index
    %156 = vector.load %arg14[%c1_84, %c0_85, %c0_86] : memref<3x1x32xf32, #tpu.memory_space<vmem>>, vector<1x1x32xf32>
    %157 = vector.shape_cast %156 : vector<1x1x32xf32> to vector<1x32xf32>
    %158 = vector.broadcast %157 : vector<1x32xf32> to vector<8x32xf32>
    %159 = arith.addf %155, %158 : vector<8x32xf32>
    %160 = arith.truncf %159 : vector<8x32xf32> to vector<8x32xbf16>
    %c0_87 = arith.constant 0 : index
    %c0_88 = arith.constant 0 : index
    %161 = vector.load %arg15[%c0_87, %c0_88] : memref<32x64xbf16, #tpu.memory_space<vmem>>, vector<32x64xbf16>
    %cst_89 = arith.constant dense<0.000000e+00> : vector<8x64xf32>
    %162 = tpu.matmul %160, %161, %cst_89 {dimension_numbers = #tpu.dot_dimension_numbers<[1], [0], [0], [1], [0, 0, 1, 1], [], []>} : vector<8x32xbf16>, vector<32x64xbf16>, vector<8x64xf32> -> vector<8x64xf32>
    %c0_90 = arith.constant 0 : index
    %c0_91 = arith.constant 0 : index
    %163 = vector.load %arg16[%c0_90, %c0_91] : memref<1x64xf32, #tpu.memory_space<vmem>>, vector<1x64xf32>
    %164 = vector.broadcast %163 : vector<1x64xf32> to vector<8x64xf32>
    %165 = arith.addf %162, %164 : vector<8x64xf32>
    %cst_92 = arith.constant 0.000000e+00 : f32
    %166 = vector.broadcast %cst_92 : f32 to vector<8x64xf32>
    %167 = arith.maximumf %165, %166 : vector<8x64xf32>
    %168 = arith.truncf %167 : vector<8x64xf32> to vector<8x64xbf16>
    %c0_93 = arith.constant 0 : index
    %c0_94 = arith.constant 0 : index
    %169 = vector.load %arg17[%c0_93, %c0_94] : memref<64x32xbf16, #tpu.memory_space<vmem>>, vector<64x32xbf16>
    %cst_95 = arith.constant dense<0.000000e+00> : vector<8x32xf32>
    %170 = tpu.matmul %168, %169, %cst_95 {dimension_numbers = #tpu.dot_dimension_numbers<[1], [0], [0], [1], [0, 0, 1, 1], [], []>} : vector<8x64xbf16>, vector<64x32xbf16>, vector<8x32xf32> -> vector<8x32xf32>
    %c0_96 = arith.constant 0 : index
    %c0_97 = arith.constant 0 : index
    %171 = vector.load %arg18[%c0_96, %c0_97] : memref<1x32xf32, #tpu.memory_space<vmem>>, vector<1x32xf32>
    %172 = vector.broadcast %171 : vector<1x32xf32> to vector<8x32xf32>
    %173 = arith.addf %170, %172 : vector<8x32xf32>
    %174 = arith.addf %159, %173 : vector<8x32xf32>
    %cst_98 = arith.constant dense<0.000000e+00> : vector<8xf32>
    %175 = vector.multi_reduction <add>, %174, %cst_98 [1] : vector<8x32xf32> to vector<8xf32>
    %176 = vector.shape_cast %175 : vector<8xf32> to vector<8x1xf32>
    %cst_99 = arith.constant 3.200000e+01 : f32
    %177 = vector.broadcast %cst_99 : f32 to vector<8x1xf32>
    %178 = arith.divf %176, %177 : vector<8x1xf32>
    %179 = vector.broadcast %178 : vector<8x1xf32> to vector<8x32xf32>
    %180 = arith.subf %174, %179 : vector<8x32xf32>
    %181 = arith.mulf %180, %180 : vector<8x32xf32>
    %cst_100 = arith.constant dense<0.000000e+00> : vector<8xf32>
    %182 = vector.multi_reduction <add>, %181, %cst_100 [1] : vector<8x32xf32> to vector<8xf32>
    %183 = vector.shape_cast %182 : vector<8xf32> to vector<8x1xf32>
    %cst_101 = arith.constant 3.200000e+01 : f32
    %184 = vector.broadcast %cst_101 : f32 to vector<8x1xf32>
    %185 = arith.divf %183, %184 : vector<8x1xf32>
    %cst_102 = arith.constant 9.99999974E-6 : f32
    %186 = vector.broadcast %cst_102 : f32 to vector<8x1xf32>
    %187 = arith.addf %185, %186 : vector<8x1xf32>
    %188 = math.rsqrt %187 : vector<8x1xf32>
    %189 = vector.broadcast %188 : vector<8x1xf32> to vector<8x32xf32>
    %190 = arith.mulf %180, %189 : vector<8x32xf32>
    %c2_103 = arith.constant 2 : index
    %c0_104 = arith.constant 0 : index
    %c0_105 = arith.constant 0 : index
    %191 = vector.load %arg13[%c2_103, %c0_104, %c0_105] : memref<3x1x32xf32, #tpu.memory_space<vmem>>, vector<1x1x32xf32>
    %192 = vector.shape_cast %191 : vector<1x1x32xf32> to vector<1x32xf32>
    %193 = vector.broadcast %192 : vector<1x32xf32> to vector<8x32xf32>
    %194 = arith.mulf %190, %193 : vector<8x32xf32>
    %c2_106 = arith.constant 2 : index
    %c0_107 = arith.constant 0 : index
    %c0_108 = arith.constant 0 : index
    %195 = vector.load %arg14[%c2_106, %c0_107, %c0_108] : memref<3x1x32xf32, #tpu.memory_space<vmem>>, vector<1x1x32xf32>
    %196 = vector.shape_cast %195 : vector<1x1x32xf32> to vector<1x32xf32>
    %197 = vector.broadcast %196 : vector<1x32xf32> to vector<8x32xf32>
    %198 = arith.addf %194, %197 : vector<8x32xf32>
    %199 = vector.shape_cast %198 : vector<8x32xf32> to vector<1x8x32xf32>
    %c0_109 = arith.constant 0 : index
    %c0_110 = arith.constant 0 : index
    %c0_111 = arith.constant 0 : index
    %200 = vector.load %arg19[%c0_109, %c0_110, %c0_111] : memref<1x8x32xf32, #tpu.memory_space<vmem>>, vector<1x8x32xf32>
    tpu.vector_store %arg19[%c0_109, %c0_110, %c0_111], %199 {strides = array<i32>} : memref<1x8x32xf32, #tpu.memory_space<vmem>>, vector<1x8x32xf32>,
    return
  }
  func.func @transform_0(%arg0: i32, %arg1: i32) -> (i32, i32, i32) {
    %c0_i32 = arith.constant 0 : i32
    %c0_i32_0 = arith.constant 0 : i32
    %c0_i32_1 = arith.constant 0 : i32
    return %arg0, %c0_i32, %c0_i32_0 : i32, i32, i32
  }
  func.func @transform_1(%arg0: i32, %arg1: i32) -> (i32, i32, i32) {
    %c0_i32 = arith.constant 0 : i32
    %c0_i32_0 = arith.constant 0 : i32
    %c0_i32_1 = arith.constant 0 : i32
    return %arg0, %c0_i32, %c0_i32_0 : i32, i32, i32
  }
  func.func @transform_2(%arg0: i32, %arg1: i32) -> (i32, i32, i32) {
    %c0_i32 = arith.constant 0 : i32
    %c0_i32_0 = arith.constant 0 : i32
    %c0_i32_1 = arith.constant 0 : i32
    return %arg0, %c0_i32, %c0_i32_0 : i32, i32, i32
  }
  func.func @transform_3(%arg0: i32, %arg1: i32) -> (i32, i32, i32) {
    %c0_i32 = arith.constant 0 : i32
    %c0_i32_0 = arith.constant 0 : i32
    %c0_i32_1 = arith.constant 0 : i32
    %c0_i32_2 = arith.constant 0 : i32
    return %c0_i32, %c0_i32_0, %c0_i32_1 : i32, i32, i32
  }
  func.func @transform_4(%arg0: i32, %arg1: i32) -> (i32, i32, i32) {
    %c0_i32 = arith.constant 0 : i32
    %c0_i32_0 = arith.constant 0 : i32
    %c0_i32_1 = arith.constant 0 : i32
    %c0_i32_2 = arith.constant 0 : i32
    return %c0_i32, %c0_i32_0, %c0_i32_1 : i32, i32, i32
  }
  func.func @transform_5(%arg0: i32, %arg1: i32) -> (i32, i32) {
    %c0_i32 = arith.constant 0 : i32
    %c0_i32_0 = arith.constant 0 : i32
    %c0_i32_1 = arith.constant 0 : i32
    return %c0_i32, %c0_i32_0 : i32, i32
  }
  func.func @transform_6(%arg0: i32, %arg1: i32) -> (i32, i32) {
    %c0_i32 = arith.constant 0 : i32
    %c0_i32_0 = arith.constant 0 : i32
    %c0_i32_1 = arith.constant 0 : i32
    return %c0_i32, %c0_i32_0 : i32, i32
  }
  func.func @transform_7(%arg0: i32, %arg1: i32) -> (i32, i32, i32) {
    %c0_i32 = arith.constant 0 : i32
    %c0_i32_0 = arith.constant 0 : i32
    %c0_i32_1 = arith.constant 0 : i32
    %c0_i32_2 = arith.constant 0 : i32
    return %c0_i32, %c0_i32_0, %c0_i32_1 : i32, i32, i32
  }
  func.func @transform_8(%arg0: i32, %arg1: i32) -> (i32, i32, i32) {
    %c0_i32 = arith.constant 0 : i32
    %c0_i32_0 = arith.constant 0 : i32
    %c0_i32_1 = arith.constant 0 : i32
    %c0_i32_2 = arith.constant 0 : i32
    return %c0_i32, %c0_i32_0, %c0_i32_1 : i32, i32, i32
  }
  func.func @transform_9(%arg0: i32, %arg1: i32) -> (i32, i32) {
    %c0_i32 = arith.constant 0 : i32
    %c0_i32_0 = arith.constant 0 : i32
    %c0_i32_1 = arith.constant 0 : i32
    return %c0_i32, %c0_i32_0 : i32, i32
  }
  func.func @transform_10(%arg0: i32, %arg1: i32) -> (i32, i32) {
    %c0_i32 = arith.constant 0 : i32
    %c0_i32_0 = arith.constant 0 : i32
    %c0_i32_1 = arith.constant 0 : i32
    return %c0_i32, %c0_i32_0 : i32, i32
  }
  func.func @transform_11(%arg0: i32, %arg1: i32) -> (i32, i32, i32) {
    %c0_i32 = arith.constant 0 : i32
    %c0_i32_0 = arith.constant 0 : i32
    %c0_i32_1 = arith.constant 0 : i32
    %c0_i32_2 = arith.constant 0 : i32
    return %c0_i32, %c0_i32_0, %c0_i32_1 : i32, i32, i32
  }
  func.func @transform_12(%arg0: i32, %arg1: i32) -> (i32, i32, i32) {
    %c0_i32 = arith.constant 0 : i32
    %c0_i32_0 = arith.constant 0 : i32
    %c0_i32_1 = arith.constant 0 : i32
    %c0_i32_2 = arith.constant 0 : i32
    return %c0_i32, %c0_i32_0, %c0_i32_1 : i32, i32, i32
  }
  func.func @transform_13(%arg0: i32, %arg1: i32) -> (i32, i32) {
    %c0_i32 = arith.constant 0 : i32
    %c0_i32_0 = arith.constant 0 : i32
    %c0_i32_1 = arith.constant 0 : i32
    return %c0_i32, %c0_i32_0 : i32, i32
  }
  func.func @transform_14(%arg0: i32, %arg1: i32) -> (i32, i32) {
    %c0_i32 = arith.constant 0 : i32
    %c0_i32_0 = arith.constant 0 : i32
    %c0_i32_1 = arith.constant 0 : i32
    return %c0_i32, %c0_i32_0 : i32, i32
  }
  func.func @transform_15(%arg0: i32, %arg1: i32) -> (i32, i32) {
    %c0_i32 = arith.constant 0 : i32
    %c0_i32_0 = arith.constant 0 : i32
    %c0_i32_1 = arith.constant 0 : i32
    return %c0_i32, %c0_i32_0 : i32, i32
  }
  func.func @transform_16(%arg0: i32, %arg1: i32) -> (i32, i32) {
    %c0_i32 = arith.constant 0 : i32
    %c0_i32_0 = arith.constant 0 : i32
    %c0_i32_1 = arith.constant 0 : i32
    return %c0_i32, %c0_i32_0 : i32, i32
  }
  func.func @transform_17(%arg0: i32, %arg1: i32) -> (i32, i32, i32) {
    %c0_i32 = arith.constant 0 : i32
    %c0_i32_0 = arith.constant 0 : i32
    return %arg0, %arg1, %c0_i32 : i32, i32, i32
  }
}

</mosaic_0001>

<llo_original>
// kernel: tpu_custom_call.1
$region0: #{tpu_custom_call.1}
  #allocation0 [shape = 'u32[]', space=smem, size = 0x4, offset = 0x4, fixed_abs, tag = 'smem constant byte address 0x4 - core index']
  #allocation1 [shape = 'u32[72,128]{1,0:T(1,128)}', space=vmem, size = 0x9000, scoped, tag = 'internal scratch']
  %s0 = inlined_call_operand.hbm [shape: f32[2,8,32], index: 0, kind: input, shape index: {}]
  %s1 = inlined_call_operand.hbm [shape: f32[2,16,32], index: 1, kind: input, shape index: {}]
  %s2 = inlined_call_operand.hbm [shape: f32[2,8,32], index: 2, kind: input, shape index: {}]
  %s3 = inlined_call_operand.vmem [shape: bf16[3,32,32], index: 3, kind: input, shape index: {}]
  %s4 = inlined_call_operand.vmem [shape: f32[3,1,32], index: 4, kind: input, shape index: {}]
  %s5 = inlined_call_operand.hbm [shape: bf16[32,32], index: 5, kind: input, shape index: {}]
  %s6 = inlined_call_operand.hbm [shape: f32[1,32], index: 6, kind: input, shape index: {}]
  %s7 = inlined_call_operand.hbm [shape: bf16[3,32,32], index: 7, kind: input, shape index: {}]
  %s8 = inlined_call_operand.vmem [shape: f32[3,1,32], index: 8, kind: input, shape index: {}]
  %s9 = inlined_call_operand.hbm [shape: bf16[32,32], index: 9, kind: input, shape index: {}]
  %s10 = inlined_call_operand.hbm [shape: f32[1,32], index: 10, kind: input, shape index: {}]
  %s11 = inlined_call_operand.vmem [shape: f32[3,1,32], index: 11, kind: input, shape index: {}]
  %s12 = inlined_call_operand.hbm [shape: f32[3,1,32], index: 12, kind: input, shape index: {}]
  %s13 = inlined_call_operand.hbm [shape: bf16[32,64], index: 13, kind: input, shape index: {}]
  %s14 = inlined_call_operand.vmem [shape: f32[1,64], index: 14, kind: input, shape index: {}]
  %s15 = inlined_call_operand.vmem [shape: bf16[64,32], index: 15, kind: input, shape index: {}]
  %s16 = inlined_call_operand.vmem [shape: f32[1,32], index: 16, kind: input, shape index: {}]
  %s17 = inlined_call_operand.hbm [shape: f32[2,8,32], index: 17, kind: output, shape index: {}]
  %s18 = sld [smem:[#allocation0]]
  $region141: #{tpu_custom_call.1} parent=0
    _
  %s20 = ssub.s32 1, %s18
  %s21 = scalar_select 0, %s20, %s18
  $region1: #{tpu_custom_call.1} parent=0
    #allocation2 [shape = 'u8[8192]{0}', space=vmem, size = 0x2000, scoped, tag = 'input window, operand 0']
    #allocation3 [shape = 's32[2]{0}', space=sflag, size = 0x8, scoped, tag = 'scoped memory for tpu_custom_call.1']
    #allocation4 [shape = 's32[2]{0}', space=sflag, size = 0x8, scoped, tag = 'scoped memory for tpu_custom_call.1']
    #allocation5 [shape = 'u8[16384]{0}', space=vmem, size = 0x4000, scoped, tag = 'input window, operand 1']
    #allocation6 [shape = 's32[2]{0}', space=sflag, size = 0x8, scoped, tag = 'scoped memory for tpu_custom_call.1']
    #allocation7 [shape = 'u8[8192]{0}', space=vmem, size = 0x2000, scoped, tag = 'input window, operand 2']
    #allocation8 [shape = 'u8[8192]{0}', space=vmem, size = 0x2000, scoped, tag = 'input window, operand 5, single buffered']
    #allocation9 [shape = 's32[1]{0}', space=sflag, size = 0x4, scoped, tag = 'scoped memory for tpu_custom_call.1']
    #allocation10 [shape = 'u8[512]{0}', space=vmem, size = 0x400, scoped, tag = 'input window, operand 6, single buffered']
    #allocation11 [shape = 'u8[24576]{0}', space=vmem, size = 0x6000, scoped, tag = 'input window, operand 7, single buffered']
    #allocation12 [shape = 's32[1]{0}', space=sflag, size = 0x4, scoped, tag = 'scoped memory for tpu_custom_call.1']
    #allocation13 [shape = 'u8[8192]{0}', space=vmem, size = 0x2000, scoped, tag = 'input window, operand 9, single buffered']
    #allocation14 [shape = 'u8[512]{0}', space=vmem, size = 0x400, scoped, tag = 'input window, operand 10, single buffered']
    #allocation15 [shape = 's32[1]{0}', space=sflag, size = 0x4, scoped, tag = 'scoped memory for tpu_custom_call.1']
    #allocation16 [shape = 'u8[1536]{0}', space=vmem, size = 0x800, scoped, tag = 'input window, operand 12, single buffered']
    #allocation17 [shape = 'u8[8192]{0}', space=vmem, size = 0x2000, scoped, tag = 'input window, operand 13, single buffered']
    #allocation18 [shape = 's32[1]{0}', space=sflag, size = 0x4, scoped, tag = 'scoped memory for tpu_custom_call.1']
    #allocation19 [shape = 'u8[8192]{0}', space=vmem, size = 0x2000, scoped, tag = 'output window, operand 0']
    %22 = vsyncpa [#allocation3], 0
    %s23 = scalar_lea.sflag [#allocation3], 1
    %24 = vsyncpa %s23, 0
    %25 = vsyncpa [#allocation6], 0
    %s26 = scalar_lea.sflag [#allocation6], 1
    %27 = vsyncpa %s26, 0
    %28 = vsyncpa [#allocation9], 0
    %29 = vsyncpa [#allocation12], 0
    %30 = vsyncpa [#allocation15], 0
    %31 = vsyncpa [#allocation18], 0
    %32 = vsyncpa [#allocation4], 0
    %s33 = scalar_lea.sflag [#allocation4], 1
    %34 = vsyncpa %s33, 0
    loop: start=0, step=1, limit=4
    $region2: #{tpu_custom_call.1} parent=1 // loop_pre_header
      _
    $region3: #{tpu_custom_call.1} parent=1 // loop_header
      %s36 = sphi 0, %s40
      %p37 = scmp.ge.s32.totalorder %s36, 4
      %s43 = sphi 0, %s55
      %s44 = sphi 0, %s51
      %s45 = sphi 0, %s43
      %s46 = sphi 0, %s44
      %s47 = sphi 0, %s45
      %s48 = sphi 0, %s46
      %s58 = sphi 0, %s60
      %s61 = sphi 0, %s58
      %s62 = sphi 0, %s61
      %s78 = sphi 0, %s62
      %s84 = sphi 0, %s86
      %s87 = sphi 0, %s84
      %s88 = sphi 0, %s87
      %s104 = sphi 0, %s88
      %s110 = sphi 0, %s112
      %s113 = sphi 0, %s110
      %s114 = sphi 0, %s113
      %s130 = sphi 0, %s114
      %s134 = sphi 0, %s134
      %s136 = sphi 0, %s134
      %s137 = sphi 0, %s136
      %s151 = sphi 0, %s137
      %s155 = sphi 0, %s155
      %s157 = sphi 0, %s155
      %s158 = sphi 0, %s157
      %s172 = sphi 0, %s158
      %s176 = sphi 0, %s176
      %s178 = sphi 0, %s176
      %s179 = sphi 0, %s178
      %s193 = sphi 0, %s179
      %s197 = sphi 0, %s197
      %s199 = sphi 0, %s197
      %s200 = sphi 0, %s199
      %s214 = sphi 0, %s200
      %s218 = sphi 0, %s218
      %s220 = sphi 0, %s218
      %s221 = sphi 0, %s220
      %s235 = sphi 0, %s221
      %s239 = sphi 0, %s239
      %s241 = sphi 0, %s239
      %s242 = sphi 0, %s241
      %s256 = sphi 0, %s242
      %s260 = sphi 0, %s260
      %s262 = sphi 0, %s260
      %s263 = sphi 0, %s262
      %s277 = sphi 0, %s263
      %s281 = sphi 0, %s281
      %s283 = sphi 0, %s281
      %s284 = sphi 0, %s283
      %s298 = sphi 0, %s284
      %s302 = sphi 0, %s302
      %s304 = sphi 0, %s302
      %s305 = sphi 0, %s304
      %s319 = sphi 0, %s305
      %s323 = sphi 0, %s323
      %s325 = sphi 0, %s323
      %s326 = sphi 0, %s325
      %s340 = sphi 0, %s326
      %s344 = sphi 0, %s344
      %s346 = sphi 0, %s344
      %s347 = sphi 0, %s346
      %s361 = sphi 0, %s347
      %s365 = sphi 0, %s365
      %s367 = sphi 0, %s365
      %s368 = sphi 0, %s367
      %s382 = sphi 0, %s368
      %s386 = sphi 0, %s386
      %s388 = sphi 0, %s386
      %s389 = sphi 0, %s388
      %s403 = sphi 0, %s389
      %s407 = sphi 0, %s407
      %s409 = sphi 0, %s407
      %s410 = sphi 0, %s409
      %s424 = sphi 0, %s410
      %s432 = sphi 0, %s434
      %s435 = sphi 0, %s432
      %s436 = sphi 0, %s435
      %s452 = sphi 0, %s436
    $region4: #{tpu_custom_call.1} parent=1 // loop_header_branch
      %39 = sbr.rel (%p37) target = $region8
    $region5: #{tpu_custom_call.1} parent=1 // loop_body
      %s41 = ssub.s32 %s36, 1
      %s42 = ssub.s32 %s36, 2
      %s49 = sadd.s32 1, %s44
      %p50 = scmp.ge.s32.totalorder %s49, 1
      %s51 = scalar_select %p50, 0, %s49
      %s52 = sadd.s32 1, %s43
      %s53 = scalar_select %p50, %s52, %s43
      %p54 = scmp.ge.s32.totalorder %s53, 2
      %s55 = scalar_select %p54, 0, %s53
      %s56 = ssub.s32 %s43, %s55
      %p57 = scmp.eq.s32.totalorder %s56, 0
      %s59 = sadd.s32 %s58, 1
      %s60 = scalar_select %p57, %s58, %s59
      %p63 = pneg %p57
      %p64 = scmp.eq.s32.totalorder %s36, 1
      %p65 = por %p63, %p64
      %p66 = scmp.ne.s32.totalorder %s58, %s61
      %p67 = scmp.eq.s32.totalorder %s36, 0
      %p68 = por %p66, %p67
      %p69 = scmp.ne.s32.totalorder %s58, %s61
      %p70 = scmp.eq.s32.totalorder %s41, 1
      %p71 = por %p69, %p70
      %p72 = scmp.ne.s32.totalorder %s61, %s62
      %p73 = scmp.eq.s32.totalorder %s41, 0
      %p74 = por %p72, %p73
      %p75 = scmp.ne.s32.totalorder %s61, %s62
      %p76 = scmp.eq.s32.totalorder %s42, 1
      %p77 = por %p75, %p76
      %p79 = scmp.ne.s32.totalorder %s62, %s78
      %p80 = scmp.eq.s32.totalorder %s42, 0
      %p81 = por %p79, %p80
      %s82 = ssub.s32 %s43, %s55
      %p83 = scmp.eq.s32.totalorder %s82, 0
      %s85 = sadd.s32 %s84, 1
      %s86 = scalar_select %p83, %s84, %s85
      %p89 = pneg %p83
      %p90 = scmp.eq.s32.totalorder %s36, 1
      %p91 = por %p89, %p90
      %p92 = scmp.ne.s32.totalorder %s84, %s87
      %p93 = scmp.eq.s32.totalorder %s36, 0
      %p94 = por %p92, %p93
      %p95 = scmp.ne.s32.totalorder %s84, %s87
      %p96 = scmp.eq.s32.totalorder %s41, 1
      %p97 = por %p95, %p96
      %p98 = scmp.ne.s32.totalorder %s87, %s88
      %p99 = scmp.eq.s32.totalorder %s41, 0
      %p100 = por %p98, %p99
      %p101 = scmp.ne.s32.totalorder %s87, %s88
      %p102 = scmp.eq.s32.totalorder %s42, 1
      %p103 = por %p101, %p102
      %p105 = scmp.ne.s32.totalorder %s88, %s104
      %p106 = scmp.eq.s32.totalorder %s42, 0
      %p107 = por %p105, %p106
      %s108 = ssub.s32 %s43, %s55
      %p109 = scmp.eq.s32.totalorder %s108, 0
      %s111 = sadd.s32 %s110, 1
      %s112 = scalar_select %p109, %s110, %s111
      %p115 = pneg %p109
      %p116 = scmp.eq.s32.totalorder %s36, 1
      %p117 = por %p115, %p116
      %p118 = scmp.ne.s32.totalorder %s110, %s113
      %p119 = scmp.eq.s32.totalorder %s36, 0
      %p120 = por %p118, %p119
      %p121 = scmp.ne.s32.totalorder %s110, %s113
      %p122 = scmp.eq.s32.totalorder %s41, 1
      %p123 = por %p121, %p122
      %p124 = scmp.ne.s32.totalorder %s113, %s114
      %p125 = scmp.eq.s32.totalorder %s41, 0
      %p126 = por %p124, %p125
      %p127 = scmp.ne.s32.totalorder %s113, %s114
      %p128 = scmp.eq.s32.totalorder %s42, 1
      %p129 = por %p127, %p128
      %p131 = scmp.ne.s32.totalorder %s114, %s130
      %p132 = scmp.eq.s32.totalorder %s42, 0
      %p133 = por %p131, %p132
      %s135 = sadd.s32 %s134, 1
      %p138 = scmp.eq.s32.totalorder %s36, 1
      %p139 = scmp.ne.s32.totalorder %s134, %s136
      %p140 = scmp.eq.s32.totalorder %s36, 0
      %p141 = por %p139, %p140
      %p142 = scmp.ne.s32.totalorder %s134, %s136
      %p143 = scmp.eq.s32.totalorder %s41, 1
      %p144 = por %p142, %p143
      %p145 = scmp.ne.s32.totalorder %s136, %s137
      %p146 = scmp.eq.s32.totalorder %s41, 0
      %p147 = por %p145, %p146
      %p148 = scmp.ne.s32.totalorder %s136, %s137
      %p149 = scmp.eq.s32.totalorder %s42, 1
      %p150 = por %p148, %p149
      %p152 = scmp.ne.s32.totalorder %s137, %s151
      %p153 = scmp.eq.s32.totalorder %s42, 0
      %p154 = por %p152, %p153
      %s156 = sadd.s32 %s155, 1
      %p159 = scmp.eq.s32.totalorder %s36, 1
      %p160 = scmp.ne.s32.totalorder %s155, %s157
      %p161 = scmp.eq.s32.totalorder %s36, 0
      %p162 = por %p160, %p161
      %p163 = scmp.ne.s32.totalorder %s155, %s157
      %p164 = scmp.eq.s32.totalorder %s41, 1
      %p165 = por %p163, %p164
      %p166 = scmp.ne.s32.totalorder %s157, %s158
      %p167 = scmp.eq.s32.totalorder %s41, 0
      %p168 = por %p166, %p167
      %p169 = scmp.ne.s32.totalorder %s157, %s158
      %p170 = scmp.eq.s32.totalorder %s42, 1
      %p171 = por %p169, %p170
      %p173 = scmp.ne.s32.totalorder %s158, %s172
      %p174 = scmp.eq.s32.totalorder %s42, 0
      %p175 = por %p173, %p174
      %s177 = sadd.s32 %s176, 1
      %p180 = scmp.eq.s32.totalorder %s36, 1
      %p181 = scmp.ne.s32.totalorder %s176, %s178
      %p182 = scmp.eq.s32.totalorder %s36, 0
      %p183 = por %p181, %p182
      %p184 = scmp.ne.s32.totalorder %s176, %s178
      %p185 = scmp.eq.s32.totalorder %s41, 1
      %p186 = por %p184, %p185
      %p187 = scmp.ne.s32.totalorder %s178, %s179
      %p188 = scmp.eq.s32.totalorder %s41, 0
      %p189 = por %p187, %p188
      %p190 = scmp.ne.s32.totalorder %s178, %s179
      %p191 = scmp.eq.s32.totalorder %s42, 1
      %p192 = por %p190, %p191
      %p194 = scmp.ne.s32.totalorder %s179, %s193
      %p195 = scmp.eq.s32.totalorder %s42, 0
      %p196 = por %p194, %p195
      %s198 = sadd.s32 %s197, 1
      %p201 = scmp.eq.s32.totalorder %s36, 1
      %p202 = scmp.ne.s32.totalorder %s197, %s199
      %p203 = scmp.eq.s32.totalorder %s36, 0
      %p204 = por %p202, %p203
      %p205 = scmp.ne.s32.totalorder %s197, %s199
      %p206 = scmp.eq.s32.totalorder %s41, 1
      %p207 = por %p205, %p206
      %p208 = scmp.ne.s32.totalorder %s199, %s200
      %p209 = scmp.eq.s32.totalorder %s41, 0
      %p210 = por %p208, %p209
      %p211 = scmp.ne.s32.totalorder %s199, %s200
      %p212 = scmp.eq.s32.totalorder %s42, 1
      %p213 = por %p211, %p212
      %p215 = scmp.ne.s32.totalorder %s200, %s214
      %p216 = scmp.eq.s32.totalorder %s42, 0
      %p217 = por %p215, %p216
      %s219 = sadd.s32 %s218, 1
      %p222 = scmp.eq.s32.totalorder %s36, 1
      %p223 = scmp.ne.s32.totalorder %s218, %s220
      %p224 = scmp.eq.s32.totalorder %s36, 0
      %p225 = por %p223, %p224
      %p226 = scmp.ne.s32.totalorder %s218, %s220
      %p227 = scmp.eq.s32.totalorder %s41, 1
      %p228 = por %p226, %p227
      %p229 = scmp.ne.s32.totalorder %s220, %s221
      %p230 = scmp.eq.s32.totalorder %s41, 0
      %p231 = por %p229, %p230
      %p232 = scmp.ne.s32.totalorder %s220, %s221
      %p233 = scmp.eq.s32.totalorder %s42, 1
      %p234 = por %p232, %p233
      %p236 = scmp.ne.s32.totalorder %s221, %s235
      %p237 = scmp.eq.s32.totalorder %s42, 0
      %p238 = por %p236, %p237
      %s240 = sadd.s32 %s239, 1
      %p243 = scmp.eq.s32.totalorder %s36, 1
      %p244 = scmp.ne.s32.totalorder %s239, %s241
      %p245 = scmp.eq.s32.totalorder %s36, 0
      %p246 = por %p244, %p245
      %p247 = scmp.ne.s32.totalorder %s239, %s241
      %p248 = scmp.eq.s32.totalorder %s41, 1
      %p249 = por %p247, %p248
      %p250 = scmp.ne.s32.totalorder %s241, %s242
      %p251 = scmp.eq.s32.totalorder %s41, 0
      %p252 = por %p250, %p251
      %p253 = scmp.ne.s32.totalorder %s241, %s242
      %p254 = scmp.eq.s32.totalorder %s42, 1
      %p255 = por %p253, %p254
      %p257 = scmp.ne.s32.totalorder %s242, %s256
      %p258 = scmp.eq.s32.totalorder %s42, 0
      %p259 = por %p257, %p258
      %s261 = sadd.s32 %s260, 1
      %p264 = scmp.eq.s32.totalorder %s36, 1
      %p265 = scmp.ne.s32.totalorder %s260, %s262
      %p266 = scmp.eq.s32.totalorder %s36, 0
      %p267 = por %p265, %p266
      %p268 = scmp.ne.s32.totalorder %s260, %s262
      %p269 = scmp.eq.s32.totalorder %s41, 1
      %p270 = por %p268, %p269
      %p271 = scmp.ne.s32.totalorder %s262, %s263
      %p272 = scmp.eq.s32.totalorder %s41, 0
      %p273 = por %p271, %p272
      %p274 = scmp.ne.s32.totalorder %s262, %s263
      %p275 = scmp.eq.s32.totalorder %s42, 1
      %p276 = por %p274, %p275
      %p278 = scmp.ne.s32.totalorder %s263, %s277
      %p279 = scmp.eq.s32.totalorder %s42, 0
      %p280 = por %p278, %p279
      %s282 = sadd.s32 %s281, 1
      %p285 = scmp.eq.s32.totalorder %s36, 1
      %p286 = scmp.ne.s32.totalorder %s281, %s283
      %p287 = scmp.eq.s32.totalorder %s36, 0
      %p288 = por %p286, %p287
      %p289 = scmp.ne.s32.totalorder %s281, %s283
      %p290 = scmp.eq.s32.totalorder %s41, 1
      %p291 = por %p289, %p290
      %p292 = scmp.ne.s32.totalorder %s283, %s284
      %p293 = scmp.eq.s32.totalorder %s41, 0
      %p294 = por %p292, %p293
      %p295 = scmp.ne.s32.totalorder %s283, %s284
      %p296 = scmp.eq.s32.totalorder %s42, 1
      %p297 = por %p295, %p296
      %p299 = scmp.ne.s32.totalorder %s284, %s298
      %p300 = scmp.eq.s32.totalorder %s42, 0
      %p301 = por %p299, %p300
      %s303 = sadd.s32 %s302, 1
      %p306 = scmp.eq.s32.totalorder %s36, 1
      %p307 = scmp.ne.s32.totalorder %s302, %s304
      %p308 = scmp.eq.s32.totalorder %s36, 0
      %p309 = por %p307, %p308
      %p310 = scmp.ne.s32.totalorder %s302, %s304
      %p311 = scmp.eq.s32.totalorder %s41, 1
      %p312 = por %p310, %p311
      %p313 = scmp.ne.s32.totalorder %s304, %s305
      %p314 = scmp.eq.s32.totalorder %s41, 0
      %p315 = por %p313, %p314
      %p316 = scmp.ne.s32.totalorder %s304, %s305
      %p317 = scmp.eq.s32.totalorder %s42, 1
      %p318 = por %p316, %p317
      %p320 = scmp.ne.s32.totalorder %s305, %s319
      %p321 = scmp.eq.s32.totalorder %s42, 0
      %p322 = por %p320, %p321
      %s324 = sadd.s32 %s323, 1
      %p327 = scmp.eq.s32.totalorder %s36, 1
      %p328 = scmp.ne.s32.totalorder %s323, %s325
      %p329 = scmp.eq.s32.totalorder %s36, 0
      %p330 = por %p328, %p329
      %p331 = scmp.ne.s32.totalorder %s323, %s325
      %p332 = scmp.eq.s32.totalorder %s41, 1
      %p333 = por %p331, %p332
      %p334 = scmp.ne.s32.totalorder %s325, %s326
      %p335 = scmp.eq.s32.totalorder %s41, 0
      %p336 = por %p334, %p335
      %p337 = scmp.ne.s32.totalorder %s325, %s326
      %p338 = scmp.eq.s32.totalorder %s42, 1
      %p339 = por %p337, %p338
      %p341 = scmp.ne.s32.totalorder %s326, %s340
      %p342 = scmp.eq.s32.totalorder %s42, 0
      %p343 = por %p341, %p342
      %s345 = sadd.s32 %s344, 1
      %p348 = scmp.eq.s32.totalorder %s36, 1
      %p349 = scmp.ne.s32.totalorder %s344, %s346
      %p350 = scmp.eq.s32.totalorder %s36, 0
      %p351 = por %p349, %p350
      %p352 = scmp.ne.s32.totalorder %s344, %s346
      %p353 = scmp.eq.s32.totalorder %s41, 1
      %p354 = por %p352, %p353
      %p355 = scmp.ne.s32.totalorder %s346, %s347
      %p356 = scmp.eq.s32.totalorder %s41, 0
      %p357 = por %p355, %p356
      %p358 = scmp.ne.s32.totalorder %s346, %s347
      %p359 = scmp.eq.s32.totalorder %s42, 1
      %p360 = por %p358, %p359
      %p362 = scmp.ne.s32.totalorder %s347, %s361
      %p363 = scmp.eq.s32.totalorder %s42, 0
      %p364 = por %p362, %p363
      %s366 = sadd.s32 %s365, 1
      %p369 = scmp.eq.s32.totalorder %s36, 1
      %p370 = scmp.ne.s32.totalorder %s365, %s367
      %p371 = scmp.eq.s32.totalorder %s36, 0
      %p372 = por %p370, %p371
      %p373 = scmp.ne.s32.totalorder %s365, %s367
      %p374 = scmp.eq.s32.totalorder %s41, 1
      %p375 = por %p373, %p374
      %p376 = scmp.ne.s32.totalorder %s367, %s368
      %p377 = scmp.eq.s32.totalorder %s41, 0
      %p378 = por %p376, %p377
      %p379 = scmp.ne.s32.totalorder %s367, %s368
      %p380 = scmp.eq.s32.totalorder %s42, 1
      %p381 = por %p379, %p380
      %p383 = scmp.ne.s32.totalorder %s368, %s382
      %p384 = scmp.eq.s32.totalorder %s42, 0
      %p385 = por %p383, %p384
      %s387 = sadd.s32 %s386, 1
      %p390 = scmp.eq.s32.totalorder %s36, 1
      %p391 = scmp.ne.s32.totalorder %s386, %s388
      %p392 = scmp.eq.s32.totalorder %s36, 0
      %p393 = por %p391, %p392
      %p394 = scmp.ne.s32.totalorder %s386, %s388
      %p395 = scmp.eq.s32.totalorder %s41, 1
      %p396 = por %p394, %p395
      %p397 = scmp.ne.s32.totalorder %s388, %s389
      %p398 = scmp.eq.s32.totalorder %s41, 0
      %p399 = por %p397, %p398
      %p400 = scmp.ne.s32.totalorder %s388, %s389
      %p401 = scmp.eq.s32.totalorder %s42, 1
      %p402 = por %p400, %p401
      %p404 = scmp.ne.s32.totalorder %s389, %s403
      %p405 = scmp.eq.s32.totalorder %s42, 0
      %p406 = por %p404, %p405
      %s408 = sadd.s32 %s407, 1
      %p411 = scmp.eq.s32.totalorder %s36, 1
      %p412 = scmp.ne.s32.totalorder %s407, %s409
      %p413 = scmp.eq.s32.totalorder %s36, 0
      %p414 = por %p412, %p413
      %p415 = scmp.ne.s32.totalorder %s407, %s409
      %p416 = scmp.eq.s32.totalorder %s41, 1
      %p417 = por %p415, %p416
      %p418 = scmp.ne.s32.totalorder %s409, %s410
      %p419 = scmp.eq.s32.totalorder %s41, 0
      %p420 = por %p418, %p419
      %p421 = scmp.ne.s32.totalorder %s409, %s410
      %p422 = scmp.eq.s32.totalorder %s42, 1
      %p423 = por %p421, %p422
      %p425 = scmp.ne.s32.totalorder %s410, %s424
      %p426 = scmp.eq.s32.totalorder %s42, 0
      %p427 = por %p425, %p426
      %s428 = ssub.s32 %s43, %s55
      %s429 = ssub.s32 %s44, %s51
      %s430 = sor.u32 %s428, %s429
      %p431 = scmp.eq.s32.totalorder %s430, 0
      %s433 = sadd.s32 %s432, 1
      %s434 = scalar_select %p431, %s432, %s433
      %p437 = pneg %p431
      %p438 = scmp.eq.s32.totalorder %s36, 1
      %p439 = por %p437, %p438
      %p440 = scmp.ne.s32.totalorder %s432, %s435
      %p441 = scmp.eq.s32.totalorder %s36, 0
      %p442 = por %p440, %p441
      %p443 = scmp.ne.s32.totalorder %s432, %s435
      %p444 = scmp.eq.s32.totalorder %s41, 1
      %p445 = por %p443, %p444
      %p446 = scmp.ne.s32.totalorder %s435, %s436
      %p447 = scmp.eq.s32.totalorder %s41, 0
      %p448 = por %p446, %p447
      %p449 = scmp.ne.s32.totalorder %s435, %s436
      %p450 = scmp.eq.s32.totalorder %s42, 1
      %p451 = por %p449, %p450
      %p453 = scmp.ne.s32.totalorder %s436, %s452
      %p454 = scmp.eq.s32.totalorder %s42, 0
      %p455 = por %p453, %p454
      %p456 = scmp.le.s32.totalorder 1, %s36
      %p457 = scmp.lt.s32.totalorder %s36, 3
      %p458 = pnand %p456, %p457
      %p459 = pneg %p458
      // Predicated region
      $region9: #{tpu_custom_call.1} parent=5 // pred_check
        _
      $region10: #{tpu_custom_call.1} parent=5 // pred_check_branch
        %461 = sbr.rel (%p458) target = $region12
      $region11: #{tpu_custom_call.1} parent=5 // pred_region
        %s462 = ssub.s32 %s36, 1
        // Predicated region
        $region13: #{tpu_custom_call.1} parent=11 // pred_check
          %p463 = pneg %p147
        $region14: #{tpu_custom_call.1} parent=11 // pred_check_branch
          %465 = sbr.rel (%p463) target = $region16
        $region15: #{tpu_custom_call.1} parent=11 // pred_region
          _
        $region16: #{tpu_custom_call.1} parent=11 // pred_fallthru
          _
        // Predicated region
        $region17: #{tpu_custom_call.1} parent=11 // pred_check
          %p466 = pneg %p168
        $region18: #{tpu_custom_call.1} parent=11 // pred_check_branch
          %468 = sbr.rel (%p466) target = $region20
        $region19: #{tpu_custom_call.1} parent=11 // pred_region
          _
        $region20: #{tpu_custom_call.1} parent=11 // pred_fallthru
          _
        // Predicated region
        $region21: #{tpu_custom_call.1} parent=11 // pred_check
          %p469 = pneg %p189
        $region22: #{tpu_custom_call.1} parent=11 // pred_check_branch
          %471 = sbr.rel (%p469) target = $region24
        $region23: #{tpu_custom_call.1} parent=11 // pred_region
          %473 = vsyncadd [#allocation9], 0
          %s474 = sshll.u32 %s5, 4
          %s475 = int_to_ptr.hbm [resolvable:$true] %s474
          %s476 = sshll.u32 [#allocation8], 4
          %s477 = int_to_ptr.vmem [resolvable:$true] %s476
          %482 = dma.hbm_to_vmem [thread:$0]  %s475, 256, %s477, [#allocation9], 64, 64, 4
        $region24: #{tpu_custom_call.1} parent=11 // pred_fallthru
          _
        // Predicated region
        $region25: #{tpu_custom_call.1} parent=11 // pred_check
          %p483 = pneg %p210
        $region26: #{tpu_custom_call.1} parent=11 // pred_check_branch
          %485 = sbr.rel (%p483) target = $region28
        $region27: #{tpu_custom_call.1} parent=11 // pred_region
          %487 = vsyncadd [#allocation9], 0
          %s489 = sshll.u32 %s6, 4
          %s490 = int_to_ptr.hbm [resolvable:$true] %s489
          %s491 = sshll.u32 [#allocation10], 4
          %s492 = int_to_ptr.vmem [resolvable:$true] %s491
          %494 = dma.hbm_to_vmem [thread:$0]  %s490, 16, %s492, [#allocation9]
        $region28: #{tpu_custom_call.1} parent=11 // pred_fallthru
          _
        // Predicated region
        $region29: #{tpu_custom_call.1} parent=11 // pred_check
          %p495 = pneg %p231
        $region30: #{tpu_custom_call.1} parent=11 // pred_check_branch
          %497 = sbr.rel (%p495) target = $region32
        $region31: #{tpu_custom_call.1} parent=11 // pred_region
          %499 = vsyncadd [#allocation12], 0
          %s500 = sshll.u32 %s7, 4
          %s501 = int_to_ptr.hbm [resolvable:$true] %s500
          %s502 = sshll.u32 [#allocation11], 4
          %s503 = int_to_ptr.vmem [resolvable:$true] %s502
          %508 = dma.hbm_to_vmem [thread:$0]  %s501, 768, %s503, [#allocation12], 64, 64, 4
        $region32: #{tpu_custom_call.1} parent=11 // pred_fallthru
          _
        // Predicated region
        $region33: #{tpu_custom_call.1} parent=11 // pred_check
          %p509 = pneg %p252
        $region34: #{tpu_custom_call.1} parent=11 // pred_check_branch
          %511 = sbr.rel (%p509) target = $region36
        $region35: #{tpu_custom_call.1} parent=11 // pred_region
          _
        $region36: #{tpu_custom_call.1} parent=11 // pred_fallthru
          _
        // Predicated region
        $region37: #{tpu_custom_call.1} parent=11 // pred_check
          %p512 = pneg %p273
        $region38: #{tpu_custom_call.1} parent=11 // pred_check_branch
          %514 = sbr.rel (%p512) target = $region40
        $region39: #{tpu_custom_call.1} parent=11 // pred_region
          %516 = vsyncadd [#allocation12], 0
          %s517 = sshll.u32 %s9, 4
          %s518 = int_to_ptr.hbm [resolvable:$true] %s517
          %s519 = sshll.u32 [#allocation13], 4
          %s520 = int_to_ptr.vmem [resolvable:$true] %s519
          %525 = dma.hbm_to_vmem [thread:$0]  %s518, 256, %s520, [#allocation12], 64, 64, 4
        $region40: #{tpu_custom_call.1} parent=11 // pred_fallthru
          _
        // Predicated region
        $region41: #{tpu_custom_call.1} parent=11 // pred_check
          %p526 = pneg %p294
        $region42: #{tpu_custom_call.1} parent=11 // pred_check_branch
          %528 = sbr.rel (%p526) target = $region44
        $region43: #{tpu_custom_call.1} parent=11 // pred_region
          %530 = vsyncadd [#allocation15], 0
          %s532 = sshll.u32 %s10, 4
          %s533 = int_to_ptr.hbm [resolvable:$true] %s532
          %s534 = sshll.u32 [#allocation14], 4
          %s535 = int_to_ptr.vmem [resolvable:$true] %s534
          %537 = dma.hbm_to_vmem [thread:$0]  %s533, 16, %s535, [#allocation15]
        $region44: #{tpu_custom_call.1} parent=11 // pred_fallthru
          _
        // Predicated region
        $region45: #{tpu_custom_call.1} parent=11 // pred_check
          %p538 = pneg %p315
        $region46: #{tpu_custom_call.1} parent=11 // pred_check_branch
          %540 = sbr.rel (%p538) target = $region48
        $region47: #{tpu_custom_call.1} parent=11 // pred_region
          _
        $region48: #{tpu_custom_call.1} parent=11 // pred_fallthru
          _
        // Predicated region
        $region49: #{tpu_custom_call.1} parent=11 // pred_check
          %p541 = pneg %p336
        $region50: #{tpu_custom_call.1} parent=11 // pred_check_branch
          %543 = sbr.rel (%p541) target = $region52
        $region51: #{tpu_custom_call.1} parent=11 // pred_region
          %545 = vsyncadd [#allocation15], 0
          %s546 = sshll.u32 %s12, 4
          %s547 = int_to_ptr.hbm [resolvable:$true] %s546
          %s548 = sshll.u32 [#allocation16], 4
          %s549 = int_to_ptr.vmem [resolvable:$true] %s548
          %554 = dma.hbm_to_vmem [thread:$0]  %s547, 48, %s549, [#allocation15], 16, 16, 1
        $region52: #{tpu_custom_call.1} parent=11 // pred_fallthru
          _
        // Predicated region
        $region53: #{tpu_custom_call.1} parent=11 // pred_check
          %p555 = pneg %p357
        $region54: #{tpu_custom_call.1} parent=11 // pred_check_branch
          %557 = sbr.rel (%p555) target = $region56
        $region55: #{tpu_custom_call.1} parent=11 // pred_region
          %559 = vsyncadd [#allocation18], 0
          %s560 = sshll.u32 %s13, 4
          %s561 = int_to_ptr.hbm [resolvable:$true] %s560
          %s562 = sshll.u32 [#allocation17], 4
          %s563 = int_to_ptr.vmem [resolvable:$true] %s562
          %568 = dma.hbm_to_vmem [thread:$0]  %s561, 256, %s563, [#allocation18], 64, 64, 4
        $region56: #{tpu_custom_call.1} parent=11 // pred_fallthru
          _
        // Predicated region
        $region57: #{tpu_custom_call.1} parent=11 // pred_check
          %p569 = pneg %p378
        $region58: #{tpu_custom_call.1} parent=11 // pred_check_branch
          %571 = sbr.rel (%p569) target = $region60
        $region59: #{tpu_custom_call.1} parent=11 // pred_region
          _
        $region60: #{tpu_custom_call.1} parent=11 // pred_fallthru
          _
        // Predicated region
        $region61: #{tpu_custom_call.1} parent=11 // pred_check
          %p572 = pneg %p399
        $region62: #{tpu_custom_call.1} parent=11 // pred_check_branch
          %574 = sbr.rel (%p572) target = $region64
        $region63: #{tpu_custom_call.1} parent=11 // pred_region
          _
        $region64: #{tpu_custom_call.1} parent=11 // pred_fallthru
          _
        // Predicated region
        $region65: #{tpu_custom_call.1} parent=11 // pred_check
          %p575 = pneg %p420
        $region66: #{tpu_custom_call.1} parent=11 // pred_check_branch
          %577 = sbr.rel (%p575) target = $region68
        $region67: #{tpu_custom_call.1} parent=11 // pred_region
          _
        $region68: #{tpu_custom_call.1} parent=11 // pred_fallthru
          _
      $region12: #{tpu_custom_call.1} parent=5 // pred_fallthru
        _
      %p578 = scmp.lt.s32.totalorder %s36, 2
      // Predicated region
      $region69: #{tpu_custom_call.1} parent=5 // pred_check
        %p579 = pneg %p578
      $region70: #{tpu_custom_call.1} parent=5 // pred_check_branch
        %581 = sbr.rel (%p579) target = $region72
      $region71: #{tpu_custom_call.1} parent=5 // pred_region
        // Predicated region
        $region73: #{tpu_custom_call.1} parent=71 // pred_check
          %p582 = pneg %p68
        $region74: #{tpu_custom_call.1} parent=71 // pred_check_branch
          %584 = sbr.rel (%p582) target = $region76
        $region75: #{tpu_custom_call.1} parent=71 // pred_region
          %s585 = sand.u32 %s58, 1
          %s586 = scalar_lea.sflag [#allocation3], %s585
          %s587 = sand.u32 %s58, 1
          %s588 = smul.addr %s587, 8
          %s589 = scalar_lea.vmem [#allocation2], %s588
          %591 = vsyncadd %s586, 0
          %s592 = smul.addr %s43, 8
          %s593 = scalar_lea.hbm %s0, %s592
          %s595 = sshll.u32 %s593, 4
          %s596 = int_to_ptr.hbm [resolvable:$true] %s595
          %s597 = sshll.u32 %s589, 4
          %s598 = int_to_ptr.vmem [resolvable:$true] %s597
          %600 = dma.hbm_to_vmem [thread:$0]  %s596, 128, %s598, %s586
        $region76: #{tpu_custom_call.1} parent=71 // pred_fallthru
          _
        // Predicated region
        $region77: #{tpu_custom_call.1} parent=71 // pred_check
          %p601 = pneg %p94
        $region78: #{tpu_custom_call.1} parent=71 // pred_check_branch
          %603 = sbr.rel (%p601) target = $region80
        $region79: #{tpu_custom_call.1} parent=71 // pred_region
          %s604 = sand.u32 %s36, 1
          %s605 = scalar_lea.sflag [#allocation6], %s604
          %s606 = sand.u32 %s84, 1
          %s607 = smul.addr %s606, 16
          %s608 = scalar_lea.vmem [#allocation5], %s607
          %610 = vsyncadd %s605, 0
          %s611 = smul.addr %s43, 2
          %s612 = smul.addr %s611, 8
          %s613 = scalar_lea.hbm %s1, %s612
          %s614 = sshll.u32 %s613, 4
          %s615 = int_to_ptr.hbm [resolvable:$true] %s614
          %s616 = sshll.u32 %s608, 4
          %s617 = int_to_ptr.vmem [resolvable:$true] %s616
          %622 = dma.hbm_to_vmem [thread:$0]  %s615, 256, %s617, %s605, 128, 128, 8
        $region80: #{tpu_custom_call.1} parent=71 // pred_fallthru
          _
        // Predicated region
        $region81: #{tpu_custom_call.1} parent=71 // pred_check
          %p623 = pneg %p120
        $region82: #{tpu_custom_call.1} parent=71 // pred_check_branch
          %625 = sbr.rel (%p623) target = $region84
        $region83: #{tpu_custom_call.1} parent=71 // pred_region
          %s626 = sand.u32 %s36, 1
          %s627 = scalar_lea.sflag [#allocation6], %s626
          %s628 = sand.u32 %s110, 1
          %s629 = smul.addr %s628, 8
          %s630 = scalar_lea.vmem [#allocation7], %s629
          %632 = vsyncadd %s627, 0
          %s633 = smul.addr %s43, 8
          %s634 = scalar_lea.hbm %s2, %s633
          %s636 = sshll.u32 %s634, 4
          %s637 = int_to_ptr.hbm [resolvable:$true] %s636
          %s638 = sshll.u32 %s630, 4
          %s639 = int_to_ptr.vmem [resolvable:$true] %s638
          %641 = dma.hbm_to_vmem [thread:$0]  %s637, 128, %s639, %s627
        $region84: #{tpu_custom_call.1} parent=71 // pred_fallthru
          _
      $region72: #{tpu_custom_call.1} parent=5 // pred_fallthru
        _
      %p642 = scmp.le.s32.totalorder 1, %s36
      %p643 = scmp.lt.s32.totalorder %s36, 3
      %p644 = pnand %p642, %p643
      %p645 = pneg %p644
      // Predicated region
      $region85: #{tpu_custom_call.1} parent=5 // pred_check
        _
      $region86: #{tpu_custom_call.1} parent=5 // pred_check_branch
        %647 = sbr.rel (%p644) target = $region88
      $region87: #{tpu_custom_call.1} parent=5 // pred_region
        %s648 = ssub.s32 %s36, 1
        %s649 = sand.u32 %s61, 1
        %s650 = scalar_lea.sflag [#allocation3], %s649
        %s651 = sand.u32 %s61, 1
        %s652 = smul.addr %s651, 8
        %s653 = scalar_lea.vmem [#allocation2], %s652
        // Predicated region
        $region89: #{tpu_custom_call.1} parent=87 // pred_check
          %p654 = pneg %p74
        $region90: #{tpu_custom_call.1} parent=87 // pred_check_branch
          %656 = sbr.rel (%p654) target = $region92
        $region91: #{tpu_custom_call.1} parent=87 // pred_region
          %658 = dma.done %s650, 128
        $region92: #{tpu_custom_call.1} parent=87 // pred_fallthru
          _
        %s659 = sand.u32 %s41, 1
        %s660 = scalar_lea.sflag [#allocation6], %s659
        %s661 = sand.u32 %s87, 1
        %s662 = smul.addr %s661, 16
        %s663 = scalar_lea.vmem [#allocation5], %s662
        // Predicated region
        $region93: #{tpu_custom_call.1} parent=87 // pred_check
          %p664 = pneg %p100
        $region94: #{tpu_custom_call.1} parent=87 // pred_check_branch
          %666 = sbr.rel (%p664) target = $region96
        $region95: #{tpu_custom_call.1} parent=87 // pred_region
          %668 = dma.done %s660, 256
        $region96: #{tpu_custom_call.1} parent=87 // pred_fallthru
          _
        %s669 = sand.u32 %s41, 1
        %s670 = scalar_lea.sflag [#allocation6], %s669
        %s671 = sand.u32 %s113, 1
        %s672 = smul.addr %s671, 8
        %s673 = scalar_lea.vmem [#allocation7], %s672
        // Predicated region
        $region97: #{tpu_custom_call.1} parent=87 // pred_check
          %p674 = pneg %p126
        $region98: #{tpu_custom_call.1} parent=87 // pred_check_branch
          %676 = sbr.rel (%p674) target = $region100
        $region99: #{tpu_custom_call.1} parent=87 // pred_region
          %678 = dma.done %s670, 128
        $region100: #{tpu_custom_call.1} parent=87 // pred_fallthru
          _
        // Predicated region
        $region101: #{tpu_custom_call.1} parent=87 // pred_check
          %p679 = pneg %p189
        $region102: #{tpu_custom_call.1} parent=87 // pred_check_branch
          %681 = sbr.rel (%p679) target = $region104
        $region103: #{tpu_custom_call.1} parent=87 // pred_region
          %683 = dma.done [#allocation9], 256
        $region104: #{tpu_custom_call.1} parent=87 // pred_fallthru
          _
        // Predicated region
        $region105: #{tpu_custom_call.1} parent=87 // pred_check
          %p684 = pneg %p210
        $region106: #{tpu_custom_call.1} parent=87 // pred_check_branch
          %686 = sbr.rel (%p684) target = $region108
        $region107: #{tpu_custom_call.1} parent=87 // pred_region
          %688 = dma.done [#allocation9], 16
        $region108: #{tpu_custom_call.1} parent=87 // pred_fallthru
          _
        // Predicated region
        $region109: #{tpu_custom_call.1} parent=87 // pred_check
          %p689 = pneg %p231
        $region110: #{tpu_custom_call.1} parent=87 // pred_check_branch
          %691 = sbr.rel (%p689) target = $region112
        $region111: #{tpu_custom_call.1} parent=87 // pred_region
          %693 = dma.done [#allocation12], 768
        $region112: #{tpu_custom_call.1} parent=87 // pred_fallthru
          _
        // Predicated region
        $region113: #{tpu_custom_call.1} parent=87 // pred_check
          %p694 = pneg %p273
        $region114: #{tpu_custom_call.1} parent=87 // pred_check_branch
          %696 = sbr.rel (%p694) target = $region116
        $region115: #{tpu_custom_call.1} parent=87 // pred_region
          %698 = dma.done [#allocation12], 256
        $region116: #{tpu_custom_call.1} parent=87 // pred_fallthru
          _
        // Predicated region
        $region117: #{tpu_custom_call.1} parent=87 // pred_check
          %p699 = pneg %p294
        $region118: #{tpu_custom_call.1} parent=87 // pred_check_branch
          %701 = sbr.rel (%p699) target = $region120
        $region119: #{tpu_custom_call.1} parent=87 // pred_region
          %703 = dma.done [#allocation15], 16
        $region120: #{tpu_custom_call.1} parent=87 // pred_fallthru
          _
        // Predicated region
        $region121: #{tpu_custom_call.1} parent=87 // pred_check
          %p704 = pneg %p336
        $region122: #{tpu_custom_call.1} parent=87 // pred_check_branch
          %706 = sbr.rel (%p704) target = $region124
        $region123: #{tpu_custom_call.1} parent=87 // pred_region
          %708 = dma.done [#allocation15], 48
        $region124: #{tpu_custom_call.1} parent=87 // pred_fallthru
          _
        // Predicated region
        $region125: #{tpu_custom_call.1} parent=87 // pred_check
          %p709 = pneg %p357
        $region126: #{tpu_custom_call.1} parent=87 // pred_check_branch
          %711 = sbr.rel (%p709) target = $region128
        $region127: #{tpu_custom_call.1} parent=87 // pred_region
          %713 = dma.done [#allocation18], 256
        $region128: #{tpu_custom_call.1} parent=87 // pred_fallthru
          _
        %s714 = sand.u32 %s61, 1
        %s715 = scalar_lea.sflag [#allocation3], %s714
        %s716 = sand.u32 %s61, 1
        %s717 = smul.addr %s716, 8
        %s718 = scalar_lea.vmem [#allocation2], %s717
        %p719 = pneg %p74
        %p720 = pneg %p71
        %s721 = sand.u32 %s41, 1
        %s722 = scalar_lea.sflag [#allocation6], %s721
        %s723 = sand.u32 %s87, 1
        %s724 = smul.addr %s723, 16
        %s725 = scalar_lea.vmem [#allocation5], %s724
        %p726 = pneg %p100
        %p727 = pneg %p97
        %s728 = sand.u32 %s41, 1
        %s729 = scalar_lea.sflag [#allocation6], %s728
        %s730 = sand.u32 %s113, 1
        %s731 = smul.addr %s730, 8
        %s732 = scalar_lea.vmem [#allocation7], %s731
        %p733 = pneg %p126
        %p734 = pneg %p123
        %p735 = pneg %p147
        %p736 = pneg %p144
        %p737 = pneg %p168
        %p738 = pneg %p165
        %p739 = pneg %p189
        %p740 = pneg %p186
        %p741 = pneg %p210
        %p742 = pneg %p207
        %p743 = pneg %p231
        %p744 = pneg %p228
        %p745 = pneg %p252
        %p746 = pneg %p249
        %p747 = pneg %p273
        %p748 = pneg %p270
        %p749 = pneg %p294
        %p750 = pneg %p291
        %p751 = pneg %p315
        %p752 = pneg %p312
        %p753 = pneg %p336
        %p754 = pneg %p333
        %p755 = pneg %p357
        %p756 = pneg %p354
        %p757 = pneg %p378
        %p758 = pneg %p375
        %p759 = pneg %p399
        %p760 = pneg %p396
        %p761 = pneg %p420
        %p762 = pneg %p417
        %p763 = pneg %p448
        %p764 = pneg %p445
        %s765 = sand.u32 %s435, 1
        %s766 = scalar_lea.sflag [#allocation4], %s765
        %s767 = sand.u32 %s435, 1
        %s768 = smul.addr %s767, 8
        %s769 = scalar_lea.vmem [#allocation19], %s768
        %v771 = vld [vmem:[%s653] sm:$0xff]
        %v772 = vld [vmem:[%s673] sm:$0xff]
        %v773 = vld [vmem:[%s663] sm:$0xff]
        %v774 = vld [vmem:[%s663 + $0x8] sm:$0xff]
        %v775 = vadd.f32 %v771, %v772
        %v776 = vpack.c.bf16 %v775, %v775
        %v777 = vpack.c.bf16 %v771, %v771
        %v778 = vld [vmem:[%s3] sm:$0xf]
        %v779 = vld [vmem:[%s3 + $0x4] sm:$0xf]
        %v780 = vld [vmem:[%s3 + $0x8] sm:$0xf]
        %v781 = vld [vmem:[%s3 + $0xc] sm:$0xf]
        %v782 = vld [vmem:[%s4] sm:$0x1]
        %v784 = vperm.slane %v782, 0
        %v790 = vunpack.c.l.b16 %v778
        %v791 = vunpack.c.l.b16 %v779
        %v792 = vunpack.c.l.b16 %v780
        %v793 = vunpack.c.l.b16 %v781
        %v794 = vpack.c.b16 %v791, %v790
        %v795 = vpack.c.b16 %v793, %v792
        %vm798 = vcmask 261120
        %v800 = vsel %vm798, %v776, 0
        %802 = vmatpush.bf16.msra.mxu0 0
        %803 = vmatpush.bf16.msra.mxu0 0
        %804 = vmatpush.bf16.msra.mxu0 0
        %805 = vmatpush.bf16.msra.mxu0 0
        %806 = vmatpush.bf16.msra.mxu0 0
        %807 = vmatpush.bf16.msra.mxu0 0
        %808 = vmatpush.bf16.msra.mxu0 %v795
        %809 = vmatpush.bf16.msra.mxu0 %v794
        %810 = vmatmul.bf16.gmra.mxu0 %v800
        %v811 = vpop.f32.mrf.mxu0
        %v812 = vadd.f32 %v784, %v811
        %v813 = vpop.f32.mrf.mxu0
        %814 = vdwg.mxu0
        %s815 = scalar_lea.vmem %s3, 16
        %v816 = vld [vmem:[%s815] sm:$0xf]
        %v817 = vld [vmem:[%s815 + $0x4] sm:$0xf]
        %v818 = vld [vmem:[%s815 + $0x8] sm:$0xf]
        %v819 = vld [vmem:[%s815 + $0xc] sm:$0xf]
        %s820 = scalar_lea.vmem %s4, 1
        %v821 = vld [vmem:[%s820] sm:$0x1]
        %v823 = vperm.slane %v821, 0
        %v829 = vunpack.c.l.b16 %v816
        %v830 = vunpack.c.l.b16 %v817
        %v831 = vunpack.c.l.b16 %v818
        %v832 = vunpack.c.l.b16 %v819
        %v833 = vpack.c.b16 %v830, %v829
        %v834 = vpack.c.b16 %v832, %v831
        %837 = vmatpush.bf16.msra.mxu0 0
        %838 = vmatpush.bf16.msra.mxu0 0
        %839 = vmatpush.bf16.msra.mxu0 0
        %840 = vmatpush.bf16.msra.mxu0 0
        %841 = vmatpush.bf16.msra.mxu0 0
        %842 = vmatpush.bf16.msra.mxu0 0
        %843 = vmatpush.bf16.msra.mxu0 %v834
        %844 = vmatpush.bf16.msra.mxu0 %v833
        %845 = vmatmul.bf16.gmra.mxu0 %v800
        %v846 = vpop.f32.mrf.mxu0
        %v847 = vadd.f32 %v823, %v846
        %v848 = vpop.f32.mrf.mxu0
        %849 = vdwg.mxu0
        %s850 = scalar_lea.vmem %s3, 32
        %v851 = vld [vmem:[%s850] sm:$0xf]
        %v852 = vld [vmem:[%s850 + $0x4] sm:$0xf]
        %v853 = vld [vmem:[%s850 + $0x8] sm:$0xf]
        %v854 = vld [vmem:[%s850 + $0xc] sm:$0xf]
        %s855 = scalar_lea.vmem %s4, 2
        %v856 = vld [vmem:[%s855] sm:$0x1]
        %v858 = vperm.slane %v856, 0
        %v864 = vunpack.c.l.b16 %v851
        %v865 = vunpack.c.l.b16 %v852
        %v866 = vunpack.c.l.b16 %v853
        %v867 = vunpack.c.l.b16 %v854
        %v868 = vpack.c.b16 %v865, %v864
        %v869 = vpack.c.b16 %v867, %v866
        %v873 = vsel %vm798, %v777, 0
        %875 = vmatpush.bf16.msra.mxu0 0
        %876 = vmatpush.bf16.msra.mxu0 0
        %877 = vmatpush.bf16.msra.mxu0 0
        %878 = vmatpush.bf16.msra.mxu0 0
        %879 = vmatpush.bf16.msra.mxu0 0
        %880 = vmatpush.bf16.msra.mxu0 0
        %881 = vmatpush.bf16.msra.mxu0 %v869
        %882 = vmatpush.bf16.msra.mxu0 %v868
        %883 = vmatmul.bf16.gmra.mxu0 %v873
        %v884 = vpop.f32.mrf.mxu0
        %v885 = vadd.f32 %v858, %v884
        %v886 = vpop.f32.mrf.mxu0
        %887 = vdwg.mxu0
        %889 = vrot.lane.b32.xlu0 %v812, 120
        %v890 = vpop.permute.xlu0 %889
        %892 = vrot.lane.b32.xlu0 %v812, 112
        %v893 = vpop.permute.xlu0 %892
        %895 = vrot.lane.b32.xlu0 %v812, 104
        %v896 = vpop.permute.xlu0 %895
        %v898 = vrot.slane %v893, 4
        %vm899 = vcmask 1047556
        %v900 = vsel %vm899, %v898, %v812
        %v901 = vrot.slane %v812, 4
        %v902 = vsel %vm899, %v893, %v901
        %v904 = vunpack.c.l.s4 1983009808
        %v905 = vunpack.c.0.s8 %v904
        %v906 = vperm.slane %v900, %v905
        %v908 = vunpack.c.l.s4 1983009808
        %v909 = vunpack.c.0.s8 %v908
        %v910 = vperm.slane %v902, %v909
        %v911 = vrot.slane %v896, 4
        %v912 = vsel %vm899, %v911, %v890
        %v913 = vrot.slane %v890, 4
        %v914 = vsel %vm899, %v896, %v913
        %v916 = vunpack.c.l.s4 1983009808
        %v917 = vunpack.c.0.s8 %v916
        %v918 = vperm.slane %v912, %v917
        %v920 = vunpack.c.l.s4 1983009808
        %v921 = vunpack.c.0.s8 %v920
        %v922 = vperm.slane %v914, %v921
        %v923 = vrot.slane %v918, 4
        %v924 = vsel %vm899, %v923, %v906
        %v925 = vrot.slane %v906, 4
        %v926 = vsel %vm899, %v918, %v925
        %v928 = vunpack.c.l.s4 1934713408
        %v929 = vunpack.c.0.s8 %v928
        %v930 = vperm.slane %v924, %v929
        %v932 = vunpack.c.l.s4 1934713408
        %v933 = vunpack.c.0.s8 %v932
        %v934 = vperm.slane %v926, %v933
        %v935 = vrot.slane %v922, 4
        %v936 = vsel %vm899, %v935, %v910
        %v937 = vrot.slane %v910, 4
        %v938 = vsel %vm899, %v922, %v937
        %v940 = vunpack.c.l.s4 1934713408
        %v941 = vunpack.c.0.s8 %v940
        %v942 = vperm.slane %v936, %v941
        %v944 = vunpack.c.l.s4 1934713408
        %v945 = vunpack.c.0.s8 %v944
        %v946 = vperm.slane %v938, %v945
        %v947 = vrot.slane %v930, 4
        %v948 = vsel %vm899, 0.0, %v947
        %v949 = vrot.slane %v934, 4
        %v950 = vsel %vm899, 0.0, %v949
        %v951 = vrot.slane %v942, 4
        %v952 = vsel %vm899, 0.0, %v951
        %v953 = vrot.slane %v946, 4
        %v954 = vsel %vm899, 0.0, %v953
        %v955 = vpack.c.bf16 %v930, %v930
        %v956 = vpack.c.bf16 %v948, %v948
        %v957 = vpack.c.bf16 %v934, %v934
        %v958 = vpack.c.bf16 %v950, %v950
        %v959 = vpack.c.bf16 %v942, %v942
        %v960 = vpack.c.bf16 %v952, %v952
        %v961 = vpack.c.bf16 %v946, %v946
        %v962 = vpack.c.bf16 %v954, %v954
        %964 = vrot.lane.b32.xlu0 %v847, 120
        %v965 = vpop.permute.xlu0 %964
        %967 = vrot.lane.b32.xlu0 %v847, 112
        %v968 = vpop.permute.xlu0 %967
        %970 = vrot.lane.b32.xlu0 %v847, 104
        %v971 = vpop.permute.xlu0 %970
        %v973 = vrot.slane %v968, 4
        %v974 = vsel %vm899, %v973, %v847
        %v975 = vrot.slane %v847, 4
        %v976 = vsel %vm899, %v968, %v975
        %v978 = vunpack.c.l.s4 1983009808
        %v979 = vunpack.c.0.s8 %v978
        %v980 = vperm.slane %v974, %v979
        %v982 = vunpack.c.l.s4 1983009808
        %v983 = vunpack.c.0.s8 %v982
        %v984 = vperm.slane %v976, %v983
        %v985 = vrot.slane %v971, 4
        %v986 = vsel %vm899, %v985, %v965
        %v987 = vrot.slane %v965, 4
        %v988 = vsel %vm899, %v971, %v987
        %v990 = vunpack.c.l.s4 1983009808
        %v991 = vunpack.c.0.s8 %v990
        %v992 = vperm.slane %v986, %v991
        %v994 = vunpack.c.l.s4 1983009808
        %v995 = vunpack.c.0.s8 %v994
        %v996 = vperm.slane %v988, %v995
        %v997 = vrot.slane %v992, 4
        %v998 = vsel %vm899, %v997, %v980
        %v999 = vrot.slane %v980, 4
        %v1000 = vsel %vm899, %v992, %v999
        %v1002 = vunpack.c.l.s4 1934713408
        %v1003 = vunpack.c.0.s8 %v1002
        %v1004 = vperm.slane %v998, %v1003
        %v1006 = vunpack.c.l.s4 1934713408
        %v1007 = vunpack.c.0.s8 %v1006
        %v1008 = vperm.slane %v1000, %v1007
        %v1009 = vrot.slane %v996, 4
        %v1010 = vsel %vm899, %v1009, %v984
        %v1011 = vrot.slane %v984, 4
        %v1012 = vsel %vm899, %v996, %v1011
        %v1014 = vunpack.c.l.s4 1934713408
        %v1015 = vunpack.c.0.s8 %v1014
        %v1016 = vperm.slane %v1010, %v1015
        %v1018 = vunpack.c.l.s4 1934713408
        %v1019 = vunpack.c.0.s8 %v1018
        %v1020 = vperm.slane %v1012, %v1019
        %v1021 = vrot.slane %v1004, 4
        %v1022 = vsel %vm899, 0.0, %v1021
        %v1023 = vrot.slane %v1008, 4
        %v1024 = vsel %vm899, 0.0, %v1023
        %v1025 = vrot.slane %v1016, 4
        %v1026 = vsel %vm899, 0.0, %v1025
        %v1027 = vrot.slane %v1020, 4
        %v1028 = vsel %vm899, 0.0, %v1027
        %v1029 = vpack.c.bf16 %v1004, %v1004
        %v1030 = vpack.c.bf16 %v1022, %v1022
        %v1031 = vpack.c.bf16 %v1008, %v1008
        %v1032 = vpack.c.bf16 %v1024, %v1024
        %v1033 = vpack.c.bf16 %v1016, %v1016
        %v1034 = vpack.c.bf16 %v1026, %v1026
        %v1035 = vpack.c.bf16 %v1020, %v1020
        %v1036 = vpack.c.bf16 %v1028, %v1028
        %1038 = vrot.lane.b32.xlu0 %v885, 120
        %v1039 = vpop.permute.xlu0 %1038
        %1041 = vrot.lane.b32.xlu0 %v885, 112
        %v1042 = vpop.permute.xlu0 %1041
        %1044 = vrot.lane.b32.xlu0 %v885, 104
        %v1045 = vpop.permute.xlu0 %1044
        %v1047 = vrot.slane %v1042, 4
        %v1048 = vsel %vm899, %v1047, %v885
        %v1049 = vrot.slane %v885, 4
        %v1050 = vsel %vm899, %v1042, %v1049
        %v1052 = vunpack.c.l.s4 1983009808
        %v1053 = vunpack.c.0.s8 %v1052
        %v1054 = vperm.slane %v1048, %v1053
        %v1056 = vunpack.c.l.s4 1983009808
        %v1057 = vunpack.c.0.s8 %v1056
        %v1058 = vperm.slane %v1050, %v1057
        %v1059 = vrot.slane %v1045, 4
        %v1060 = vsel %vm899, %v1059, %v1039
        %v1061 = vrot.slane %v1039, 4
        %v1062 = vsel %vm899, %v1045, %v1061
        %v1064 = vunpack.c.l.s4 1983009808
        %v1065 = vunpack.c.0.s8 %v1064
        %v1066 = vperm.slane %v1060, %v1065
        %v1068 = vunpack.c.l.s4 1983009808
        %v1069 = vunpack.c.0.s8 %v1068
        %v1070 = vperm.slane %v1062, %v1069
        %v1071 = vrot.slane %v1066, 4
        %v1072 = vsel %vm899, %v1071, %v1054
        %v1073 = vrot.slane %v1054, 4
        %v1074 = vsel %vm899, %v1066, %v1073
        %v1076 = vunpack.c.l.s4 1934713408
        %v1077 = vunpack.c.0.s8 %v1076
        %v1078 = vperm.slane %v1072, %v1077
        %v1080 = vunpack.c.l.s4 1934713408
        %v1081 = vunpack.c.0.s8 %v1080
        %v1082 = vperm.slane %v1074, %v1081
        %v1083 = vrot.slane %v1070, 4
        %v1084 = vsel %vm899, %v1083, %v1058
        %v1085 = vrot.slane %v1058, 4
        %v1086 = vsel %vm899, %v1070, %v1085
        %v1088 = vunpack.c.l.s4 1934713408
        %v1089 = vunpack.c.0.s8 %v1088
        %v1090 = vperm.slane %v1084, %v1089
        %v1092 = vunpack.c.l.s4 1934713408
        %v1093 = vunpack.c.0.s8 %v1092
        %v1094 = vperm.slane %v1086, %v1093
        %v1095 = vrot.slane %v1078, 4
        %v1096 = vsel %vm899, 0.0, %v1095
        %v1097 = vrot.slane %v1082, 4
        %v1098 = vsel %vm899, 0.0, %v1097
        %v1099 = vrot.slane %v1090, 4
        %v1100 = vsel %vm899, 0.0, %v1099
        %v1101 = vrot.slane %v1094, 4
        %v1102 = vsel %vm899, 0.0, %v1101
        %v1103 = vpack.c.bf16 %v1078, %v1078
        %v1104 = vpack.c.bf16 %v1096, %v1096
        %v1105 = vpack.c.bf16 %v1082, %v1082
        %v1106 = vpack.c.bf16 %v1098, %v1098
        %v1107 = vpack.c.bf16 %v1090, %v1090
        %v1108 = vpack.c.bf16 %v1100, %v1100
        %v1109 = vpack.c.bf16 %v1094, %v1094
        %v1110 = vpack.c.bf16 %v1102, %v1102
        %v1111 = vrot.slane %v959, 4
        %vm1112 = vcmask 1047556
        %v1113 = vsel %vm1112, %v1111, %v955
        %v1115 = vunpack.c.l.s4 1983009808
        %v1116 = vunpack.c.0.s8 %v1115
        %v1117 = vperm.slane %v1113, %v1116
        %v1118 = vrot.slane %v961, 4
        %v1119 = vsel %vm1112, %v1118, %v957
        %v1121 = vunpack.c.l.s4 1983009808
        %v1122 = vunpack.c.0.s8 %v1121
        %v1123 = vperm.slane %v1119, %v1122
        %v1124 = vrot.slane %v1123, 4
        %v1125 = vsel %vm1112, %v1124, %v1117
        %v1127 = vunpack.c.l.s4 1934713408
        %v1128 = vunpack.c.0.s8 %v1127
        %v1129 = vperm.slane %v1125, %v1128
        %v1130 = vrot.slane %v1129, 4
        %v1131 = vsel %vm1112, 0, %v1130
        %v1132 = vrot.slane %v960, 4
        %v1133 = vsel %vm1112, %v1132, %v956
        %v1135 = vunpack.c.l.s4 1983009808
        %v1136 = vunpack.c.0.s8 %v1135
        %v1137 = vperm.slane %v1133, %v1136
        %v1138 = vrot.slane %v962, 4
        %v1139 = vsel %vm1112, %v1138, %v958
        %v1141 = vunpack.c.l.s4 1983009808
        %v1142 = vunpack.c.0.s8 %v1141
        %v1143 = vperm.slane %v1139, %v1142
        %v1144 = vrot.slane %v1143, 4
        %v1145 = vsel %vm1112, %v1144, %v1137
        %v1147 = vunpack.c.l.s4 1934713408
        %v1148 = vunpack.c.0.s8 %v1147
        %v1149 = vperm.slane %v1145, %v1148
        %v1150 = vrot.slane %v1149, 4
        %v1151 = vsel %vm1112, 0, %v1150
        %v1154 = vpack.i.b16 %v1149, %v1129
        %v1155 = vshrl.u32 %v1129, 16
        %v1156 = vshrl.u32 %v1149, 16
        %v1157 = vpack.i.b16 %v1156, %v1155
        %v1160 = vpack.i.b16 %v1151, %v1131
        %v1161 = vshrl.u32 %v1131, 16
        %v1162 = vshrl.u32 %v1151, 16
        %v1163 = vpack.i.b16 %v1162, %v1161
        %1164 = vxpose.xlu0.c.b16.start [1/8] %v1029, 128
        %1165 = vxpose.xlu0.c.b16.cont [2/8] 0, 128
        %1166 = vxpose.xlu0.c.b16.cont [3/8] 0, 128
        %1167 = vxpose.xlu0.c.b16.cont [4/8] 0, 128
        %1168 = vxpose.xlu0.c.b16.cont [5/8] 0, 128
        %1169 = vxpose.xlu0.c.b16.cont [6/8] 0, 128
        %1170 = vxpose.xlu0.c.b16.cont [7/8] 0, 128
        %1171 = vxpose.xlu0.c.b16.end [8/8] 0, 128
        %v1172 = vpop.trf.xlu0
        %v1173 = vpop.trf.xlu0
        %v1174 = vpop.trf.xlu0
        %v1175 = vpop.trf.xlu0
        %v1176 = vpop.trf.xlu0
        %v1177 = vpop.trf.xlu0
        %v1178 = vpop.trf.xlu0
        %v1179 = vpop.trf.xlu0
        %1180 = vxpose.xlu0.c.b16.start [1/8] %v1030, 128
        %1181 = vxpose.xlu0.c.b16.cont [2/8] 0, 128
        %1182 = vxpose.xlu0.c.b16.cont [3/8] 0, 128
        %1183 = vxpose.xlu0.c.b16.cont [4/8] 0, 128
        %1184 = vxpose.xlu0.c.b16.cont [5/8] 0, 128
        %1185 = vxpose.xlu0.c.b16.cont [6/8] 0, 128
        %1186 = vxpose.xlu0.c.b16.cont [7/8] 0, 128
        %1187 = vxpose.xlu0.c.b16.end [8/8] 0, 128
        %v1188 = vpop.trf.xlu0
        %v1189 = vpop.trf.xlu0
        %v1190 = vpop.trf.xlu0
        %v1191 = vpop.trf.xlu0
        %v1192 = vpop.trf.xlu0
        %v1193 = vpop.trf.xlu0
        %v1194 = vpop.trf.xlu0
        %v1195 = vpop.trf.xlu0
        %1196 = vxpose.xlu0.c.b16.start [1/8] %v1031, 128
        %1197 = vxpose.xlu0.c.b16.cont [2/8] 0, 128
        %1198 = vxpose.xlu0.c.b16.cont [3/8] 0, 128
        %1199 = vxpose.xlu0.c.b16.cont [4/8] 0, 128
        %1200 = vxpose.xlu0.c.b16.cont [5/8] 0, 128
        %1201 = vxpose.xlu0.c.b16.cont [6/8] 0, 128
        %1202 = vxpose.xlu0.c.b16.cont [7/8] 0, 128
        %1203 = vxpose.xlu0.c.b16.end [8/8] 0, 128
        %v1204 = vpop.trf.xlu0
        %v1205 = vpop.trf.xlu0
        %v1206 = vpop.trf.xlu0
        %v1207 = vpop.trf.xlu0
        %v1208 = vpop.trf.xlu0
        %v1209 = vpop.trf.xlu0
        %v1210 = vpop.trf.xlu0
        %v1211 = vpop.trf.xlu0
        %1212 = vxpose.xlu0.c.b16.start [1/8] %v1032, 128
        %1213 = vxpose.xlu0.c.b16.cont [2/8] 0, 128
        %1214 = vxpose.xlu0.c.b16.cont [3/8] 0, 128
        %1215 = vxpose.xlu0.c.b16.cont [4/8] 0, 128
        %1216 = vxpose.xlu0.c.b16.cont [5/8] 0, 128
        %1217 = vxpose.xlu0.c.b16.cont [6/8] 0, 128
        %1218 = vxpose.xlu0.c.b16.cont [7/8] 0, 128
        %1219 = vxpose.xlu0.c.b16.end [8/8] 0, 128
        %v1220 = vpop.trf.xlu0
        %v1221 = vpop.trf.xlu0
        %v1222 = vpop.trf.xlu0
        %v1223 = vpop.trf.xlu0
        %v1224 = vpop.trf.xlu0
        %v1225 = vpop.trf.xlu0
        %v1226 = vpop.trf.xlu0
        %v1227 = vpop.trf.xlu0
        %1228 = vxpose.xlu0.c.b16.start [1/8] %v1033, 128
        %1229 = vxpose.xlu0.c.b16.cont [2/8] 0, 128
        %1230 = vxpose.xlu0.c.b16.cont [3/8] 0, 128
        %1231 = vxpose.xlu0.c.b16.cont [4/8] 0, 128
        %1232 = vxpose.xlu0.c.b16.cont [5/8] 0, 128
        %1233 = vxpose.xlu0.c.b16.cont [6/8] 0, 128
        %1234 = vxpose.xlu0.c.b16.cont [7/8] 0, 128
        %1235 = vxpose.xlu0.c.b16.end [8/8] 0, 128
        %v1236 = vpop.trf.xlu0
        %v1237 = vpop.trf.xlu0
        %v1238 = vpop.trf.xlu0
        %v1239 = vpop.trf.xlu0
        %v1240 = vpop.trf.xlu0
        %v1241 = vpop.trf.xlu0
        %v1242 = vpop.trf.xlu0
        %v1243 = vpop.trf.xlu0
        %1244 = vxpose.xlu0.c.b16.start [1/8] %v1034, 128
        %1245 = vxpose.xlu0.c.b16.cont [2/8] 0, 128
        %1246 = vxpose.xlu0.c.b16.cont [3/8] 0, 128
        %1247 = vxpose.xlu0.c.b16.cont [4/8] 0, 128
        %1248 = vxpose.xlu0.c.b16.cont [5/8] 0, 128
        %1249 = vxpose.xlu0.c.b16.cont [6/8] 0, 128
        %1250 = vxpose.xlu0.c.b16.cont [7/8] 0, 128
        %1251 = vxpose.xlu0.c.b16.end [8/8] 0, 128
        %v1252 = vpop.trf.xlu0
        %v1253 = vpop.trf.xlu0
        %v1254 = vpop.trf.xlu0
        %v1255 = vpop.trf.xlu0
        %v1256 = vpop.trf.xlu0
        %v1257 = vpop.trf.xlu0
        %v1258 = vpop.trf.xlu0
        %v1259 = vpop.trf.xlu0
        %1260 = vxpose.xlu0.c.b16.start [1/8] %v1035, 128
        %1261 = vxpose.xlu0.c.b16.cont [2/8] 0, 128
        %1262 = vxpose.xlu0.c.b16.cont [3/8] 0, 128
        %1263 = vxpose.xlu0.c.b16.cont [4/8] 0, 128
        %1264 = vxpose.xlu0.c.b16.cont [5/8] 0, 128
        %1265 = vxpose.xlu0.c.b16.cont [6/8] 0, 128
        %1266 = vxpose.xlu0.c.b16.cont [7/8] 0, 128
        %1267 = vxpose.xlu0.c.b16.end [8/8] 0, 128
        %v1268 = vpop.trf.xlu0
        %v1269 = vpop.trf.xlu0
        %v1270 = vpop.trf.xlu0
        %v1271 = vpop.trf.xlu0
        %v1272 = vpop.trf.xlu0
        %v1273 = vpop.trf.xlu0
        %v1274 = vpop.trf.xlu0
        %v1275 = vpop.trf.xlu0
        %1276 = vxpose.xlu0.c.b16.start [1/8] %v1036, 128
        %1277 = vxpose.xlu0.c.b16.cont [2/8] 0, 128
        %1278 = vxpose.xlu0.c.b16.cont [3/8] 0, 128
        %1279 = vxpose.xlu0.c.b16.cont [4/8] 0, 128
        %1280 = vxpose.xlu0.c.b16.cont [5/8] 0, 128
        %1281 = vxpose.xlu0.c.b16.cont [6/8] 0, 128
        %1282 = vxpose.xlu0.c.b16.cont [7/8] 0, 128
        %1283 = vxpose.xlu0.c.b16.end [8/8] 0, 128
        %v1284 = vpop.trf.xlu0
        %v1285 = vpop.trf.xlu0
        %v1286 = vpop.trf.xlu0
        %v1287 = vpop.trf.xlu0
        %v1288 = vpop.trf.xlu0
        %v1289 = vpop.trf.xlu0
        %v1290 = vpop.trf.xlu0
        %v1291 = vpop.trf.xlu0
        %v1292 = vrot.slane %v1236, 4
        %v1293 = vsel %vm1112, %v1292, %v1172
        %v1295 = vunpack.c.l.s4 1983009808
        %v1296 = vunpack.c.0.s8 %v1295
        %v1297 = vperm.slane %v1293, %v1296
        %v1298 = vrot.slane %v1268, 4
        %v1299 = vsel %vm1112, %v1298, %v1204
        %v1301 = vunpack.c.l.s4 1983009808
        %v1302 = vunpack.c.0.s8 %v1301
        %v1303 = vperm.slane %v1299, %v1302
        %v1304 = vrot.slane %v1303, 4
        %v1305 = vsel %vm1112, %v1304, %v1297
        %v1306 = vrot.slane %v1297, 4
        %v1307 = vsel %vm1112, %v1303, %v1306
        %v1309 = vunpack.c.l.s4 1934713408
        %v1310 = vunpack.c.0.s8 %v1309
        %v1311 = vperm.slane %v1305, %v1310
        %v1313 = vunpack.c.l.s4 1934713408
        %v1314 = vunpack.c.0.s8 %v1313
        %v1315 = vperm.slane %v1307, %v1314
        %v1316 = vrot.slane %v1311, 4
        %v1317 = vsel %vm1112, 0, %v1316
        %v1318 = vrot.slane %v1315, 4
        %v1319 = vsel %vm1112, 0, %v1318
        %v1320 = vrot.slane %v1252, 4
        %v1321 = vsel %vm1112, %v1320, %v1188
        %v1323 = vunpack.c.l.s4 1983009808
        %v1324 = vunpack.c.0.s8 %v1323
        %v1325 = vperm.slane %v1321, %v1324
        %v1326 = vrot.slane %v1284, 4
        %v1327 = vsel %vm1112, %v1326, %v1220
        %v1329 = vunpack.c.l.s4 1983009808
        %v1330 = vunpack.c.0.s8 %v1329
        %v1331 = vperm.slane %v1327, %v1330
        %v1332 = vrot.slane %v1331, 4
        %v1333 = vsel %vm1112, %v1332, %v1325
        %v1334 = vrot.slane %v1325, 4
        %v1335 = vsel %vm1112, %v1331, %v1334
        %v1337 = vunpack.c.l.s4 1934713408
        %v1338 = vunpack.c.0.s8 %v1337
        %v1339 = vperm.slane %v1333, %v1338
        %v1341 = vunpack.c.l.s4 1934713408
        %v1342 = vunpack.c.0.s8 %v1341
        %v1343 = vperm.slane %v1335, %v1342
        %v1344 = vrot.slane %v1339, 4
        %v1345 = vsel %vm1112, 0, %v1344
        %v1346 = vrot.slane %v1343, 4
        %v1347 = vsel %vm1112, 0, %v1346
        %v1350 = vpack.i.b16 %v1339, %v1311
        %v1352 = vshrl.u32 %v1311, 16
        %v1353 = vshrl.u32 %v1339, 16
        %v1354 = vpack.i.b16 %v1353, %v1352
        %v1358 = vpack.i.b16 %v1345, %v1317
        %v1360 = vshrl.u32 %v1317, 16
        %v1361 = vshrl.u32 %v1345, 16
        %v1362 = vpack.i.b16 %v1361, %v1360
        %v1366 = vpack.i.b16 %v1343, %v1315
        %v1368 = vshrl.u32 %v1315, 16
        %v1369 = vshrl.u32 %v1343, 16
        %v1370 = vpack.i.b16 %v1369, %v1368
        %v1374 = vpack.i.b16 %v1347, %v1319
        %v1376 = vshrl.u32 %v1319, 16
        %v1377 = vshrl.u32 %v1347, 16
        %v1378 = vpack.i.b16 %v1377, %v1376
        %1380 = vxpose.xlu0.c.b16.start [1/8] %v1350, 128
        %1381 = vxpose.xlu0.c.b16.cont [2/8] 0, 128
        %1382 = vxpose.xlu0.c.b16.cont [3/8] 0, 128
        %1383 = vxpose.xlu0.c.b16.cont [4/8] 0, 128
        %1384 = vxpose.xlu0.c.b16.cont [5/8] 0, 128
        %1385 = vxpose.xlu0.c.b16.cont [6/8] 0, 128
        %1386 = vxpose.xlu0.c.b16.cont [7/8] 0, 128
        %1387 = vxpose.xlu0.c.b16.end [8/8] 0, 128
        %v1388 = vpop.trf.xlu0
        %v1389 = vpop.trf.xlu0
        %v1390 = vpop.trf.xlu0
        %v1391 = vpop.trf.xlu0
        %v1392 = vpop.trf.xlu0
        %v1393 = vpop.trf.xlu0
        %v1394 = vpop.trf.xlu0
        %v1395 = vpop.trf.xlu0
        %1396 = vxpose.xlu0.c.b16.start [1/8] %v1354, 128
        %1397 = vxpose.xlu0.c.b16.cont [2/8] 0, 128
        %1398 = vxpose.xlu0.c.b16.cont [3/8] 0, 128
        %1399 = vxpose.xlu0.c.b16.cont [4/8] 0, 128
        %1400 = vxpose.xlu0.c.b16.cont [5/8] 0, 128
        %1401 = vxpose.xlu0.c.b16.cont [6/8] 0, 128
        %1402 = vxpose.xlu0.c.b16.cont [7/8] 0, 128
        %1403 = vxpose.xlu0.c.b16.end [8/8] 0, 128
        %v1404 = vpop.trf.xlu0
        %v1405 = vpop.trf.xlu0
        %v1406 = vpop.trf.xlu0
        %v1407 = vpop.trf.xlu0
        %v1408 = vpop.trf.xlu0
        %v1409 = vpop.trf.xlu0
        %v1410 = vpop.trf.xlu0
        %v1411 = vpop.trf.xlu0
        %1412 = vxpose.xlu0.c.b16.start [1/8] %v1358, 128
        %1413 = vxpose.xlu0.c.b16.cont [2/8] 0, 128
        %1414 = vxpose.xlu0.c.b16.cont [3/8] 0, 128
        %1415 = vxpose.xlu0.c.b16.cont [4/8] 0, 128
        %1416 = vxpose.xlu0.c.b16.cont [5/8] 0, 128
        %1417 = vxpose.xlu0.c.b16.cont [6/8] 0, 128
        %1418 = vxpose.xlu0.c.b16.cont [7/8] 0, 128
        %1419 = vxpose.xlu0.c.b16.end [8/8] 0, 128
        %v1420 = vpop.trf.xlu0
        %v1421 = vpop.trf.xlu0
        %v1422 = vpop.trf.xlu0
        %v1423 = vpop.trf.xlu0
        %v1424 = vpop.trf.xlu0
        %v1425 = vpop.trf.xlu0
        %v1426 = vpop.trf.xlu0
        %v1427 = vpop.trf.xlu0
        %1428 = vxpose.xlu0.c.b16.start [1/8] %v1362, 128
        %1429 = vxpose.xlu0.c.b16.cont [2/8] 0, 128
        %1430 = vxpose.xlu0.c.b16.cont [3/8] 0, 128
        %1431 = vxpose.xlu0.c.b16.cont [4/8] 0, 128
        %1432 = vxpose.xlu0.c.b16.cont [5/8] 0, 128
        %1433 = vxpose.xlu0.c.b16.cont [6/8] 0, 128
        %1434 = vxpose.xlu0.c.b16.cont [7/8] 0, 128
        %1435 = vxpose.xlu0.c.b16.end [8/8] 0, 128
        %v1436 = vpop.trf.xlu0
        %v1437 = vpop.trf.xlu0
        %v1438 = vpop.trf.xlu0
        %v1439 = vpop.trf.xlu0
        %v1440 = vpop.trf.xlu0
        %v1441 = vpop.trf.xlu0
        %v1442 = vpop.trf.xlu0
        %v1443 = vpop.trf.xlu0
        %1444 = vxpose.xlu0.c.b16.start [1/8] %v1366, 128
        %1445 = vxpose.xlu0.c.b16.cont [2/8] 0, 128
        %1446 = vxpose.xlu0.c.b16.cont [3/8] 0, 128
        %1447 = vxpose.xlu0.c.b16.cont [4/8] 0, 128
        %1448 = vxpose.xlu0.c.b16.cont [5/8] 0, 128
        %1449 = vxpose.xlu0.c.b16.cont [6/8] 0, 128
        %1450 = vxpose.xlu0.c.b16.cont [7/8] 0, 128
        %1451 = vxpose.xlu0.c.b16.end [8/8] 0, 128
        %v1452 = vpop.trf.xlu0
        %v1453 = vpop.trf.xlu0
        %v1454 = vpop.trf.xlu0
        %v1455 = vpop.trf.xlu0
        %v1456 = vpop.trf.xlu0
        %v1457 = vpop.trf.xlu0
        %v1458 = vpop.trf.xlu0
        %v1459 = vpop.trf.xlu0
        %1460 = vxpose.xlu0.c.b16.start [1/8] %v1370, 128
        %1461 = vxpose.xlu0.c.b16.cont [2/8] 0, 128
        %1462 = vxpose.xlu0.c.b16.cont [3/8] 0, 128
        %1463 = vxpose.xlu0.c.b16.cont [4/8] 0, 128
        %1464 = vxpose.xlu0.c.b16.cont [5/8] 0, 128
        %1465 = vxpose.xlu0.c.b16.cont [6/8] 0, 128
        %1466 = vxpose.xlu0.c.b16.cont [7/8] 0, 128
        %1467 = vxpose.xlu0.c.b16.end [8/8] 0, 128
        %v1468 = vpop.trf.xlu0
        %v1469 = vpop.trf.xlu0
        %v1470 = vpop.trf.xlu0
        %v1471 = vpop.trf.xlu0
        %v1472 = vpop.trf.xlu0
        %v1473 = vpop.trf.xlu0
        %v1474 = vpop.trf.xlu0
        %v1475 = vpop.trf.xlu0
        %1476 = vxpose.xlu0.c.b16.start [1/8] %v1374, 128
        %1477 = vxpose.xlu0.c.b16.cont [2/8] 0, 128
        %1478 = vxpose.xlu0.c.b16.cont [3/8] 0, 128
        %1479 = vxpose.xlu0.c.b16.cont [4/8] 0, 128
        %1480 = vxpose.xlu0.c.b16.cont [5/8] 0, 128
        %1481 = vxpose.xlu0.c.b16.cont [6/8] 0, 128
        %1482 = vxpose.xlu0.c.b16.cont [7/8] 0, 128
        %1483 = vxpose.xlu0.c.b16.end [8/8] 0, 128
        %v1484 = vpop.trf.xlu0
        %v1485 = vpop.trf.xlu0
        %v1486 = vpop.trf.xlu0
        %v1487 = vpop.trf.xlu0
        %v1488 = vpop.trf.xlu0
        %v1489 = vpop.trf.xlu0
        %v1490 = vpop.trf.xlu0
        %v1491 = vpop.trf.xlu0
        %1492 = vxpose.xlu0.c.b16.start [1/8] %v1378, 128
        %1493 = vxpose.xlu0.c.b16.cont [2/8] 0, 128
        %1494 = vxpose.xlu0.c.b16.cont [3/8] 0, 128
        %1495 = vxpose.xlu0.c.b16.cont [4/8] 0, 128
        %1496 = vxpose.xlu0.c.b16.cont [5/8] 0, 128
        %1497 = vxpose.xlu0.c.b16.cont [6/8] 0, 128
        %1498 = vxpose.xlu0.c.b16.cont [7/8] 0, 128
        %1499 = vxpose.xlu0.c.b16.end [8/8] 0, 128
        %v1500 = vpop.trf.xlu0
        %v1501 = vpop.trf.xlu0
        %v1502 = vpop.trf.xlu0
        %v1503 = vpop.trf.xlu0
        %v1504 = vpop.trf.xlu0
        %v1505 = vpop.trf.xlu0
        %v1506 = vpop.trf.xlu0
        %v1507 = vpop.trf.xlu0
        %v1508 = vrot.slane %v1452, 4
        %v1509 = vsel %vm1112, %v1508, %v1388
        %v1511 = vunpack.c.l.s4 1983009808
        %v1512 = vunpack.c.0.s8 %v1511
        %v1513 = vperm.slane %v1509, %v1512
        %v1514 = vrot.slane %v1484, 4
        %v1515 = vsel %vm1112, %v1514, %v1420
        %v1517 = vunpack.c.l.s4 1983009808
        %v1518 = vunpack.c.0.s8 %v1517
        %v1519 = vperm.slane %v1515, %v1518
        %v1520 = vrot.slane %v1519, 4
        %v1521 = vsel %vm1112, %v1520, %v1513
        %v1523 = vunpack.c.l.s4 1934713408
        %v1524 = vunpack.c.0.s8 %v1523
        %v1525 = vperm.slane %v1521, %v1524
        %v1526 = vrot.slane %v1525, 4
        %v1527 = vsel %vm1112, 0, %v1526
        %v1528 = vrot.slane %v1468, 4
        %v1529 = vsel %vm1112, %v1528, %v1404
        %v1531 = vunpack.c.l.s4 1983009808
        %v1532 = vunpack.c.0.s8 %v1531
        %v1533 = vperm.slane %v1529, %v1532
        %v1534 = vrot.slane %v1500, 4
        %v1535 = vsel %vm1112, %v1534, %v1436
        %v1537 = vunpack.c.l.s4 1983009808
        %v1538 = vunpack.c.0.s8 %v1537
        %v1539 = vperm.slane %v1535, %v1538
        %v1540 = vrot.slane %v1539, 4
        %v1541 = vsel %vm1112, %v1540, %v1533
        %v1543 = vunpack.c.l.s4 1934713408
        %v1544 = vunpack.c.0.s8 %v1543
        %v1545 = vperm.slane %v1541, %v1544
        %v1546 = vrot.slane %v1545, 4
        %v1547 = vsel %vm1112, 0, %v1546
        %v1550 = vpack.i.b16 %v1545, %v1525
        %v1551 = vshrl.u32 %v1525, 16
        %v1552 = vshrl.u32 %v1545, 16
        %v1553 = vpack.i.b16 %v1552, %v1551
        %v1556 = vpack.i.b16 %v1547, %v1527
        %v1557 = vshrl.u32 %v1527, 16
        %v1558 = vshrl.u32 %v1547, 16
        %v1559 = vpack.i.b16 %v1558, %v1557
        %vm1560 = vcmask 64512
        %v1562 = vsel %vm1560, %v1154, 0
        %vm1564 = vcmask 1043456
        %v1566 = vsel %vm1564, %v1550, 0
        %1568 = vmatpush.bf16.msra.mxu0 0
        %1569 = vmatpush.bf16.msra.mxu0 0
        %1570 = vmatpush.bf16.msra.mxu0 0
        %1571 = vmatpush.bf16.msra.mxu0 0
        %1572 = vmatpush.bf16.msra.mxu0 0
        %1573 = vmatpush.bf16.msra.mxu0 0
        %1574 = vmatpush.bf16.msra.mxu0 0
        %1575 = vmatpush.bf16.msra.mxu0 %v1566
        %1576 = vmatmul.bf16.gmra.mxu0 %v1562
        %v1577 = vpop.f32.mrf.mxu0
        %v1578 = vadd.f32 0.0, %v1577
        %v1579 = vpop.f32.mrf.mxu0
        %1580 = vdwg.mxu0
        %v1582 = vsel %vm1560, %v1157, 0
        %v1585 = vsel %vm1564, %v1553, 0
        %1587 = vmatpush.bf16.msra.mxu0 0
        %1588 = vmatpush.bf16.msra.mxu0 0
        %1589 = vmatpush.bf16.msra.mxu0 0
        %1590 = vmatpush.bf16.msra.mxu0 0
        %1591 = vmatpush.bf16.msra.mxu0 0
        %1592 = vmatpush.bf16.msra.mxu0 0
        %1593 = vmatpush.bf16.msra.mxu0 0
        %1594 = vmatpush.bf16.msra.mxu0 %v1585
        %1595 = vmatmul.bf16.gmra.mxu0 %v1582
        %v1596 = vpop.f32.mrf.mxu0
        %v1597 = vadd.f32 0.0, %v1596
        %v1598 = vpop.f32.mrf.mxu0
        %1599 = vdwg.mxu0
        %v1601 = vsel %vm1560, %v1160, 0
        %v1604 = vsel %vm1564, %v1556, 0
        %1606 = vmatpush.bf16.msra.mxu0 0
        %1607 = vmatpush.bf16.msra.mxu0 0
        %1608 = vmatpush.bf16.msra.mxu0 0
        %1609 = vmatpush.bf16.msra.mxu0 0
        %1610 = vmatpush.bf16.msra.mxu0 0
        %1611 = vmatpush.bf16.msra.mxu0 0
        %1612 = vmatpush.bf16.msra.mxu0 0
        %1613 = vmatpush.bf16.msra.mxu0 %v1604
        %1614 = vmatmul.bf16.gmra.mxu0 %v1601
        %v1615 = vpop.f32.mrf.mxu0
        %v1616 = vadd.f32 0.0, %v1615
        %v1617 = vpop.f32.mrf.mxu0
        %1618 = vdwg.mxu0
        %v1620 = vsel %vm1560, %v1163, 0
        %v1623 = vsel %vm1564, %v1559, 0
        %1625 = vmatpush.bf16.msra.mxu0 0
        %1626 = vmatpush.bf16.msra.mxu0 0
        %1627 = vmatpush.bf16.msra.mxu0 0
        %1628 = vmatpush.bf16.msra.mxu0 0
        %1629 = vmatpush.bf16.msra.mxu0 0
        %1630 = vmatpush.bf16.msra.mxu0 0
        %1631 = vmatpush.bf16.msra.mxu0 0
        %1632 = vmatpush.bf16.msra.mxu0 %v1623
        %1633 = vmatmul.bf16.gmra.mxu0 %v1620
        %v1634 = vpop.f32.mrf.mxu0
        %v1635 = vadd.f32 0.0, %v1634
        %v1636 = vpop.f32.mrf.mxu0
        %1637 = vdwg.mxu0
        %v1638 = vsel %vm1560, %v1578, -inf
        %1639 = vmax.xlane.f32.xlu0 %v1638
        %v1640 = vpop.xlane.xlu0 %1639
        %v1641 = vsel %vm1560, %v1597, -inf
        %1642 = vmax.xlane.f32.xlu0 %v1641
        %v1643 = vpop.xlane.xlu0 %1642
        %v1644 = vsel %vm1560, %v1616, -inf
        %1645 = vmax.xlane.f32.xlu0 %v1644
        %v1646 = vpop.xlane.xlu0 %1645
        %v1647 = vsel %vm1560, %v1635, -inf
        %1648 = vmax.xlane.f32.xlu0 %v1647
        %v1649 = vpop.xlane.xlu0 %1648
        %v1650 = vsub.f32 %v1578, %v1640
        %v1651 = vsub.f32 %v1597, %v1643
        %v1652 = vsub.f32 %v1616, %v1646
        %v1653 = vsub.f32 %v1635, %v1649
        %v1654 = vmul.f32 %v1650, 1.442695
        %v1655 = vpow.pop %v1654
        %v1656 = vmul.f32 %v1651, 1.442695
        %v1657 = vpow.pop %v1656
        %v1658 = vmul.f32 %v1652, 1.442695
        %v1659 = vpow.pop %v1658
        %v1660 = vmul.f32 %v1653, 1.442695
        %v1661 = vpow.pop %v1660
        %v1662 = vsel %vm1560, %v1655, 0.0
        %1663 = vadd.xlane.f32.xlu0 %v1662
        %v1664 = vpop.xlane.xlu0 %1663
        %v1665 = vsel %vm1560, %v1657, 0.0
        %1666 = vadd.xlane.f32.xlu0 %v1665
        %v1667 = vpop.xlane.xlu0 %1666
        %v1668 = vsel %vm1560, %v1659, 0.0
        %1669 = vadd.xlane.f32.xlu0 %v1668
        %v1670 = vpop.xlane.xlu0 %1669
        %v1671 = vsel %vm1560, %v1661, 0.0
        %1672 = vadd.xlane.f32.xlu0 %v1671
        %v1673 = vpop.xlane.xlu0 %1672
        %v1674 = vrcp.pop %v1664
        %v1675 = vrcp.pop %v1667
        %v1676 = vrcp.pop %v1670
        %v1677 = vrcp.pop %v1673
        %v1678 = vpack.c.bf16 %v1655, %v1655
        %v1679 = vpack.c.bf16 %v1657, %v1657
        %v1680 = vpack.c.bf16 %v1659, %v1659
        %v1681 = vpack.c.bf16 %v1661, %v1661
        %1682 = vxpose.xlu0.c.b16.start [1/8] %v1103, 128
        %1683 = vxpose.xlu0.c.b16.cont [2/8] 0, 128
        %1684 = vxpose.xlu0.c.b16.cont [3/8] 0, 128
        %1685 = vxpose.xlu0.c.b16.cont [4/8] 0, 128
        %1686 = vxpose.xlu0.c.b16.cont [5/8] 0, 128
        %1687 = vxpose.xlu0.c.b16.cont [6/8] 0, 128
        %1688 = vxpose.xlu0.c.b16.cont [7/8] 0, 128
        %1689 = vxpose.xlu0.c.b16.end [8/8] 0, 128
        %v1690 = vpop.trf.xlu0
        %v1691 = vpop.trf.xlu0
        %v1692 = vpop.trf.xlu0
        %v1693 = vpop.trf.xlu0
        %v1694 = vpop.trf.xlu0
        %v1695 = vpop.trf.xlu0
        %v1696 = vpop.trf.xlu0
        %v1697 = vpop.trf.xlu0
        %1698 = vxpose.xlu0.c.b16.start [1/8] %v1104, 128
        %1699 = vxpose.xlu0.c.b16.cont [2/8] 0, 128
        %1700 = vxpose.xlu0.c.b16.cont [3/8] 0, 128
        %1701 = vxpose.xlu0.c.b16.cont [4/8] 0, 128
        %1702 = vxpose.xlu0.c.b16.cont [5/8] 0, 128
        %1703 = vxpose.xlu0.c.b16.cont [6/8] 0, 128
        %1704 = vxpose.xlu0.c.b16.cont [7/8] 0, 128
        %1705 = vxpose.xlu0.c.b16.end [8/8] 0, 128
        %v1706 = vpop.trf.xlu0
        %v1707 = vpop.trf.xlu0
        %v1708 = vpop.trf.xlu0
        %v1709 = vpop.trf.xlu0
        %v1710 = vpop.trf.xlu0
        %v1711 = vpop.trf.xlu0
        %v1712 = vpop.trf.xlu0
        %v1713 = vpop.trf.xlu0
        %1714 = vxpose.xlu0.c.b16.start [1/8] %v1105, 128
        %1715 = vxpose.xlu0.c.b16.cont [2/8] 0, 128
        %1716 = vxpose.xlu0.c.b16.cont [3/8] 0, 128
        %1717 = vxpose.xlu0.c.b16.cont [4/8] 0, 128
        %1718 = vxpose.xlu0.c.b16.cont [5/8] 0, 128
        %1719 = vxpose.xlu0.c.b16.cont [6/8] 0, 128
        %1720 = vxpose.xlu0.c.b16.cont [7/8] 0, 128
        %1721 = vxpose.xlu0.c.b16.end [8/8] 0, 128
        %v1722 = vpop.trf.xlu0
        %v1723 = vpop.trf.xlu0
        %v1724 = vpop.trf.xlu0
        %v1725 = vpop.trf.xlu0
        %v1726 = vpop.trf.xlu0
        %v1727 = vpop.trf.xlu0
        %v1728 = vpop.trf.xlu0
        %v1729 = vpop.trf.xlu0
        %1730 = vxpose.xlu0.c.b16.start [1/8] %v1106, 128
        %1731 = vxpose.xlu0.c.b16.cont [2/8] 0, 128
        %1732 = vxpose.xlu0.c.b16.cont [3/8] 0, 128
        %1733 = vxpose.xlu0.c.b16.cont [4/8] 0, 128
        %1734 = vxpose.xlu0.c.b16.cont [5/8] 0, 128
        %1735 = vxpose.xlu0.c.b16.cont [6/8] 0, 128
        %1736 = vxpose.xlu0.c.b16.cont [7/8] 0, 128
        %1737 = vxpose.xlu0.c.b16.end [8/8] 0, 128
        %v1738 = vpop.trf.xlu0
        %v1739 = vpop.trf.xlu0
        %v1740 = vpop.trf.xlu0
        %v1741 = vpop.trf.xlu0
        %v1742 = vpop.trf.xlu0
        %v1743 = vpop.trf.xlu0
        %v1744 = vpop.trf.xlu0
        %v1745 = vpop.trf.xlu0
        %1746 = vxpose.xlu0.c.b16.start [1/8] %v1107, 128
        %1747 = vxpose.xlu0.c.b16.cont [2/8] 0, 128
        %1748 = vxpose.xlu0.c.b16.cont [3/8] 0, 128
        %1749 = vxpose.xlu0.c.b16.cont [4/8] 0, 128
        %1750 = vxpose.xlu0.c.b16.cont [5/8] 0, 128
        %1751 = vxpose.xlu0.c.b16.cont [6/8] 0, 128
        %1752 = vxpose.xlu0.c.b16.cont [7/8] 0, 128
        %1753 = vxpose.xlu0.c.b16.end [8/8] 0, 128
        %v1754 = vpop.trf.xlu0
        %v1755 = vpop.trf.xlu0
        %v1756 = vpop.trf.xlu0
        %v1757 = vpop.trf.xlu0
        %v1758 = vpop.trf.xlu0
        %v1759 = vpop.trf.xlu0
        %v1760 = vpop.trf.xlu0
        %v1761 = vpop.trf.xlu0
        %1762 = vxpose.xlu0.c.b16.start [1/8] %v1108, 128
        %1763 = vxpose.xlu0.c.b16.cont [2/8] 0, 128
        %1764 = vxpose.xlu0.c.b16.cont [3/8] 0, 128
        %1765 = vxpose.xlu0.c.b16.cont [4/8] 0, 128
        %1766 = vxpose.xlu0.c.b16.cont [5/8] 0, 128
        %1767 = vxpose.xlu0.c.b16.cont [6/8] 0, 128
        %1768 = vxpose.xlu0.c.b16.cont [7/8] 0, 128
        %1769 = vxpose.xlu0.c.b16.end [8/8] 0, 128
        %v1770 = vpop.trf.xlu0
        %v1771 = vpop.trf.xlu0
        %v1772 = vpop.trf.xlu0
        %v1773 = vpop.trf.xlu0
        %v1774 = vpop.trf.xlu0
        %v1775 = vpop.trf.xlu0
        %v1776 = vpop.trf.xlu0
        %v1777 = vpop.trf.xlu0
        %1778 = vxpose.xlu0.c.b16.start [1/8] %v1109, 128
        %1779 = vxpose.xlu0.c.b16.cont [2/8] 0, 128
        %1780 = vxpose.xlu0.c.b16.cont [3/8] 0, 128
        %1781 = vxpose.xlu0.c.b16.cont [4/8] 0, 128
        %1782 = vxpose.xlu0.c.b16.cont [5/8] 0, 128
        %1783 = vxpose.xlu0.c.b16.cont [6/8] 0, 128
        %1784 = vxpose.xlu0.c.b16.cont [7/8] 0, 128
        %1785 = vxpose.xlu0.c.b16.end [8/8] 0, 128
        %v1786 = vpop.trf.xlu0
        %v1787 = vpop.trf.xlu0
        %v1788 = vpop.trf.xlu0
        %v1789 = vpop.trf.xlu0
        %v1790 = vpop.trf.xlu0
        %v1791 = vpop.trf.xlu0
        %v1792 = vpop.trf.xlu0
        %v1793 = vpop.trf.xlu0
        %1794 = vxpose.xlu0.c.b16.start [1/8] %v1110, 128
        %1795 = vxpose.xlu0.c.b16.cont [2/8] 0, 128
        %1796 = vxpose.xlu0.c.b16.cont [3/8] 0, 128
        %1797 = vxpose.xlu0.c.b16.cont [4/8] 0, 128
        %1798 = vxpose.xlu0.c.b16.cont [5/8] 0, 128
        %1799 = vxpose.xlu0.c.b16.cont [6/8] 0, 128
        %1800 = vxpose.xlu0.c.b16.cont [7/8] 0, 128
        %1801 = vxpose.xlu0.c.b16.end [8/8] 0, 128
        %v1802 = vpop.trf.xlu0
        %v1803 = vpop.trf.xlu0
        %v1804 = vpop.trf.xlu0
        %v1805 = vpop.trf.xlu0
        %v1806 = vpop.trf.xlu0
        %v1807 = vpop.trf.xlu0
        %v1808 = vpop.trf.xlu0
        %v1809 = vpop.trf.xlu0
        %v1810 = vrot.slane %v1754, 4
        %v1811 = vsel %vm1112, %v1810, %v1690
        %v1813 = vunpack.c.l.s4 1983009808
        %v1814 = vunpack.c.0.s8 %v1813
        %v1815 = vperm.slane %v1811, %v1814
        %v1816 = vrot.slane %v1786, 4
        %v1817 = vsel %vm1112, %v1816, %v1722
        %v1819 = vunpack.c.l.s4 1983009808
        %v1820 = vunpack.c.0.s8 %v1819
        %v1821 = vperm.slane %v1817, %v1820
        %v1822 = vrot.slane %v1821, 4
        %v1823 = vsel %vm1112, %v1822, %v1815
        %v1824 = vrot.slane %v1815, 4
        %v1825 = vsel %vm1112, %v1821, %v1824
        %v1827 = vunpack.c.l.s4 1934713408
        %v1828 = vunpack.c.0.s8 %v1827
        %v1829 = vperm.slane %v1823, %v1828
        %v1831 = vunpack.c.l.s4 1934713408
        %v1832 = vunpack.c.0.s8 %v1831
        %v1833 = vperm.slane %v1825, %v1832
        %v1834 = vrot.slane %v1829, 4
        %v1835 = vsel %vm1112, 0, %v1834
        %v1836 = vrot.slane %v1833, 4
        %v1837 = vsel %vm1112, 0, %v1836
        %v1838 = vrot.slane %v1770, 4
        %v1839 = vsel %vm1112, %v1838, %v1706
        %v1841 = vunpack.c.l.s4 1983009808
        %v1842 = vunpack.c.0.s8 %v1841
        %v1843 = vperm.slane %v1839, %v1842
        %v1844 = vrot.slane %v1802, 4
        %v1845 = vsel %vm1112, %v1844, %v1738
        %v1847 = vunpack.c.l.s4 1983009808
        %v1848 = vunpack.c.0.s8 %v1847
        %v1849 = vperm.slane %v1845, %v1848
        %v1850 = vrot.slane %v1849, 4
        %v1851 = vsel %vm1112, %v1850, %v1843
        %v1852 = vrot.slane %v1843, 4
        %v1853 = vsel %vm1112, %v1849, %v1852
        %v1855 = vunpack.c.l.s4 1934713408
        %v1856 = vunpack.c.0.s8 %v1855
        %v1857 = vperm.slane %v1851, %v1856
        %v1859 = vunpack.c.l.s4 1934713408
        %v1860 = vunpack.c.0.s8 %v1859
        %v1861 = vperm.slane %v1853, %v1860
        %v1862 = vrot.slane %v1857, 4
        %v1863 = vsel %vm1112, 0, %v1862
        %v1864 = vrot.slane %v1861, 4
        %v1865 = vsel %vm1112, 0, %v1864
        %v1868 = vpack.i.b16 %v1857, %v1829
        %v1870 = vshrl.u32 %v1829, 16
        %v1871 = vshrl.u32 %v1857, 16
        %v1872 = vpack.i.b16 %v1871, %v1870
        %v1876 = vpack.i.b16 %v1863, %v1835
        %v1878 = vshrl.u32 %v1835, 16
        %v1879 = vshrl.u32 %v1863, 16
        %v1880 = vpack.i.b16 %v1879, %v1878
        %v1884 = vpack.i.b16 %v1861, %v1833
        %v1886 = vshrl.u32 %v1833, 16
        %v1887 = vshrl.u32 %v1861, 16
        %v1888 = vpack.i.b16 %v1887, %v1886
        %v1892 = vpack.i.b16 %v1865, %v1837
        %v1894 = vshrl.u32 %v1837, 16
        %v1895 = vshrl.u32 %v1865, 16
        %v1896 = vpack.i.b16 %v1895, %v1894
        %1898 = vxpose.xlu0.c.b16.start [1/8] %v1868, 128
        %1899 = vxpose.xlu0.c.b16.cont [2/8] 0, 128
        %1900 = vxpose.xlu0.c.b16.cont [3/8] 0, 128
        %1901 = vxpose.xlu0.c.b16.cont [4/8] 0, 128
        %1902 = vxpose.xlu0.c.b16.cont [5/8] 0, 128
        %1903 = vxpose.xlu0.c.b16.cont [6/8] 0, 128
        %1904 = vxpose.xlu0.c.b16.cont [7/8] 0, 128
        %1905 = vxpose.xlu0.c.b16.end [8/8] 0, 128
        %v1906 = vpop.trf.xlu0
        %v1907 = vpop.trf.xlu0
        %v1908 = vpop.trf.xlu0
        %v1909 = vpop.trf.xlu0
        %v1910 = vpop.trf.xlu0
        %v1911 = vpop.trf.xlu0
        %v1912 = vpop.trf.xlu0
        %v1913 = vpop.trf.xlu0
        %1914 = vxpose.xlu0.c.b16.start [1/8] %v1872, 128
        %1915 = vxpose.xlu0.c.b16.cont [2/8] 0, 128
        %1916 = vxpose.xlu0.c.b16.cont [3/8] 0, 128
        %1917 = vxpose.xlu0.c.b16.cont [4/8] 0, 128
        %1918 = vxpose.xlu0.c.b16.cont [5/8] 0, 128
        %1919 = vxpose.xlu0.c.b16.cont [6/8] 0, 128
        %1920 = vxpose.xlu0.c.b16.cont [7/8] 0, 128
        %1921 = vxpose.xlu0.c.b16.end [8/8] 0, 128
        %v1922 = vpop.trf.xlu0
        %v1923 = vpop.trf.xlu0
        %v1924 = vpop.trf.xlu0
        %v1925 = vpop.trf.xlu0
        %v1926 = vpop.trf.xlu0
        %v1927 = vpop.trf.xlu0
        %v1928 = vpop.trf.xlu0
        %v1929 = vpop.trf.xlu0
        %1930 = vxpose.xlu0.c.b16.start [1/8] %v1876, 128
        %1931 = vxpose.xlu0.c.b16.cont [2/8] 0, 128
        %1932 = vxpose.xlu0.c.b16.cont [3/8] 0, 128
        %1933 = vxpose.xlu0.c.b16.cont [4/8] 0, 128
        %1934 = vxpose.xlu0.c.b16.cont [5/8] 0, 128
        %1935 = vxpose.xlu0.c.b16.cont [6/8] 0, 128
        %1936 = vxpose.xlu0.c.b16.cont [7/8] 0, 128
        %1937 = vxpose.xlu0.c.b16.end [8/8] 0, 128
        %v1938 = vpop.trf.xlu0
        %v1939 = vpop.trf.xlu0
        %v1940 = vpop.trf.xlu0
        %v1941 = vpop.trf.xlu0
        %v1942 = vpop.trf.xlu0
        %v1943 = vpop.trf.xlu0
        %v1944 = vpop.trf.xlu0
        %v1945 = vpop.trf.xlu0
        %1946 = vxpose.xlu0.c.b16.start [1/8] %v1880, 128
        %1947 = vxpose.xlu0.c.b16.cont [2/8] 0, 128
        %1948 = vxpose.xlu0.c.b16.cont [3/8] 0, 128
        %1949 = vxpose.xlu0.c.b16.cont [4/8] 0, 128
        %1950 = vxpose.xlu0.c.b16.cont [5/8] 0, 128
        %1951 = vxpose.xlu0.c.b16.cont [6/8] 0, 128
        %1952 = vxpose.xlu0.c.b16.cont [7/8] 0, 128
        %1953 = vxpose.xlu0.c.b16.end [8/8] 0, 128
        %v1954 = vpop.trf.xlu0
        %v1955 = vpop.trf.xlu0
        %v1956 = vpop.trf.xlu0
        %v1957 = vpop.trf.xlu0
        %v1958 = vpop.trf.xlu0
        %v1959 = vpop.trf.xlu0
        %v1960 = vpop.trf.xlu0
        %v1961 = vpop.trf.xlu0
        %1962 = vxpose.xlu0.c.b16.start [1/8] %v1884, 128
        %1963 = vxpose.xlu0.c.b16.cont [2/8] 0, 128
        %1964 = vxpose.xlu0.c.b16.cont [3/8] 0, 128
        %1965 = vxpose.xlu0.c.b16.cont [4/8] 0, 128
        %1966 = vxpose.xlu0.c.b16.cont [5/8] 0, 128
        %1967 = vxpose.xlu0.c.b16.cont [6/8] 0, 128
        %1968 = vxpose.xlu0.c.b16.cont [7/8] 0, 128
        %1969 = vxpose.xlu0.c.b16.end [8/8] 0, 128
        %v1970 = vpop.trf.xlu0
        %v1971 = vpop.trf.xlu0
        %v1972 = vpop.trf.xlu0
        %v1973 = vpop.trf.xlu0
        %v1974 = vpop.trf.xlu0
        %v1975 = vpop.trf.xlu0
        %v1976 = vpop.trf.xlu0
        %v1977 = vpop.trf.xlu0
        %1978 = vxpose.xlu0.c.b16.start [1/8] %v1888, 128
        %1979 = vxpose.xlu0.c.b16.cont [2/8] 0, 128
        %1980 = vxpose.xlu0.c.b16.cont [3/8] 0, 128
        %1981 = vxpose.xlu0.c.b16.cont [4/8] 0, 128
        %1982 = vxpose.xlu0.c.b16.cont [5/8] 0, 128
        %1983 = vxpose.xlu0.c.b16.cont [6/8] 0, 128
        %1984 = vxpose.xlu0.c.b16.cont [7/8] 0, 128
        %1985 = vxpose.xlu0.c.b16.end [8/8] 0, 128
        %v1986 = vpop.trf.xlu0
        %v1987 = vpop.trf.xlu0
        %v1988 = vpop.trf.xlu0
        %v1989 = vpop.trf.xlu0
        %v1990 = vpop.trf.xlu0
        %v1991 = vpop.trf.xlu0
        %v1992 = vpop.trf.xlu0
        %v1993 = vpop.trf.xlu0
        %1994 = vxpose.xlu0.c.b16.start [1/8] %v1892, 128
        %1995 = vxpose.xlu0.c.b16.cont [2/8] 0, 128
        %1996 = vxpose.xlu0.c.b16.cont [3/8] 0, 128
        %1997 = vxpose.xlu0.c.b16.cont [4/8] 0, 128
        %1998 = vxpose.xlu0.c.b16.cont [5/8] 0, 128
        %1999 = vxpose.xlu0.c.b16.cont [6/8] 0, 128
        %2000 = vxpose.xlu0.c.b16.cont [7/8] 0, 128
        %2001 = vxpose.xlu0.c.b16.end [8/8] 0, 128
        %v2002 = vpop.trf.xlu0
        %v2003 = vpop.trf.xlu0
        %v2004 = vpop.trf.xlu0
        %v2005 = vpop.trf.xlu0
        %v2006 = vpop.trf.xlu0
        %v2007 = vpop.trf.xlu0
        %v2008 = vpop.trf.xlu0
        %v2009 = vpop.trf.xlu0
        %2010 = vxpose.xlu0.c.b16.start [1/8] %v1896, 128
        %2011 = vxpose.xlu0.c.b16.cont [2/8] 0, 128
        %2012 = vxpose.xlu0.c.b16.cont [3/8] 0, 128
        %2013 = vxpose.xlu0.c.b16.cont [4/8] 0, 128
        %2014 = vxpose.xlu0.c.b16.cont [5/8] 0, 128
        %2015 = vxpose.xlu0.c.b16.cont [6/8] 0, 128
        %2016 = vxpose.xlu0.c.b16.cont [7/8] 0, 128
        %2017 = vxpose.xlu0.c.b16.end [8/8] 0, 128
        %v2018 = vpop.trf.xlu0
        %v2019 = vpop.trf.xlu0
        %v2020 = vpop.trf.xlu0
        %v2021 = vpop.trf.xlu0
        %v2022 = vpop.trf.xlu0
        %v2023 = vpop.trf.xlu0
        %v2024 = vpop.trf.xlu0
        %v2025 = vpop.trf.xlu0
        %v2026 = vrot.slane %v1970, 4
        %v2027 = vsel %vm1112, %v2026, %v1906
        %v2029 = vunpack.c.l.s4 1983009808
        %v2030 = vunpack.c.0.s8 %v2029
        %v2031 = vperm.slane %v2027, %v2030
        %v2032 = vrot.slane %v2002, 4
        %v2033 = vsel %vm1112, %v2032, %v1938
        %v2035 = vunpack.c.l.s4 1983009808
        %v2036 = vunpack.c.0.s8 %v2035
        %v2037 = vperm.slane %v2033, %v2036
        %v2038 = vrot.slane %v2037, 4
        %v2039 = vsel %vm1112, %v2038, %v2031
        %v2041 = vunpack.c.l.s4 1934713408
        %v2042 = vunpack.c.0.s8 %v2041
        %v2043 = vperm.slane %v2039, %v2042
        %v2044 = vrot.slane %v2043, 4
        %v2045 = vsel %vm1112, 0, %v2044
        %v2046 = vrot.slane %v1986, 4
        %v2047 = vsel %vm1112, %v2046, %v1922
        %v2049 = vunpack.c.l.s4 1983009808
        %v2050 = vunpack.c.0.s8 %v2049
        %v2051 = vperm.slane %v2047, %v2050
        %v2052 = vrot.slane %v2018, 4
        %v2053 = vsel %vm1112, %v2052, %v1954
        %v2055 = vunpack.c.l.s4 1983009808
        %v2056 = vunpack.c.0.s8 %v2055
        %v2057 = vperm.slane %v2053, %v2056
        %v2058 = vrot.slane %v2057, 4
        %v2059 = vsel %vm1112, %v2058, %v2051
        %v2061 = vunpack.c.l.s4 1934713408
        %v2062 = vunpack.c.0.s8 %v2061
        %v2063 = vperm.slane %v2059, %v2062
        %v2064 = vrot.slane %v2063, 4
        %v2065 = vsel %vm1112, 0, %v2064
        %v2068 = vpack.i.b16 %v2063, %v2043
        %v2069 = vshrl.u32 %v2043, 16
        %v2070 = vshrl.u32 %v2063, 16
        %v2071 = vpack.i.b16 %v2070, %v2069
        %v2074 = vpack.i.b16 %v2065, %v2045
        %v2075 = vshrl.u32 %v2045, 16
        %v2076 = vshrl.u32 %v2065, 16
        %v2077 = vpack.i.b16 %v2076, %v2075
        %v2079 = vsel %vm1560, %v2068, 0
        %v2082 = vsel %vm1560, %v1678, 0
        %2084 = vmatpush.bf16.xpose.msra.mxu0 0
        %2085 = vmatpush.bf16.xpose.msra.mxu0 0
        %2086 = vmatpush.bf16.xpose.msra.mxu0 0
        %2087 = vmatpush.bf16.xpose.msra.mxu0 0
        %2088 = vmatpush.bf16.xpose.msra.mxu0 0
        %2089 = vmatpush.bf16.xpose.msra.mxu0 0
        %2090 = vmatpush.bf16.xpose.msra.mxu0 0
        %2091 = vmatpush.bf16.xpose.msra.mxu0 %v2082
        %2092 = vmatmul.bf16.gmra.mxu0 %v2079
        %v2093 = vpop.f32.mrf.mxu0
        %v2094 = vadd.f32 0.0, %v2093
        %v2095 = vpop.f32.mrf.mxu0
        %2096 = vdwg.mxu0
        %v2098 = vsel %vm1560, %v2071, 0
        %v2101 = vsel %vm1560, %v1679, 0
        %2103 = vmatpush.bf16.xpose.msra.mxu0 0
        %2104 = vmatpush.bf16.xpose.msra.mxu0 0
        %2105 = vmatpush.bf16.xpose.msra.mxu0 0
        %2106 = vmatpush.bf16.xpose.msra.mxu0 0
        %2107 = vmatpush.bf16.xpose.msra.mxu0 0
        %2108 = vmatpush.bf16.xpose.msra.mxu0 0
        %2109 = vmatpush.bf16.xpose.msra.mxu0 0
        %2110 = vmatpush.bf16.xpose.msra.mxu0 %v2101
        %2111 = vmatmul.bf16.gmra.mxu0 %v2098
        %v2112 = vpop.f32.mrf.mxu0
        %v2113 = vadd.f32 0.0, %v2112
        %v2114 = vpop.f32.mrf.mxu0
        %2115 = vdwg.mxu0
        %v2117 = vsel %vm1560, %v2074, 0
        %v2120 = vsel %vm1560, %v1680, 0
        %2122 = vmatpush.bf16.xpose.msra.mxu0 0
        %2123 = vmatpush.bf16.xpose.msra.mxu0 0
        %2124 = vmatpush.bf16.xpose.msra.mxu0 0
        %2125 = vmatpush.bf16.xpose.msra.mxu0 0
        %2126 = vmatpush.bf16.xpose.msra.mxu0 0
        %2127 = vmatpush.bf16.xpose.msra.mxu0 0
        %2128 = vmatpush.bf16.xpose.msra.mxu0 0
        %2129 = vmatpush.bf16.xpose.msra.mxu0 %v2120
        %2130 = vmatmul.bf16.gmra.mxu0 %v2117
        %v2131 = vpop.f32.mrf.mxu0
        %v2132 = vadd.f32 0.0, %v2131
        %v2133 = vpop.f32.mrf.mxu0
        %2134 = vdwg.mxu0
        %v2136 = vsel %vm1560, %v2077, 0
        %v2139 = vsel %vm1560, %v1681, 0
        %2141 = vmatpush.bf16.xpose.msra.mxu0 0
        %2142 = vmatpush.bf16.xpose.msra.mxu0 0
        %2143 = vmatpush.bf16.xpose.msra.mxu0 0
        %2144 = vmatpush.bf16.xpose.msra.mxu0 0
        %2145 = vmatpush.bf16.xpose.msra.mxu0 0
        %2146 = vmatpush.bf16.xpose.msra.mxu0 0
        %2147 = vmatpush.bf16.xpose.msra.mxu0 0
        %2148 = vmatpush.bf16.xpose.msra.mxu0 %v2139
        %2149 = vmatmul.bf16.gmra.mxu0 %v2136
        %v2150 = vpop.f32.mrf.mxu0
        %v2151 = vadd.f32 0.0, %v2150
        %v2152 = vpop.f32.mrf.mxu0
        %2153 = vdwg.mxu0
        %2154 = vxpose.xlu0.b32.start [1/16] %v2094, 128
        %2155 = vxpose.xlu0.b32.cont [2/16] 0.0, 128
        %2156 = vxpose.xlu0.b32.cont [3/16] 0.0, 128
        %2157 = vxpose.xlu0.b32.cont [4/16] 0.0, 128
        %2158 = vxpose.xlu0.b32.cont [5/16] 0.0, 128
        %2159 = vxpose.xlu0.b32.cont [6/16] 0.0, 128
        %2160 = vxpose.xlu0.b32.cont [7/16] 0.0, 128
        %2161 = vxpose.xlu0.b32.cont [8/16] 0.0, 128
        %2162 = vxpose.xlu0.b32.cont [9/16] 0.0, 128
        %2163 = vxpose.xlu0.b32.cont [10/16] 0.0, 128
        %2164 = vxpose.xlu0.b32.cont [11/16] 0.0, 128
        %2165 = vxpose.xlu0.b32.cont [12/16] 0.0, 128
        %2166 = vxpose.xlu0.b32.cont [13/16] 0.0, 128
        %2167 = vxpose.xlu0.b32.cont [14/16] 0.0, 128
        %2168 = vxpose.xlu0.b32.cont [15/16] 0.0, 128
        %2169 = vxpose.xlu0.b32.end [16/16] 0.0, 128
        %v2170 = vpop.trf.xlu0
        %v2171 = vpop.trf.xlu0
        %v2172 = vpop.trf.xlu0
        %v2173 = vpop.trf.xlu0
        %v2174 = vpop.trf.xlu0
        %v2175 = vpop.trf.xlu0
        %v2176 = vpop.trf.xlu0
        %v2177 = vpop.trf.xlu0
        %v2178 = vpop.trf.xlu0
        %v2179 = vpop.trf.xlu0
        %v2180 = vpop.trf.xlu0
        %v2181 = vpop.trf.xlu0
        %v2182 = vpop.trf.xlu0
        %v2183 = vpop.trf.xlu0
        %v2184 = vpop.trf.xlu0
        %v2185 = vpop.trf.xlu0
        %2186 = vxpose.xlu0.b32.start [1/16] %v2113, 128
        %2187 = vxpose.xlu0.b32.cont [2/16] 0.0, 128
        %2188 = vxpose.xlu0.b32.cont [3/16] 0.0, 128
        %2189 = vxpose.xlu0.b32.cont [4/16] 0.0, 128
        %2190 = vxpose.xlu0.b32.cont [5/16] 0.0, 128
        %2191 = vxpose.xlu0.b32.cont [6/16] 0.0, 128
        %2192 = vxpose.xlu0.b32.cont [7/16] 0.0, 128
        %2193 = vxpose.xlu0.b32.cont [8/16] 0.0, 128
        %2194 = vxpose.xlu0.b32.cont [9/16] 0.0, 128
        %2195 = vxpose.xlu0.b32.cont [10/16] 0.0, 128
        %2196 = vxpose.xlu0.b32.cont [11/16] 0.0, 128
        %2197 = vxpose.xlu0.b32.cont [12/16] 0.0, 128
        %2198 = vxpose.xlu0.b32.cont [13/16] 0.0, 128
        %2199 = vxpose.xlu0.b32.cont [14/16] 0.0, 128
        %2200 = vxpose.xlu0.b32.cont [15/16] 0.0, 128
        %2201 = vxpose.xlu0.b32.end [16/16] 0.0, 128
        %v2202 = vpop.trf.xlu0
        %v2203 = vpop.trf.xlu0
        %v2204 = vpop.trf.xlu0
        %v2205 = vpop.trf.xlu0
        %v2206 = vpop.trf.xlu0
        %v2207 = vpop.trf.xlu0
        %v2208 = vpop.trf.xlu0
        %v2209 = vpop.trf.xlu0
        %v2210 = vpop.trf.xlu0
        %v2211 = vpop.trf.xlu0
        %v2212 = vpop.trf.xlu0
        %v2213 = vpop.trf.xlu0
        %v2214 = vpop.trf.xlu0
        %v2215 = vpop.trf.xlu0
        %v2216 = vpop.trf.xlu0
        %v2217 = vpop.trf.xlu0
        %2218 = vxpose.xlu0.b32.start [1/16] %v2132, 128
        %2219 = vxpose.xlu0.b32.cont [2/16] 0.0, 128
        %2220 = vxpose.xlu0.b32.cont [3/16] 0.0, 128
        %2221 = vxpose.xlu0.b32.cont [4/16] 0.0, 128
        %2222 = vxpose.xlu0.b32.cont [5/16] 0.0, 128
        %2223 = vxpose.xlu0.b32.cont [6/16] 0.0, 128
        %2224 = vxpose.xlu0.b32.cont [7/16] 0.0, 128
        %2225 = vxpose.xlu0.b32.cont [8/16] 0.0, 128
        %2226 = vxpose.xlu0.b32.cont [9/16] 0.0, 128
        %2227 = vxpose.xlu0.b32.cont [10/16] 0.0, 128
        %2228 = vxpose.xlu0.b32.cont [11/16] 0.0, 128
        %2229 = vxpose.xlu0.b32.cont [12/16] 0.0, 128
        %2230 = vxpose.xlu0.b32.cont [13/16] 0.0, 128
        %2231 = vxpose.xlu0.b32.cont [14/16] 0.0, 128
        %2232 = vxpose.xlu0.b32.cont [15/16] 0.0, 128
        %2233 = vxpose.xlu0.b32.end [16/16] 0.0, 128
        %v2234 = vpop.trf.xlu0
        %v2235 = vpop.trf.xlu0
        %v2236 = vpop.trf.xlu0
        %v2237 = vpop.trf.xlu0
        %v2238 = vpop.trf.xlu0
        %v2239 = vpop.trf.xlu0
        %v2240 = vpop.trf.xlu0
        %v2241 = vpop.trf.xlu0
        %v2242 = vpop.trf.xlu0
        %v2243 = vpop.trf.xlu0
        %v2244 = vpop.trf.xlu0
        %v2245 = vpop.trf.xlu0
        %v2246 = vpop.trf.xlu0
        %v2247 = vpop.trf.xlu0
        %v2248 = vpop.trf.xlu0
        %v2249 = vpop.trf.xlu0
        %2250 = vxpose.xlu0.b32.start [1/16] %v2151, 128
        %2251 = vxpose.xlu0.b32.cont [2/16] 0.0, 128
        %2252 = vxpose.xlu0.b32.cont [3/16] 0.0, 128
        %2253 = vxpose.xlu0.b32.cont [4/16] 0.0, 128
        %2254 = vxpose.xlu0.b32.cont [5/16] 0.0, 128
        %2255 = vxpose.xlu0.b32.cont [6/16] 0.0, 128
        %2256 = vxpose.xlu0.b32.cont [7/16] 0.0, 128
        %2257 = vxpose.xlu0.b32.cont [8/16] 0.0, 128
        %2258 = vxpose.xlu0.b32.cont [9/16] 0.0, 128
        %2259 = vxpose.xlu0.b32.cont [10/16] 0.0, 128
        %2260 = vxpose.xlu0.b32.cont [11/16] 0.0, 128
        %2261 = vxpose.xlu0.b32.cont [12/16] 0.0, 128
        %2262 = vxpose.xlu0.b32.cont [13/16] 0.0, 128
        %2263 = vxpose.xlu0.b32.cont [14/16] 0.0, 128
        %2264 = vxpose.xlu0.b32.cont [15/16] 0.0, 128
        %2265 = vxpose.xlu0.b32.end [16/16] 0.0, 128
        %v2266 = vpop.trf.xlu0
        %v2267 = vpop.trf.xlu0
        %v2268 = vpop.trf.xlu0
        %v2269 = vpop.trf.xlu0
        %v2270 = vpop.trf.xlu0
        %v2271 = vpop.trf.xlu0
        %v2272 = vpop.trf.xlu0
        %v2273 = vpop.trf.xlu0
        %v2274 = vpop.trf.xlu0
        %v2275 = vpop.trf.xlu0
        %v2276 = vpop.trf.xlu0
        %v2277 = vpop.trf.xlu0
        %v2278 = vpop.trf.xlu0
        %v2279 = vpop.trf.xlu0
        %v2280 = vpop.trf.xlu0
        %v2281 = vpop.trf.xlu0
        %v2282 = vrot.slane %v2234, 4
        %v2283 = vsel %vm899, %v2282, %v2170
        %v2284 = vrot.slane %v2170, 4
        %v2285 = vsel %vm899, %v2234, %v2284
        %v2287 = vunpack.c.l.s4 1983009808
        %v2288 = vunpack.c.0.s8 %v2287
        %v2289 = vperm.slane %v2283, %v2288
        %v2291 = vunpack.c.l.s4 1983009808
        %v2292 = vunpack.c.0.s8 %v2291
        %v2293 = vperm.slane %v2285, %v2292
        %v2294 = vrot.slane %v2266, 4
        %v2295 = vsel %vm899, %v2294, %v2202
        %v2296 = vrot.slane %v2202, 4
        %v2297 = vsel %vm899, %v2266, %v2296
        %v2299 = vunpack.c.l.s4 1983009808
        %v2300 = vunpack.c.0.s8 %v2299
        %v2301 = vperm.slane %v2295, %v2300
        %v2303 = vunpack.c.l.s4 1983009808
        %v2304 = vunpack.c.0.s8 %v2303
        %v2305 = vperm.slane %v2297, %v2304
        %v2306 = vrot.slane %v2301, 4
        %v2307 = vsel %vm899, %v2306, %v2289
        %v2308 = vrot.slane %v2289, 4
        %v2309 = vsel %vm899, %v2301, %v2308
        %v2311 = vunpack.c.l.s4 1934713408
        %v2312 = vunpack.c.0.s8 %v2311
        %v2313 = vperm.slane %v2307, %v2312
        %v2315 = vunpack.c.l.s4 1934713408
        %v2316 = vunpack.c.0.s8 %v2315
        %v2317 = vperm.slane %v2309, %v2316
        %v2318 = vrot.slane %v2305, 4
        %v2319 = vsel %vm899, %v2318, %v2293
        %v2320 = vrot.slane %v2293, 4
        %v2321 = vsel %vm899, %v2305, %v2320
        %v2323 = vunpack.c.l.s4 1934713408
        %v2324 = vunpack.c.0.s8 %v2323
        %v2325 = vperm.slane %v2319, %v2324
        %v2327 = vunpack.c.l.s4 1934713408
        %v2328 = vunpack.c.0.s8 %v2327
        %v2329 = vperm.slane %v2321, %v2328
        %v2330 = vrot.slane %v2313, 4
        %v2331 = vsel %vm899, 0.0, %v2330
        %v2332 = vrot.slane %v2317, 4
        %v2333 = vsel %vm899, 0.0, %v2332
        %v2334 = vrot.slane %v2325, 4
        %v2335 = vsel %vm899, 0.0, %v2334
        %v2336 = vrot.slane %v2329, 4
        %v2337 = vsel %vm899, 0.0, %v2336
        %v2342 = vlaneseq
        %v2343 = vand.u32 %v2342, 127
        %v2344 = vperm.slane %v1674, %v2343
        %v2345 = vperm.slane %v1675, %v2343
        %v2346 = vperm.slane %v1676, %v2343
        %v2347 = vperm.slane %v1677, %v2343
        %vm2348 = vcmask 1041409
        %v2349 = vsel %vm2348, %v2345, %v2344
        %vm2350 = vcmask 1042434
        %v2351 = vsel %vm2350, %v2346, %v2349
        %vm2352 = vcmask 1043459
        %v2353 = vsel %vm2352, %v2347, %v2351
        %2355 = vxpose.xlu0.b32.start [1/16] %v2353, 128
        %2356 = vxpose.xlu0.b32.cont [2/16] 0.0, 128
        %2357 = vxpose.xlu0.b32.cont [3/16] 0.0, 128
        %2358 = vxpose.xlu0.b32.cont [4/16] 0.0, 128
        %2359 = vxpose.xlu0.b32.cont [5/16] 0.0, 128
        %2360 = vxpose.xlu0.b32.cont [6/16] 0.0, 128
        %2361 = vxpose.xlu0.b32.cont [7/16] 0.0, 128
        %2362 = vxpose.xlu0.b32.cont [8/16] 0.0, 128
        %2363 = vxpose.xlu0.b32.cont [9/16] 0.0, 128
        %2364 = vxpose.xlu0.b32.cont [10/16] 0.0, 128
        %2365 = vxpose.xlu0.b32.cont [11/16] 0.0, 128
        %2366 = vxpose.xlu0.b32.cont [12/16] 0.0, 128
        %2367 = vxpose.xlu0.b32.cont [13/16] 0.0, 128
        %2368 = vxpose.xlu0.b32.cont [14/16] 0.0, 128
        %2369 = vxpose.xlu0.b32.cont [15/16] 0.0, 128
        %2370 = vxpose.xlu0.b32.end [16/16] 0.0, 128
        %v2371 = vpop.trf.xlu0
        %v2372 = vpop.trf.xlu0
        %v2373 = vpop.trf.xlu0
        %v2374 = vpop.trf.xlu0
        %v2375 = vpop.trf.xlu0
        %v2376 = vpop.trf.xlu0
        %v2377 = vpop.trf.xlu0
        %v2378 = vpop.trf.xlu0
        %v2379 = vpop.trf.xlu0
        %v2380 = vpop.trf.xlu0
        %v2381 = vpop.trf.xlu0
        %v2382 = vpop.trf.xlu0
        %v2383 = vpop.trf.xlu0
        %v2384 = vpop.trf.xlu0
        %v2385 = vpop.trf.xlu0
        %v2386 = vpop.trf.xlu0
        %v2387 = vperm.slane %v2371, 0
        %v2388 = vlaneseq
        %v2389 = vshrl.u32 %v2388, 7
        %2391 = vset.pattern.permute.xlu0 %v2389
        %2392 = vperm.xlu0 %2391, %v2387
        %v2393 = vpop.permute.xlu0 %2392
        %v2394 = vperm.slane %v2371, 1
        %v2395 = vlaneseq
        %v2396 = vshrl.u32 %v2395, 7
        %2398 = vset.pattern.permute.xlu0 %v2396
        %2399 = vperm.xlu0 %2398, %v2394
        %v2400 = vpop.permute.xlu0 %2399
        %v2401 = vperm.slane %v2371, 2
        %v2402 = vlaneseq
        %v2403 = vshrl.u32 %v2402, 7
        %2405 = vset.pattern.permute.xlu0 %v2403
        %2406 = vperm.xlu0 %2405, %v2401
        %v2407 = vpop.permute.xlu0 %2406
        %v2408 = vperm.slane %v2371, 3
        %v2409 = vlaneseq
        %v2410 = vshrl.u32 %v2409, 7
        %2412 = vset.pattern.permute.xlu0 %v2410
        %2413 = vperm.xlu0 %2412, %v2408
        %v2414 = vpop.permute.xlu0 %2413
        %v2415 = vperm.slane %v2371, 4
        %v2416 = vlaneseq
        %v2417 = vshrl.u32 %v2416, 7
        %2419 = vset.pattern.permute.xlu0 %v2417
        %2420 = vperm.xlu0 %2419, %v2415
        %v2421 = vpop.permute.xlu0 %2420
        %v2422 = vperm.slane %v2371, 5
        %v2423 = vlaneseq
        %v2424 = vshrl.u32 %v2423, 7
        %2426 = vset.pattern.permute.xlu0 %v2424
        %2427 = vperm.xlu0 %2426, %v2422
        %v2428 = vpop.permute.xlu0 %2427
        %v2429 = vperm.slane %v2371, 6
        %v2430 = vlaneseq
        %v2431 = vshrl.u32 %v2430, 7
        %2433 = vset.pattern.permute.xlu0 %v2431
        %2434 = vperm.xlu0 %2433, %v2429
        %v2435 = vpop.permute.xlu0 %2434
        %v2436 = vperm.slane %v2371, 7
        %v2437 = vlaneseq
        %v2438 = vshrl.u32 %v2437, 7
        %2440 = vset.pattern.permute.xlu0 %v2438
        %2441 = vperm.xlu0 %2440, %v2436
        %v2442 = vpop.permute.xlu0 %2441
        %v2443 = vmul.f32 %v2313, %v2393
        %v2444 = vmul.f32 %v2331, %v2400
        %v2445 = vmul.f32 %v2317, %v2407
        %v2446 = vmul.f32 %v2333, %v2414
        %v2447 = vmul.f32 %v2325, %v2421
        %v2448 = vmul.f32 %v2335, %v2428
        %v2449 = vmul.f32 %v2329, %v2435
        %v2450 = vmul.f32 %v2337, %v2442
        %v2451 = vrot.slane %v2445, 4
        %v2452 = vsel %vm899, %v2451, %v2443
        %v2454 = vunpack.c.l.s4 1983009808
        %v2455 = vunpack.c.0.s8 %v2454
        %v2456 = vperm.slane %v2452, %v2455
        %v2457 = vrot.slane %v2446, 4
        %v2458 = vsel %vm899, %v2457, %v2444
        %v2460 = vunpack.c.l.s4 1983009808
        %v2461 = vunpack.c.0.s8 %v2460
        %v2462 = vperm.slane %v2458, %v2461
        %v2463 = vrot.slane %v2449, 4
        %v2464 = vsel %vm899, %v2463, %v2447
        %v2466 = vunpack.c.l.s4 1983009808
        %v2467 = vunpack.c.0.s8 %v2466
        %v2468 = vperm.slane %v2464, %v2467
        %v2469 = vrot.slane %v2450, 4
        %v2470 = vsel %vm899, %v2469, %v2448
        %v2472 = vunpack.c.l.s4 1983009808
        %v2473 = vunpack.c.0.s8 %v2472
        %v2474 = vperm.slane %v2470, %v2473
        %v2475 = vrot.slane %v2462, 4
        %v2476 = vsel %vm899, %v2475, %v2456
        %v2477 = vrot.slane %v2456, 4
        %v2478 = vsel %vm899, %v2462, %v2477
        %v2480 = vunpack.c.l.s4 1934713408
        %v2481 = vunpack.c.0.s8 %v2480
        %v2482 = vperm.slane %v2476, %v2481
        %v2484 = vunpack.c.l.s4 1934713408
        %v2485 = vunpack.c.0.s8 %v2484
        %v2486 = vperm.slane %v2478, %v2485
        %v2487 = vrot.slane %v2474, 4
        %v2488 = vsel %vm899, %v2487, %v2468
        %v2489 = vrot.slane %v2468, 4
        %v2490 = vsel %vm899, %v2474, %v2489
        %v2492 = vunpack.c.l.s4 1934713408
        %v2493 = vunpack.c.0.s8 %v2492
        %v2494 = vperm.slane %v2488, %v2493
        %v2496 = vunpack.c.l.s4 1934713408
        %v2497 = vunpack.c.0.s8 %v2496
        %v2498 = vperm.slane %v2490, %v2497
        %v2499 = vrot.slane %v2494, 4
        %v2500 = vsel %vm899, %v2499, %v2482
        %v2501 = vrot.slane %v2482, 4
        %v2502 = vsel %vm899, %v2494, %v2501
        %v2503 = vrot.slane %v2498, 4
        %v2504 = vsel %vm899, %v2503, %v2486
        %v2505 = vrot.slane %v2486, 4
        %v2506 = vsel %vm899, %v2498, %v2505
        %2508 = vrot.lane.b32.xlu0 %v2502, 8
        %v2509 = vpop.permute.xlu0 %2508
        %2512 = vrot.lane.b32.xlu0 %v2504, 16
        %v2513 = vpop.permute.xlu0 %2512
        %2516 = vrot.lane.b32.xlu0 %v2506, 24
        %v2517 = vpop.permute.xlu0 %2516
        %v2519 = vsel %vm1560, %v2500, %v2509
        %vm2520 = vcmask 130048
        %v2521 = vsel %vm2520, %v2519, %v2513
        %vm2522 = vcmask 195584
        %v2523 = vsel %vm2522, %v2521, %v2517
        %v2524 = vpack.c.bf16 %v2523, %v2523
        %v2525 = vld [vmem:[#allocation8] sm:$0xf]
        %v2526 = vld [vmem:[#allocation8 + $0x4] sm:$0xf]
        %v2527 = vld [vmem:[#allocation8 + $0x8] sm:$0xf]
        %v2528 = vld [vmem:[#allocation8 + $0xc] sm:$0xf]
        %v2529 = vld [vmem:[#allocation10] sm:$0x1]
        %v2531 = vperm.slane %v2529, 0
        %v2537 = vunpack.c.l.b16 %v2525
        %v2538 = vunpack.c.l.b16 %v2526
        %v2539 = vunpack.c.l.b16 %v2527
        %v2540 = vunpack.c.l.b16 %v2528
        %v2541 = vpack.c.b16 %v2538, %v2537
        %v2542 = vpack.c.b16 %v2540, %v2539
        %v2546 = vsel %vm798, %v2524, 0
        %2548 = vmatpush.bf16.msra.mxu0 0
        %2549 = vmatpush.bf16.msra.mxu0 0
        %2550 = vmatpush.bf16.msra.mxu0 0
        %2551 = vmatpush.bf16.msra.mxu0 0
        %2552 = vmatpush.bf16.msra.mxu0 0
        %2553 = vmatpush.bf16.msra.mxu0 0
        %2554 = vmatpush.bf16.msra.mxu0 %v2542
        %2555 = vmatpush.bf16.msra.mxu0 %v2541
        %2556 = vmatmul.bf16.gmra.mxu0 %v2546
        %v2557 = vpop.f32.mrf.mxu0
        %v2558 = vadd.f32 %v2531, %v2557
        %v2559 = vpop.f32.mrf.mxu0
        %2560 = vdwg.mxu0
        %v2561 = vadd.f32 %v771, %v2558
        %v2562 = vsel %vm798, %v2561, 0.0
        %2563 = vadd.xlane.f32.xlu0 %v2562
        %v2564 = vpop.xlane.xlu0 %2563
        %v2565 = vrcp.pop 32.0
        %v2566 = vmul.f32 32.0, %v2565
        %v2567 = vsub.f32 1.0, %v2566
        %v2568 = vmul.f32 %v2565, %v2567
        %v2569 = vadd.f32 %v2565, %v2568
        %vm2570 = vweird.f32 %v2565
        %v2571 = vsel %vm2570, %v2565, %v2569
        %v2572 = vmul.f32 %v2564, %v2571
        %v2573 = vsub.f32 %v2561, %v2572
        %v2574 = vmul.f32 %v2573, %v2573
        %v2575 = vsel %vm798, %v2574, 0.0
        %2576 = vadd.xlane.f32.xlu0 %v2575
        %v2577 = vpop.xlane.xlu0 %2576
        %v2578 = vmul.f32 %v2577, %v2571
        %v2579 = vadd.f32 %v2578, 1e-05
        %v2580 = vrsqrt.pop %v2579
        %v2581 = vmul.f32 %v2580, %v2579
        %v2582 = vmul.f32 %v2581, %v2580
        %v2583 = vmul.f32 0.5, %v2582
        %v2584 = vsub.f32 1.5, %v2583
        %v2585 = vmul.f32 %v2580, %v2584
        %vm2586 = vweird.f32 %v2579
        %vm2587 = vweird.f32 %v2580
        %vm2588 = vmor %vm2586, %vm2587
        %v2589 = vsel %vm2588, %v2580, %v2585
        %v2590 = vmul.f32 %v2573, %v2589
        %v2591 = vld [vmem:[%s11] sm:$0x1]
        %v2593 = vperm.slane %v2591, 0
        %v2595 = vmul.f32 %v2590, %v2593
        %v2596 = vld [vmem:[#allocation16] sm:$0x1]
        %v2598 = vperm.slane %v2596, 0
        %v2600 = vadd.f32 %v2595, %v2598
        %v2601 = vadd.f32 %v2600, %v772
        %v2602 = vpack.c.bf16 %v2601, %v2601
        %v2603 = vpack.c.bf16 %v774, %v773
        %v2604 = vld [vmem:[#allocation11] sm:$0xf]
        %v2605 = vld [vmem:[#allocation11 + $0x4] sm:$0xf]
        %v2606 = vld [vmem:[#allocation11 + $0x8] sm:$0xf]
        %v2607 = vld [vmem:[#allocation11 + $0xc] sm:$0xf]
        %v2608 = vld [vmem:[%s8] sm:$0x1]
        %v2610 = vperm.slane %v2608, 0
        %v2616 = vunpack.c.l.b16 %v2604
        %v2617 = vunpack.c.l.b16 %v2605
        %v2618 = vunpack.c.l.b16 %v2606
        %v2619 = vunpack.c.l.b16 %v2607
        %v2620 = vpack.c.b16 %v2617, %v2616
        %v2621 = vpack.c.b16 %v2619, %v2618
        %v2625 = vsel %vm798, %v2602, 0
        %2627 = vmatpush.bf16.msra.mxu0 0
        %2628 = vmatpush.bf16.msra.mxu0 0
        %2629 = vmatpush.bf16.msra.mxu0 0
        %2630 = vmatpush.bf16.msra.mxu0 0
        %2631 = vmatpush.bf16.msra.mxu0 0
        %2632 = vmatpush.bf16.msra.mxu0 0
        %2633 = vmatpush.bf16.msra.mxu0 %v2621
        %2634 = vmatpush.bf16.msra.mxu0 %v2620
        %2635 = vmatmul.bf16.gmra.mxu0 %v2625
        %v2636 = vpop.f32.mrf.mxu0
        %v2637 = vadd.f32 %v2610, %v2636
        %v2638 = vpop.f32.mrf.mxu0
        %2639 = vdwg.mxu0
        %s2640 = scalar_lea.vmem [#allocation11], 16
        %v2641 = vld [vmem:[%s2640] sm:$0xf]
        %v2642 = vld [vmem:[%s2640 + $0x4] sm:$0xf]
        %v2643 = vld [vmem:[%s2640 + $0x8] sm:$0xf]
        %v2644 = vld [vmem:[%s2640 + $0xc] sm:$0xf]
        %s2645 = scalar_lea.vmem %s8, 1
        %v2646 = vld [vmem:[%s2645] sm:$0x1]
        %v2648 = vperm.slane %v2646, 0
        %v2654 = vunpack.c.l.b16 %v2641
        %v2655 = vunpack.c.l.b16 %v2642
        %v2656 = vunpack.c.l.b16 %v2643
        %v2657 = vunpack.c.l.b16 %v2644
        %v2658 = vpack.c.b16 %v2655, %v2654
        %v2659 = vpack.c.b16 %v2657, %v2656
        %v2663 = vsel %vm798, %v2603, 0
        %2665 = vmatpush.bf16.msra.mxu0 0
        %2666 = vmatpush.bf16.msra.mxu0 0
        %2667 = vmatpush.bf16.msra.mxu0 0
        %2668 = vmatpush.bf16.msra.mxu0 0
        %2669 = vmatpush.bf16.msra.mxu0 0
        %2670 = vmatpush.bf16.msra.mxu0 0
        %2671 = vmatpush.bf16.msra.mxu0 %v2659
        %2672 = vmatpush.bf16.msra.mxu0 %v2658
        %2673 = vmatmul.bf16.gmra.mxu0 %v2663
        %v2674 = vpop.f32.mrf.mxu0
        %v2675 = vadd.f32 %v2648, %v2674
        %v2676 = vpop.f32.mrf.mxu0
        %v2677 = vadd.f32 %v2648, %v2676
        %2678 = vdwg.mxu0
        %s2679 = scalar_lea.vmem [#allocation11], 32
        %v2680 = vld [vmem:[%s2679] sm:$0xf]
        %v2681 = vld [vmem:[%s2679 + $0x4] sm:$0xf]
        %v2682 = vld [vmem:[%s2679 + $0x8] sm:$0xf]
        %v2683 = vld [vmem:[%s2679 + $0xc] sm:$0xf]
        %s2684 = scalar_lea.vmem %s8, 2
        %v2685 = vld [vmem:[%s2684] sm:$0x1]
        %v2687 = vperm.slane %v2685, 0
        %v2693 = vunpack.c.l.b16 %v2680
        %v2694 = vunpack.c.l.b16 %v2681
        %v2695 = vunpack.c.l.b16 %v2682
        %v2696 = vunpack.c.l.b16 %v2683
        %v2697 = vpack.c.b16 %v2694, %v2693
        %v2698 = vpack.c.b16 %v2696, %v2695
        %2701 = vmatpush.bf16.msra.mxu0 0
        %2702 = vmatpush.bf16.msra.mxu0 0
        %2703 = vmatpush.bf16.msra.mxu0 0
        %2704 = vmatpush.bf16.msra.mxu0 0
        %2705 = vmatpush.bf16.msra.mxu0 0
        %2706 = vmatpush.bf16.msra.mxu0 0
        %2707 = vmatpush.bf16.msra.mxu0 %v2698
        %2708 = vmatpush.bf16.msra.mxu0 %v2697
        %2709 = vmatmul.bf16.gmra.mxu0 %v2663
        %v2710 = vpop.f32.mrf.mxu0
        %v2711 = vadd.f32 %v2687, %v2710
        %v2712 = vpop.f32.mrf.mxu0
        %v2713 = vadd.f32 %v2687, %v2712
        %2714 = vdwg.mxu0
        %2716 = vrot.lane.b32.xlu0 %v2637, 120
        %v2717 = vpop.permute.xlu0 %2716
        %2719 = vrot.lane.b32.xlu0 %v2637, 112
        %v2720 = vpop.permute.xlu0 %2719
        %2722 = vrot.lane.b32.xlu0 %v2637, 104
        %v2723 = vpop.permute.xlu0 %2722
        %v2725 = vrot.slane %v2720, 4
        %v2726 = vsel %vm899, %v2725, %v2637
        %v2727 = vrot.slane %v2637, 4
        %v2728 = vsel %vm899, %v2720, %v2727
        %v2730 = vunpack.c.l.s4 1983009808
        %v2731 = vunpack.c.0.s8 %v2730
        %v2732 = vperm.slane %v2726, %v2731
        %v2734 = vunpack.c.l.s4 1983009808
        %v2735 = vunpack.c.0.s8 %v2734
        %v2736 = vperm.slane %v2728, %v2735
        %v2737 = vrot.slane %v2723, 4
        %v2738 = vsel %vm899, %v2737, %v2717
        %v2739 = vrot.slane %v2717, 4
        %v2740 = vsel %vm899, %v2723, %v2739
        %v2742 = vunpack.c.l.s4 1983009808
        %v2743 = vunpack.c.0.s8 %v2742
        %v2744 = vperm.slane %v2738, %v2743
        %v2746 = vunpack.c.l.s4 1983009808
        %v2747 = vunpack.c.0.s8 %v2746
        %v2748 = vperm.slane %v2740, %v2747
        %v2749 = vrot.slane %v2744, 4
        %v2750 = vsel %vm899, %v2749, %v2732
        %v2751 = vrot.slane %v2732, 4
        %v2752 = vsel %vm899, %v2744, %v2751
        %v2754 = vunpack.c.l.s4 1934713408
        %v2755 = vunpack.c.0.s8 %v2754
        %v2756 = vperm.slane %v2750, %v2755
        %v2758 = vunpack.c.l.s4 1934713408
        %v2759 = vunpack.c.0.s8 %v2758
        %v2760 = vperm.slane %v2752, %v2759
        %v2761 = vrot.slane %v2748, 4
        %v2762 = vsel %vm899, %v2761, %v2736
        %v2763 = vrot.slane %v2736, 4
        %v2764 = vsel %vm899, %v2748, %v2763
        %v2766 = vunpack.c.l.s4 1934713408
        %v2767 = vunpack.c.0.s8 %v2766
        %v2768 = vperm.slane %v2762, %v2767
        %v2770 = vunpack.c.l.s4 1934713408
        %v2771 = vunpack.c.0.s8 %v2770
        %v2772 = vperm.slane %v2764, %v2771
        %v2773 = vrot.slane %v2756, 4
        %v2774 = vsel %vm899, 0.0, %v2773
        %v2775 = vrot.slane %v2760, 4
        %v2776 = vsel %vm899, 0.0, %v2775
        %v2777 = vrot.slane %v2768, 4
        %v2778 = vsel %vm899, 0.0, %v2777
        %v2779 = vrot.slane %v2772, 4
        %v2780 = vsel %vm899, 0.0, %v2779
        %v2781 = vpack.c.bf16 %v2756, %v2756
        %v2782 = vpack.c.bf16 %v2774, %v2774
        %v2783 = vpack.c.bf16 %v2760, %v2760
        %v2784 = vpack.c.bf16 %v2776, %v2776
        %v2785 = vpack.c.bf16 %v2768, %v2768
        %v2786 = vpack.c.bf16 %v2778, %v2778
        %v2787 = vpack.c.bf16 %v2772, %v2772
        %v2788 = vpack.c.bf16 %v2780, %v2780
        %2791 = vrot.lane.b32.xlu0 %v2675, 120
        %v2792 = vpop.permute.xlu0 %2791
        %2793 = vrot.lane.b32.xlu0 %v2677, 120
        %v2794 = vpop.permute.xlu0 %2793
        %2797 = vrot.lane.b32.xlu0 %v2675, 112
        %v2798 = vpop.permute.xlu0 %2797
        %2799 = vrot.lane.b32.xlu0 %v2677, 112
        %v2800 = vpop.permute.xlu0 %2799
        %2803 = vrot.lane.b32.xlu0 %v2675, 104
        %v2804 = vpop.permute.xlu0 %2803
        %2805 = vrot.lane.b32.xlu0 %v2677, 104
        %v2806 = vpop.permute.xlu0 %2805
        %v2809 = vrot.slane %v2798, 4
        %v2810 = vsel %vm899, %v2809, %v2675
        %v2811 = vrot.slane %v2675, 4
        %v2812 = vsel %vm899, %v2798, %v2811
        %v2814 = vunpack.c.l.s4 1983009808
        %v2815 = vunpack.c.0.s8 %v2814
        %v2816 = vperm.slane %v2810, %v2815
        %v2818 = vunpack.c.l.s4 1983009808
        %v2819 = vunpack.c.0.s8 %v2818
        %v2820 = vperm.slane %v2812, %v2819
        %v2821 = vrot.slane %v2804, 4
        %v2822 = vsel %vm899, %v2821, %v2792
        %v2823 = vrot.slane %v2792, 4
        %v2824 = vsel %vm899, %v2804, %v2823
        %v2826 = vunpack.c.l.s4 1983009808
        %v2827 = vunpack.c.0.s8 %v2826
        %v2828 = vperm.slane %v2822, %v2827
        %v2830 = vunpack.c.l.s4 1983009808
        %v2831 = vunpack.c.0.s8 %v2830
        %v2832 = vperm.slane %v2824, %v2831
        %v2833 = vrot.slane %v2828, 4
        %v2834 = vsel %vm899, %v2833, %v2816
        %v2835 = vrot.slane %v2816, 4
        %v2836 = vsel %vm899, %v2828, %v2835
        %v2838 = vunpack.c.l.s4 1934713408
        %v2839 = vunpack.c.0.s8 %v2838
        %v2840 = vperm.slane %v2834, %v2839
        %v2842 = vunpack.c.l.s4 1934713408
        %v2843 = vunpack.c.0.s8 %v2842
        %v2844 = vperm.slane %v2836, %v2843
        %v2845 = vrot.slane %v2832, 4
        %v2846 = vsel %vm899, %v2845, %v2820
        %v2847 = vrot.slane %v2820, 4
        %v2848 = vsel %vm899, %v2832, %v2847
        %v2850 = vunpack.c.l.s4 1934713408
        %v2851 = vunpack.c.0.s8 %v2850
        %v2852 = vperm.slane %v2846, %v2851
        %v2854 = vunpack.c.l.s4 1934713408
        %v2855 = vunpack.c.0.s8 %v2854
        %v2856 = vperm.slane %v2848, %v2855
        %v2857 = vrot.slane %v2840, 4
        %v2858 = vsel %vm899, 0.0, %v2857
        %v2859 = vrot.slane %v2844, 4
        %v2860 = vsel %vm899, 0.0, %v2859
        %v2861 = vrot.slane %v2852, 4
        %v2862 = vsel %vm899, 0.0, %v2861
        %v2863 = vrot.slane %v2856, 4
        %v2864 = vsel %vm899, 0.0, %v2863
        %v2865 = vrot.slane %v2800, 4
        %v2866 = vsel %vm899, %v2865, %v2677
        %v2867 = vrot.slane %v2677, 4
        %v2868 = vsel %vm899, %v2800, %v2867
        %v2870 = vunpack.c.l.s4 1983009808
        %v2871 = vunpack.c.0.s8 %v2870
        %v2872 = vperm.slane %v2866, %v2871
        %v2874 = vunpack.c.l.s4 1983009808
        %v2875 = vunpack.c.0.s8 %v2874
        %v2876 = vperm.slane %v2868, %v2875
        %v2877 = vrot.slane %v2806, 4
        %v2878 = vsel %vm899, %v2877, %v2794
        %v2879 = vrot.slane %v2794, 4
        %v2880 = vsel %vm899, %v2806, %v2879
        %v2882 = vunpack.c.l.s4 1983009808
        %v2883 = vunpack.c.0.s8 %v2882
        %v2884 = vperm.slane %v2878, %v2883
        %v2886 = vunpack.c.l.s4 1983009808
        %v2887 = vunpack.c.0.s8 %v2886
        %v2888 = vperm.slane %v2880, %v2887
        %v2889 = vrot.slane %v2884, 4
        %v2890 = vsel %vm899, %v2889, %v2872
        %v2891 = vrot.slane %v2872, 4
        %v2892 = vsel %vm899, %v2884, %v2891
        %v2894 = vunpack.c.l.s4 1934713408
        %v2895 = vunpack.c.0.s8 %v2894
        %v2896 = vperm.slane %v2890, %v2895
        %v2898 = vunpack.c.l.s4 1934713408
        %v2899 = vunpack.c.0.s8 %v2898
        %v2900 = vperm.slane %v2892, %v2899
        %v2901 = vrot.slane %v2888, 4
        %v2902 = vsel %vm899, %v2901, %v2876
        %v2903 = vrot.slane %v2876, 4
        %v2904 = vsel %vm899, %v2888, %v2903
        %v2906 = vunpack.c.l.s4 1934713408
        %v2907 = vunpack.c.0.s8 %v2906
        %v2908 = vperm.slane %v2902, %v2907
        %v2910 = vunpack.c.l.s4 1934713408
        %v2911 = vunpack.c.0.s8 %v2910
        %v2912 = vperm.slane %v2904, %v2911
        %v2913 = vrot.slane %v2896, 4
        %v2914 = vsel %vm899, 0.0, %v2913
        %v2915 = vrot.slane %v2900, 4
        %v2916 = vsel %vm899, 0.0, %v2915
        %v2917 = vrot.slane %v2908, 4
        %v2918 = vsel %vm899, 0.0, %v2917
        %v2919 = vrot.slane %v2912, 4
        %v2920 = vsel %vm899, 0.0, %v2919
        %v2921 = vpack.c.bf16 %v2840, %v2840
        %v2922 = vpack.c.bf16 %v2858, %v2858
        %v2923 = vpack.c.bf16 %v2844, %v2844
        %v2924 = vpack.c.bf16 %v2860, %v2860
        %v2925 = vpack.c.bf16 %v2852, %v2852
        %v2926 = vpack.c.bf16 %v2862, %v2862
        %v2927 = vpack.c.bf16 %v2856, %v2856
        %v2928 = vpack.c.bf16 %v2864, %v2864
        %v2929 = vpack.c.bf16 %v2896, %v2896
        %v2930 = vpack.c.bf16 %v2914, %v2914
        %v2931 = vpack.c.bf16 %v2900, %v2900
        %v2932 = vpack.c.bf16 %v2916, %v2916
        %v2933 = vpack.c.bf16 %v2908, %v2908
        %v2934 = vpack.c.bf16 %v2918, %v2918
        %v2935 = vpack.c.bf16 %v2912, %v2912
        %v2936 = vpack.c.bf16 %v2920, %v2920
        %2939 = vrot.lane.b32.xlu0 %v2711, 120
        %v2940 = vpop.permute.xlu0 %2939
        %2941 = vrot.lane.b32.xlu0 %v2713, 120
        %v2942 = vpop.permute.xlu0 %2941
        %2945 = vrot.lane.b32.xlu0 %v2711, 112
        %v2946 = vpop.permute.xlu0 %2945
        %2947 = vrot.lane.b32.xlu0 %v2713, 112
        %v2948 = vpop.permute.xlu0 %2947
        %2951 = vrot.lane.b32.xlu0 %v2711, 104
        %v2952 = vpop.permute.xlu0 %2951
        %2953 = vrot.lane.b32.xlu0 %v2713, 104
        %v2954 = vpop.permute.xlu0 %2953
        %v2957 = vrot.slane %v2946, 4
        %v2958 = vsel %vm899, %v2957, %v2711
        %v2959 = vrot.slane %v2711, 4
        %v2960 = vsel %vm899, %v2946, %v2959
        %v2962 = vunpack.c.l.s4 1983009808
        %v2963 = vunpack.c.0.s8 %v2962
        %v2964 = vperm.slane %v2958, %v2963
        %v2966 = vunpack.c.l.s4 1983009808
        %v2967 = vunpack.c.0.s8 %v2966
        %v2968 = vperm.slane %v2960, %v2967
        %v2969 = vrot.slane %v2952, 4
        %v2970 = vsel %vm899, %v2969, %v2940
        %v2971 = vrot.slane %v2940, 4
        %v2972 = vsel %vm899, %v2952, %v2971
        %v2974 = vunpack.c.l.s4 1983009808
        %v2975 = vunpack.c.0.s8 %v2974
        %v2976 = vperm.slane %v2970, %v2975
        %v2978 = vunpack.c.l.s4 1983009808
        %v2979 = vunpack.c.0.s8 %v2978
        %v2980 = vperm.slane %v2972, %v2979
        %v2981 = vrot.slane %v2976, 4
        %v2982 = vsel %vm899, %v2981, %v2964
        %v2983 = vrot.slane %v2964, 4
        %v2984 = vsel %vm899, %v2976, %v2983
        %v2986 = vunpack.c.l.s4 1934713408
        %v2987 = vunpack.c.0.s8 %v2986
        %v2988 = vperm.slane %v2982, %v2987
        %v2990 = vunpack.c.l.s4 1934713408
        %v2991 = vunpack.c.0.s8 %v2990
        %v2992 = vperm.slane %v2984, %v2991
        %v2993 = vrot.slane %v2980, 4
        %v2994 = vsel %vm899, %v2993, %v2968
        %v2995 = vrot.slane %v2968, 4
        %v2996 = vsel %vm899, %v2980, %v2995
        %v2998 = vunpack.c.l.s4 1934713408
        %v2999 = vunpack.c.0.s8 %v2998
        %v3000 = vperm.slane %v2994, %v2999
        %v3002 = vunpack.c.l.s4 1934713408
        %v3003 = vunpack.c.0.s8 %v3002
        %v3004 = vperm.slane %v2996, %v3003
        %v3005 = vrot.slane %v2988, 4
        %v3006 = vsel %vm899, 0.0, %v3005
        %v3007 = vrot.slane %v2992, 4
        %v3008 = vsel %vm899, 0.0, %v3007
        %v3009 = vrot.slane %v3000, 4
        %v3010 = vsel %vm899, 0.0, %v3009
        %v3011 = vrot.slane %v3004, 4
        %v3012 = vsel %vm899, 0.0, %v3011
        %v3013 = vrot.slane %v2948, 4
        %v3014 = vsel %vm899, %v3013, %v2713
        %v3015 = vrot.slane %v2713, 4
        %v3016 = vsel %vm899, %v2948, %v3015
        %v3018 = vunpack.c.l.s4 1983009808
        %v3019 = vunpack.c.0.s8 %v3018
        %v3020 = vperm.slane %v3014, %v3019
        %v3022 = vunpack.c.l.s4 1983009808
        %v3023 = vunpack.c.0.s8 %v3022
        %v3024 = vperm.slane %v3016, %v3023
        %v3025 = vrot.slane %v2954, 4
        %v3026 = vsel %vm899, %v3025, %v2942
        %v3027 = vrot.slane %v2942, 4
        %v3028 = vsel %vm899, %v2954, %v3027
        %v3030 = vunpack.c.l.s4 1983009808
        %v3031 = vunpack.c.0.s8 %v3030
        %v3032 = vperm.slane %v3026, %v3031
        %v3034 = vunpack.c.l.s4 1983009808
        %v3035 = vunpack.c.0.s8 %v3034
        %v3036 = vperm.slane %v3028, %v3035
        %v3037 = vrot.slane %v3032, 4
        %v3038 = vsel %vm899, %v3037, %v3020
        %v3039 = vrot.slane %v3020, 4
        %v3040 = vsel %vm899, %v3032, %v3039
        %v3042 = vunpack.c.l.s4 1934713408
        %v3043 = vunpack.c.0.s8 %v3042
        %v3044 = vperm.slane %v3038, %v3043
        %v3046 = vunpack.c.l.s4 1934713408
        %v3047 = vunpack.c.0.s8 %v3046
        %v3048 = vperm.slane %v3040, %v3047
        %v3049 = vrot.slane %v3036, 4
        %v3050 = vsel %vm899, %v3049, %v3024
        %v3051 = vrot.slane %v3024, 4
        %v3052 = vsel %vm899, %v3036, %v3051
        %v3054 = vunpack.c.l.s4 1934713408
        %v3055 = vunpack.c.0.s8 %v3054
        %v3056 = vperm.slane %v3050, %v3055
        %v3058 = vunpack.c.l.s4 1934713408
        %v3059 = vunpack.c.0.s8 %v3058
        %v3060 = vperm.slane %v3052, %v3059
        %v3061 = vrot.slane %v3044, 4
        %v3062 = vsel %vm899, 0.0, %v3061
        %v3063 = vrot.slane %v3048, 4
        %v3064 = vsel %vm899, 0.0, %v3063
        %v3065 = vrot.slane %v3056, 4
        %v3066 = vsel %vm899, 0.0, %v3065
        %v3067 = vrot.slane %v3060, 4
        %v3068 = vsel %vm899, 0.0, %v3067
        %v3069 = vpack.c.bf16 %v2988, %v2988
        %v3070 = vpack.c.bf16 %v3006, %v3006
        %v3071 = vpack.c.bf16 %v2992, %v2992
        %v3072 = vpack.c.bf16 %v3008, %v3008
        %v3073 = vpack.c.bf16 %v3000, %v3000
        %v3074 = vpack.c.bf16 %v3010, %v3010
        %v3075 = vpack.c.bf16 %v3004, %v3004
        %v3076 = vpack.c.bf16 %v3012, %v3012
        %v3077 = vpack.c.bf16 %v3044, %v3044
        %v3078 = vpack.c.bf16 %v3062, %v3062
        %v3079 = vpack.c.bf16 %v3048, %v3048
        %v3080 = vpack.c.bf16 %v3064, %v3064
        %v3081 = vpack.c.bf16 %v3056, %v3056
        %v3082 = vpack.c.bf16 %v3066, %v3066
        %v3083 = vpack.c.bf16 %v3060, %v3060
        %v3084 = vpack.c.bf16 %v3068, %v3068
        %v3085 = vrot.slane %v2785, 4
        %v3086 = vsel %vm1112, %v3085, %v2781
        %v3088 = vunpack.c.l.s4 1983009808
        %v3089 = vunpack.c.0.s8 %v3088
        %v3090 = vperm.slane %v3086, %v3089
        %v3091 = vrot.slane %v2787, 4
        %v3092 = vsel %vm1112, %v3091, %v2783
        %v3094 = vunpack.c.l.s4 1983009808
        %v3095 = vunpack.c.0.s8 %v3094
        %v3096 = vperm.slane %v3092, %v3095
        %v3097 = vrot.slane %v3096, 4
        %v3098 = vsel %vm1112, %v3097, %v3090
        %v3100 = vunpack.c.l.s4 1934713408
        %v3101 = vunpack.c.0.s8 %v3100
        %v3102 = vperm.slane %v3098, %v3101
        %v3103 = vrot.slane %v3102, 4
        %v3104 = vsel %vm1112, 0, %v3103
        %v3105 = vrot.slane %v2786, 4
        %v3106 = vsel %vm1112, %v3105, %v2782
        %v3108 = vunpack.c.l.s4 1983009808
        %v3109 = vunpack.c.0.s8 %v3108
        %v3110 = vperm.slane %v3106, %v3109
        %v3111 = vrot.slane %v2788, 4
        %v3112 = vsel %vm1112, %v3111, %v2784
        %v3114 = vunpack.c.l.s4 1983009808
        %v3115 = vunpack.c.0.s8 %v3114
        %v3116 = vperm.slane %v3112, %v3115
        %v3117 = vrot.slane %v3116, 4
        %v3118 = vsel %vm1112, %v3117, %v3110
        %v3120 = vunpack.c.l.s4 1934713408
        %v3121 = vunpack.c.0.s8 %v3120
        %v3122 = vperm.slane %v3118, %v3121
        %v3123 = vrot.slane %v3122, 4
        %v3124 = vsel %vm1112, 0, %v3123
        %v3127 = vpack.i.b16 %v3122, %v3102
        %v3128 = vshrl.u32 %v3102, 16
        %v3129 = vshrl.u32 %v3122, 16
        %v3130 = vpack.i.b16 %v3129, %v3128
        %v3133 = vpack.i.b16 %v3124, %v3104
        %v3134 = vshrl.u32 %v3104, 16
        %v3135 = vshrl.u32 %v3124, 16
        %v3136 = vpack.i.b16 %v3135, %v3134
        %3137 = vxpose.xlu0.c.b16.start [1/8] %v2921, 128
        %3138 = vxpose.xlu0.c.b16.cont [2/8] 0, 128
        %3139 = vxpose.xlu0.c.b16.cont [3/8] 0, 128
        %3140 = vxpose.xlu0.c.b16.cont [4/8] 0, 128
        %3141 = vxpose.xlu0.c.b16.cont [5/8] 0, 128
        %3142 = vxpose.xlu0.c.b16.cont [6/8] 0, 128
        %3143 = vxpose.xlu0.c.b16.cont [7/8] 0, 128
        %3144 = vxpose.xlu0.c.b16.end [8/8] 0, 128
        %v3145 = vpop.trf.xlu0
        %v3146 = vpop.trf.xlu0
        %v3147 = vpop.trf.xlu0
        %v3148 = vpop.trf.xlu0
        %v3149 = vpop.trf.xlu0
        %v3150 = vpop.trf.xlu0
        %v3151 = vpop.trf.xlu0
        %v3152 = vpop.trf.xlu0
        %3153 = vxpose.xlu0.c.b16.start [1/8] %v2922, 128
        %3154 = vxpose.xlu0.c.b16.cont [2/8] 0, 128
        %3155 = vxpose.xlu0.c.b16.cont [3/8] 0, 128
        %3156 = vxpose.xlu0.c.b16.cont [4/8] 0, 128
        %3157 = vxpose.xlu0.c.b16.cont [5/8] 0, 128
        %3158 = vxpose.xlu0.c.b16.cont [6/8] 0, 128
        %3159 = vxpose.xlu0.c.b16.cont [7/8] 0, 128
        %3160 = vxpose.xlu0.c.b16.end [8/8] 0, 128
        %v3161 = vpop.trf.xlu0
        %v3162 = vpop.trf.xlu0
        %v3163 = vpop.trf.xlu0
        %v3164 = vpop.trf.xlu0
        %v3165 = vpop.trf.xlu0
        %v3166 = vpop.trf.xlu0
        %v3167 = vpop.trf.xlu0
        %v3168 = vpop.trf.xlu0
        %3169 = vxpose.xlu0.c.b16.start [1/8] %v2923, 128
        %3170 = vxpose.xlu0.c.b16.cont [2/8] 0, 128
        %3171 = vxpose.xlu0.c.b16.cont [3/8] 0, 128
        %3172 = vxpose.xlu0.c.b16.cont [4/8] 0, 128
        %3173 = vxpose.xlu0.c.b16.cont [5/8] 0, 128
        %3174 = vxpose.xlu0.c.b16.cont [6/8] 0, 128
        %3175 = vxpose.xlu0.c.b16.cont [7/8] 0, 128
        %3176 = vxpose.xlu0.c.b16.end [8/8] 0, 128
        %v3177 = vpop.trf.xlu0
        %v3178 = vpop.trf.xlu0
        %v3179 = vpop.trf.xlu0
        %v3180 = vpop.trf.xlu0
        %v3181 = vpop.trf.xlu0
        %v3182 = vpop.trf.xlu0
        %v3183 = vpop.trf.xlu0
        %v3184 = vpop.trf.xlu0
        %3185 = vxpose.xlu0.c.b16.start [1/8] %v2924, 128
        %3186 = vxpose.xlu0.c.b16.cont [2/8] 0, 128
        %3187 = vxpose.xlu0.c.b16.cont [3/8] 0, 128
        %3188 = vxpose.xlu0.c.b16.cont [4/8] 0, 128
        %3189 = vxpose.xlu0.c.b16.cont [5/8] 0, 128
        %3190 = vxpose.xlu0.c.b16.cont [6/8] 0, 128
        %3191 = vxpose.xlu0.c.b16.cont [7/8] 0, 128
        %3192 = vxpose.xlu0.c.b16.end [8/8] 0, 128
        %v3193 = vpop.trf.xlu0
        %v3194 = vpop.trf.xlu0
        %v3195 = vpop.trf.xlu0
        %v3196 = vpop.trf.xlu0
        %v3197 = vpop.trf.xlu0
        %v3198 = vpop.trf.xlu0
        %v3199 = vpop.trf.xlu0
        %v3200 = vpop.trf.xlu0
        %3201 = vxpose.xlu0.c.b16.start [1/8] %v2925, 128
        %3202 = vxpose.xlu0.c.b16.cont [2/8] 0, 128
        %3203 = vxpose.xlu0.c.b16.cont [3/8] 0, 128
        %3204 = vxpose.xlu0.c.b16.cont [4/8] 0, 128
        %3205 = vxpose.xlu0.c.b16.cont [5/8] 0, 128
        %3206 = vxpose.xlu0.c.b16.cont [6/8] 0, 128
        %3207 = vxpose.xlu0.c.b16.cont [7/8] 0, 128
        %3208 = vxpose.xlu0.c.b16.end [8/8] 0, 128
        %v3209 = vpop.trf.xlu0
        %v3210 = vpop.trf.xlu0
        %v3211 = vpop.trf.xlu0
        %v3212 = vpop.trf.xlu0
        %v3213 = vpop.trf.xlu0
        %v3214 = vpop.trf.xlu0
        %v3215 = vpop.trf.xlu0
        %v3216 = vpop.trf.xlu0
        %3217 = vxpose.xlu0.c.b16.start [1/8] %v2926, 128
        %3218 = vxpose.xlu0.c.b16.cont [2/8] 0, 128
        %3219 = vxpose.xlu0.c.b16.cont [3/8] 0, 128
        %3220 = vxpose.xlu0.c.b16.cont [4/8] 0, 128
        %3221 = vxpose.xlu0.c.b16.cont [5/8] 0, 128
        %3222 = vxpose.xlu0.c.b16.cont [6/8] 0, 128
        %3223 = vxpose.xlu0.c.b16.cont [7/8] 0, 128
        %3224 = vxpose.xlu0.c.b16.end [8/8] 0, 128
        %v3225 = vpop.trf.xlu0
        %v3226 = vpop.trf.xlu0
        %v3227 = vpop.trf.xlu0
        %v3228 = vpop.trf.xlu0
        %v3229 = vpop.trf.xlu0
        %v3230 = vpop.trf.xlu0
        %v3231 = vpop.trf.xlu0
        %v3232 = vpop.trf.xlu0
        %3233 = vxpose.xlu0.c.b16.start [1/8] %v2927, 128
        %3234 = vxpose.xlu0.c.b16.cont [2/8] 0, 128
        %3235 = vxpose.xlu0.c.b16.cont [3/8] 0, 128
        %3236 = vxpose.xlu0.c.b16.cont [4/8] 0, 128
        %3237 = vxpose.xlu0.c.b16.cont [5/8] 0, 128
        %3238 = vxpose.xlu0.c.b16.cont [6/8] 0, 128
        %3239 = vxpose.xlu0.c.b16.cont [7/8] 0, 128
        %3240 = vxpose.xlu0.c.b16.end [8/8] 0, 128
        %v3241 = vpop.trf.xlu0
        %v3242 = vpop.trf.xlu0
        %v3243 = vpop.trf.xlu0
        %v3244 = vpop.trf.xlu0
        %v3245 = vpop.trf.xlu0
        %v3246 = vpop.trf.xlu0
        %v3247 = vpop.trf.xlu0
        %v3248 = vpop.trf.xlu0
        %3249 = vxpose.xlu0.c.b16.start [1/8] %v2928, 128
        %3250 = vxpose.xlu0.c.b16.cont [2/8] 0, 128
        %3251 = vxpose.xlu0.c.b16.cont [3/8] 0, 128
        %3252 = vxpose.xlu0.c.b16.cont [4/8] 0, 128
        %3253 = vxpose.xlu0.c.b16.cont [5/8] 0, 128
        %3254 = vxpose.xlu0.c.b16.cont [6/8] 0, 128
        %3255 = vxpose.xlu0.c.b16.cont [7/8] 0, 128
        %3256 = vxpose.xlu0.c.b16.end [8/8] 0, 128
        %v3257 = vpop.trf.xlu0
        %v3258 = vpop.trf.xlu0
        %v3259 = vpop.trf.xlu0
        %v3260 = vpop.trf.xlu0
        %v3261 = vpop.trf.xlu0
        %v3262 = vpop.trf.xlu0
        %v3263 = vpop.trf.xlu0
        %v3264 = vpop.trf.xlu0
        %3265 = vxpose.xlu0.c.b16.start [1/8] %v2929, 128
        %3266 = vxpose.xlu0.c.b16.cont [2/8] 0, 128
        %3267 = vxpose.xlu0.c.b16.cont [3/8] 0, 128
        %3268 = vxpose.xlu0.c.b16.cont [4/8] 0, 128
        %3269 = vxpose.xlu0.c.b16.cont [5/8] 0, 128
        %3270 = vxpose.xlu0.c.b16.cont [6/8] 0, 128
        %3271 = vxpose.xlu0.c.b16.cont [7/8] 0, 128
        %3272 = vxpose.xlu0.c.b16.end [8/8] 0, 128
        %v3273 = vpop.trf.xlu0
        %v3274 = vpop.trf.xlu0
        %v3275 = vpop.trf.xlu0
        %v3276 = vpop.trf.xlu0
        %v3277 = vpop.trf.xlu0
        %v3278 = vpop.trf.xlu0
        %v3279 = vpop.trf.xlu0
        %v3280 = vpop.trf.xlu0
        %3281 = vxpose.xlu0.c.b16.start [1/8] %v2930, 128
        %3282 = vxpose.xlu0.c.b16.cont [2/8] 0, 128
        %3283 = vxpose.xlu0.c.b16.cont [3/8] 0, 128
        %3284 = vxpose.xlu0.c.b16.cont [4/8] 0, 128
        %3285 = vxpose.xlu0.c.b16.cont [5/8] 0, 128
        %3286 = vxpose.xlu0.c.b16.cont [6/8] 0, 128
        %3287 = vxpose.xlu0.c.b16.cont [7/8] 0, 128
        %3288 = vxpose.xlu0.c.b16.end [8/8] 0, 128
        %v3289 = vpop.trf.xlu0
        %v3290 = vpop.trf.xlu0
        %v3291 = vpop.trf.xlu0
        %v3292 = vpop.trf.xlu0
        %v3293 = vpop.trf.xlu0
        %v3294 = vpop.trf.xlu0
        %v3295 = vpop.trf.xlu0
        %v3296 = vpop.trf.xlu0
        %3297 = vxpose.xlu0.c.b16.start [1/8] %v2931, 128
        %3298 = vxpose.xlu0.c.b16.cont [2/8] 0, 128
        %3299 = vxpose.xlu0.c.b16.cont [3/8] 0, 128
        %3300 = vxpose.xlu0.c.b16.cont [4/8] 0, 128
        %3301 = vxpose.xlu0.c.b16.cont [5/8] 0, 128
        %3302 = vxpose.xlu0.c.b16.cont [6/8] 0, 128
        %3303 = vxpose.xlu0.c.b16.cont [7/8] 0, 128
        %3304 = vxpose.xlu0.c.b16.end [8/8] 0, 128
        %v3305 = vpop.trf.xlu0
        %v3306 = vpop.trf.xlu0
        %v3307 = vpop.trf.xlu0
        %v3308 = vpop.trf.xlu0
        %v3309 = vpop.trf.xlu0
        %v3310 = vpop.trf.xlu0
        %v3311 = vpop.trf.xlu0
        %v3312 = vpop.trf.xlu0
        %3313 = vxpose.xlu0.c.b16.start [1/8] %v2932, 128
        %3314 = vxpose.xlu0.c.b16.cont [2/8] 0, 128
        %3315 = vxpose.xlu0.c.b16.cont [3/8] 0, 128
        %3316 = vxpose.xlu0.c.b16.cont [4/8] 0, 128
        %3317 = vxpose.xlu0.c.b16.cont [5/8] 0, 128
        %3318 = vxpose.xlu0.c.b16.cont [6/8] 0, 128
        %3319 = vxpose.xlu0.c.b16.cont [7/8] 0, 128
        %3320 = vxpose.xlu0.c.b16.end [8/8] 0, 128
        %v3321 = vpop.trf.xlu0
        %v3322 = vpop.trf.xlu0
        %v3323 = vpop.trf.xlu0
        %v3324 = vpop.trf.xlu0
        %v3325 = vpop.trf.xlu0
        %v3326 = vpop.trf.xlu0
        %v3327 = vpop.trf.xlu0
        %v3328 = vpop.trf.xlu0
        %3329 = vxpose.xlu0.c.b16.start [1/8] %v2933, 128
        %3330 = vxpose.xlu0.c.b16.cont [2/8] 0, 128
        %3331 = vxpose.xlu0.c.b16.cont [3/8] 0, 128
        %3332 = vxpose.xlu0.c.b16.cont [4/8] 0, 128
        %3333 = vxpose.xlu0.c.b16.cont [5/8] 0, 128
        %3334 = vxpose.xlu0.c.b16.cont [6/8] 0, 128
        %3335 = vxpose.xlu0.c.b16.cont [7/8] 0, 128
        %3336 = vxpose.xlu0.c.b16.end [8/8] 0, 128
        %v3337 = vpop.trf.xlu0
        %v3338 = vpop.trf.xlu0
        %v3339 = vpop.trf.xlu0
        %v3340 = vpop.trf.xlu0
        %v3341 = vpop.trf.xlu0
        %v3342 = vpop.trf.xlu0
        %v3343 = vpop.trf.xlu0
        %v3344 = vpop.trf.xlu0
        %3345 = vxpose.xlu0.c.b16.start [1/8] %v2934, 128
        %3346 = vxpose.xlu0.c.b16.cont [2/8] 0, 128
        %3347 = vxpose.xlu0.c.b16.cont [3/8] 0, 128
        %3348 = vxpose.xlu0.c.b16.cont [4/8] 0, 128
        %3349 = vxpose.xlu0.c.b16.cont [5/8] 0, 128
        %3350 = vxpose.xlu0.c.b16.cont [6/8] 0, 128
        %3351 = vxpose.xlu0.c.b16.cont [7/8] 0, 128
        %3352 = vxpose.xlu0.c.b16.end [8/8] 0, 128
        %v3353 = vpop.trf.xlu0
        %v3354 = vpop.trf.xlu0
        %v3355 = vpop.trf.xlu0
        %v3356 = vpop.trf.xlu0
        %v3357 = vpop.trf.xlu0
        %v3358 = vpop.trf.xlu0
        %v3359 = vpop.trf.xlu0
        %v3360 = vpop.trf.xlu0
        %3361 = vxpose.xlu0.c.b16.start [1/8] %v2935, 128
        %3362 = vxpose.xlu0.c.b16.cont [2/8] 0, 128
        %3363 = vxpose.xlu0.c.b16.cont [3/8] 0, 128
        %3364 = vxpose.xlu0.c.b16.cont [4/8] 0, 128
        %3365 = vxpose.xlu0.c.b16.cont [5/8] 0, 128
        %3366 = vxpose.xlu0.c.b16.cont [6/8] 0, 128
        %3367 = vxpose.xlu0.c.b16.cont [7/8] 0, 128
        %3368 = vxpose.xlu0.c.b16.end [8/8] 0, 128
        %v3369 = vpop.trf.xlu0
        %v3370 = vpop.trf.xlu0
        %v3371 = vpop.trf.xlu0
        %v3372 = vpop.trf.xlu0
        %v3373 = vpop.trf.xlu0
        %v3374 = vpop.trf.xlu0
        %v3375 = vpop.trf.xlu0
        %v3376 = vpop.trf.xlu0
        %3377 = vxpose.xlu0.c.b16.start [1/8] %v2936, 128
        %3378 = vxpose.xlu0.c.b16.cont [2/8] 0, 128
        %3379 = vxpose.xlu0.c.b16.cont [3/8] 0, 128
        %3380 = vxpose.xlu0.c.b16.cont [4/8] 0, 128
        %3381 = vxpose.xlu0.c.b16.cont [5/8] 0, 128
        %3382 = vxpose.xlu0.c.b16.cont [6/8] 0, 128
        %3383 = vxpose.xlu0.c.b16.cont [7/8] 0, 128
        %3384 = vxpose.xlu0.c.b16.end [8/8] 0, 128
        %v3385 = vpop.trf.xlu0
        %v3386 = vpop.trf.xlu0
        %v3387 = vpop.trf.xlu0
        %v3388 = vpop.trf.xlu0
        %v3389 = vpop.trf.xlu0
        %v3390 = vpop.trf.xlu0
        %v3391 = vpop.trf.xlu0
        %v3392 = vpop.trf.xlu0
        %v3393 = vrot.slane %v3209, 4
        %v3394 = vsel %vm1112, %v3393, %v3145
        %v3396 = vunpack.c.l.s4 1983009808
        %v3397 = vunpack.c.0.s8 %v3396
        %v3398 = vperm.slane %v3394, %v3397
        %v3399 = vrot.slane %v3241, 4
        %v3400 = vsel %vm1112, %v3399, %v3177
        %v3402 = vunpack.c.l.s4 1983009808
        %v3403 = vunpack.c.0.s8 %v3402
        %v3404 = vperm.slane %v3400, %v3403
        %v3405 = vrot.slane %v3337, 4
        %v3406 = vsel %vm1112, %v3405, %v3273
        %v3408 = vunpack.c.l.s4 1983009808
        %v3409 = vunpack.c.0.s8 %v3408
        %v3410 = vperm.slane %v3406, %v3409
        %v3411 = vrot.slane %v3369, 4
        %v3412 = vsel %vm1112, %v3411, %v3305
        %v3414 = vunpack.c.l.s4 1983009808
        %v3415 = vunpack.c.0.s8 %v3414
        %v3416 = vperm.slane %v3412, %v3415
        %v3417 = vrot.slane %v3404, 4
        %v3418 = vsel %vm1112, %v3417, %v3398
        %v3419 = vrot.slane %v3398, 4
        %v3420 = vsel %vm1112, %v3404, %v3419
        %v3422 = vunpack.c.l.s4 1934713408
        %v3423 = vunpack.c.0.s8 %v3422
        %v3424 = vperm.slane %v3418, %v3423
        %v3426 = vunpack.c.l.s4 1934713408
        %v3427 = vunpack.c.0.s8 %v3426
        %v3428 = vperm.slane %v3420, %v3427
        %v3429 = vrot.slane %v3416, 4
        %v3430 = vsel %vm1112, %v3429, %v3410
        %v3431 = vrot.slane %v3410, 4
        %v3432 = vsel %vm1112, %v3416, %v3431
        %v3434 = vunpack.c.l.s4 1934713408
        %v3435 = vunpack.c.0.s8 %v3434
        %v3436 = vperm.slane %v3430, %v3435
        %v3438 = vunpack.c.l.s4 1934713408
        %v3439 = vunpack.c.0.s8 %v3438
        %v3440 = vperm.slane %v3432, %v3439
        %v3441 = vrot.slane %v3436, 4
        %v3442 = vsel %vm1112, %v3441, %v3424
        %v3443 = vrot.slane %v3424, 4
        %v3444 = vsel %vm1112, %v3436, %v3443
        %v3445 = vrot.slane %v3440, 4
        %v3446 = vsel %vm1112, %v3445, %v3428
        %v3447 = vrot.slane %v3428, 4
        %v3448 = vsel %vm1112, %v3440, %v3447
        %v3449 = vrot.slane %v3225, 4
        %v3450 = vsel %vm1112, %v3449, %v3161
        %v3452 = vunpack.c.l.s4 1983009808
        %v3453 = vunpack.c.0.s8 %v3452
        %v3454 = vperm.slane %v3450, %v3453
        %v3455 = vrot.slane %v3257, 4
        %v3456 = vsel %vm1112, %v3455, %v3193
        %v3458 = vunpack.c.l.s4 1983009808
        %v3459 = vunpack.c.0.s8 %v3458
        %v3460 = vperm.slane %v3456, %v3459
        %v3461 = vrot.slane %v3353, 4
        %v3462 = vsel %vm1112, %v3461, %v3289
        %v3464 = vunpack.c.l.s4 1983009808
        %v3465 = vunpack.c.0.s8 %v3464
        %v3466 = vperm.slane %v3462, %v3465
        %v3467 = vrot.slane %v3385, 4
        %v3468 = vsel %vm1112, %v3467, %v3321
        %v3470 = vunpack.c.l.s4 1983009808
        %v3471 = vunpack.c.0.s8 %v3470
        %v3472 = vperm.slane %v3468, %v3471
        %v3473 = vrot.slane %v3460, 4
        %v3474 = vsel %vm1112, %v3473, %v3454
        %v3475 = vrot.slane %v3454, 4
        %v3476 = vsel %vm1112, %v3460, %v3475
        %v3478 = vunpack.c.l.s4 1934713408
        %v3479 = vunpack.c.0.s8 %v3478
        %v3480 = vperm.slane %v3474, %v3479
        %v3482 = vunpack.c.l.s4 1934713408
        %v3483 = vunpack.c.0.s8 %v3482
        %v3484 = vperm.slane %v3476, %v3483
        %v3485 = vrot.slane %v3472, 4
        %v3486 = vsel %vm1112, %v3485, %v3466
        %v3487 = vrot.slane %v3466, 4
        %v3488 = vsel %vm1112, %v3472, %v3487
        %v3490 = vunpack.c.l.s4 1934713408
        %v3491 = vunpack.c.0.s8 %v3490
        %v3492 = vperm.slane %v3486, %v3491
        %v3494 = vunpack.c.l.s4 1934713408
        %v3495 = vunpack.c.0.s8 %v3494
        %v3496 = vperm.slane %v3488, %v3495
        %v3497 = vrot.slane %v3492, 4
        %v3498 = vsel %vm1112, %v3497, %v3480
        %v3499 = vrot.slane %v3480, 4
        %v3500 = vsel %vm1112, %v3492, %v3499
        %v3501 = vrot.slane %v3496, 4
        %v3502 = vsel %vm1112, %v3501, %v3484
        %v3503 = vrot.slane %v3484, 4
        %v3504 = vsel %vm1112, %v3496, %v3503
        %v3507 = vpack.i.b16 %v3498, %v3442
        %v3509 = vshrl.u32 %v3442, 16
        %v3510 = vshrl.u32 %v3498, 16
        %v3511 = vpack.i.b16 %v3510, %v3509
        %v3515 = vpack.i.b16 %v3500, %v3444
        %v3517 = vshrl.u32 %v3444, 16
        %v3518 = vshrl.u32 %v3500, 16
        %v3519 = vpack.i.b16 %v3518, %v3517
        %v3523 = vpack.i.b16 %v3502, %v3446
        %v3525 = vshrl.u32 %v3446, 16
        %v3526 = vshrl.u32 %v3502, 16
        %v3527 = vpack.i.b16 %v3526, %v3525
        %v3531 = vpack.i.b16 %v3504, %v3448
        %v3533 = vshrl.u32 %v3448, 16
        %v3534 = vshrl.u32 %v3504, 16
        %v3535 = vpack.i.b16 %v3534, %v3533
        %3537 = vxpose.xlu0.c.b16.start [1/8] %v3507, 128
        %3538 = vxpose.xlu0.c.b16.cont [2/8] 0, 128
        %3539 = vxpose.xlu0.c.b16.cont [3/8] 0, 128
        %3540 = vxpose.xlu0.c.b16.cont [4/8] 0, 128
        %3541 = vxpose.xlu0.c.b16.cont [5/8] 0, 128
        %3542 = vxpose.xlu0.c.b16.cont [6/8] 0, 128
        %3543 = vxpose.xlu0.c.b16.cont [7/8] 0, 128
        %3544 = vxpose.xlu0.c.b16.end [8/8] 0, 128
        %v3545 = vpop.trf.xlu0
        %v3546 = vpop.trf.xlu0
        %v3547 = vpop.trf.xlu0
        %v3548 = vpop.trf.xlu0
        %v3549 = vpop.trf.xlu0
        %v3550 = vpop.trf.xlu0
        %v3551 = vpop.trf.xlu0
        %v3552 = vpop.trf.xlu0
        %3553 = vxpose.xlu0.c.b16.start [1/8] %v3511, 128
        %3554 = vxpose.xlu0.c.b16.cont [2/8] 0, 128
        %3555 = vxpose.xlu0.c.b16.cont [3/8] 0, 128
        %3556 = vxpose.xlu0.c.b16.cont [4/8] 0, 128
        %3557 = vxpose.xlu0.c.b16.cont [5/8] 0, 128
        %3558 = vxpose.xlu0.c.b16.cont [6/8] 0, 128
        %3559 = vxpose.xlu0.c.b16.cont [7/8] 0, 128
        %3560 = vxpose.xlu0.c.b16.end [8/8] 0, 128
        %v3561 = vpop.trf.xlu0
        %v3562 = vpop.trf.xlu0
        %v3563 = vpop.trf.xlu0
        %v3564 = vpop.trf.xlu0
        %v3565 = vpop.trf.xlu0
        %v3566 = vpop.trf.xlu0
        %v3567 = vpop.trf.xlu0
        %v3568 = vpop.trf.xlu0
        %3569 = vxpose.xlu0.c.b16.start [1/8] %v3515, 128
        %3570 = vxpose.xlu0.c.b16.cont [2/8] 0, 128
        %3571 = vxpose.xlu0.c.b16.cont [3/8] 0, 128
        %3572 = vxpose.xlu0.c.b16.cont [4/8] 0, 128
        %3573 = vxpose.xlu0.c.b16.cont [5/8] 0, 128
        %3574 = vxpose.xlu0.c.b16.cont [6/8] 0, 128
        %3575 = vxpose.xlu0.c.b16.cont [7/8] 0, 128
        %3576 = vxpose.xlu0.c.b16.end [8/8] 0, 128
        %v3577 = vpop.trf.xlu0
        %v3578 = vpop.trf.xlu0
        %v3579 = vpop.trf.xlu0
        %v3580 = vpop.trf.xlu0
        %v3581 = vpop.trf.xlu0
        %v3582 = vpop.trf.xlu0
        %v3583 = vpop.trf.xlu0
        %v3584 = vpop.trf.xlu0
        %3585 = vxpose.xlu0.c.b16.start [1/8] %v3519, 128
        %3586 = vxpose.xlu0.c.b16.cont [2/8] 0, 128
        %3587 = vxpose.xlu0.c.b16.cont [3/8] 0, 128
        %3588 = vxpose.xlu0.c.b16.cont [4/8] 0, 128
        %3589 = vxpose.xlu0.c.b16.cont [5/8] 0, 128
        %3590 = vxpose.xlu0.c.b16.cont [6/8] 0, 128
        %3591 = vxpose.xlu0.c.b16.cont [7/8] 0, 128
        %3592 = vxpose.xlu0.c.b16.end [8/8] 0, 128
        %v3593 = vpop.trf.xlu0
        %v3594 = vpop.trf.xlu0
        %v3595 = vpop.trf.xlu0
        %v3596 = vpop.trf.xlu0
        %v3597 = vpop.trf.xlu0
        %v3598 = vpop.trf.xlu0
        %v3599 = vpop.trf.xlu0
        %v3600 = vpop.trf.xlu0
        %3601 = vxpose.xlu0.c.b16.start [1/8] %v3523, 128
        %3602 = vxpose.xlu0.c.b16.cont [2/8] 0, 128
        %3603 = vxpose.xlu0.c.b16.cont [3/8] 0, 128
        %3604 = vxpose.xlu0.c.b16.cont [4/8] 0, 128
        %3605 = vxpose.xlu0.c.b16.cont [5/8] 0, 128
        %3606 = vxpose.xlu0.c.b16.cont [6/8] 0, 128
        %3607 = vxpose.xlu0.c.b16.cont [7/8] 0, 128
        %3608 = vxpose.xlu0.c.b16.end [8/8] 0, 128
        %v3609 = vpop.trf.xlu0
        %v3610 = vpop.trf.xlu0
        %v3611 = vpop.trf.xlu0
        %v3612 = vpop.trf.xlu0
        %v3613 = vpop.trf.xlu0
        %v3614 = vpop.trf.xlu0
        %v3615 = vpop.trf.xlu0
        %v3616 = vpop.trf.xlu0
        %3617 = vxpose.xlu0.c.b16.start [1/8] %v3527, 128
        %3618 = vxpose.xlu0.c.b16.cont [2/8] 0, 128
        %3619 = vxpose.xlu0.c.b16.cont [3/8] 0, 128
        %3620 = vxpose.xlu0.c.b16.cont [4/8] 0, 128
        %3621 = vxpose.xlu0.c.b16.cont [5/8] 0, 128
        %3622 = vxpose.xlu0.c.b16.cont [6/8] 0, 128
        %3623 = vxpose.xlu0.c.b16.cont [7/8] 0, 128
        %3624 = vxpose.xlu0.c.b16.end [8/8] 0, 128
        %v3625 = vpop.trf.xlu0
        %v3626 = vpop.trf.xlu0
        %v3627 = vpop.trf.xlu0
        %v3628 = vpop.trf.xlu0
        %v3629 = vpop.trf.xlu0
        %v3630 = vpop.trf.xlu0
        %v3631 = vpop.trf.xlu0
        %v3632 = vpop.trf.xlu0
        %3633 = vxpose.xlu0.c.b16.start [1/8] %v3531, 128
        %3634 = vxpose.xlu0.c.b16.cont [2/8] 0, 128
        %3635 = vxpose.xlu0.c.b16.cont [3/8] 0, 128
        %3636 = vxpose.xlu0.c.b16.cont [4/8] 0, 128
        %3637 = vxpose.xlu0.c.b16.cont [5/8] 0, 128
        %3638 = vxpose.xlu0.c.b16.cont [6/8] 0, 128
        %3639 = vxpose.xlu0.c.b16.cont [7/8] 0, 128
        %3640 = vxpose.xlu0.c.b16.end [8/8] 0, 128
        %v3641 = vpop.trf.xlu0
        %v3642 = vpop.trf.xlu0
        %v3643 = vpop.trf.xlu0
        %v3644 = vpop.trf.xlu0
        %v3645 = vpop.trf.xlu0
        %v3646 = vpop.trf.xlu0
        %v3647 = vpop.trf.xlu0
        %v3648 = vpop.trf.xlu0
        %3649 = vxpose.xlu0.c.b16.start [1/8] %v3535, 128
        %3650 = vxpose.xlu0.c.b16.cont [2/8] 0, 128
        %3651 = vxpose.xlu0.c.b16.cont [3/8] 0, 128
        %3652 = vxpose.xlu0.c.b16.cont [4/8] 0, 128
        %3653 = vxpose.xlu0.c.b16.cont [5/8] 0, 128
        %3654 = vxpose.xlu0.c.b16.cont [6/8] 0, 128
        %3655 = vxpose.xlu0.c.b16.cont [7/8] 0, 128
        %3656 = vxpose.xlu0.c.b16.end [8/8] 0, 128
        %v3657 = vpop.trf.xlu0
        %v3658 = vpop.trf.xlu0
        %v3659 = vpop.trf.xlu0
        %v3660 = vpop.trf.xlu0
        %v3661 = vpop.trf.xlu0
        %v3662 = vpop.trf.xlu0
        %v3663 = vpop.trf.xlu0
        %v3664 = vpop.trf.xlu0
        %v3665 = vrot.slane %v3609, 4
        %v3666 = vsel %vm1112, %v3665, %v3545
        %v3668 = vunpack.c.l.s4 1983009808
        %v3669 = vunpack.c.0.s8 %v3668
        %v3670 = vperm.slane %v3666, %v3669
        %v3671 = vrot.slane %v3641, 4
        %v3672 = vsel %vm1112, %v3671, %v3577
        %v3674 = vunpack.c.l.s4 1983009808
        %v3675 = vunpack.c.0.s8 %v3674
        %v3676 = vperm.slane %v3672, %v3675
        %v3677 = vrot.slane %v3676, 4
        %v3678 = vsel %vm1112, %v3677, %v3670
        %v3680 = vunpack.c.l.s4 1934713408
        %v3681 = vunpack.c.0.s8 %v3680
        %v3682 = vperm.slane %v3678, %v3681
        %v3683 = vrot.slane %v3682, 4
        %v3684 = vsel %vm1112, 0, %v3683
        %v3685 = vrot.slane %v3625, 4
        %v3686 = vsel %vm1112, %v3685, %v3561
        %v3688 = vunpack.c.l.s4 1983009808
        %v3689 = vunpack.c.0.s8 %v3688
        %v3690 = vperm.slane %v3686, %v3689
        %v3691 = vrot.slane %v3657, 4
        %v3692 = vsel %vm1112, %v3691, %v3593
        %v3694 = vunpack.c.l.s4 1983009808
        %v3695 = vunpack.c.0.s8 %v3694
        %v3696 = vperm.slane %v3692, %v3695
        %v3697 = vrot.slane %v3696, 4
        %v3698 = vsel %vm1112, %v3697, %v3690
        %v3700 = vunpack.c.l.s4 1934713408
        %v3701 = vunpack.c.0.s8 %v3700
        %v3702 = vperm.slane %v3698, %v3701
        %v3703 = vrot.slane %v3702, 4
        %v3704 = vsel %vm1112, 0, %v3703
        %v3707 = vpack.i.b16 %v3702, %v3682
        %v3708 = vshrl.u32 %v3682, 16
        %v3709 = vshrl.u32 %v3702, 16
        %v3710 = vpack.i.b16 %v3709, %v3708
        %v3713 = vpack.i.b16 %v3704, %v3684
        %v3714 = vshrl.u32 %v3684, 16
        %v3715 = vshrl.u32 %v3704, 16
        %v3716 = vpack.i.b16 %v3715, %v3714
        %v3718 = vsel %vm1560, %v3127, 0
        %v3721 = vsel %vm1564, %v3707, 0
        %3723 = vmatpush.bf16.msra.mxu0 0
        %3724 = vmatpush.bf16.msra.mxu0 0
        %3725 = vmatpush.bf16.msra.mxu0 0
        %3726 = vmatpush.bf16.msra.mxu0 0
        %3727 = vmatpush.bf16.msra.mxu0 0
        %3728 = vmatpush.bf16.msra.mxu0 0
        %3729 = vmatpush.bf16.msra.mxu0 0
        %3730 = vmatpush.bf16.msra.mxu0 %v3721
        %3731 = vmatmul.bf16.gmra.mxu0 %v3718
        %v3732 = vpop.f32.mrf.mxu0
        %v3733 = vadd.f32 0.0, %v3732
        %v3734 = vpop.f32.mrf.mxu0
        %3735 = vdwg.mxu0
        %v3737 = vsel %vm1560, %v3130, 0
        %v3740 = vsel %vm1564, %v3710, 0
        %3742 = vmatpush.bf16.msra.mxu0 0
        %3743 = vmatpush.bf16.msra.mxu0 0
        %3744 = vmatpush.bf16.msra.mxu0 0
        %3745 = vmatpush.bf16.msra.mxu0 0
        %3746 = vmatpush.bf16.msra.mxu0 0
        %3747 = vmatpush.bf16.msra.mxu0 0
        %3748 = vmatpush.bf16.msra.mxu0 0
        %3749 = vmatpush.bf16.msra.mxu0 %v3740
        %3750 = vmatmul.bf16.gmra.mxu0 %v3737
        %v3751 = vpop.f32.mrf.mxu0
        %v3752 = vadd.f32 0.0, %v3751
        %v3753 = vpop.f32.mrf.mxu0
        %3754 = vdwg.mxu0
        %v3756 = vsel %vm1560, %v3133, 0
        %v3759 = vsel %vm1564, %v3713, 0
        %3761 = vmatpush.bf16.msra.mxu0 0
        %3762 = vmatpush.bf16.msra.mxu0 0
        %3763 = vmatpush.bf16.msra.mxu0 0
        %3764 = vmatpush.bf16.msra.mxu0 0
        %3765 = vmatpush.bf16.msra.mxu0 0
        %3766 = vmatpush.bf16.msra.mxu0 0
        %3767 = vmatpush.bf16.msra.mxu0 0
        %3768 = vmatpush.bf16.msra.mxu0 %v3759
        %3769 = vmatmul.bf16.gmra.mxu0 %v3756
        %v3770 = vpop.f32.mrf.mxu0
        %v3771 = vadd.f32 0.0, %v3770
        %v3772 = vpop.f32.mrf.mxu0
        %3773 = vdwg.mxu0
        %v3775 = vsel %vm1560, %v3136, 0
        %v3778 = vsel %vm1564, %v3716, 0
        %3780 = vmatpush.bf16.msra.mxu0 0
        %3781 = vmatpush.bf16.msra.mxu0 0
        %3782 = vmatpush.bf16.msra.mxu0 0
        %3783 = vmatpush.bf16.msra.mxu0 0
        %3784 = vmatpush.bf16.msra.mxu0 0
        %3785 = vmatpush.bf16.msra.mxu0 0
        %3786 = vmatpush.bf16.msra.mxu0 0
        %3787 = vmatpush.bf16.msra.mxu0 %v3778
        %3788 = vmatmul.bf16.gmra.mxu0 %v3775
        %v3789 = vpop.f32.mrf.mxu0
        %v3790 = vadd.f32 0.0, %v3789
        %v3791 = vpop.f32.mrf.mxu0
        %3792 = vdwg.mxu0
        %v3793 = vsel %vm2520, %v3733, -inf
        %3794 = vmax.xlane.f32.xlu0 %v3793
        %v3795 = vpop.xlane.xlu0 %3794
        %v3796 = vsel %vm2520, %v3752, -inf
        %3797 = vmax.xlane.f32.xlu0 %v3796
        %v3798 = vpop.xlane.xlu0 %3797
        %v3799 = vsel %vm2520, %v3771, -inf
        %3800 = vmax.xlane.f32.xlu0 %v3799
        %v3801 = vpop.xlane.xlu0 %3800
        %v3802 = vsel %vm2520, %v3790, -inf
        %3803 = vmax.xlane.f32.xlu0 %v3802
        %v3804 = vpop.xlane.xlu0 %3803
        %v3805 = vsub.f32 %v3733, %v3795
        %v3806 = vsub.f32 %v3752, %v3798
        %v3807 = vsub.f32 %v3771, %v3801
        %v3808 = vsub.f32 %v3790, %v3804
        %v3809 = vmul.f32 %v3805, 1.442695
        %v3810 = vpow.pop %v3809
        %v3811 = vmul.f32 %v3806, 1.442695
        %v3812 = vpow.pop %v3811
        %v3813 = vmul.f32 %v3807, 1.442695
        %v3814 = vpow.pop %v3813
        %v3815 = vmul.f32 %v3808, 1.442695
        %v3816 = vpow.pop %v3815
        %v3817 = vsel %vm2520, %v3810, 0.0
        %3818 = vadd.xlane.f32.xlu0 %v3817
        %v3819 = vpop.xlane.xlu0 %3818
        %v3820 = vsel %vm2520, %v3812, 0.0
        %3821 = vadd.xlane.f32.xlu0 %v3820
        %v3822 = vpop.xlane.xlu0 %3821
        %v3823 = vsel %vm2520, %v3814, 0.0
        %3824 = vadd.xlane.f32.xlu0 %v3823
        %v3825 = vpop.xlane.xlu0 %3824
        %v3826 = vsel %vm2520, %v3816, 0.0
        %3827 = vadd.xlane.f32.xlu0 %v3826
        %v3828 = vpop.xlane.xlu0 %3827
        %v3829 = vrcp.pop %v3819
        %v3830 = vrcp.pop %v3822
        %v3831 = vrcp.pop %v3825
        %v3832 = vrcp.pop %v3828
        %v3833 = vpack.c.bf16 %v3810, %v3810
        %v3834 = vpack.c.bf16 %v3812, %v3812
        %v3835 = vpack.c.bf16 %v3814, %v3814
        %v3836 = vpack.c.bf16 %v3816, %v3816
        %3837 = vxpose.xlu0.c.b16.start [1/8] %v3069, 128
        %3838 = vxpose.xlu0.c.b16.cont [2/8] 0, 128
        %3839 = vxpose.xlu0.c.b16.cont [3/8] 0, 128
        %3840 = vxpose.xlu0.c.b16.cont [4/8] 0, 128
        %3841 = vxpose.xlu0.c.b16.cont [5/8] 0, 128
        %3842 = vxpose.xlu0.c.b16.cont [6/8] 0, 128
        %3843 = vxpose.xlu0.c.b16.cont [7/8] 0, 128
        %3844 = vxpose.xlu0.c.b16.end [8/8] 0, 128
        %v3845 = vpop.trf.xlu0
        %v3846 = vpop.trf.xlu0
        %v3847 = vpop.trf.xlu0
        %v3848 = vpop.trf.xlu0
        %v3849 = vpop.trf.xlu0
        %v3850 = vpop.trf.xlu0
        %v3851 = vpop.trf.xlu0
        %v3852 = vpop.trf.xlu0
        %3853 = vxpose.xlu0.c.b16.start [1/8] %v3070, 128
        %3854 = vxpose.xlu0.c.b16.cont [2/8] 0, 128
        %3855 = vxpose.xlu0.c.b16.cont [3/8] 0, 128
        %3856 = vxpose.xlu0.c.b16.cont [4/8] 0, 128
        %3857 = vxpose.xlu0.c.b16.cont [5/8] 0, 128
        %3858 = vxpose.xlu0.c.b16.cont [6/8] 0, 128
        %3859 = vxpose.xlu0.c.b16.cont [7/8] 0, 128
        %3860 = vxpose.xlu0.c.b16.end [8/8] 0, 128
        %v3861 = vpop.trf.xlu0
        %v3862 = vpop.trf.xlu0
        %v3863 = vpop.trf.xlu0
        %v3864 = vpop.trf.xlu0
        %v3865 = vpop.trf.xlu0
        %v3866 = vpop.trf.xlu0
        %v3867 = vpop.trf.xlu0
        %v3868 = vpop.trf.xlu0
        %3869 = vxpose.xlu0.c.b16.start [1/8] %v3071, 128
        %3870 = vxpose.xlu0.c.b16.cont [2/8] 0, 128
        %3871 = vxpose.xlu0.c.b16.cont [3/8] 0, 128
        %3872 = vxpose.xlu0.c.b16.cont [4/8] 0, 128
        %3873 = vxpose.xlu0.c.b16.cont [5/8] 0, 128
        %3874 = vxpose.xlu0.c.b16.cont [6/8] 0, 128
        %3875 = vxpose.xlu0.c.b16.cont [7/8] 0, 128
        %3876 = vxpose.xlu0.c.b16.end [8/8] 0, 128
        %v3877 = vpop.trf.xlu0
        %v3878 = vpop.trf.xlu0
        %v3879 = vpop.trf.xlu0
        %v3880 = vpop.trf.xlu0
        %v3881 = vpop.trf.xlu0
        %v3882 = vpop.trf.xlu0
        %v3883 = vpop.trf.xlu0
        %v3884 = vpop.trf.xlu0
        %3885 = vxpose.xlu0.c.b16.start [1/8] %v3072, 128
        %3886 = vxpose.xlu0.c.b16.cont [2/8] 0, 128
        %3887 = vxpose.xlu0.c.b16.cont [3/8] 0, 128
        %3888 = vxpose.xlu0.c.b16.cont [4/8] 0, 128
        %3889 = vxpose.xlu0.c.b16.cont [5/8] 0, 128
        %3890 = vxpose.xlu0.c.b16.cont [6/8] 0, 128
        %3891 = vxpose.xlu0.c.b16.cont [7/8] 0, 128
        %3892 = vxpose.xlu0.c.b16.end [8/8] 0, 128
        %v3893 = vpop.trf.xlu0
        %v3894 = vpop.trf.xlu0
        %v3895 = vpop.trf.xlu0
        %v3896 = vpop.trf.xlu0
        %v3897 = vpop.trf.xlu0
        %v3898 = vpop.trf.xlu0
        %v3899 = vpop.trf.xlu0
        %v3900 = vpop.trf.xlu0
        %3901 = vxpose.xlu0.c.b16.start [1/8] %v3073, 128
        %3902 = vxpose.xlu0.c.b16.cont [2/8] 0, 128
        %3903 = vxpose.xlu0.c.b16.cont [3/8] 0, 128
        %3904 = vxpose.xlu0.c.b16.cont [4/8] 0, 128
        %3905 = vxpose.xlu0.c.b16.cont [5/8] 0, 128
        %3906 = vxpose.xlu0.c.b16.cont [6/8] 0, 128
        %3907 = vxpose.xlu0.c.b16.cont [7/8] 0, 128
        %3908 = vxpose.xlu0.c.b16.end [8/8] 0, 128
        %v3909 = vpop.trf.xlu0
        %v3910 = vpop.trf.xlu0
        %v3911 = vpop.trf.xlu0
        %v3912 = vpop.trf.xlu0
        %v3913 = vpop.trf.xlu0
        %v3914 = vpop.trf.xlu0
        %v3915 = vpop.trf.xlu0
        %v3916 = vpop.trf.xlu0
        %3917 = vxpose.xlu0.c.b16.start [1/8] %v3074, 128
        %3918 = vxpose.xlu0.c.b16.cont [2/8] 0, 128
        %3919 = vxpose.xlu0.c.b16.cont [3/8] 0, 128
        %3920 = vxpose.xlu0.c.b16.cont [4/8] 0, 128
        %3921 = vxpose.xlu0.c.b16.cont [5/8] 0, 128
        %3922 = vxpose.xlu0.c.b16.cont [6/8] 0, 128
        %3923 = vxpose.xlu0.c.b16.cont [7/8] 0, 128
        %3924 = vxpose.xlu0.c.b16.end [8/8] 0, 128
        %v3925 = vpop.trf.xlu0
        %v3926 = vpop.trf.xlu0
        %v3927 = vpop.trf.xlu0
        %v3928 = vpop.trf.xlu0
        %v3929 = vpop.trf.xlu0
        %v3930 = vpop.trf.xlu0
        %v3931 = vpop.trf.xlu0
        %v3932 = vpop.trf.xlu0
        %3933 = vxpose.xlu0.c.b16.start [1/8] %v3075, 128
        %3934 = vxpose.xlu0.c.b16.cont [2/8] 0, 128
        %3935 = vxpose.xlu0.c.b16.cont [3/8] 0, 128
        %3936 = vxpose.xlu0.c.b16.cont [4/8] 0, 128
        %3937 = vxpose.xlu0.c.b16.cont [5/8] 0, 128
        %3938 = vxpose.xlu0.c.b16.cont [6/8] 0, 128
        %3939 = vxpose.xlu0.c.b16.cont [7/8] 0, 128
        %3940 = vxpose.xlu0.c.b16.end [8/8] 0, 128
        %v3941 = vpop.trf.xlu0
        %v3942 = vpop.trf.xlu0
        %v3943 = vpop.trf.xlu0
        %v3944 = vpop.trf.xlu0
        %v3945 = vpop.trf.xlu0
        %v3946 = vpop.trf.xlu0
        %v3947 = vpop.trf.xlu0
        %v3948 = vpop.trf.xlu0
        %3949 = vxpose.xlu0.c.b16.start [1/8] %v3076, 128
        %3950 = vxpose.xlu0.c.b16.cont [2/8] 0, 128
        %3951 = vxpose.xlu0.c.b16.cont [3/8] 0, 128
        %3952 = vxpose.xlu0.c.b16.cont [4/8] 0, 128
        %3953 = vxpose.xlu0.c.b16.cont [5/8] 0, 128
        %3954 = vxpose.xlu0.c.b16.cont [6/8] 0, 128
        %3955 = vxpose.xlu0.c.b16.cont [7/8] 0, 128
        %3956 = vxpose.xlu0.c.b16.end [8/8] 0, 128
        %v3957 = vpop.trf.xlu0
        %v3958 = vpop.trf.xlu0
        %v3959 = vpop.trf.xlu0
        %v3960 = vpop.trf.xlu0
        %v3961 = vpop.trf.xlu0
        %v3962 = vpop.trf.xlu0
        %v3963 = vpop.trf.xlu0
        %v3964 = vpop.trf.xlu0
        %3965 = vxpose.xlu0.c.b16.start [1/8] %v3077, 128
        %3966 = vxpose.xlu0.c.b16.cont [2/8] 0, 128
        %3967 = vxpose.xlu0.c.b16.cont [3/8] 0, 128
        %3968 = vxpose.xlu0.c.b16.cont [4/8] 0, 128
        %3969 = vxpose.xlu0.c.b16.cont [5/8] 0, 128
        %3970 = vxpose.xlu0.c.b16.cont [6/8] 0, 128
        %3971 = vxpose.xlu0.c.b16.cont [7/8] 0, 128
        %3972 = vxpose.xlu0.c.b16.end [8/8] 0, 128
        %v3973 = vpop.trf.xlu0
        %v3974 = vpop.trf.xlu0
        %v3975 = vpop.trf.xlu0
        %v3976 = vpop.trf.xlu0
        %v3977 = vpop.trf.xlu0
        %v3978 = vpop.trf.xlu0
        %v3979 = vpop.trf.xlu0
        %v3980 = vpop.trf.xlu0
        %3981 = vxpose.xlu0.c.b16.start [1/8] %v3078, 128
        %3982 = vxpose.xlu0.c.b16.cont [2/8] 0, 128
        %3983 = vxpose.xlu0.c.b16.cont [3/8] 0, 128
        %3984 = vxpose.xlu0.c.b16.cont [4/8] 0, 128
        %3985 = vxpose.xlu0.c.b16.cont [5/8] 0, 128
        %3986 = vxpose.xlu0.c.b16.cont [6/8] 0, 128
        %3987 = vxpose.xlu0.c.b16.cont [7/8] 0, 128
        %3988 = vxpose.xlu0.c.b16.end [8/8] 0, 128
        %v3989 = vpop.trf.xlu0
        %v3990 = vpop.trf.xlu0
        %v3991 = vpop.trf.xlu0
        %v3992 = vpop.trf.xlu0
        %v3993 = vpop.trf.xlu0
        %v3994 = vpop.trf.xlu0
        %v3995 = vpop.trf.xlu0
        %v3996 = vpop.trf.xlu0
        %3997 = vxpose.xlu0.c.b16.start [1/8] %v3079, 128
        %3998 = vxpose.xlu0.c.b16.cont [2/8] 0, 128
        %3999 = vxpose.xlu0.c.b16.cont [3/8] 0, 128
        %4000 = vxpose.xlu0.c.b16.cont [4/8] 0, 128
        %4001 = vxpose.xlu0.c.b16.cont [5/8] 0, 128
        %4002 = vxpose.xlu0.c.b16.cont [6/8] 0, 128
        %4003 = vxpose.xlu0.c.b16.cont [7/8] 0, 128
        %4004 = vxpose.xlu0.c.b16.end [8/8] 0, 128
        %v4005 = vpop.trf.xlu0
        %v4006 = vpop.trf.xlu0
        %v4007 = vpop.trf.xlu0
        %v4008 = vpop.trf.xlu0
        %v4009 = vpop.trf.xlu0
        %v4010 = vpop.trf.xlu0
        %v4011 = vpop.trf.xlu0
        %v4012 = vpop.trf.xlu0
        %4013 = vxpose.xlu0.c.b16.start [1/8] %v3080, 128
        %4014 = vxpose.xlu0.c.b16.cont [2/8] 0, 128
        %4015 = vxpose.xlu0.c.b16.cont [3/8] 0, 128
        %4016 = vxpose.xlu0.c.b16.cont [4/8] 0, 128
        %4017 = vxpose.xlu0.c.b16.cont [5/8] 0, 128
        %4018 = vxpose.xlu0.c.b16.cont [6/8] 0, 128
        %4019 = vxpose.xlu0.c.b16.cont [7/8] 0, 128
        %4020 = vxpose.xlu0.c.b16.end [8/8] 0, 128
        %v4021 = vpop.trf.xlu0
        %v4022 = vpop.trf.xlu0
        %v4023 = vpop.trf.xlu0
        %v4024 = vpop.trf.xlu0
        %v4025 = vpop.trf.xlu0
        %v4026 = vpop.trf.xlu0
        %v4027 = vpop.trf.xlu0
        %v4028 = vpop.trf.xlu0
        %4029 = vxpose.xlu0.c.b16.start [1/8] %v3081, 128
        %4030 = vxpose.xlu0.c.b16.cont [2/8] 0, 128
        %4031 = vxpose.xlu0.c.b16.cont [3/8] 0, 128
        %4032 = vxpose.xlu0.c.b16.cont [4/8] 0, 128
        %4033 = vxpose.xlu0.c.b16.cont [5/8] 0, 128
        %4034 = vxpose.xlu0.c.b16.cont [6/8] 0, 128
        %4035 = vxpose.xlu0.c.b16.cont [7/8] 0, 128
        %4036 = vxpose.xlu0.c.b16.end [8/8] 0, 128
        %v4037 = vpop.trf.xlu0
        %v4038 = vpop.trf.xlu0
        %v4039 = vpop.trf.xlu0
        %v4040 = vpop.trf.xlu0
        %v4041 = vpop.trf.xlu0
        %v4042 = vpop.trf.xlu0
        %v4043 = vpop.trf.xlu0
        %v4044 = vpop.trf.xlu0
        %4045 = vxpose.xlu0.c.b16.start [1/8] %v3082, 128
        %4046 = vxpose.xlu0.c.b16.cont [2/8] 0, 128
        %4047 = vxpose.xlu0.c.b16.cont [3/8] 0, 128
        %4048 = vxpose.xlu0.c.b16.cont [4/8] 0, 128
        %4049 = vxpose.xlu0.c.b16.cont [5/8] 0, 128
        %4050 = vxpose.xlu0.c.b16.cont [6/8] 0, 128
        %4051 = vxpose.xlu0.c.b16.cont [7/8] 0, 128
        %4052 = vxpose.xlu0.c.b16.end [8/8] 0, 128
        %v4053 = vpop.trf.xlu0
        %v4054 = vpop.trf.xlu0
        %v4055 = vpop.trf.xlu0
        %v4056 = vpop.trf.xlu0
        %v4057 = vpop.trf.xlu0
        %v4058 = vpop.trf.xlu0
        %v4059 = vpop.trf.xlu0
        %v4060 = vpop.trf.xlu0
        %4061 = vxpose.xlu0.c.b16.start [1/8] %v3083, 128
        %4062 = vxpose.xlu0.c.b16.cont [2/8] 0, 128
        %4063 = vxpose.xlu0.c.b16.cont [3/8] 0, 128
        %4064 = vxpose.xlu0.c.b16.cont [4/8] 0, 128
        %4065 = vxpose.xlu0.c.b16.cont [5/8] 0, 128
        %4066 = vxpose.xlu0.c.b16.cont [6/8] 0, 128
        %4067 = vxpose.xlu0.c.b16.cont [7/8] 0, 128
        %4068 = vxpose.xlu0.c.b16.end [8/8] 0, 128
        %v4069 = vpop.trf.xlu0
        %v4070 = vpop.trf.xlu0
        %v4071 = vpop.trf.xlu0
        %v4072 = vpop.trf.xlu0
        %v4073 = vpop.trf.xlu0
        %v4074 = vpop.trf.xlu0
        %v4075 = vpop.trf.xlu0
        %v4076 = vpop.trf.xlu0
        %4077 = vxpose.xlu0.c.b16.start [1/8] %v3084, 128
        %4078 = vxpose.xlu0.c.b16.cont [2/8] 0, 128
        %4079 = vxpose.xlu0.c.b16.cont [3/8] 0, 128
        %4080 = vxpose.xlu0.c.b16.cont [4/8] 0, 128
        %4081 = vxpose.xlu0.c.b16.cont [5/8] 0, 128
        %4082 = vxpose.xlu0.c.b16.cont [6/8] 0, 128
        %4083 = vxpose.xlu0.c.b16.cont [7/8] 0, 128
        %4084 = vxpose.xlu0.c.b16.end [8/8] 0, 128
        %v4085 = vpop.trf.xlu0
        %v4086 = vpop.trf.xlu0
        %v4087 = vpop.trf.xlu0
        %v4088 = vpop.trf.xlu0
        %v4089 = vpop.trf.xlu0
        %v4090 = vpop.trf.xlu0
        %v4091 = vpop.trf.xlu0
        %v4092 = vpop.trf.xlu0
        %v4093 = vrot.slane %v3909, 4
        %v4094 = vsel %vm1112, %v4093, %v3845
        %v4096 = vunpack.c.l.s4 1983009808
        %v4097 = vunpack.c.0.s8 %v4096
        %v4098 = vperm.slane %v4094, %v4097
        %v4099 = vrot.slane %v3941, 4
        %v4100 = vsel %vm1112, %v4099, %v3877
        %v4102 = vunpack.c.l.s4 1983009808
        %v4103 = vunpack.c.0.s8 %v4102
        %v4104 = vperm.slane %v4100, %v4103
        %v4105 = vrot.slane %v4037, 4
        %v4106 = vsel %vm1112, %v4105, %v3973
        %v4108 = vunpack.c.l.s4 1983009808
        %v4109 = vunpack.c.0.s8 %v4108
        %v4110 = vperm.slane %v4106, %v4109
        %v4111 = vrot.slane %v4069, 4
        %v4112 = vsel %vm1112, %v4111, %v4005
        %v4114 = vunpack.c.l.s4 1983009808
        %v4115 = vunpack.c.0.s8 %v4114
        %v4116 = vperm.slane %v4112, %v4115
        %v4117 = vrot.slane %v4104, 4
        %v4118 = vsel %vm1112, %v4117, %v4098
        %v4119 = vrot.slane %v4098, 4
        %v4120 = vsel %vm1112, %v4104, %v4119
        %v4122 = vunpack.c.l.s4 1934713408
        %v4123 = vunpack.c.0.s8 %v4122
        %v4124 = vperm.slane %v4118, %v4123
        %v4126 = vunpack.c.l.s4 1934713408
        %v4127 = vunpack.c.0.s8 %v4126
        %v4128 = vperm.slane %v4120, %v4127
        %v4129 = vrot.slane %v4116, 4
        %v4130 = vsel %vm1112, %v4129, %v4110
        %v4131 = vrot.slane %v4110, 4
        %v4132 = vsel %vm1112, %v4116, %v4131
        %v4134 = vunpack.c.l.s4 1934713408
        %v4135 = vunpack.c.0.s8 %v4134
        %v4136 = vperm.slane %v4130, %v4135
        %v4138 = vunpack.c.l.s4 1934713408
        %v4139 = vunpack.c.0.s8 %v4138
        %v4140 = vperm.slane %v4132, %v4139
        %v4141 = vrot.slane %v4136, 4
        %v4142 = vsel %vm1112, %v4141, %v4124
        %v4143 = vrot.slane %v4124, 4
        %v4144 = vsel %vm1112, %v4136, %v4143
        %v4145 = vrot.slane %v4140, 4
        %v4146 = vsel %vm1112, %v4145, %v4128
        %v4147 = vrot.slane %v4128, 4
        %v4148 = vsel %vm1112, %v4140, %v4147
        %v4149 = vrot.slane %v3925, 4
        %v4150 = vsel %vm1112, %v4149, %v3861
        %v4152 = vunpack.c.l.s4 1983009808
        %v4153 = vunpack.c.0.s8 %v4152
        %v4154 = vperm.slane %v4150, %v4153
        %v4155 = vrot.slane %v3957, 4
        %v4156 = vsel %vm1112, %v4155, %v3893
        %v4158 = vunpack.c.l.s4 1983009808
        %v4159 = vunpack.c.0.s8 %v4158
        %v4160 = vperm.slane %v4156, %v4159
        %v4161 = vrot.slane %v4053, 4
        %v4162 = vsel %vm1112, %v4161, %v3989
        %v4164 = vunpack.c.l.s4 1983009808
        %v4165 = vunpack.c.0.s8 %v4164
        %v4166 = vperm.slane %v4162, %v4165
        %v4167 = vrot.slane %v4085, 4
        %v4168 = vsel %vm1112, %v4167, %v4021
        %v4170 = vunpack.c.l.s4 1983009808
        %v4171 = vunpack.c.0.s8 %v4170
        %v4172 = vperm.slane %v4168, %v4171
        %v4173 = vrot.slane %v4160, 4
        %v4174 = vsel %vm1112, %v4173, %v4154
        %v4175 = vrot.slane %v4154, 4
        %v4176 = vsel %vm1112, %v4160, %v4175
        %v4178 = vunpack.c.l.s4 1934713408
        %v4179 = vunpack.c.0.s8 %v4178
        %v4180 = vperm.slane %v4174, %v4179
        %v4182 = vunpack.c.l.s4 1934713408
        %v4183 = vunpack.c.0.s8 %v4182
        %v4184 = vperm.slane %v4176, %v4183
        %v4185 = vrot.slane %v4172, 4
        %v4186 = vsel %vm1112, %v4185, %v4166
        %v4187 = vrot.slane %v4166, 4
        %v4188 = vsel %vm1112, %v4172, %v4187
        %v4190 = vunpack.c.l.s4 1934713408
        %v4191 = vunpack.c.0.s8 %v4190
        %v4192 = vperm.slane %v4186, %v4191
        %v4194 = vunpack.c.l.s4 1934713408
        %v4195 = vunpack.c.0.s8 %v4194
        %v4196 = vperm.slane %v4188, %v4195
        %v4197 = vrot.slane %v4192, 4
        %v4198 = vsel %vm1112, %v4197, %v4180
        %v4199 = vrot.slane %v4180, 4
        %v4200 = vsel %vm1112, %v4192, %v4199
        %v4201 = vrot.slane %v4196, 4
        %v4202 = vsel %vm1112, %v4201, %v4184
        %v4203 = vrot.slane %v4184, 4
        %v4204 = vsel %vm1112, %v4196, %v4203
        %v4207 = vpack.i.b16 %v4198, %v4142
        %v4209 = vshrl.u32 %v4142, 16
        %v4210 = vshrl.u32 %v4198, 16
        %v4211 = vpack.i.b16 %v4210, %v4209
        %v4215 = vpack.i.b16 %v4200, %v4144
        %v4217 = vshrl.u32 %v4144, 16
        %v4218 = vshrl.u32 %v4200, 16
        %v4219 = vpack.i.b16 %v4218, %v4217
        %v4223 = vpack.i.b16 %v4202, %v4146
        %v4225 = vshrl.u32 %v4146, 16
        %v4226 = vshrl.u32 %v4202, 16
        %v4227 = vpack.i.b16 %v4226, %v4225
        %v4231 = vpack.i.b16 %v4204, %v4148
        %v4233 = vshrl.u32 %v4148, 16
        %v4234 = vshrl.u32 %v4204, 16
        %v4235 = vpack.i.b16 %v4234, %v4233
        %4237 = vxpose.xlu0.c.b16.start [1/8] %v4207, 128
        %4238 = vxpose.xlu0.c.b16.cont [2/8] 0, 128
        %4239 = vxpose.xlu0.c.b16.cont [3/8] 0, 128
        %4240 = vxpose.xlu0.c.b16.cont [4/8] 0, 128
        %4241 = vxpose.xlu0.c.b16.cont [5/8] 0, 128
        %4242 = vxpose.xlu0.c.b16.cont [6/8] 0, 128
        %4243 = vxpose.xlu0.c.b16.cont [7/8] 0, 128
        %4244 = vxpose.xlu0.c.b16.end [8/8] 0, 128
        %v4245 = vpop.trf.xlu0
        %v4246 = vpop.trf.xlu0
        %v4247 = vpop.trf.xlu0
        %v4248 = vpop.trf.xlu0
        %v4249 = vpop.trf.xlu0
        %v4250 = vpop.trf.xlu0
        %v4251 = vpop.trf.xlu0
        %v4252 = vpop.trf.xlu0
        %4253 = vxpose.xlu0.c.b16.start [1/8] %v4211, 128
        %4254 = vxpose.xlu0.c.b16.cont [2/8] 0, 128
        %4255 = vxpose.xlu0.c.b16.cont [3/8] 0, 128
        %4256 = vxpose.xlu0.c.b16.cont [4/8] 0, 128
        %4257 = vxpose.xlu0.c.b16.cont [5/8] 0, 128
        %4258 = vxpose.xlu0.c.b16.cont [6/8] 0, 128
        %4259 = vxpose.xlu0.c.b16.cont [7/8] 0, 128
        %4260 = vxpose.xlu0.c.b16.end [8/8] 0, 128
        %v4261 = vpop.trf.xlu0
        %v4262 = vpop.trf.xlu0
        %v4263 = vpop.trf.xlu0
        %v4264 = vpop.trf.xlu0
        %v4265 = vpop.trf.xlu0
        %v4266 = vpop.trf.xlu0
        %v4267 = vpop.trf.xlu0
        %v4268 = vpop.trf.xlu0
        %4269 = vxpose.xlu0.c.b16.start [1/8] %v4215, 128
        %4270 = vxpose.xlu0.c.b16.cont [2/8] 0, 128
        %4271 = vxpose.xlu0.c.b16.cont [3/8] 0, 128
        %4272 = vxpose.xlu0.c.b16.cont [4/8] 0, 128
        %4273 = vxpose.xlu0.c.b16.cont [5/8] 0, 128
        %4274 = vxpose.xlu0.c.b16.cont [6/8] 0, 128
        %4275 = vxpose.xlu0.c.b16.cont [7/8] 0, 128
        %4276 = vxpose.xlu0.c.b16.end [8/8] 0, 128
        %v4277 = vpop.trf.xlu0
        %v4278 = vpop.trf.xlu0
        %v4279 = vpop.trf.xlu0
        %v4280 = vpop.trf.xlu0
        %v4281 = vpop.trf.xlu0
        %v4282 = vpop.trf.xlu0
        %v4283 = vpop.trf.xlu0
        %v4284 = vpop.trf.xlu0
        %4285 = vxpose.xlu0.c.b16.start [1/8] %v4219, 128
        %4286 = vxpose.xlu0.c.b16.cont [2/8] 0, 128
        %4287 = vxpose.xlu0.c.b16.cont [3/8] 0, 128
        %4288 = vxpose.xlu0.c.b16.cont [4/8] 0, 128
        %4289 = vxpose.xlu0.c.b16.cont [5/8] 0, 128
        %4290 = vxpose.xlu0.c.b16.cont [6/8] 0, 128
        %4291 = vxpose.xlu0.c.b16.cont [7/8] 0, 128
        %4292 = vxpose.xlu0.c.b16.end [8/8] 0, 128
        %v4293 = vpop.trf.xlu0
        %v4294 = vpop.trf.xlu0
        %v4295 = vpop.trf.xlu0
        %v4296 = vpop.trf.xlu0
        %v4297 = vpop.trf.xlu0
        %v4298 = vpop.trf.xlu0
        %v4299 = vpop.trf.xlu0
        %v4300 = vpop.trf.xlu0
        %4301 = vxpose.xlu0.c.b16.start [1/8] %v4223, 128
        %4302 = vxpose.xlu0.c.b16.cont [2/8] 0, 128
        %4303 = vxpose.xlu0.c.b16.cont [3/8] 0, 128
        %4304 = vxpose.xlu0.c.b16.cont [4/8] 0, 128
        %4305 = vxpose.xlu0.c.b16.cont [5/8] 0, 128
        %4306 = vxpose.xlu0.c.b16.cont [6/8] 0, 128
        %4307 = vxpose.xlu0.c.b16.cont [7/8] 0, 128
        %4308 = vxpose.xlu0.c.b16.end [8/8] 0, 128
        %v4309 = vpop.trf.xlu0
        %v4310 = vpop.trf.xlu0
        %v4311 = vpop.trf.xlu0
        %v4312 = vpop.trf.xlu0
        %v4313 = vpop.trf.xlu0
        %v4314 = vpop.trf.xlu0
        %v4315 = vpop.trf.xlu0
        %v4316 = vpop.trf.xlu0
        %4317 = vxpose.xlu0.c.b16.start [1/8] %v4227, 128
        %4318 = vxpose.xlu0.c.b16.cont [2/8] 0, 128
        %4319 = vxpose.xlu0.c.b16.cont [3/8] 0, 128
        %4320 = vxpose.xlu0.c.b16.cont [4/8] 0, 128
        %4321 = vxpose.xlu0.c.b16.cont [5/8] 0, 128
        %4322 = vxpose.xlu0.c.b16.cont [6/8] 0, 128
        %4323 = vxpose.xlu0.c.b16.cont [7/8] 0, 128
        %4324 = vxpose.xlu0.c.b16.end [8/8] 0, 128
        %v4325 = vpop.trf.xlu0
        %v4326 = vpop.trf.xlu0
        %v4327 = vpop.trf.xlu0
        %v4328 = vpop.trf.xlu0
        %v4329 = vpop.trf.xlu0
        %v4330 = vpop.trf.xlu0
        %v4331 = vpop.trf.xlu0
        %v4332 = vpop.trf.xlu0
        %4333 = vxpose.xlu0.c.b16.start [1/8] %v4231, 128
        %4334 = vxpose.xlu0.c.b16.cont [2/8] 0, 128
        %4335 = vxpose.xlu0.c.b16.cont [3/8] 0, 128
        %4336 = vxpose.xlu0.c.b16.cont [4/8] 0, 128
        %4337 = vxpose.xlu0.c.b16.cont [5/8] 0, 128
        %4338 = vxpose.xlu0.c.b16.cont [6/8] 0, 128
        %4339 = vxpose.xlu0.c.b16.cont [7/8] 0, 128
        %4340 = vxpose.xlu0.c.b16.end [8/8] 0, 128
        %v4341 = vpop.trf.xlu0
        %v4342 = vpop.trf.xlu0
        %v4343 = vpop.trf.xlu0
        %v4344 = vpop.trf.xlu0
        %v4345 = vpop.trf.xlu0
        %v4346 = vpop.trf.xlu0
        %v4347 = vpop.trf.xlu0
        %v4348 = vpop.trf.xlu0
        %4349 = vxpose.xlu0.c.b16.start [1/8] %v4235, 128
        %4350 = vxpose.xlu0.c.b16.cont [2/8] 0, 128
        %4351 = vxpose.xlu0.c.b16.cont [3/8] 0, 128
        %4352 = vxpose.xlu0.c.b16.cont [4/8] 0, 128
        %4353 = vxpose.xlu0.c.b16.cont [5/8] 0, 128
        %4354 = vxpose.xlu0.c.b16.cont [6/8] 0, 128
        %4355 = vxpose.xlu0.c.b16.cont [7/8] 0, 128
        %4356 = vxpose.xlu0.c.b16.end [8/8] 0, 128
        %v4357 = vpop.trf.xlu0
        %v4358 = vpop.trf.xlu0
        %v4359 = vpop.trf.xlu0
        %v4360 = vpop.trf.xlu0
        %v4361 = vpop.trf.xlu0
        %v4362 = vpop.trf.xlu0
        %v4363 = vpop.trf.xlu0
        %v4364 = vpop.trf.xlu0
        %v4365 = vrot.slane %v4309, 4
        %v4366 = vsel %vm1112, %v4365, %v4245
        %v4368 = vunpack.c.l.s4 1983009808
        %v4369 = vunpack.c.0.s8 %v4368
        %v4370 = vperm.slane %v4366, %v4369
        %v4371 = vrot.slane %v4341, 4
        %v4372 = vsel %vm1112, %v4371, %v4277
        %v4374 = vunpack.c.l.s4 1983009808
        %v4375 = vunpack.c.0.s8 %v4374
        %v4376 = vperm.slane %v4372, %v4375
        %v4377 = vrot.slane %v4376, 4
        %v4378 = vsel %vm1112, %v4377, %v4370
        %v4380 = vunpack.c.l.s4 1934713408
        %v4381 = vunpack.c.0.s8 %v4380
        %v4382 = vperm.slane %v4378, %v4381
        %v4383 = vrot.slane %v4382, 4
        %v4384 = vsel %vm1112, 0, %v4383
        %v4385 = vrot.slane %v4325, 4
        %v4386 = vsel %vm1112, %v4385, %v4261
        %v4388 = vunpack.c.l.s4 1983009808
        %v4389 = vunpack.c.0.s8 %v4388
        %v4390 = vperm.slane %v4386, %v4389
        %v4391 = vrot.slane %v4357, 4
        %v4392 = vsel %vm1112, %v4391, %v4293
        %v4394 = vunpack.c.l.s4 1983009808
        %v4395 = vunpack.c.0.s8 %v4394
        %v4396 = vperm.slane %v4392, %v4395
        %v4397 = vrot.slane %v4396, 4
        %v4398 = vsel %vm1112, %v4397, %v4390
        %v4400 = vunpack.c.l.s4 1934713408
        %v4401 = vunpack.c.0.s8 %v4400
        %v4402 = vperm.slane %v4398, %v4401
        %v4403 = vrot.slane %v4402, 4
        %v4404 = vsel %vm1112, 0, %v4403
        %v4407 = vpack.i.b16 %v4402, %v4382
        %v4408 = vshrl.u32 %v4382, 16
        %v4409 = vshrl.u32 %v4402, 16
        %v4410 = vpack.i.b16 %v4409, %v4408
        %v4413 = vpack.i.b16 %v4404, %v4384
        %v4414 = vshrl.u32 %v4384, 16
        %v4415 = vshrl.u32 %v4404, 16
        %v4416 = vpack.i.b16 %v4415, %v4414
        %v4418 = vsel %vm2520, %v4407, 0
        %v4421 = vsel %vm2520, %v3833, 0
        %4423 = vmatpush.bf16.xpose.msra.mxu0 0
        %4424 = vmatpush.bf16.xpose.msra.mxu0 0
        %4425 = vmatpush.bf16.xpose.msra.mxu0 0
        %4426 = vmatpush.bf16.xpose.msra.mxu0 0
        %4427 = vmatpush.bf16.xpose.msra.mxu0 0
        %4428 = vmatpush.bf16.xpose.msra.mxu0 0
        %4429 = vmatpush.bf16.xpose.msra.mxu0 0
        %4430 = vmatpush.bf16.xpose.msra.mxu0 %v4421
        %4431 = vmatmul.bf16.gmra.mxu0 %v4418
        %v4432 = vpop.f32.mrf.mxu0
        %v4433 = vadd.f32 0.0, %v4432
        %v4434 = vpop.f32.mrf.mxu0
        %4435 = vdwg.mxu0
        %v4437 = vsel %vm2520, %v4410, 0
        %v4440 = vsel %vm2520, %v3834, 0
        %4442 = vmatpush.bf16.xpose.msra.mxu0 0
        %4443 = vmatpush.bf16.xpose.msra.mxu0 0
        %4444 = vmatpush.bf16.xpose.msra.mxu0 0
        %4445 = vmatpush.bf16.xpose.msra.mxu0 0
        %4446 = vmatpush.bf16.xpose.msra.mxu0 0
        %4447 = vmatpush.bf16.xpose.msra.mxu0 0
        %4448 = vmatpush.bf16.xpose.msra.mxu0 0
        %4449 = vmatpush.bf16.xpose.msra.mxu0 %v4440
        %4450 = vmatmul.bf16.gmra.mxu0 %v4437
        %v4451 = vpop.f32.mrf.mxu0
        %v4452 = vadd.f32 0.0, %v4451
        %v4453 = vpop.f32.mrf.mxu0
        %4454 = vdwg.mxu0
        %v4456 = vsel %vm2520, %v4413, 0
        %v4459 = vsel %vm2520, %v3835, 0
        %4461 = vmatpush.bf16.xpose.msra.mxu0 0
        %4462 = vmatpush.bf16.xpose.msra.mxu0 0
        %4463 = vmatpush.bf16.xpose.msra.mxu0 0
        %4464 = vmatpush.bf16.xpose.msra.mxu0 0
        %4465 = vmatpush.bf16.xpose.msra.mxu0 0
        %4466 = vmatpush.bf16.xpose.msra.mxu0 0
        %4467 = vmatpush.bf16.xpose.msra.mxu0 0
        %4468 = vmatpush.bf16.xpose.msra.mxu0 %v4459
        %4469 = vmatmul.bf16.gmra.mxu0 %v4456
        %v4470 = vpop.f32.mrf.mxu0
        %v4471 = vadd.f32 0.0, %v4470
        %v4472 = vpop.f32.mrf.mxu0
        %4473 = vdwg.mxu0
        %v4475 = vsel %vm2520, %v4416, 0
        %v4478 = vsel %vm2520, %v3836, 0
        %4480 = vmatpush.bf16.xpose.msra.mxu0 0
        %4481 = vmatpush.bf16.xpose.msra.mxu0 0
        %4482 = vmatpush.bf16.xpose.msra.mxu0 0
        %4483 = vmatpush.bf16.xpose.msra.mxu0 0
        %4484 = vmatpush.bf16.xpose.msra.mxu0 0
        %4485 = vmatpush.bf16.xpose.msra.mxu0 0
        %4486 = vmatpush.bf16.xpose.msra.mxu0 0
        %4487 = vmatpush.bf16.xpose.msra.mxu0 %v4478
        %4488 = vmatmul.bf16.gmra.mxu0 %v4475
        %v4489 = vpop.f32.mrf.mxu0
        %v4490 = vadd.f32 0.0, %v4489
        %v4491 = vpop.f32.mrf.mxu0
        %4492 = vdwg.mxu0
        %4493 = vxpose.xlu0.b32.start [1/16] %v4433, 128
        %4494 = vxpose.xlu0.b32.cont [2/16] 0.0, 128
        %4495 = vxpose.xlu0.b32.cont [3/16] 0.0, 128
        %4496 = vxpose.xlu0.b32.cont [4/16] 0.0, 128
        %4497 = vxpose.xlu0.b32.cont [5/16] 0.0, 128
        %4498 = vxpose.xlu0.b32.cont [6/16] 0.0, 128
        %4499 = vxpose.xlu0.b32.cont [7/16] 0.0, 128
        %4500 = vxpose.xlu0.b32.cont [8/16] 0.0, 128
        %4501 = vxpose.xlu0.b32.cont [9/16] 0.0, 128
        %4502 = vxpose.xlu0.b32.cont [10/16] 0.0, 128
        %4503 = vxpose.xlu0.b32.cont [11/16] 0.0, 128
        %4504 = vxpose.xlu0.b32.cont [12/16] 0.0, 128
        %4505 = vxpose.xlu0.b32.cont [13/16] 0.0, 128
        %4506 = vxpose.xlu0.b32.cont [14/16] 0.0, 128
        %4507 = vxpose.xlu0.b32.cont [15/16] 0.0, 128
        %4508 = vxpose.xlu0.b32.end [16/16] 0.0, 128
        %v4509 = vpop.trf.xlu0
        %v4510 = vpop.trf.xlu0
        %v4511 = vpop.trf.xlu0
        %v4512 = vpop.trf.xlu0
        %v4513 = vpop.trf.xlu0
        %v4514 = vpop.trf.xlu0
        %v4515 = vpop.trf.xlu0
        %v4516 = vpop.trf.xlu0
        %v4517 = vpop.trf.xlu0
        %v4518 = vpop.trf.xlu0
        %v4519 = vpop.trf.xlu0
        %v4520 = vpop.trf.xlu0
        %v4521 = vpop.trf.xlu0
        %v4522 = vpop.trf.xlu0
        %v4523 = vpop.trf.xlu0
        %v4524 = vpop.trf.xlu0
        %4525 = vxpose.xlu0.b32.start [1/16] %v4452, 128
        %4526 = vxpose.xlu0.b32.cont [2/16] 0.0, 128
        %4527 = vxpose.xlu0.b32.cont [3/16] 0.0, 128
        %4528 = vxpose.xlu0.b32.cont [4/16] 0.0, 128
        %4529 = vxpose.xlu0.b32.cont [5/16] 0.0, 128
        %4530 = vxpose.xlu0.b32.cont [6/16] 0.0, 128
        %4531 = vxpose.xlu0.b32.cont [7/16] 0.0, 128
        %4532 = vxpose.xlu0.b32.cont [8/16] 0.0, 128
        %4533 = vxpose.xlu0.b32.cont [9/16] 0.0, 128
        %4534 = vxpose.xlu0.b32.cont [10/16] 0.0, 128
        %4535 = vxpose.xlu0.b32.cont [11/16] 0.0, 128
        %4536 = vxpose.xlu0.b32.cont [12/16] 0.0, 128
        %4537 = vxpose.xlu0.b32.cont [13/16] 0.0, 128
        %4538 = vxpose.xlu0.b32.cont [14/16] 0.0, 128
        %4539 = vxpose.xlu0.b32.cont [15/16] 0.0, 128
        %4540 = vxpose.xlu0.b32.end [16/16] 0.0, 128
        %v4541 = vpop.trf.xlu0
        %v4542 = vpop.trf.xlu0
        %v4543 = vpop.trf.xlu0
        %v4544 = vpop.trf.xlu0
        %v4545 = vpop.trf.xlu0
        %v4546 = vpop.trf.xlu0
        %v4547 = vpop.trf.xlu0
        %v4548 = vpop.trf.xlu0
        %v4549 = vpop.trf.xlu0
        %v4550 = vpop.trf.xlu0
        %v4551 = vpop.trf.xlu0
        %v4552 = vpop.trf.xlu0
        %v4553 = vpop.trf.xlu0
        %v4554 = vpop.trf.xlu0
        %v4555 = vpop.trf.xlu0
        %v4556 = vpop.trf.xlu0
        %4557 = vxpose.xlu0.b32.start [1/16] %v4471, 128
        %4558 = vxpose.xlu0.b32.cont [2/16] 0.0, 128
        %4559 = vxpose.xlu0.b32.cont [3/16] 0.0, 128
        %4560 = vxpose.xlu0.b32.cont [4/16] 0.0, 128
        %4561 = vxpose.xlu0.b32.cont [5/16] 0.0, 128
        %4562 = vxpose.xlu0.b32.cont [6/16] 0.0, 128
        %4563 = vxpose.xlu0.b32.cont [7/16] 0.0, 128
        %4564 = vxpose.xlu0.b32.cont [8/16] 0.0, 128
        %4565 = vxpose.xlu0.b32.cont [9/16] 0.0, 128
        %4566 = vxpose.xlu0.b32.cont [10/16] 0.0, 128
        %4567 = vxpose.xlu0.b32.cont [11/16] 0.0, 128
        %4568 = vxpose.xlu0.b32.cont [12/16] 0.0, 128
        %4569 = vxpose.xlu0.b32.cont [13/16] 0.0, 128
        %4570 = vxpose.xlu0.b32.cont [14/16] 0.0, 128
        %4571 = vxpose.xlu0.b32.cont [15/16] 0.0, 128
        %4572 = vxpose.xlu0.b32.end [16/16] 0.0, 128
        %v4573 = vpop.trf.xlu0
        %v4574 = vpop.trf.xlu0
        %v4575 = vpop.trf.xlu0
        %v4576 = vpop.trf.xlu0
        %v4577 = vpop.trf.xlu0
        %v4578 = vpop.trf.xlu0
        %v4579 = vpop.trf.xlu0
        %v4580 = vpop.trf.xlu0
        %v4581 = vpop.trf.xlu0
        %v4582 = vpop.trf.xlu0
        %v4583 = vpop.trf.xlu0
        %v4584 = vpop.trf.xlu0
        %v4585 = vpop.trf.xlu0
        %v4586 = vpop.trf.xlu0
        %v4587 = vpop.trf.xlu0
        %v4588 = vpop.trf.xlu0
        %4589 = vxpose.xlu0.b32.start [1/16] %v4490, 128
        %4590 = vxpose.xlu0.b32.cont [2/16] 0.0, 128
        %4591 = vxpose.xlu0.b32.cont [3/16] 0.0, 128
        %4592 = vxpose.xlu0.b32.cont [4/16] 0.0, 128
        %4593 = vxpose.xlu0.b32.cont [5/16] 0.0, 128
        %4594 = vxpose.xlu0.b32.cont [6/16] 0.0, 128
        %4595 = vxpose.xlu0.b32.cont [7/16] 0.0, 128
        %4596 = vxpose.xlu0.b32.cont [8/16] 0.0, 128
        %4597 = vxpose.xlu0.b32.cont [9/16] 0.0, 128
        %4598 = vxpose.xlu0.b32.cont [10/16] 0.0, 128
        %4599 = vxpose.xlu0.b32.cont [11/16] 0.0, 128
        %4600 = vxpose.xlu0.b32.cont [12/16] 0.0, 128
        %4601 = vxpose.xlu0.b32.cont [13/16] 0.0, 128
        %4602 = vxpose.xlu0.b32.cont [14/16] 0.0, 128
        %4603 = vxpose.xlu0.b32.cont [15/16] 0.0, 128
        %4604 = vxpose.xlu0.b32.end [16/16] 0.0, 128
        %v4605 = vpop.trf.xlu0
        %v4606 = vpop.trf.xlu0
        %v4607 = vpop.trf.xlu0
        %v4608 = vpop.trf.xlu0
        %v4609 = vpop.trf.xlu0
        %v4610 = vpop.trf.xlu0
        %v4611 = vpop.trf.xlu0
        %v4612 = vpop.trf.xlu0
        %v4613 = vpop.trf.xlu0
        %v4614 = vpop.trf.xlu0
        %v4615 = vpop.trf.xlu0
        %v4616 = vpop.trf.xlu0
        %v4617 = vpop.trf.xlu0
        %v4618 = vpop.trf.xlu0
        %v4619 = vpop.trf.xlu0
        %v4620 = vpop.trf.xlu0
        %v4621 = vrot.slane %v4573, 4
        %v4622 = vsel %vm899, %v4621, %v4509
        %v4623 = vrot.slane %v4509, 4
        %v4624 = vsel %vm899, %v4573, %v4623
        %v4626 = vunpack.c.l.s4 1983009808
        %v4627 = vunpack.c.0.s8 %v4626
        %v4628 = vperm.slane %v4622, %v4627
        %v4630 = vunpack.c.l.s4 1983009808
        %v4631 = vunpack.c.0.s8 %v4630
        %v4632 = vperm.slane %v4624, %v4631
        %v4633 = vrot.slane %v4605, 4
        %v4634 = vsel %vm899, %v4633, %v4541
        %v4635 = vrot.slane %v4541, 4
        %v4636 = vsel %vm899, %v4605, %v4635
        %v4638 = vunpack.c.l.s4 1983009808
        %v4639 = vunpack.c.0.s8 %v4638
        %v4640 = vperm.slane %v4634, %v4639
        %v4642 = vunpack.c.l.s4 1983009808
        %v4643 = vunpack.c.0.s8 %v4642
        %v4644 = vperm.slane %v4636, %v4643
        %v4645 = vrot.slane %v4640, 4
        %v4646 = vsel %vm899, %v4645, %v4628
        %v4647 = vrot.slane %v4628, 4
        %v4648 = vsel %vm899, %v4640, %v4647
        %v4650 = vunpack.c.l.s4 1934713408
        %v4651 = vunpack.c.0.s8 %v4650
        %v4652 = vperm.slane %v4646, %v4651
        %v4654 = vunpack.c.l.s4 1934713408
        %v4655 = vunpack.c.0.s8 %v4654
        %v4656 = vperm.slane %v4648, %v4655
        %v4657 = vrot.slane %v4644, 4
        %v4658 = vsel %vm899, %v4657, %v4632
        %v4659 = vrot.slane %v4632, 4
        %v4660 = vsel %vm899, %v4644, %v4659
        %v4662 = vunpack.c.l.s4 1934713408
        %v4663 = vunpack.c.0.s8 %v4662
        %v4664 = vperm.slane %v4658, %v4663
        %v4666 = vunpack.c.l.s4 1934713408
        %v4667 = vunpack.c.0.s8 %v4666
        %v4668 = vperm.slane %v4660, %v4667
        %v4669 = vrot.slane %v4652, 4
        %v4670 = vsel %vm899, 0.0, %v4669
        %v4671 = vrot.slane %v4656, 4
        %v4672 = vsel %vm899, 0.0, %v4671
        %v4673 = vrot.slane %v4664, 4
        %v4674 = vsel %vm899, 0.0, %v4673
        %v4675 = vrot.slane %v4668, 4
        %v4676 = vsel %vm899, 0.0, %v4675
        %v4681 = vperm.slane %v3829, %v2343
        %v4682 = vperm.slane %v3830, %v2343
        %v4683 = vperm.slane %v3831, %v2343
        %v4684 = vperm.slane %v3832, %v2343
        %v4685 = vsel %vm2348, %v4682, %v4681
        %v4686 = vsel %vm2350, %v4683, %v4685
        %v4687 = vsel %vm2352, %v4684, %v4686
        %4689 = vxpose.xlu0.b32.start [1/16] %v4687, 128
        %4690 = vxpose.xlu0.b32.cont [2/16] 0.0, 128
        %4691 = vxpose.xlu0.b32.cont [3/16] 0.0, 128
        %4692 = vxpose.xlu0.b32.cont [4/16] 0.0, 128
        %4693 = vxpose.xlu0.b32.cont [5/16] 0.0, 128
        %4694 = vxpose.xlu0.b32.cont [6/16] 0.0, 128
        %4695 = vxpose.xlu0.b32.cont [7/16] 0.0, 128
        %4696 = vxpose.xlu0.b32.cont [8/16] 0.0, 128
        %4697 = vxpose.xlu0.b32.cont [9/16] 0.0, 128
        %4698 = vxpose.xlu0.b32.cont [10/16] 0.0, 128
        %4699 = vxpose.xlu0.b32.cont [11/16] 0.0, 128
        %4700 = vxpose.xlu0.b32.cont [12/16] 0.0, 128
        %4701 = vxpose.xlu0.b32.cont [13/16] 0.0, 128
        %4702 = vxpose.xlu0.b32.cont [14/16] 0.0, 128
        %4703 = vxpose.xlu0.b32.cont [15/16] 0.0, 128
        %4704 = vxpose.xlu0.b32.end [16/16] 0.0, 128
        %v4705 = vpop.trf.xlu0
        %v4706 = vpop.trf.xlu0
        %v4707 = vpop.trf.xlu0
        %v4708 = vpop.trf.xlu0
        %v4709 = vpop.trf.xlu0
        %v4710 = vpop.trf.xlu0
        %v4711 = vpop.trf.xlu0
        %v4712 = vpop.trf.xlu0
        %v4713 = vpop.trf.xlu0
        %v4714 = vpop.trf.xlu0
        %v4715 = vpop.trf.xlu0
        %v4716 = vpop.trf.xlu0
        %v4717 = vpop.trf.xlu0
        %v4718 = vpop.trf.xlu0
        %v4719 = vpop.trf.xlu0
        %v4720 = vpop.trf.xlu0
        %v4721 = vperm.slane %v4705, 0
        %v4722 = vlaneseq
        %v4723 = vshrl.u32 %v4722, 7
        %4725 = vset.pattern.permute.xlu0 %v4723
        %4726 = vperm.xlu0 %4725, %v4721
        %v4727 = vpop.permute.xlu0 %4726
        %v4728 = vperm.slane %v4705, 1
        %v4729 = vlaneseq
        %v4730 = vshrl.u32 %v4729, 7
        %4732 = vset.pattern.permute.xlu0 %v4730
        %4733 = vperm.xlu0 %4732, %v4728
        %v4734 = vpop.permute.xlu0 %4733
        %v4735 = vperm.slane %v4705, 2
        %v4736 = vlaneseq
        %v4737 = vshrl.u32 %v4736, 7
        %4739 = vset.pattern.permute.xlu0 %v4737
        %4740 = vperm.xlu0 %4739, %v4735
        %v4741 = vpop.permute.xlu0 %4740
        %v4742 = vperm.slane %v4705, 3
        %v4743 = vlaneseq
        %v4744 = vshrl.u32 %v4743, 7
        %4746 = vset.pattern.permute.xlu0 %v4744
        %4747 = vperm.xlu0 %4746, %v4742
        %v4748 = vpop.permute.xlu0 %4747
        %v4749 = vperm.slane %v4705, 4
        %v4750 = vlaneseq
        %v4751 = vshrl.u32 %v4750, 7
        %4753 = vset.pattern.permute.xlu0 %v4751
        %4754 = vperm.xlu0 %4753, %v4749
        %v4755 = vpop.permute.xlu0 %4754
        %v4756 = vperm.slane %v4705, 5
        %v4757 = vlaneseq
        %v4758 = vshrl.u32 %v4757, 7
        %4760 = vset.pattern.permute.xlu0 %v4758
        %4761 = vperm.xlu0 %4760, %v4756
        %v4762 = vpop.permute.xlu0 %4761
        %v4763 = vperm.slane %v4705, 6
        %v4764 = vlaneseq
        %v4765 = vshrl.u32 %v4764, 7
        %4767 = vset.pattern.permute.xlu0 %v4765
        %4768 = vperm.xlu0 %4767, %v4763
        %v4769 = vpop.permute.xlu0 %4768
        %v4770 = vperm.slane %v4705, 7
        %v4771 = vlaneseq
        %v4772 = vshrl.u32 %v4771, 7
        %4774 = vset.pattern.permute.xlu0 %v4772
        %4775 = vperm.xlu0 %4774, %v4770
        %v4776 = vpop.permute.xlu0 %4775
        %v4777 = vmul.f32 %v4652, %v4727
        %v4778 = vmul.f32 %v4670, %v4734
        %v4779 = vmul.f32 %v4656, %v4741
        %v4780 = vmul.f32 %v4672, %v4748
        %v4781 = vmul.f32 %v4664, %v4755
        %v4782 = vmul.f32 %v4674, %v4762
        %v4783 = vmul.f32 %v4668, %v4769
        %v4784 = vmul.f32 %v4676, %v4776
        %v4785 = vrot.slane %v4779, 4
        %v4786 = vsel %vm899, %v4785, %v4777
        %v4788 = vunpack.c.l.s4 1983009808
        %v4789 = vunpack.c.0.s8 %v4788
        %v4790 = vperm.slane %v4786, %v4789
        %v4791 = vrot.slane %v4780, 4
        %v4792 = vsel %vm899, %v4791, %v4778
        %v4794 = vunpack.c.l.s4 1983009808
        %v4795 = vunpack.c.0.s8 %v4794
        %v4796 = vperm.slane %v4792, %v4795
        %v4797 = vrot.slane %v4783, 4
        %v4798 = vsel %vm899, %v4797, %v4781
        %v4800 = vunpack.c.l.s4 1983009808
        %v4801 = vunpack.c.0.s8 %v4800
        %v4802 = vperm.slane %v4798, %v4801
        %v4803 = vrot.slane %v4784, 4
        %v4804 = vsel %vm899, %v4803, %v4782
        %v4806 = vunpack.c.l.s4 1983009808
        %v4807 = vunpack.c.0.s8 %v4806
        %v4808 = vperm.slane %v4804, %v4807
        %v4809 = vrot.slane %v4796, 4
        %v4810 = vsel %vm899, %v4809, %v4790
        %v4811 = vrot.slane %v4790, 4
        %v4812 = vsel %vm899, %v4796, %v4811
        %v4814 = vunpack.c.l.s4 1934713408
        %v4815 = vunpack.c.0.s8 %v4814
        %v4816 = vperm.slane %v4810, %v4815
        %v4818 = vunpack.c.l.s4 1934713408
        %v4819 = vunpack.c.0.s8 %v4818
        %v4820 = vperm.slane %v4812, %v4819
        %v4821 = vrot.slane %v4808, 4
        %v4822 = vsel %vm899, %v4821, %v4802
        %v4823 = vrot.slane %v4802, 4
        %v4824 = vsel %vm899, %v4808, %v4823
        %v4826 = vunpack.c.l.s4 1934713408
        %v4827 = vunpack.c.0.s8 %v4826
        %v4828 = vperm.slane %v4822, %v4827
        %v4830 = vunpack.c.l.s4 1934713408
        %v4831 = vunpack.c.0.s8 %v4830
        %v4832 = vperm.slane %v4824, %v4831
        %v4833 = vrot.slane %v4828, 4
        %v4834 = vsel %vm899, %v4833, %v4816
        %v4835 = vrot.slane %v4816, 4
        %v4836 = vsel %vm899, %v4828, %v4835
        %v4837 = vrot.slane %v4832, 4
        %v4838 = vsel %vm899, %v4837, %v4820
        %v4839 = vrot.slane %v4820, 4
        %v4840 = vsel %vm899, %v4832, %v4839
        %4842 = vrot.lane.b32.xlu0 %v4836, 8
        %v4843 = vpop.permute.xlu0 %4842
        %4846 = vrot.lane.b32.xlu0 %v4838, 16
        %v4847 = vpop.permute.xlu0 %4846
        %4850 = vrot.lane.b32.xlu0 %v4840, 24
        %v4851 = vpop.permute.xlu0 %4850
        %v4853 = vsel %vm1560, %v4834, %v4843
        %v4854 = vsel %vm2520, %v4853, %v4847
        %v4855 = vsel %vm2522, %v4854, %v4851
        %v4856 = vpack.c.bf16 %v4855, %v4855
        %v4857 = vld [vmem:[#allocation13] sm:$0xf]
        %v4858 = vld [vmem:[#allocation13 + $0x4] sm:$0xf]
        %v4859 = vld [vmem:[#allocation13 + $0x8] sm:$0xf]
        %v4860 = vld [vmem:[#allocation13 + $0xc] sm:$0xf]
        %v4861 = vld [vmem:[#allocation14] sm:$0x1]
        %v4863 = vperm.slane %v4861, 0
        %v4869 = vunpack.c.l.b16 %v4857
        %v4870 = vunpack.c.l.b16 %v4858
        %v4871 = vunpack.c.l.b16 %v4859
        %v4872 = vunpack.c.l.b16 %v4860
        %v4873 = vpack.c.b16 %v4870, %v4869
        %v4874 = vpack.c.b16 %v4872, %v4871
        %v4878 = vsel %vm798, %v4856, 0
        %4880 = vmatpush.bf16.msra.mxu0 0
        %4881 = vmatpush.bf16.msra.mxu0 0
        %4882 = vmatpush.bf16.msra.mxu0 0
        %4883 = vmatpush.bf16.msra.mxu0 0
        %4884 = vmatpush.bf16.msra.mxu0 0
        %4885 = vmatpush.bf16.msra.mxu0 0
        %4886 = vmatpush.bf16.msra.mxu0 %v4874
        %4887 = vmatpush.bf16.msra.mxu0 %v4873
        %4888 = vmatmul.bf16.gmra.mxu0 %v4878
        %v4889 = vpop.f32.mrf.mxu0
        %v4890 = vadd.f32 %v4863, %v4889
        %v4891 = vpop.f32.mrf.mxu0
        %4892 = vdwg.mxu0
        %v4893 = vadd.f32 %v2600, %v4890
        %v4894 = vsel %vm798, %v4893, 0.0
        %4895 = vadd.xlane.f32.xlu0 %v4894
        %v4896 = vpop.xlane.xlu0 %4895
        %v4897 = vmul.f32 %v4896, %v2571
        %v4898 = vsub.f32 %v4893, %v4897
        %v4899 = vmul.f32 %v4898, %v4898
        %v4900 = vsel %vm798, %v4899, 0.0
        %4901 = vadd.xlane.f32.xlu0 %v4900
        %v4902 = vpop.xlane.xlu0 %4901
        %v4903 = vmul.f32 %v4902, %v2571
        %v4904 = vadd.f32 %v4903, 1e-05
        %v4905 = vrsqrt.pop %v4904
        %v4906 = vmul.f32 %v4905, %v4904
        %v4907 = vmul.f32 %v4906, %v4905
        %v4908 = vmul.f32 0.5, %v4907
        %v4909 = vsub.f32 1.5, %v4908
        %v4910 = vmul.f32 %v4905, %v4909
        %vm4911 = vweird.f32 %v4904
        %vm4912 = vweird.f32 %v4905
        %vm4913 = vmor %vm4911, %vm4912
        %v4914 = vsel %vm4913, %v4905, %v4910
        %v4915 = vmul.f32 %v4898, %v4914
        %s4916 = scalar_lea.vmem %s11, 1
        %v4917 = vld [vmem:[%s4916] sm:$0x1]
        %v4919 = vperm.slane %v4917, 0
        %v4921 = vmul.f32 %v4915, %v4919
        %s4922 = scalar_lea.vmem [#allocation16], 1
        %v4923 = vld [vmem:[%s4922] sm:$0x1]
        %v4925 = vperm.slane %v4923, 0
        %v4927 = vadd.f32 %v4921, %v4925
        %v4928 = vpack.c.bf16 %v4927, %v4927
        %v4929 = vld [vmem:[#allocation17] sm:$0xf]
        %v4930 = vld [vmem:[#allocation17 + $0x4] sm:$0xf]
        %v4931 = vld [vmem:[#allocation17 + $0x8] sm:$0xf]
        %v4932 = vld [vmem:[#allocation17 + $0xc] sm:$0xf]
        %v4933 = vld [vmem:[%s14] sm:$0x1]
        %v4935 = vperm.slane %v4933, 0
        %v4941 = vunpack.c.l.b16 %v4929
        %v4942 = vunpack.c.l.b16 %v4930
        %v4943 = vunpack.c.l.b16 %v4931
        %v4944 = vunpack.c.l.b16 %v4932
        %v4945 = vpack.c.b16 %v4942, %v4941
        %v4946 = vpack.c.b16 %v4944, %v4943
        %v4950 = vsel %vm798, %v4928, 0
        %4952 = vmatpush.bf16.msra.mxu0 0
        %4953 = vmatpush.bf16.msra.mxu0 0
        %4954 = vmatpush.bf16.msra.mxu0 0
        %4955 = vmatpush.bf16.msra.mxu0 0
        %4956 = vmatpush.bf16.msra.mxu0 0
        %4957 = vmatpush.bf16.msra.mxu0 0
        %4958 = vmatpush.bf16.msra.mxu0 %v4946
        %4959 = vmatpush.bf16.msra.mxu0 %v4945
        %4960 = vmatmul.bf16.gmra.mxu0 %v4950
        %v4961 = vpop.f32.mrf.mxu0
        %v4962 = vadd.f32 %v4935, %v4961
        %v4963 = vpop.f32.mrf.mxu0
        %4964 = vdwg.mxu0
        %v4965 = vmax.f32 %v4962, 0.0
        %v4966 = vpack.c.bf16 %v4965, %v4965
        %v4967 = vld [vmem:[%s15] sm:$0xf]
        %v4968 = vld [vmem:[%s15 + $0x4] sm:$0xf]
        %v4969 = vld [vmem:[%s15 + $0x8] sm:$0xf]
        %v4970 = vld [vmem:[%s15 + $0xc] sm:$0xf]
        %v4971 = vld [vmem:[%s15 + $0x10] sm:$0xf]
        %v4972 = vld [vmem:[%s15 + $0x14] sm:$0xf]
        %v4973 = vld [vmem:[%s15 + $0x18] sm:$0xf]
        %v4974 = vld [vmem:[%s15 + $0x1c] sm:$0xf]
        %v4975 = vld [vmem:[%s16] sm:$0x1]
        %v4977 = vperm.slane %v4975, 0
        %v4987 = vunpack.c.l.b16 %v4967
        %v4988 = vunpack.c.l.b16 %v4968
        %v4989 = vunpack.c.l.b16 %v4969
        %v4990 = vunpack.c.l.b16 %v4970
        %v4991 = vunpack.c.l.b16 %v4971
        %v4992 = vunpack.c.l.b16 %v4972
        %v4993 = vunpack.c.l.b16 %v4973
        %v4994 = vunpack.c.l.b16 %v4974
        %v4995 = vpack.c.b16 %v4988, %v4987
        %v4996 = vpack.c.b16 %v4990, %v4989
        %v4997 = vpack.c.b16 %v4992, %v4991
        %v4998 = vpack.c.b16 %v4994, %v4993
        %vm5003 = vcmask 523264
        %v5005 = vsel %vm5003, %v4966, 0
        %5007 = vmatpush.bf16.msra.mxu0 0
        %5008 = vmatpush.bf16.msra.mxu0 0
        %5009 = vmatpush.bf16.msra.mxu0 0
        %5010 = vmatpush.bf16.msra.mxu0 0
        %5011 = vmatpush.bf16.msra.mxu0 %v4998
        %5012 = vmatpush.bf16.msra.mxu0 %v4997
        %5013 = vmatpush.bf16.msra.mxu0 %v4996
        %5014 = vmatpush.bf16.msra.mxu0 %v4995
        %5015 = vmatmul.bf16.gmra.mxu0 %v5005
        %v5016 = vpop.f32.mrf.mxu0
        %v5017 = vadd.f32 %v4977, %v5016
        %v5018 = vpop.f32.mrf.mxu0
        %5019 = vdwg.mxu0
        %v5020 = vadd.f32 %v4927, %v5017
        %v5021 = vsel %vm798, %v5020, 0.0
        %5022 = vadd.xlane.f32.xlu0 %v5021
        %v5023 = vpop.xlane.xlu0 %5022
        %v5024 = vmul.f32 %v5023, %v2571
        %v5025 = vsub.f32 %v5020, %v5024
        %v5026 = vmul.f32 %v5025, %v5025
        %v5027 = vsel %vm798, %v5026, 0.0
        %5028 = vadd.xlane.f32.xlu0 %v5027
        %v5029 = vpop.xlane.xlu0 %5028
        %v5030 = vmul.f32 %v5029, %v2571
        %v5031 = vadd.f32 %v5030, 1e-05
        %v5032 = vrsqrt.pop %v5031
        %v5033 = vmul.f32 %v5032, %v5031
        %v5034 = vmul.f32 %v5033, %v5032
        %v5035 = vmul.f32 0.5, %v5034
        %v5036 = vsub.f32 1.5, %v5035
        %v5037 = vmul.f32 %v5032, %v5036
        %vm5038 = vweird.f32 %v5031
        %vm5039 = vweird.f32 %v5032
        %vm5040 = vmor %vm5038, %vm5039
        %v5041 = vsel %vm5040, %v5032, %v5037
        %v5042 = vmul.f32 %v5025, %v5041
        %s5043 = scalar_lea.vmem %s11, 2
        %v5044 = vld [vmem:[%s5043] sm:$0x1]
        %v5046 = vperm.slane %v5044, 0
        %v5048 = vmul.f32 %v5042, %v5046
        %s5049 = scalar_lea.vmem [#allocation16], 2
        %v5050 = vld [vmem:[%s5049] sm:$0x1]
        %v5052 = vperm.slane %v5050, 0
        %v5054 = vadd.f32 %v5048, %v5052
        %5055 = vst.msk [vmem:[%s769] sm:$0xff] %vm798, %v5054
        %s5056 = sand.u32 %s435, 1
        %s5057 = scalar_lea.sflag [#allocation4], %s5056
        %s5058 = sand.u32 %s435, 1
        %s5059 = smul.addr %s5058, 8
        %s5060 = scalar_lea.vmem [#allocation19], %s5059
        // Predicated region
        $region129: #{tpu_custom_call.1} parent=87 // pred_check
          %p5061 = pneg %p445
        $region130: #{tpu_custom_call.1} parent=87 // pred_check_branch
          %5063 = sbr.rel (%p5061) target = $region132
        $region131: #{tpu_custom_call.1} parent=87 // pred_region
          %5065 = vsyncadd %s5057, 0
          %s5066 = sadd.s32 %s46, %s45
          %s5067 = smul.addr %s5066, 8
          %s5068 = scalar_lea.hbm %s17, %s5067
          %s5070 = sshll.u32 %s5060, 4
          %s5071 = int_to_ptr.vmem [resolvable:$true] %s5070
          %s5072 = sshll.u32 %s5068, 4
          %s5073 = int_to_ptr.hbm [resolvable:$true] %s5072
          %5075 = dma.vmem_to_hbm [thread:$0]  %s5071, 128, %s5073, %s5057
        $region132: #{tpu_custom_call.1} parent=87 // pred_fallthru
          _
      $region88: #{tpu_custom_call.1} parent=5 // pred_fallthru
        _
      %p5076 = scmp.le.s32.totalorder 2, %s36
      // Predicated region
      $region133: #{tpu_custom_call.1} parent=5 // pred_check
        %p5077 = pneg %p5076
      $region134: #{tpu_custom_call.1} parent=5 // pred_check_branch
        %5079 = sbr.rel (%p5077) target = $region136
      $region135: #{tpu_custom_call.1} parent=5 // pred_region
        %s5080 = ssub.s32 %s36, 2
        // Predicated region
        $region137: #{tpu_custom_call.1} parent=135 // pred_check
          %p5081 = pneg %p451
        $region138: #{tpu_custom_call.1} parent=135 // pred_check_branch
          %5083 = sbr.rel (%p5081) target = $region140
        $region139: #{tpu_custom_call.1} parent=135 // pred_region
          %s5084 = sand.u32 %s436, 1
          %s5085 = scalar_lea.sflag [#allocation4], %s5084
          %s5086 = sand.u32 %s436, 1
          %s5087 = smul.addr %s5086, 8
          %s5088 = scalar_lea.vmem [#allocation19], %s5087
          %5090 = dma.done %s5085, 128
        $region140: #{tpu_custom_call.1} parent=135 // pred_fallthru
          _
      $region136: #{tpu_custom_call.1} parent=5 // pred_fallthru
        _
    $region6: #{tpu_custom_call.1} parent=1 // loop_footer
      %s40 = sadd.s32 1, %s36
    $region7: #{tpu_custom_call.1} parent=1 // loop_footer_branch
      %35 = sbr.rel target = $region3
    $region8: #{tpu_custom_call.1} parent=1 // loop_exit
      _
    %5091 = vsyncpa [#allocation3], 1
    %s5092 = scalar_lea.sflag [#allocation3], 1
    %5093 = vsyncpa %s5092, 1
    %5094 = vsyncpa [#allocation6], 1
    %s5095 = scalar_lea.sflag [#allocation6], 1
    %5096 = vsyncpa %s5095, 1
    %5097 = vsyncpa [#allocation9], 1
    %5098 = vsyncpa [#allocation12], 1
    %5099 = vsyncpa [#allocation15], 1
    %5100 = vsyncpa [#allocation18], 1
    %5101 = vsyncpa [#allocation4], 1
    %s5102 = scalar_lea.sflag [#allocation4], 1
    %5103 = vsyncpa %s5102, 1

// kernel: tpu_custom_call.1
$region0: #{tpu_custom_call.1}
  #allocation0 [shape = 'u32[]', space=smem, size = 0x4, offset = 0x4, fixed_abs, tag = 'smem constant byte address 0x4 - core index']
  #allocation1 [shape = 'u32[72,128]{1,0:T(1,128)}', space=vmem, size = 0x9000, scoped, tag = 'internal scratch']
  %s0 = inlined_call_operand.hbm [shape: f32[2,8,32], index: 0, kind: input, shape index: {}]
  %s1 = inlined_call_operand.hbm [shape: f32[2,16,32], index: 1, kind: input, shape index: {}]
  %s2 = inlined_call_operand.hbm [shape: f32[2,8,32], index: 2, kind: input, shape index: {}]
  %s3 = inlined_call_operand.vmem [shape: bf16[3,32,32], index: 3, kind: input, shape index: {}]
  %s4 = inlined_call_operand.vmem [shape: f32[3,1,32], index: 4, kind: input, shape index: {}]
  %s5 = inlined_call_operand.hbm [shape: bf16[32,32], index: 5, kind: input, shape index: {}]
  %s6 = inlined_call_operand.hbm [shape: f32[1,32], index: 6, kind: input, shape index: {}]
  %s7 = inlined_call_operand.hbm [shape: bf16[3,32,32], index: 7, kind: input, shape index: {}]
  %s8 = inlined_call_operand.vmem [shape: f32[3,1,32], index: 8, kind: input, shape index: {}]
  %s9 = inlined_call_operand.hbm [shape: bf16[32,32], index: 9, kind: input, shape index: {}]
  %s10 = inlined_call_operand.hbm [shape: f32[1,32], index: 10, kind: input, shape index: {}]
  %s11 = inlined_call_operand.vmem [shape: f32[3,1,32], index: 11, kind: input, shape index: {}]
  %s12 = inlined_call_operand.hbm [shape: f32[3,1,32], index: 12, kind: input, shape index: {}]
  %s13 = inlined_call_operand.hbm [shape: bf16[32,64], index: 13, kind: input, shape index: {}]
  %s14 = inlined_call_operand.vmem [shape: f32[1,64], index: 14, kind: input, shape index: {}]
  %s15 = inlined_call_operand.vmem [shape: bf16[64,32], index: 15, kind: input, shape index: {}]
  %s16 = inlined_call_operand.vmem [shape: f32[1,32], index: 16, kind: input, shape index: {}]
  %s17 = inlined_call_operand.hbm [shape: f32[2,8,32], index: 17, kind: output, shape index: {}]
  %s18 = sld [smem:[#allocation0]]
  $region141: #{tpu_custom_call.1} parent=0
    _
  %s20 = ssub.s32 1, %s18
  %s21 = scalar_select 0, %s20, %s18
  $region1: #{tpu_custom_call.1} parent=0
    #allocation2 [shape = 'u8[8192]{0}', space=vmem, size = 0x2000, scoped, tag = 'input window, operand 0']
    #allocation3 [shape = 's32[2]{0}', space=sflag, size = 0x8, scoped, tag = 'scoped memory for tpu_custom_call.1']
    #allocation4 [shape = 's32[2]{0}', space=sflag, size = 0x8, scoped, tag = 'scoped memory for tpu_custom_call.1']
    #allocation5 [shape = 'u8[16384]{0}', space=vmem, size = 0x4000, scoped, tag = 'input window, operand 1']
    #allocation6 [shape = 's32[2]{0}', space=sflag, size = 0x8, scoped, tag = 'scoped memory for tpu_custom_call.1']
    #allocation7 [shape = 'u8[8192]{0}', space=vmem, size = 0x2000, scoped, tag = 'input window, operand 2']
    #allocation8 [shape = 'u8[8192]{0}', space=vmem, size = 0x2000, scoped, tag = 'input window, operand 5, single buffered']
    #allocation9 [shape = 's32[1]{0}', space=sflag, size = 0x4, scoped, tag = 'scoped memory for tpu_custom_call.1']
    #allocation10 [shape = 'u8[512]{0}', space=vmem, size = 0x400, scoped, tag = 'input window, operand 6, single buffered']
    #allocation11 [shape = 'u8[24576]{0}', space=vmem, size = 0x6000, scoped, tag = 'input window, operand 7, single buffered']
    #allocation12 [shape = 's32[1]{0}', space=sflag, size = 0x4, scoped, tag = 'scoped memory for tpu_custom_call.1']
    #allocation13 [shape = 'u8[8192]{0}', space=vmem, size = 0x2000, scoped, tag = 'input window, operand 9, single buffered']
    #allocation14 [shape = 'u8[512]{0}', space=vmem, size = 0x400, scoped, tag = 'input window, operand 10, single buffered']
    #allocation15 [shape = 's32[1]{0}', space=sflag, size = 0x4, scoped, tag = 'scoped memory for tpu_custom_call.1']
    #allocation16 [shape = 'u8[1536]{0}', space=vmem, size = 0x800, scoped, tag = 'input window, operand 12, single buffered']
    #allocation17 [shape = 'u8[8192]{0}', space=vmem, size = 0x2000, scoped, tag = 'input window, operand 13, single buffered']
    #allocation18 [shape = 's32[1]{0}', space=sflag, size = 0x4, scoped, tag = 'scoped memory for tpu_custom_call.1']
    #allocation19 [shape = 'u8[8192]{0}', space=vmem, size = 0x2000, scoped, tag = 'output window, operand 0']
    %22 = vsyncpa [#allocation3], 0
    %s23 = scalar_lea.sflag [#allocation3], 1
    %24 = vsyncpa %s23, 0
    %25 = vsyncpa [#allocation6], 0
    %s26 = scalar_lea.sflag [#allocation6], 1
    %27 = vsyncpa %s26, 0
    %28 = vsyncpa [#allocation9], 0
    %29 = vsyncpa [#allocation12], 0
    %30 = vsyncpa [#allocation15], 0
    %31 = vsyncpa [#allocation18], 0
    %32 = vsyncpa [#allocation4], 0
    %s33 = scalar_lea.sflag [#allocation4], 1
    %34 = vsyncpa %s33, 0
    loop: start=0, step=1, limit=4
    $region2: #{tpu_custom_call.1} parent=1 // loop_pre_header
      _
    $region3: #{tpu_custom_call.1} parent=1 // loop_header
      %s36 = sphi 0, %s40
      %p37 = scmp.ge.s32.totalorder %s36, 4
      %s43 = sphi 0, %s55
      %s44 = sphi 0, %s51
      %s45 = sphi 0, %s43
      %s46 = sphi 0, %s44
      %s47 = sphi 0, %s45
      %s48 = sphi 0, %s46
      %s58 = sphi 0, %s60
      %s61 = sphi 0, %s58
      %s62 = sphi 0, %s61
      %s78 = sphi 0, %s62
      %s84 = sphi 0, %s86
      %s87 = sphi 0, %s84
      %s88 = sphi 0, %s87
      %s104 = sphi 0, %s88
      %s110 = sphi 0, %s112
      %s113 = sphi 0, %s110
      %s114 = sphi 0, %s113
      %s130 = sphi 0, %s114
      %s134 = sphi 0, %s134
      %s136 = sphi 0, %s134
      %s137 = sphi 0, %s136
      %s151 = sphi 0, %s137
      %s155 = sphi 0, %s155
      %s157 = sphi 0, %s155
      %s158 = sphi 0, %s157
      %s172 = sphi 0, %s158
      %s176 = sphi 0, %s176
      %s178 = sphi 0, %s176
      %s179 = sphi 0, %s178
      %s193 = sphi 0, %s179
      %s197 = sphi 0, %s197
      %s199 = sphi 0, %s197
      %s200 = sphi 0, %s199
      %s214 = sphi 0, %s200
      %s218 = sphi 0, %s218
      %s220 = sphi 0, %s218
      %s221 = sphi 0, %s220
      %s235 = sphi 0, %s221
      %s239 = sphi 0, %s239
      %s241 = sphi 0, %s239
      %s242 = sphi 0, %s241
      %s256 = sphi 0, %s242
      %s260 = sphi 0, %s260
      %s262 = sphi 0, %s260
      %s263 = sphi 0, %s262
      %s277 = sphi 0, %s263
      %s281 = sphi 0, %s281
      %s283 = sphi 0, %s281
      %s284 = sphi 0, %s283
      %s298 = sphi 0, %s284
      %s302 = sphi 0, %s302
      %s304 = sphi 0, %s302
      %s305 = sphi 0, %s304
      %s319 = sphi 0, %s305
      %s323 = sphi 0, %s323
      %s325 = sphi 0, %s323
      %s326 = sphi 0, %s325
      %s340 = sphi 0, %s326
      %s344 = sphi 0, %s344
      %s346 = sphi 0, %s344
      %s347 = sphi 0, %s346
      %s361 = sphi 0, %s347
      %s365 = sphi 0, %s365
      %s367 = sphi 0, %s365
      %s368 = sphi 0, %s367
      %s382 = sphi 0, %s368
      %s386 = sphi 0, %s386
      %s388 = sphi 0, %s386
      %s389 = sphi 0, %s388
      %s403 = sphi 0, %s389
      %s407 = sphi 0, %s407
      %s409 = sphi 0, %s407
      %s410 = sphi 0, %s409
      %s424 = sphi 0, %s410
      %s432 = sphi 0, %s434
      %s435 = sphi 0, %s432
      %s436 = sphi 0, %s435
      %s452 = sphi 0, %s436
    $region4: #{tpu_custom_call.1} parent=1 // loop_header_branch
      %39 = sbr.rel (%p37) target = $region8
    $region5: #{tpu_custom_call.1} parent=1 // loop_body
      %s41 = ssub.s32 %s36, 1
      %s42 = ssub.s32 %s36, 2
      %s49 = sadd.s32 1, %s44
      %p50 = scmp.ge.s32.totalorder %s49, 1
      %s51 = scalar_select %p50, 0, %s49
      %s52 = sadd.s32 1, %s43
      %s53 = scalar_select %p50, %s52, %s43
      %p54 = scmp.ge.s32.totalorder %s53, 2
      %s55 = scalar_select %p54, 0, %s53
      %s56 = ssub.s32 %s43, %s55
      %p57 = scmp.eq.s32.totalorder %s56, 0
      %s59 = sadd.s32 %s58, 1
      %s60 = scalar_select %p57, %s58, %s59
      %p63 = pneg %p57
      %p64 = scmp.eq.s32.totalorder %s36, 1
      %p65 = por %p63, %p64
      %p66 = scmp.ne.s32.totalorder %s58, %s61
      %p67 = scmp.eq.s32.totalorder %s36, 0
      %p68 = por %p66, %p67
      %p69 = scmp.ne.s32.totalorder %s58, %s61
      %p70 = scmp.eq.s32.totalorder %s41, 1
      %p71 = por %p69, %p70
      %p72 = scmp.ne.s32.totalorder %s61, %s62
      %p73 = scmp.eq.s32.totalorder %s41, 0
      %p74 = por %p72, %p73
      %p75 = scmp.ne.s32.totalorder %s61, %s62
      %p76 = scmp.eq.s32.totalorder %s42, 1
      %p77 = por %p75, %p76
      %p79 = scmp.ne.s32.totalorder %s62, %s78
      %p80 = scmp.eq.s32.totalorder %s42, 0
      %p81 = por %p79, %p80
      %s82 = ssub.s32 %s43, %s55
      %p83 = scmp.eq.s32.totalorder %s82, 0
      %s85 = sadd.s32 %s84, 1
      %s86 = scalar_select %p83, %s84, %s85
      %p89 = pneg %p83
      %p90 = scmp.eq.s32.totalorder %s36, 1
      %p91 = por %p89, %p90
      %p92 = scmp.ne.s32.totalorder %s84, %s87
      %p93 = scmp.eq.s32.totalorder %s36, 0
      %p94 = por %p92, %p93
      %p95 = scmp.ne.s32.totalorder %s84, %s87
      %p96 = scmp.eq.s32.totalorder %s41, 1
      %p97 = por %p95, %p96
      %p98 = scmp.ne.s32.totalorder %s87, %s88
      %p99 = scmp.eq.s32.totalorder %s41, 0
      %p100 = por %p98, %p99
      %p101 = scmp.ne.s32.totalorder %s87, %s88
      %p102 = scmp.eq.s32.totalorder %s42, 1
      %p103 = por %p101, %p102
      %p105 = scmp.ne.s32.totalorder %s88, %s104
      %p106 = scmp.eq.s32.totalorder %s42, 0
      %p107 = por %p105, %p106
      %s108 = ssub.s32 %s43, %s55
      %p109 = scmp.eq.s32.totalorder %s108, 0
      %s111 = sadd.s32 %s110, 1
      %s112 = scalar_select %p109, %s110, %s111
      %p115 = pneg %p109
      %p116 = scmp.eq.s32.totalorder %s36, 1
      %p117 = por %p115, %p116
      %p118 = scmp.ne.s32.totalorder %s110, %s113
      %p119 = scmp.eq.s32.totalorder %s36, 0
      %p120 = por %p118, %p119
      %p121 = scmp.ne.s32.totalorder %s110, %s113
      %p122 = scmp.eq.s32.totalorder %s41, 1
      %p123 = por %p121, %p122
      %p124 = scmp.ne.s32.totalorder %s113, %s114
      %p125 = scmp.eq.s32.totalorder %s41, 0
      %p126 = por %p124, %p125
      %p127 = scmp.ne.s32.totalorder %s113, %s114
      %p128 = scmp.eq.s32.totalorder %s42, 1
      %p129 = por %p127, %p128
      %p131 = scmp.ne.s32.totalorder %s114, %s130
      %p132 = scmp.eq.s32.totalorder %s42, 0
      %p133 = por %p131, %p132
      %s135 = sadd.s32 %s134, 1
      %p138 = scmp.eq.s32.totalorder %s36, 1
      %p139 = scmp.ne.s32.totalorder %s134, %s136
      %p140 = scmp.eq.s32.totalorder %s36, 0
      %p141 = por %p139, %p140
      %p142 = scmp.ne.s32.totalorder %s134, %s136
      %p143 = scmp.eq.s32.totalorder %s41, 1
      %p144 = por %p142, %p143
      %p145 = scmp.ne.s32.totalorder %s136, %s137
      %p146 = scmp.eq.s32.totalorder %s41, 0
      %p147 = por %p145, %p146
      %p148 = scmp.ne.s32.totalorder %s136, %s137
      %p149 = scmp.eq.s32.totalorder %s42, 1
      %p150 = por %p148, %p149
      %p152 = scmp.ne.s32.totalorder %s137, %s151
      %p153 = scmp.eq.s32.totalorder %s42, 0
      %p154 = por %p152, %p153
      %s156 = sadd.s32 %s155, 1
      %p159 = scmp.eq.s32.totalorder %s36, 1
      %p160 = scmp.ne.s32.totalorder %s155, %s157
      %p161 = scmp.eq.s32.totalorder %s36, 0
      %p162 = por %p160, %p161
      %p163 = scmp.ne.s32.totalorder %s155, %s157
      %p164 = scmp.eq.s32.totalorder %s41, 1
      %p165 = por %p163, %p164
      %p166 = scmp.ne.s32.totalorder %s157, %s158
      %p167 = scmp.eq.s32.totalorder %s41, 0
      %p168 = por %p166, %p167
      %p169 = scmp.ne.s32.totalorder %s157, %s158
      %p170 = scmp.eq.s32.totalorder %s42, 1
      %p171 = por %p169, %p170
      %p173 = scmp.ne.s32.totalorder %s158, %s172
      %p174 = scmp.eq.s32.totalorder %s42, 0
      %p175 = por %p173, %p174
      %s177 = sadd.s32 %s176, 1
      %p180 = scmp.eq.s32.totalorder %s36, 1
      %p181 = scmp.ne.s32.totalorder %s176, %s178
      %p182 = scmp.eq.s32.totalorder %s36, 0
      %p183 = por %p181, %p182
      %p184 = scmp.ne.s32.totalorder %s176, %s178
      %p185 = scmp.eq.s32.totalorder %s41, 1
      %p186 = por %p184, %p185
      %p187 = scmp.ne.s32.totalorder %s178, %s179
      %p188 = scmp.eq.s32.totalorder %s41, 0
      %p189 = por %p187, %p188
      %p190 = scmp.ne.s32.totalorder %s178, %s179
      %p191 = scmp.eq.s32.totalorder %s42, 1
      %p192 = por %p190, %p191
      %p194 = scmp.ne.s32.totalorder %s179, %s193
      %p195 = scmp.eq.s32.totalorder %s42, 0
      %p196 = por %p194, %p195
      %s198 = sadd.s32 %s197, 1
      %p201 = scmp.eq.s32.totalorder %s36, 1
      %p202 = scmp.ne.s32.totalorder %s197, %s199
      %p203 = scmp.eq.s32.totalorder %s36, 0
      %p204 = por %p202, %p203
      %p205 = scmp.ne.s32.totalorder %s197, %s199
      %p206 = scmp.eq.s32.totalorder %s41, 1
      %p207 = por %p205, %p206
      %p208 = scmp.ne.s32.totalorder %s199, %s200
      %p209 = scmp.eq.s32.totalorder %s41, 0
      %p210 = por %p208, %p209
      %p211 = scmp.ne.s32.totalorder %s199, %s200
      %p212 = scmp.eq.s32.totalorder %s42, 1
      %p213 = por %p211, %p212
      %p215 = scmp.ne.s32.totalorder %s200, %s214
      %p216 = scmp.eq.s32.totalorder %s42, 0
      %p217 = por %p215, %p216
      %s219 = sadd.s32 %s218, 1
      %p222 = scmp.eq.s32.totalorder %s36, 1
      %p223 = scmp.ne.s32.totalorder %s218, %s220
      %p224 = scmp.eq.s32.totalorder %s36, 0
      %p225 = por %p223, %p224
      %p226 = scmp.ne.s32.totalorder %s218, %s220
      %p227 = scmp.eq.s32.totalorder %s41, 1
      %p228 = por %p226, %p227
      %p229 = scmp.ne.s32.totalorder %s220, %s221
      %p230 = scmp.eq.s32.totalorder %s41, 0
      %p231 = por %p229, %p230
      %p232 = scmp.ne.s32.totalorder %s220, %s221
      %p233 = scmp.eq.s32.totalorder %s42, 1
      %p234 = por %p232, %p233
      %p236 = scmp.ne.s32.totalorder %s221, %s235
      %p237 = scmp.eq.s32.totalorder %s42, 0
      %p238 = por %p236, %p237
      %s240 = sadd.s32 %s239, 1
      %p243 = scmp.eq.s32.totalorder %s36, 1
      %p244 = scmp.ne.s32.totalorder %s239, %s241
      %p245 = scmp.eq.s32.totalorder %s36, 0
      %p246 = por %p244, %p245
      %p247 = scmp.ne.s32.totalorder %s239, %s241
      %p248 = scmp.eq.s32.totalorder %s41, 1
      %p249 = por %p247, %p248
      %p250 = scmp.ne.s32.totalorder %s241, %s242
      %p251 = scmp.eq.s32.totalorder %s41, 0
      %p252 = por %p250, %p251
      %p253 = scmp.ne.s32.totalorder %s241, %s242
      %p254 = scmp.eq.s32.totalorder %s42, 1
      %p255 = por %p253, %p254
      %p257 = scmp.ne.s32.totalorder %s242, %s256
      %p258 = scmp.eq.s32.totalorder %s42, 0
      %p259 = por %p257, %p258
      %s261 = sadd.s32 %s260, 1
      %p264 = scmp.eq.s32.totalorder %s36, 1
      %p265 = scmp.ne.s32.totalorder %s260, %s262
      %p266 = scmp.eq.s32.totalorder %s36, 0
      %p267 = por %p265, %p266
      %p268 = scmp.ne.s32.totalorder %s260, %s262
      %p269 = scmp.eq.s32.totalorder %s41, 1
      %p270 = por %p268, %p269
      %p271 = scmp.ne.s32.totalorder %s262, %s263
      %p272 = scmp.eq.s32.totalorder %s41, 0
      %p273 = por %p271, %p272
      %p274 = scmp.ne.s32.totalorder %s262, %s263
      %p275 = scmp.eq.s32.totalorder %s42, 1
      %p276 = por %p274, %p275
      %p278 = scmp.ne.s32.totalorder %s263, %s277
      %p279 = scmp.eq.s32.totalorder %s42, 0
      %p280 = por %p278, %p279
      %s282 = sadd.s32 %s281, 1
      %p285 = scmp.eq.s32.totalorder %s36, 1
      %p286 = scmp.ne.s32.totalorder %s281, %s283
      %p287 = scmp.eq.s32.totalorder %s36, 0
      %p288 = por %p286, %p287
      %p289 = scmp.ne.s32.totalorder %s281, %s283
      %p290 = scmp.eq.s32.totalorder %s41, 1
      %p291 = por %p289, %p290
      %p292 = scmp.ne.s32.totalorder %s283, %s284
      %p293 = scmp.eq.s32.totalorder %s41, 0
      %p294 = por %p292, %p293
      %p295 = scmp.ne.s32.totalorder %s283, %s284
      %p296 = scmp.eq.s32.totalorder %s42, 1
      %p297 = por %p295, %p296
      %p299 = scmp.ne.s32.totalorder %s284, %s298
      %p300 = scmp.eq.s32.totalorder %s42, 0
      %p301 = por %p299, %p300
      %s303 = sadd.s32 %s302, 1
      %p306 = scmp.eq.s32.totalorder %s36, 1
      %p307 = scmp.ne.s32.totalorder %s302, %s304
      %p308 = scmp.eq.s32.totalorder %s36, 0
      %p309 = por %p307, %p308
      %p310 = scmp.ne.s32.totalorder %s302, %s304
      %p311 = scmp.eq.s32.totalorder %s41, 1
      %p312 = por %p310, %p311
      %p313 = scmp.ne.s32.totalorder %s304, %s305
      %p314 = scmp.eq.s32.totalorder %s41, 0
      %p315 = por %p313, %p314
      %p316 = scmp.ne.s32.totalorder %s304, %s305
      %p317 = scmp.eq.s32.totalorder %s42, 1
      %p318 = por %p316, %p317
      %p320 = scmp.ne.s32.totalorder %s305, %s319
      %p321 = scmp.eq.s32.totalorder %s42, 0
      %p322 = por %p320, %p321
      %s324 = sadd.s32 %s323, 1
      %p327 = scmp.eq.s32.totalorder %s36, 1
      %p328 = scmp.ne.s32.totalorder %s323, %s325
      %p329 = scmp.eq.s32.totalorder %s36, 0
      %p330 = por %p328, %p329
      %p331 = scmp.ne.s32.totalorder %s323, %s325
      %p332 = scmp.eq.s32.totalorder %s41, 1
      %p333 = por %p331, %p332
      %p334 = scmp.ne.s32.totalorder %s325, %s326
      %p335 = scmp.eq.s32.totalorder %s41, 0
      %p336 = por %p334, %p335
      %p337 = scmp.ne.s32.totalorder %s325, %s326
      %p338 = scmp.eq.s32.totalorder %s42, 1
      %p339 = por %p337, %p338
      %p341 = scmp.ne.s32.totalorder %s326, %s340
      %p342 = scmp.eq.s32.totalorder %s42, 0
      %p343 = por %p341, %p342
      %s345 = sadd.s32 %s344, 1
      %p348 = scmp.eq.s32.totalorder %s36, 1
      %p349 = scmp.ne.s32.totalorder %s344, %s346
      %p350 = scmp.eq.s32.totalorder %s36, 0
      %p351 = por %p349, %p350
      %p352 = scmp.ne.s32.totalorder %s344, %s346
      %p353 = scmp.eq.s32.totalorder %s41, 1
      %p354 = por %p352, %p353
      %p355 = scmp.ne.s32.totalorder %s346, %s347
      %p356 = scmp.eq.s32.totalorder %s41, 0
      %p357 = por %p355, %p356
      %p358 = scmp.ne.s32.totalorder %s346, %s347
      %p359 = scmp.eq.s32.totalorder %s42, 1
      %p360 = por %p358, %p359
      %p362 = scmp.ne.s32.totalorder %s347, %s361
      %p363 = scmp.eq.s32.totalorder %s42, 0
      %p364 = por %p362, %p363
      %s366 = sadd.s32 %s365, 1
      %p369 = scmp.eq.s32.totalorder %s36, 1
      %p370 = scmp.ne.s32.totalorder %s365, %s367
      %p371 = scmp.eq.s32.totalorder %s36, 0
      %p372 = por %p370, %p371
      %p373 = scmp.ne.s32.totalorder %s365, %s367
      %p374 = scmp.eq.s32.totalorder %s41, 1
      %p375 = por %p373, %p374
      %p376 = scmp.ne.s32.totalorder %s367, %s368
      %p377 = scmp.eq.s32.totalorder %s41, 0
      %p378 = por %p376, %p377
      %p379 = scmp.ne.s32.totalorder %s367, %s368
      %p380 = scmp.eq.s32.totalorder %s42, 1
      %p381 = por %p379, %p380
      %p383 = scmp.ne.s32.totalorder %s368, %s382
      %p384 = scmp.eq.s32.totalorder %s42, 0
      %p385 = por %p383, %p384
      %s387 = sadd.s32 %s386, 1
      %p390 = scmp.eq.s32.totalorder %s36, 1
      %p391 = scmp.ne.s32.totalorder %s386, %s388
      %p392 = scmp.eq.s32.totalorder %s36, 0
      %p393 = por %p391, %p392
      %p394 = scmp.ne.s32.totalorder %s386, %s388
      %p395 = scmp.eq.s32.totalorder %s41, 1
      %p396 = por %p394, %p395
      %p397 = scmp.ne.s32.totalorder %s388, %s389
      %p398 = scmp.eq.s32.totalorder %s41, 0
      %p399 = por %p397, %p398
      %p400 = scmp.ne.s32.totalorder %s388, %s389
      %p401 = scmp.eq.s32.totalorder %s42, 1
      %p402 = por %p400, %p401
      %p404 = scmp.ne.s32.totalorder %s389, %s403
      %p405 = scmp.eq.s32.totalorder %s42, 0
      %p406 = por %p404, %p405
      %s408 = sadd.s32 %s407, 1
      %p411 = scmp.eq.s32.totalorder %s36, 1
      %p412 = scmp.ne.s32.totalorder %s407, %s409
      %p413 = scmp.eq.s32.totalorder %s36, 0
      %p414 = por %p412, %p413
      %p415 = scmp.ne.s32.totalorder %s407, %s409
      %p416 = scmp.eq.s32.totalorder %s41, 1
      %p417 = por %p415, %p416
      %p418 = scmp.ne.s32.totalorder %s409, %s410
      %p419 = scmp.eq.s32.totalorder %s41, 0
      %p420 = por %p418, %p419
      %p421 = scmp.ne.s32.totalorder %s409, %s410
      %p422 = scmp.eq.s32.totalorder %s42, 1
      %p423 = por %p421, %p422
      %p425 = scmp.ne.s32.totalorder %s410, %s424
      %p426 = scmp.eq.s32.totalorder %s42, 0
      %p427 = por %p425, %p426
      %s428 = ssub.s32 %s43, %s55
      %s429 = ssub.s32 %s44, %s51
      %s430 = sor.u32 %s428, %s429
      %p431 = scmp.eq.s32.totalorder %s430, 0
      %s433 = sadd.s32 %s432, 1
      %s434 = scalar_select %p431, %s432, %s433
      %p437 = pneg %p431
      %p438 = scmp.eq.s32.totalorder %s36, 1
      %p439 = por %p437, %p438
      %p440 = scmp.ne.s32.totalorder %s432, %s435
      %p441 = scmp.eq.s32.totalorder %s36, 0
      %p442 = por %p440, %p441
      %p443 = scmp.ne.s32.totalorder %s432, %s435
      %p444 = scmp.eq.s32.totalorder %s41, 1
      %p445 = por %p443, %p444
      %p446 = scmp.ne.s32.totalorder %s435, %s436
      %p447 = scmp.eq.s32.totalorder %s41, 0
      %p448 = por %p446, %p447
      %p449 = scmp.ne.s32.totalorder %s435, %s436
      %p450 = scmp.eq.s32.totalorder %s42, 1
      %p451 = por %p449, %p450
      %p453 = scmp.ne.s32.totalorder %s436, %s452
      %p454 = scmp.eq.s32.totalorder %s42, 0
      %p455 = por %p453, %p454
      %p456 = scmp.le.s32.totalorder 1, %s36
      %p457 = scmp.lt.s32.totalorder %s36, 3
      %p458 = pnand %p456, %p457
      %p459 = pneg %p458
      // Predicated region
      $region9: #{tpu_custom_call.1} parent=5 // pred_check
        _
      $region10: #{tpu_custom_call.1} parent=5 // pred_check_branch
        %461 = sbr.rel (%p458) target = $region12
      $region11: #{tpu_custom_call.1} parent=5 // pred_region
        %s462 = ssub.s32 %s36, 1
        // Predicated region
        $region13: #{tpu_custom_call.1} parent=11 // pred_check
          %p463 = pneg %p147
        $region14: #{tpu_custom_call.1} parent=11 // pred_check_branch
          %465 = sbr.rel (%p463) target = $region16
        $region15: #{tpu_custom_call.1} parent=11 // pred_region
          _
        $region16: #{tpu_custom_call.1} parent=11 // pred_fallthru
          _
        // Predicated region
        $region17: #{tpu_custom_call.1} parent=11 // pred_check
          %p466 = pneg %p168
        $region18: #{tpu_custom_call.1} parent=11 // pred_check_branch
          %468 = sbr.rel (%p466) target = $region20
        $region19: #{tpu_custom_call.1} parent=11 // pred_region
          _
        $region20: #{tpu_custom_call.1} parent=11 // pred_fallthru
          _
        // Predicated region
        $region21: #{tpu_custom_call.1} parent=11 // pred_check
          %p469 = pneg %p189
        $region22: #{tpu_custom_call.1} parent=11 // pred_check_branch
          %471 = sbr.rel (%p469) target = $region24
        $region23: #{tpu_custom_call.1} parent=11 // pred_region
          %473 = vsyncadd [#allocation9], 0
          %s474 = sshll.u32 %s5, 4
          %s475 = int_to_ptr.hbm [resolvable:$true] %s474
          %s476 = sshll.u32 [#allocation8], 4
          %s477 = int_to_ptr.vmem [resolvable:$true] %s476
          %482 = dma.hbm_to_vmem [thread:$0]  %s475, 256, %s477, [#allocation9], 64, 64, 4
        $region24: #{tpu_custom_call.1} parent=11 // pred_fallthru
          _
        // Predicated region
        $region25: #{tpu_custom_call.1} parent=11 // pred_check
          %p483 = pneg %p210
        $region26: #{tpu_custom_call.1} parent=11 // pred_check_branch
          %485 = sbr.rel (%p483) target = $region28
        $region27: #{tpu_custom_call.1} parent=11 // pred_region
          %487 = vsyncadd [#allocation9], 0
          %s489 = sshll.u32 %s6, 4
          %s490 = int_to_ptr.hbm [resolvable:$true] %s489
          %s491 = sshll.u32 [#allocation10], 4
          %s492 = int_to_ptr.vmem [resolvable:$true] %s491
          %494 = dma.hbm_to_vmem [thread:$0]  %s490, 16, %s492, [#allocation9]
        $region28: #{tpu_custom_call.1} parent=11 // pred_fallthru
          _
        // Predicated region
        $region29: #{tpu_custom_call.1} parent=11 // pred_check
          %p495 = pneg %p231
        $region30: #{tpu_custom_call.1} parent=11 // pred_check_branch
          %497 = sbr.rel (%p495) target = $region32
        $region31: #{tpu_custom_call.1} parent=11 // pred_region
          %499 = vsyncadd [#allocation12], 0
          %s500 = sshll.u32 %s7, 4
          %s501 = int_to_ptr.hbm [resolvable:$true] %s500
          %s502 = sshll.u32 [#allocation11], 4
          %s503 = int_to_ptr.vmem [resolvable:$true] %s502
          %508 = dma.hbm_to_vmem [thread:$0]  %s501, 768, %s503, [#allocation12], 64, 64, 4
        $region32: #{tpu_custom_call.1} parent=11 // pred_fallthru
          _
        // Predicated region
        $region33: #{tpu_custom_call.1} parent=11 // pred_check
          %p509 = pneg %p252
        $region34: #{tpu_custom_call.1} parent=11 // pred_check_branch
          %511 = sbr.rel (%p509) target = $region36
        $region35: #{tpu_custom_call.1} parent=11 // pred_region
          _
        $region36: #{tpu_custom_call.1} parent=11 // pred_fallthru
          _
        // Predicated region
        $region37: #{tpu_custom_call.1} parent=11 // pred_check
          %p512 = pneg %p273
        $region38: #{tpu_custom_call.1} parent=11 // pred_check_branch
          %514 = sbr.rel (%p512) target = $region40
        $region39: #{tpu_custom_call.1} parent=11 // pred_region
          %516 = vsyncadd [#allocation12], 0
          %s517 = sshll.u32 %s9, 4
          %s518 = int_to_ptr.hbm [resolvable:$true] %s517
          %s519 = sshll.u32 [#allocation13], 4
          %s520 = int_to_ptr.vmem [resolvable:$true] %s519
          %525 = dma.hbm_to_vmem [thread:$0]  %s518, 256, %s520, [#allocation12], 64, 64, 4
        $region40: #{tpu_custom_call.1} parent=11 // pred_fallthru
          _
        // Predicated region
        $region41: #{tpu_custom_call.1} parent=11 // pred_check
          %p526 = pneg %p294
        $region42: #{tpu_custom_call.1} parent=11 // pred_check_branch
          %528 = sbr.rel (%p526) target = $region44
        $region43: #{tpu_custom_call.1} parent=11 // pred_region
          %530 = vsyncadd [#allocation15], 0
          %s532 = sshll.u32 %s10, 4
          %s533 = int_to_ptr.hbm [resolvable:$true] %s532
          %s534 = sshll.u32 [#allocation14], 4
          %s535 = int_to_ptr.vmem [resolvable:$true] %s534
          %537 = dma.hbm_to_vmem [thread:$0]  %s533, 16, %s535, [#allocation15]
        $region44: #{tpu_custom_call.1} parent=11 // pred_fallthru
          _
        // Predicated region
        $region45: #{tpu_custom_call.1} parent=11 // pred_check
          %p538 = pneg %p315
        $region46: #{tpu_custom_call.1} parent=11 // pred_check_branch
          %540 = sbr.rel (%p538) target = $region48
        $region47: #{tpu_custom_call.1} parent=11 // pred_region
          _
        $region48: #{tpu_custom_call.1} parent=11 // pred_fallthru
          _
        // Predicated region
        $region49: #{tpu_custom_call.1} parent=11 // pred_check
          %p541 = pneg %p336
        $region50: #{tpu_custom_call.1} parent=11 // pred_check_branch
          %543 = sbr.rel (%p541) target = $region52
        $region51: #{tpu_custom_call.1} parent=11 // pred_region
          %545 = vsyncadd [#allocation15], 0
          %s546 = sshll.u32 %s12, 4
          %s547 = int_to_ptr.hbm [resolvable:$true] %s546
          %s548 = sshll.u32 [#allocation16], 4
          %s549 = int_to_ptr.vmem [resolvable:$true] %s548
          %554 = dma.hbm_to_vmem [thread:$0]  %s547, 48, %s549, [#allocation15], 16, 16, 1
        $region52: #{tpu_custom_call.1} parent=11 // pred_fallthru
          _
        // Predicated region
        $region53: #{tpu_custom_call.1} parent=11 // pred_check
          %p555 = pneg %p357
        $region54: #{tpu_custom_call.1} parent=11 // pred_check_branch
          %557 = sbr.rel (%p555) target = $region56
        $region55: #{tpu_custom_call.1} parent=11 // pred_region
          %559 = vsyncadd [#allocation18], 0
          %s560 = sshll.u32 %s13, 4
          %s561 = int_to_ptr.hbm [resolvable:$true] %s560
          %s562 = sshll.u32 [#allocation17], 4
          %s563 = int_to_ptr.vmem [resolvable:$true] %s562
          %568 = dma.hbm_to_vmem [thread:$0]  %s561, 256, %s563, [#allocation18], 64, 64, 4
        $region56: #{tpu_custom_call.1} parent=11 // pred_fallthru
          _
        // Predicated region
        $region57: #{tpu_custom_call.1} parent=11 // pred_check
          %p569 = pneg %p378
        $region58: #{tpu_custom_call.1} parent=11 // pred_check_branch
          %571 = sbr.rel (%p569) target = $region60
        $region59: #{tpu_custom_call.1} parent=11 // pred_region
          _
        $region60: #{tpu_custom_call.1} parent=11 // pred_fallthru
          _
        // Predicated region
        $region61: #{tpu_custom_call.1} parent=11 // pred_check
          %p572 = pneg %p399
        $region62: #{tpu_custom_call.1} parent=11 // pred_check_branch
          %574 = sbr.rel (%p572) target = $region64
        $region63: #{tpu_custom_call.1} parent=11 // pred_region
          _
        $region64: #{tpu_custom_call.1} parent=11 // pred_fallthru
          _
        // Predicated region
        $region65: #{tpu_custom_call.1} parent=11 // pred_check
          %p575 = pneg %p420
        $region66: #{tpu_custom_call.1} parent=11 // pred_check_branch
          %577 = sbr.rel (%p575) target = $region68
        $region67: #{tpu_custom_call.1} parent=11 // pred_region
          _
        $region68: #{tpu_custom_call.1} parent=11 // pred_fallthru
          _
      $region12: #{tpu_custom_call.1} parent=5 // pred_fallthru
        _
      %p578 = scmp.lt.s32.totalorder %s36, 2
      // Predicated region
      $region69: #{tpu_custom_call.1} parent=5 // pred_check
        %p579 = pneg %p578
      $region70: #{tpu_custom_call.1} parent=5 // pred_check_branch
        %581 = sbr.rel (%p579) target = $region72
      $region71: #{tpu_custom_call.1} parent=5 // pred_region
        // Predicated region
        $region73: #{tpu_custom_call.1} parent=71 // pred_check
          %p582 = pneg %p68
        $region74: #{tpu_custom_call.1} parent=71 // pred_check_branch
          %584 = sbr.rel (%p582) target = $region76
        $region75: #{tpu_custom_call.1} parent=71 // pred_region
          %s585 = sand.u32 %s58, 1
          %s586 = scalar_lea.sflag [#allocation3], %s585
          %s587 = sand.u32 %s58, 1
          %s588 = smul.addr %s587, 8
          %s589 = scalar_lea.vmem [#allocation2], %s588
          %591 = vsyncadd %s586, 0
          %s592 = smul.addr %s43, 8
          %s593 = scalar_lea.hbm %s0, %s592
          %s595 = sshll.u32 %s593, 4
          %s596 = int_to_ptr.hbm [resolvable:$true] %s595
          %s597 = sshll.u32 %s589, 4
          %s598 = int_to_ptr.vmem [resolvable:$true] %s597
          %600 = dma.hbm_to_vmem [thread:$0]  %s596, 128, %s598, %s586
        $region76: #{tpu_custom_call.1} parent=71 // pred_fallthru
          _
        // Predicated region
        $region77: #{tpu_custom_call.1} parent=71 // pred_check
          %p601 = pneg %p94
        $region78: #{tpu_custom_call.1} parent=71 // pred_check_branch
          %603 = sbr.rel (%p601) target = $region80
        $region79: #{tpu_custom_call.1} parent=71 // pred_region
          %s604 = sand.u32 %s36, 1
          %s605 = scalar_lea.sflag [#allocation6], %s604
          %s606 = sand.u32 %s84, 1
          %s607 = smul.addr %s606, 16
          %s608 = scalar_lea.vmem [#allocation5], %s607
          %610 = vsyncadd %s605, 0
          %s611 = smul.addr %s43, 2
          %s612 = smul.addr %s611, 8
          %s613 = scalar_lea.hbm %s1, %s612
          %s614 = sshll.u32 %s613, 4
          %s615 = int_to_ptr.hbm [resolvable:$true] %s614
          %s616 = sshll.u32 %s608, 4
          %s617 = int_to_ptr.vmem [resolvable:$true] %s616
          %622 = dma.hbm_to_vmem [thread:$0]  %s615, 256, %s617, %s605, 128, 128, 8
        $region80: #{tpu_custom_call.1} parent=71 // pred_fallthru
          _
        // Predicated region
        $region81: #{tpu_custom_call.1} parent=71 // pred_check
          %p623 = pneg %p120
        $region82: #{tpu_custom_call.1} parent=71 // pred_check_branch
          %625 = sbr.rel (%p623) target = $region84
        $region83: #{tpu_custom_call.1} parent=71 // pred_region
          %s626 = sand.u32 %s36, 1
          %s627 = scalar_lea.sflag [#allocation6], %s626
          %s628 = sand.u32 %s110, 1
          %s629 = smul.addr %s628, 8
          %s630 = scalar_lea.vmem [#allocation7], %s629
          %632 = vsyncadd %s627, 0
          %s633 = smul.addr %s43, 8
          %s634 = scalar_lea.hbm %s2, %s633
          %s636 = sshll.u32 %s634, 4
          %s637 = int_to_ptr.hbm [resolvable:$true] %s636
          %s638 = sshll.u32 %s630, 4
          %s639 = int_to_ptr.vmem [resolvable:$true] %s638
          %641 = dma.hbm_to_vmem [thread:$0]  %s637, 128, %s639, %s627
        $region84: #{tpu_custom_call.1} parent=71 // pred_fallthru
          _
      $region72: #{tpu_custom_call.1} parent=5 // pred_fallthru
        _
      %p642 = scmp.le.s32.totalorder 1, %s36
      %p643 = scmp.lt.s32.totalorder %s36, 3
      %p644 = pnand %p642, %p643
      %p645 = pneg %p644
      // Predicated region
      $region85: #{tpu_custom_call.1} parent=5 // pred_check
        _
      $region86: #{tpu_custom_call.1} parent=5 // pred_check_branch
        %647 = sbr.rel (%p644) target = $region88
      $region87: #{tpu_custom_call.1} parent=5 // pred_region
        %s648 = ssub.s32 %s36, 1
        %s649 = sand.u32 %s61, 1
        %s650 = scalar_lea.sflag [#allocation3], %s649
        %s651 = sand.u32 %s61, 1
        %s652 = smul.addr %s651, 8
        %s653 = scalar_lea.vmem [#allocation2], %s652
        // Predicated region
        $region89: #{tpu_custom_call.1} parent=87 // pred_check
          %p654 = pneg %p74
        $region90: #{tpu_custom_call.1} parent=87 // pred_check_branch
          %656 = sbr.rel (%p654) target = $region92
        $region91: #{tpu_custom_call.1} parent=87 // pred_region
          %658 = dma.done %s650, 128
        $region92: #{tpu_custom_call.1} parent=87 // pred_fallthru
          _
        %s659 = sand.u32 %s41, 1
        %s660 = scalar_lea.sflag [#allocation6], %s659
        %s661 = sand.u32 %s87, 1
        %s662 = smul.addr %s661, 16
        %s663 = scalar_lea.vmem [#allocation5], %s662
        // Predicated region
        $region93: #{tpu_custom_call.1} parent=87 // pred_check
          %p664 = pneg %p100
        $region94: #{tpu_custom_call.1} parent=87 // pred_check_branch
          %666 = sbr.rel (%p664) target = $region96
        $region95: #{tpu_custom_call.1} parent=87 // pred_region
          %668 = dma.done %s660, 256
        $region96: #{tpu_custom_call.1} parent=87 // pred_fallthru
          _
        %s669 = sand.u32 %s41, 1
        %s670 = scalar_lea.sflag [#allocation6], %s669
        %s671 = sand.u32 %s113, 1
        %s672 = smul.addr %s671, 8
        %s673 = scalar_lea.vmem [#allocation7], %s672
        // Predicated region
        $region97: #{tpu_custom_call.1} parent=87 // pred_check
          %p674 = pneg %p126
        $region98: #{tpu_custom_call.1} parent=87 // pred_check_branch
          %676 = sbr.rel (%p674) target = $region100
        $region99: #{tpu_custom_call.1} parent=87 // pred_region
          %678 = dma.done %s670, 128
        $region100: #{tpu_custom_call.1} parent=87 // pred_fallthru
          _
        // Predicated region
        $region101: #{tpu_custom_call.1} parent=87 // pred_check
          %p679 = pneg %p189
        $region102: #{tpu_custom_call.1} parent=87 // pred_check_branch
          %681 = sbr.rel (%p679) target = $region104
        $region103: #{tpu_custom_call.1} parent=87 // pred_region
          %683 = dma.done [#allocation9], 256
        $region104: #{tpu_custom_call.1} parent=87 // pred_fallthru
          _
        // Predicated region
        $region105: #{tpu_custom_call.1} parent=87 // pred_check
          %p684 = pneg %p210
        $region106: #{tpu_custom_call.1} parent=87 // pred_check_branch
          %686 = sbr.rel (%p684) target = $region108
        $region107: #{tpu_custom_call.1} parent=87 // pred_region
          %688 = dma.done [#allocation9], 16
        $region108: #{tpu_custom_call.1} parent=87 // pred_fallthru
          _
        // Predicated region
        $region109: #{tpu_custom_call.1} parent=87 // pred_check
          %p689 = pneg %p231
        $region110: #{tpu_custom_call.1} parent=87 // pred_check_branch
          %691 = sbr.rel (%p689) target = $region112
        $region111: #{tpu_custom_call.1} parent=87 // pred_region
          %693 = dma.done [#allocation12], 768
        $region112: #{tpu_custom_call.1} parent=87 // pred_fallthru
          _
        // Predicated region
        $region113: #{tpu_custom_call.1} parent=87 // pred_check
          %p694 = pneg %p273
        $region114: #{tpu_custom_call.1} parent=87 // pred_check_branch
          %696 = sbr.rel (%p694) target = $region116
        $region115: #{tpu_custom_call.1} parent=87 // pred_region
          %698 = dma.done [#allocation12], 256
        $region116: #{tpu_custom_call.1} parent=87 // pred_fallthru
          _
        // Predicated region
        $region117: #{tpu_custom_call.1} parent=87 // pred_check
          %p699 = pneg %p294
        $region118: #{tpu_custom_call.1} parent=87 // pred_check_branch
          %701 = sbr.rel (%p699) target = $region120
        $region119: #{tpu_custom_call.1} parent=87 // pred_region
          %703 = dma.done [#allocation15], 16
        $region120: #{tpu_custom_call.1} parent=87 // pred_fallthru
          _
        // Predicated region
        $region121: #{tpu_custom_call.1} parent=87 // pred_check
          %p704 = pneg %p336
        $region122: #{tpu_custom_call.1} parent=87 // pred_check_branch
          %706 = sbr.rel (%p704) target = $region124
        $region123: #{tpu_custom_call.1} parent=87 // pred_region
          %708 = dma.done [#allocation15], 48
        $region124: #{tpu_custom_call.1} parent=87 // pred_fallthru
          _
        // Predicated region
        $region125: #{tpu_custom_call.1} parent=87 // pred_check
          %p709 = pneg %p357
        $region126: #{tpu_custom_call.1} parent=87 // pred_check_branch
          %711 = sbr.rel (%p709) target = $region128
        $region127: #{tpu_custom_call.1} parent=87 // pred_region
          %713 = dma.done [#allocation18], 256
        $region128: #{tpu_custom_call.1} parent=87 // pred_fallthru
          _
        %s714 = sand.u32 %s61, 1
        %s715 = scalar_lea.sflag [#allocation3], %s714
        %s716 = sand.u32 %s61, 1
        %s717 = smul.addr %s716, 8
        %s718 = scalar_lea.vmem [#allocation2], %s717
        %p719 = pneg %p74
        %p720 = pneg %p71
        %s721 = sand.u32 %s41, 1
        %s722 = scalar_lea.sflag [#allocation6], %s721
        %s723 = sand.u32 %s87, 1
        %s724 = smul.addr %s723, 16
        %s725 = scalar_lea.vmem [#allocation5], %s724
        %p726 = pneg %p100
        %p727 = pneg %p97
        %s728 = sand.u32 %s41, 1
        %s729 = scalar_lea.sflag [#allocation6], %s728
        %s730 = sand.u32 %s113, 1
        %s731 = smul.addr %s730, 8
        %s732 = scalar_lea.vmem [#allocation7], %s731
        %p733 = pneg %p126
        %p734 = pneg %p123
        %p735 = pneg %p147
        %p736 = pneg %p144
        %p737 = pneg %p168
        %p738 = pneg %p165
        %p739 = pneg %p189
        %p740 = pneg %p186
        %p741 = pneg %p210
        %p742 = pneg %p207
        %p743 = pneg %p231
        %p744 = pneg %p228
        %p745 = pneg %p252
        %p746 = pneg %p249
        %p747 = pneg %p273
        %p748 = pneg %p270
        %p749 = pneg %p294
        %p750 = pneg %p291
        %p751 = pneg %p315
        %p752 = pneg %p312
        %p753 = pneg %p336
        %p754 = pneg %p333
        %p755 = pneg %p357
        %p756 = pneg %p354
        %p757 = pneg %p378
        %p758 = pneg %p375
        %p759 = pneg %p399
        %p760 = pneg %p396
        %p761 = pneg %p420
        %p762 = pneg %p417
        %p763 = pneg %p448
        %p764 = pneg %p445
        %s765 = sand.u32 %s435, 1
        %s766 = scalar_lea.sflag [#allocation4], %s765
        %s767 = sand.u32 %s435, 1
        %s768 = smul.addr %s767, 8
        %s769 = scalar_lea.vmem [#allocation19], %s768
        %v771 = vld [vmem:[%s653] sm:$0xff]
        %v772 = vld [vmem:[%s673] sm:$0xff]
        %v773 = vld [vmem:[%s663] sm:$0xff]
        %v774 = vld [vmem:[%s663 + $0x8] sm:$0xff]
        %v775 = vadd.f32 %v771, %v772
        %v776 = vpack.c.bf16 %v775, %v775
        %v777 = vpack.c.bf16 %v771, %v771
        %v778 = vld [vmem:[%s3] sm:$0xf]
        %v779 = vld [vmem:[%s3 + $0x4] sm:$0xf]
        %v780 = vld [vmem:[%s3 + $0x8] sm:$0xf]
        %v781 = vld [vmem:[%s3 + $0xc] sm:$0xf]
        %v782 = vld [vmem:[%s4] sm:$0x1]
        %v784 = vperm.slane %v782, 0
        %v790 = vunpack.c.l.b16 %v778
        %v791 = vunpack.c.l.b16 %v779
        %v792 = vunpack.c.l.b16 %v780
        %v793 = vunpack.c.l.b16 %v781
        %v794 = vpack.c.b16 %v791, %v790
        %v795 = vpack.c.b16 %v793, %v792
        %vm798 = vcmask 261120
        %v800 = vsel %vm798, %v776, 0
        %802 = vmatpush.bf16.msra.mxu0 0
        %803 = vmatpush.bf16.msra.mxu0 0
        %804 = vmatpush.bf16.msra.mxu0 0
        %805 = vmatpush.bf16.msra.mxu0 0
        %806 = vmatpush.bf16.msra.mxu0 0
        %807 = vmatpush.bf16.msra.mxu0 0
        %808 = vmatpush.bf16.msra.mxu0 %v795
        %809 = vmatpush.bf16.msra.mxu0 %v794
        %810 = vmatmul.bf16.gmra.mxu0 %v800
        %v811 = vpop.f32.mrf.mxu0
        %v812 = vadd.f32 %v784, %v811
        %v813 = vpop.f32.mrf.mxu0
        %814 = vdwg.mxu0
        %s815 = scalar_lea.vmem %s3, 16
        %v816 = vld [vmem:[%s815] sm:$0xf]
        %v817 = vld [vmem:[%s815 + $0x4] sm:$0xf]
        %v818 = vld [vmem:[%s815 + $0x8] sm:$0xf]
        %v819 = vld [vmem:[%s815 + $0xc] sm:$0xf]
        %s820 = scalar_lea.vmem %s4, 1
        %v821 = vld [vmem:[%s820] sm:$0x1]
        %v823 = vperm.slane %v821, 0
        %v829 = vunpack.c.l.b16 %v816
        %v830 = vunpack.c.l.b16 %v817
        %v831 = vunpack.c.l.b16 %v818
        %v832 = vunpack.c.l.b16 %v819
        %v833 = vpack.c.b16 %v830, %v829
        %v834 = vpack.c.b16 %v832, %v831
        %837 = vmatpush.bf16.msra.mxu0 0
        %838 = vmatpush.bf16.msra.mxu0 0
        %839 = vmatpush.bf16.msra.mxu0 0
        %840 = vmatpush.bf16.msra.mxu0 0
        %841 = vmatpush.bf16.msra.mxu0 0
        %842 = vmatpush.bf16.msra.mxu0 0
        %843 = vmatpush.bf16.msra.mxu0 %v834
        %844 = vmatpush.bf16.msra.mxu0 %v833
        %845 = vmatmul.bf16.gmra.mxu0 %v800
        %v846 = vpop.f32.mrf.mxu0
        %v847 = vadd.f32 %v823, %v846
        %v848 = vpop.f32.mrf.mxu0
        %849 = vdwg.mxu0
        %s850 = scalar_lea.vmem %s3, 32
        %v851 = vld [vmem:[%s850] sm:$0xf]
        %v852 = vld [vmem:[%s850 + $0x4] sm:$0xf]
        %v853 = vld [vmem:[%s850 + $0x8] sm:$0xf]
        %v854 = vld [vmem:[%s850 + $0xc] sm:$0xf]
        %s855 = scalar_lea.vmem %s4, 2
        %v856 = vld [vmem:[%s855] sm:$0x1]
        %v858 = vperm.slane %v856, 0
        %v864 = vunpack.c.l.b16 %v851
        %v865 = vunpack.c.l.b16 %v852
        %v866 = vunpack.c.l.b16 %v853
        %v867 = vunpack.c.l.b16 %v854
        %v868 = vpack.c.b16 %v865, %v864
        %v869 = vpack.c.b16 %v867, %v866
        %v873 = vsel %vm798, %v777, 0
        %875 = vmatpush.bf16.msra.mxu0 0
        %876 = vmatpush.bf16.msra.mxu0 0
        %877 = vmatpush.bf16.msra.mxu0 0
        %878 = vmatpush.bf16.msra.mxu0 0
        %879 = vmatpush.bf16.msra.mxu0 0
        %880 = vmatpush.bf16.msra.mxu0 0
        %881 = vmatpush.bf16.msra.mxu0 %v869
        %882 = vmatpush.bf16.msra.mxu0 %v868
        %883 = vmatmul.bf16.gmra.mxu0 %v873
        %v884 = vpop.f32.mrf.mxu0
        %v885 = vadd.f32 %v858, %v884
        %v886 = vpop.f32.mrf.mxu0
        %887 = vdwg.mxu0
        %889 = vrot.lane.b32.xlu0 %v812, 120
        %v890 = vpop.permute.xlu0 %889
        %892 = vrot.lane.b32.xlu0 %v812, 112
        %v893 = vpop.permute.xlu0 %892
        %895 = vrot.lane.b32.xlu0 %v812, 104
        %v896 = vpop.permute.xlu0 %895
        %v898 = vrot.slane %v893, 4
        %vm899 = vcmask 1047556
        %v900 = vsel %vm899, %v898, %v812
        %v901 = vrot.slane %v812, 4
        %v902 = vsel %vm899, %v893, %v901
        %v904 = vunpack.c.l.s4 1983009808
        %v905 = vunpack.c.0.s8 %v904
        %v906 = vperm.slane %v900, %v905
        %v908 = vunpack.c.l.s4 1983009808
        %v909 = vunpack.c.0.s8 %v908
        %v910 = vperm.slane %v902, %v909
        %v911 = vrot.slane %v896, 4
        %v912 = vsel %vm899, %v911, %v890
        %v913 = vrot.slane %v890, 4
        %v914 = vsel %vm899, %v896, %v913
        %v916 = vunpack.c.l.s4 1983009808
        %v917 = vunpack.c.0.s8 %v916
        %v918 = vperm.slane %v912, %v917
        %v920 = vunpack.c.l.s4 1983009808
        %v921 = vunpack.c.0.s8 %v920
        %v922 = vperm.slane %v914, %v921
        %v923 = vrot.slane %v918, 4
        %v924 = vsel %vm899, %v923, %v906
        %v925 = vrot.slane %v906, 4
        %v926 = vsel %vm899, %v918, %v925
        %v928 = vunpack.c.l.s4 1934713408
        %v929 = vunpack.c.0.s8 %v928
        %v930 = vperm.slane %v924, %v929
        %v932 = vunpack.c.l.s4 1934713408
        %v933 = vunpack.c.0.s8 %v932
        %v934 = vperm.slane %v926, %v933
        %v935 = vrot.slane %v922, 4
        %v936 = vsel %vm899, %v935, %v910
        %v937 = vrot.slane %v910, 4
        %v938 = vsel %vm899, %v922, %v937
        %v940 = vunpack.c.l.s4 1934713408
        %v941 = vunpack.c.0.s8 %v940
        %v942 = vperm.slane %v936, %v941
        %v944 = vunpack.c.l.s4 1934713408
        %v945 = vunpack.c.0.s8 %v944
        %v946 = vperm.slane %v938, %v945
        %v947 = vrot.slane %v930, 4
        %v948 = vsel %vm899, 0.0, %v947
        %v949 = vrot.slane %v934, 4
        %v950 = vsel %vm899, 0.0, %v949
        %v951 = vrot.slane %v942, 4
        %v952 = vsel %vm899, 0.0, %v951
        %v953 = vrot.slane %v946, 4
        %v954 = vsel %vm899, 0.0, %v953
        %v955 = vpack.c.bf16 %v930, %v930
        %v956 = vpack.c.bf16 %v948, %v948
        %v957 = vpack.c.bf16 %v934, %v934
        %v958 = vpack.c.bf16 %v950, %v950
        %v959 = vpack.c.bf16 %v942, %v942
        %v960 = vpack.c.bf16 %v952, %v952
        %v961 = vpack.c.bf16 %v946, %v946
        %v962 = vpack.c.bf16 %v954, %v954
        %964 = vrot.lane.b32.xlu0 %v847, 120
        %v965 = vpop.permute.xlu0 %964
        %967 = vrot.lane.b32.xlu0 %v847, 112
        %v968 = vpop.permute.xlu0 %967
        %970 = vrot.lane.b32.xlu0 %v847, 104
        %v971 = vpop.permute.xlu0 %970
        %v973 = vrot.slane %v968, 4
        %v974 = vsel %vm899, %v973, %v847
        %v975 = vrot.slane %v847, 4
        %v976 = vsel %vm899, %v968, %v975
        %v978 = vunpack.c.l.s4 1983009808
        %v979 = vunpack.c.0.s8 %v978
        %v980 = vperm.slane %v974, %v979
        %v982 = vunpack.c.l.s4 1983009808
        %v983 = vunpack.c.0.s8 %v982
        %v984 = vperm.slane %v976, %v983
        %v985 = vrot.slane %v971, 4
        %v986 = vsel %vm899, %v985, %v965
        %v987 = vrot.slane %v965, 4
        %v988 = vsel %vm899, %v971, %v987
        %v990 = vunpack.c.l.s4 1983009808
        %v991 = vunpack.c.0.s8 %v990
        %v992 = vperm.slane %v986, %v991
        %v994 = vunpack.c.l.s4 1983009808
        %v995 = vunpack.c.0.s8 %v994
        %v996 = vperm.slane %v988, %v995
        %v997 = vrot.slane %v992, 4
        %v998 = vsel %vm899, %v997, %v980
        %v999 = vrot.slane %v980, 4
        %v1000 = vsel %vm899, %v992, %v999
        %v1002 = vunpack.c.l.s4 1934713408
        %v1003 = vunpack.c.0.s8 %v1002
        %v1004 = vperm.slane %v998, %v1003
        %v1006 = vunpack.c.l.s4 1934713408
        %v1007 = vunpack.c.0.s8 %v1006
        %v1008 = vperm.slane %v1000, %v1007
        %v1009 = vrot.slane %v996, 4
        %v1010 = vsel %vm899, %v1009, %v984
        %v1011 = vrot.slane %v984, 4
        %v1012 = vsel %vm899, %v996, %v1011
        %v1014 = vunpack.c.l.s4 1934713408
        %v1015 = vunpack.c.0.s8 %v1014
        %v1016 = vperm.slane %v1010, %v1015
        %v1018 = vunpack.c.l.s4 1934713408
        %v1019 = vunpack.c.0.s8 %v1018
        %v1020 = vperm.slane %v1012, %v1019
        %v1021 = vrot.slane %v1004, 4
        %v1022 = vsel %vm899, 0.0, %v1021
        %v1023 = vrot.slane %v1008, 4
        %v1024 = vsel %vm899, 0.0, %v1023
        %v1025 = vrot.slane %v1016, 4
        %v1026 = vsel %vm899, 0.0, %v1025
        %v1027 = vrot.slane %v1020, 4
        %v1028 = vsel %vm899, 0.0, %v1027
        %v1029 = vpack.c.bf16 %v1004, %v1004
        %v1030 = vpack.c.bf16 %v1022, %v1022
        %v1031 = vpack.c.bf16 %v1008, %v1008
        %v1032 = vpack.c.bf16 %v1024, %v1024
        %v1033 = vpack.c.bf16 %v1016, %v1016
        %v1034 = vpack.c.bf16 %v1026, %v1026
        %v1035 = vpack.c.bf16 %v1020, %v1020
        %v1036 = vpack.c.bf16 %v1028, %v1028
        %1038 = vrot.lane.b32.xlu0 %v885, 120
        %v1039 = vpop.permute.xlu0 %1038
        %1041 = vrot.lane.b32.xlu0 %v885, 112
        %v1042 = vpop.permute.xlu0 %1041
        %1044 = vrot.lane.b32.xlu0 %v885, 104
        %v1045 = vpop.permute.xlu0 %1044
        %v1047 = vrot.slane %v1042, 4
        %v1048 = vsel %vm899, %v1047, %v885
        %v1049 = vrot.slane %v885, 4
        %v1050 = vsel %vm899, %v1042, %v1049
        %v1052 = vunpack.c.l.s4 1983009808
        %v1053 = vunpack.c.0.s8 %v1052
        %v1054 = vperm.slane %v1048, %v1053
        %v1056 = vunpack.c.l.s4 1983009808
        %v1057 = vunpack.c.0.s8 %v1056
        %v1058 = vperm.slane %v1050, %v1057
        %v1059 = vrot.slane %v1045, 4
        %v1060 = vsel %vm899, %v1059, %v1039
        %v1061 = vrot.slane %v1039, 4
        %v1062 = vsel %vm899, %v1045, %v1061
        %v1064 = vunpack.c.l.s4 1983009808
        %v1065 = vunpack.c.0.s8 %v1064
        %v1066 = vperm.slane %v1060, %v1065
        %v1068 = vunpack.c.l.s4 1983009808
        %v1069 = vunpack.c.0.s8 %v1068
        %v1070 = vperm.slane %v1062, %v1069
        %v1071 = vrot.slane %v1066, 4
        %v1072 = vsel %vm899, %v1071, %v1054
        %v1073 = vrot.slane %v1054, 4
        %v1074 = vsel %vm899, %v1066, %v1073
        %v1076 = vunpack.c.l.s4 1934713408
        %v1077 = vunpack.c.0.s8 %v1076
        %v1078 = vperm.slane %v1072, %v1077
        %v1080 = vunpack.c.l.s4 1934713408
        %v1081 = vunpack.c.0.s8 %v1080
        %v1082 = vperm.slane %v1074, %v1081
        %v1083 = vrot.slane %v1070, 4
        %v1084 = vsel %vm899, %v1083, %v1058
        %v1085 = vrot.slane %v1058, 4
        %v1086 = vsel %vm899, %v1070, %v1085
        %v1088 = vunpack.c.l.s4 1934713408
        %v1089 = vunpack.c.0.s8 %v1088
        %v1090 = vperm.slane %v1084, %v1089
        %v1092 = vunpack.c.l.s4 1934713408
        %v1093 = vunpack.c.0.s8 %v1092
        %v1094 = vperm.slane %v1086, %v1093
        %v1095 = vrot.slane %v1078, 4
        %v1096 = vsel %vm899, 0.0, %v1095
        %v1097 = vrot.slane %v1082, 4
        %v1098 = vsel %vm899, 0.0, %v1097
        %v1099 = vrot.slane %v1090, 4
        %v1100 = vsel %vm899, 0.0, %v1099
        %v1101 = vrot.slane %v1094, 4
        %v1102 = vsel %vm899, 0.0, %v1101
        %v1103 = vpack.c.bf16 %v1078, %v1078
        %v1104 = vpack.c.bf16 %v1096, %v1096
        %v1105 = vpack.c.bf16 %v1082, %v1082
        %v1106 = vpack.c.bf16 %v1098, %v1098
        %v1107 = vpack.c.bf16 %v1090, %v1090
        %v1108 = vpack.c.bf16 %v1100, %v1100
        %v1109 = vpack.c.bf16 %v1094, %v1094
        %v1110 = vpack.c.bf16 %v1102, %v1102
        %v1111 = vrot.slane %v959, 4
        %vm1112 = vcmask 1047556
        %v1113 = vsel %vm1112, %v1111, %v955
        %v1115 = vunpack.c.l.s4 1983009808
        %v1116 = vunpack.c.0.s8 %v1115
        %v1117 = vperm.slane %v1113, %v1116
        %v1118 = vrot.slane %v961, 4
        %v1119 = vsel %vm1112, %v1118, %v957
        %v1121 = vunpack.c.l.s4 1983009808
        %v1122 = vunpack.c.0.s8 %v1121
        %v1123 = vperm.slane %v1119, %v1122
        %v1124 = vrot.slane %v1123, 4
        %v1125 = vsel %vm1112, %v1124, %v1117
        %v1127 = vunpack.c.l.s4 1934713408
        %v1128 = vunpack.c.0.s8 %v1127
        %v1129 = vperm.slane %v1125, %v1128
        %v1130 = vrot.slane %v1129, 4
        %v1131 = vsel %vm1112, 0, %v1130
        %v1132 = vrot.slane %v960, 4
        %v1133 = vsel %vm1112, %v1132, %v956
        %v1135 = vunpack.c.l.s4 1983009808
        %v1136 = vunpack.c.0.s8 %v1135
        %v1137 = vperm.slane %v1133, %v1136
        %v1138 = vrot.slane %v962, 4
        %v1139 = vsel %vm1112, %v1138, %v958
        %v1141 = vunpack.c.l.s4 1983009808
        %v1142 = vunpack.c.0.s8 %v1141
        %v1143 = vperm.slane %v1139, %v1142
        %v1144 = vrot.slane %v1143, 4
        %v1145 = vsel %vm1112, %v1144, %v1137
        %v1147 = vunpack.c.l.s4 1934713408
        %v1148 = vunpack.c.0.s8 %v1147
        %v1149 = vperm.slane %v1145, %v1148
        %v1150 = vrot.slane %v1149, 4
        %v1151 = vsel %vm1112, 0, %v1150
        %v1154 = vpack.i.b16 %v1149, %v1129
        %v1155 = vshrl.u32 %v1129, 16
        %v1156 = vshrl.u32 %v1149, 16
        %v1157 = vpack.i.b16 %v1156, %v1155
        %v1160 = vpack.i.b16 %v1151, %v1131
        %v1161 = vshrl.u32 %v1131, 16
        %v1162 = vshrl.u32 %v1151, 16
        %v1163 = vpack.i.b16 %v1162, %v1161
        %1164 = vxpose.xlu0.c.b16.start [1/8] %v1029, 128
        %1165 = vxpose.xlu0.c.b16.cont [2/8] 0, 128
        %1166 = vxpose.xlu0.c.b16.cont [3/8] 0, 128
        %1167 = vxpose.xlu0.c.b16.cont [4/8] 0, 128
        %1168 = vxpose.xlu0.c.b16.cont [5/8] 0, 128
        %1169 = vxpose.xlu0.c.b16.cont [6/8] 0, 128
        %1170 = vxpose.xlu0.c.b16.cont [7/8] 0, 128
        %1171 = vxpose.xlu0.c.b16.end [8/8] 0, 128
        %v1172 = vpop.trf.xlu0
        %v1173 = vpop.trf.xlu0
        %v1174 = vpop.trf.xlu0
        %v1175 = vpop.trf.xlu0
        %v1176 = vpop.trf.xlu0
        %v1177 = vpop.trf.xlu0
        %v1178 = vpop.trf.xlu0
        %v1179 = vpop.trf.xlu0
        %1180 = vxpose.xlu0.c.b16.start [1/8] %v1030, 128
        %1181 = vxpose.xlu0.c.b16.cont [2/8] 0, 128
        %1182 = vxpose.xlu0.c.b16.cont [3/8] 0, 128
        %1183 = vxpose.xlu0.c.b16.cont [4/8] 0, 128
        %1184 = vxpose.xlu0.c.b16.cont [5/8] 0, 128
        %1185 = vxpose.xlu0.c.b16.cont [6/8] 0, 128
        %1186 = vxpose.xlu0.c.b16.cont [7/8] 0, 128
        %1187 = vxpose.xlu0.c.b16.end [8/8] 0, 128
        %v1188 = vpop.trf.xlu0
        %v1189 = vpop.trf.xlu0
        %v1190 = vpop.trf.xlu0
        %v1191 = vpop.trf.xlu0
        %v1192 = vpop.trf.xlu0
        %v1193 = vpop.trf.xlu0
        %v1194 = vpop.trf.xlu0
        %v1195 = vpop.trf.xlu0
        %1196 = vxpose.xlu0.c.b16.start [1/8] %v1031, 128
        %1197 = vxpose.xlu0.c.b16.cont [2/8] 0, 128
        %1198 = vxpose.xlu0.c.b16.cont [3/8] 0, 128
        %1199 = vxpose.xlu0.c.b16.cont [4/8] 0, 128
        %1200 = vxpose.xlu0.c.b16.cont [5/8] 0, 128
        %1201 = vxpose.xlu0.c.b16.cont [6/8] 0, 128
        %1202 = vxpose.xlu0.c.b16.cont [7/8] 0, 128
        %1203 = vxpose.xlu0.c.b16.end [8/8] 0, 128
        %v1204 = vpop.trf.xlu0
        %v1205 = vpop.trf.xlu0
        %v1206 = vpop.trf.xlu0
        %v1207 = vpop.trf.xlu0
        %v1208 = vpop.trf.xlu0
        %v1209 = vpop.trf.xlu0
        %v1210 = vpop.trf.xlu0
        %v1211 = vpop.trf.xlu0
        %1212 = vxpose.xlu0.c.b16.start [1/8] %v1032, 128
        %1213 = vxpose.xlu0.c.b16.cont [2/8] 0, 128
        %1214 = vxpose.xlu0.c.b16.cont [3/8] 0, 128
        %1215 = vxpose.xlu0.c.b16.cont [4/8] 0, 128
        %1216 = vxpose.xlu0.c.b16.cont [5/8] 0, 128
        %1217 = vxpose.xlu0.c.b16.cont [6/8] 0, 128
        %1218 = vxpose.xlu0.c.b16.cont [7/8] 0, 128
        %1219 = vxpose.xlu0.c.b16.end [8/8] 0, 128
        %v1220 = vpop.trf.xlu0
        %v1221 = vpop.trf.xlu0
        %v1222 = vpop.trf.xlu0
        %v1223 = vpop.trf.xlu0
        %v1224 = vpop.trf.xlu0
        %v1225 = vpop.trf.xlu0
        %v1226 = vpop.trf.xlu0
        %v1227 = vpop.trf.xlu0
        %1228 = vxpose.xlu0.c.b16.start [1/8] %v1033, 128
        %1229 = vxpose.xlu0.c.b16.cont [2/8] 0, 128
        %1230 = vxpose.xlu0.c.b16.cont [3/8] 0, 128
        %1231 = vxpose.xlu0.c.b16.cont [4/8] 0, 128
        %1232 = vxpose.xlu0.c.b16.cont [5/8] 0, 128
        %1233 = vxpose.xlu0.c.b16.cont [6/8] 0, 128
        %1234 = vxpose.xlu0.c.b16.cont [7/8] 0, 128
        %1235 = vxpose.xlu0.c.b16.end [8/8] 0, 128
        %v1236 = vpop.trf.xlu0
        %v1237 = vpop.trf.xlu0
        %v1238 = vpop.trf.xlu0
        %v1239 = vpop.trf.xlu0
        %v1240 = vpop.trf.xlu0
        %v1241 = vpop.trf.xlu0
        %v1242 = vpop.trf.xlu0
        %v1243 = vpop.trf.xlu0
        %1244 = vxpose.xlu0.c.b16.start [1/8] %v1034, 128
        %1245 = vxpose.xlu0.c.b16.cont [2/8] 0, 128
        %1246 = vxpose.xlu0.c.b16.cont [3/8] 0, 128
        %1247 = vxpose.xlu0.c.b16.cont [4/8] 0, 128
        %1248 = vxpose.xlu0.c.b16.cont [5/8] 0, 128
        %1249 = vxpose.xlu0.c.b16.cont [6/8] 0, 128
        %1250 = vxpose.xlu0.c.b16.cont [7/8] 0, 128
        %1251 = vxpose.xlu0.c.b16.end [8/8] 0, 128
        %v1252 = vpop.trf.xlu0
        %v1253 = vpop.trf.xlu0
        %v1254 = vpop.trf.xlu0
        %v1255 = vpop.trf.xlu0
        %v1256 = vpop.trf.xlu0
        %v1257 = vpop.trf.xlu0
        %v1258 = vpop.trf.xlu0
        %v1259 = vpop.trf.xlu0
        %1260 = vxpose.xlu0.c.b16.start [1/8] %v1035, 128
        %1261 = vxpose.xlu0.c.b16.cont [2/8] 0, 128
        %1262 = vxpose.xlu0.c.b16.cont [3/8] 0, 128
        %1263 = vxpose.xlu0.c.b16.cont [4/8] 0, 128
        %1264 = vxpose.xlu0.c.b16.cont [5/8] 0, 128
        %1265 = vxpose.xlu0.c.b16.cont [6/8] 0, 128
        %1266 = vxpose.xlu0.c.b16.cont [7/8] 0, 128
        %1267 = vxpose.xlu0.c.b16.end [8/8] 0, 128
        %v1268 = vpop.trf.xlu0
        %v1269 = vpop.trf.xlu0
        %v1270 = vpop.trf.xlu0
        %v1271 = vpop.trf.xlu0
        %v1272 = vpop.trf.xlu0
        %v1273 = vpop.trf.xlu0
        %v1274 = vpop.trf.xlu0
        %v1275 = vpop.trf.xlu0
        %1276 = vxpose.xlu0.c.b16.start [1/8] %v1036, 128
        %1277 = vxpose.xlu0.c.b16.cont [2/8] 0, 128
        %1278 = vxpose.xlu0.c.b16.cont [3/8] 0, 128
        %1279 = vxpose.xlu0.c.b16.cont [4/8] 0, 128
        %1280 = vxpose.xlu0.c.b16.cont [5/8] 0, 128
        %1281 = vxpose.xlu0.c.b16.cont [6/8] 0, 128
        %1282 = vxpose.xlu0.c.b16.cont [7/8] 0, 128
        %1283 = vxpose.xlu0.c.b16.end [8/8] 0, 128
        %v1284 = vpop.trf.xlu0
        %v1285 = vpop.trf.xlu0
        %v1286 = vpop.trf.xlu0
        %v1287 = vpop.trf.xlu0
        %v1288 = vpop.trf.xlu0
        %v1289 = vpop.trf.xlu0
        %v1290 = vpop.trf.xlu0
        %v1291 = vpop.trf.xlu0
        %v1292 = vrot.slane %v1236, 4
        %v1293 = vsel %vm1112, %v1292, %v1172
        %v1295 = vunpack.c.l.s4 1983009808
        %v1296 = vunpack.c.0.s8 %v1295
        %v1297 = vperm.slane %v1293, %v1296
        %v1298 = vrot.slane %v1268, 4
        %v1299 = vsel %vm1112, %v1298, %v1204
        %v1301 = vunpack.c.l.s4 1983009808
        %v1302 = vunpack.c.0.s8 %v1301
        %v1303 = vperm.slane %v1299, %v1302
        %v1304 = vrot.slane %v1303, 4
        %v1305 = vsel %vm1112, %v1304, %v1297
        %v1306 = vrot.slane %v1297, 4
        %v1307 = vsel %vm1112, %v1303, %v1306
        %v1309 = vunpack.c.l.s4 1934713408
        %v1310 = vunpack.c.0.s8 %v1309
        %v1311 = vperm.slane %v1305, %v1310
        %v1313 = vunpack.c.l.s4 1934713408
        %v1314 = vunpack.c.0.s8 %v1313
        %v1315 = vperm.slane %v1307, %v1314
        %v1316 = vrot.slane %v1311, 4
        %v1317 = vsel %vm1112, 0, %v1316
        %v1318 = vrot.slane %v1315, 4
        %v1319 = vsel %vm1112, 0, %v1318
        %v1320 = vrot.slane %v1252, 4
        %v1321 = vsel %vm1112, %v1320, %v1188
        %v1323 = vunpack.c.l.s4 1983009808
        %v1324 = vunpack.c.0.s8 %v1323
        %v1325 = vperm.slane %v1321, %v1324
        %v1326 = vrot.slane %v1284, 4
        %v1327 = vsel %vm1112, %v1326, %v1220
        %v1329 = vunpack.c.l.s4 1983009808
        %v1330 = vunpack.c.0.s8 %v1329
        %v1331 = vperm.slane %v1327, %v1330
        %v1332 = vrot.slane %v1331, 4
        %v1333 = vsel %vm1112, %v1332, %v1325
        %v1334 = vrot.slane %v1325, 4
        %v1335 = vsel %vm1112, %v1331, %v1334
        %v1337 = vunpack.c.l.s4 1934713408
        %v1338 = vunpack.c.0.s8 %v1337
        %v1339 = vperm.slane %v1333, %v1338
        %v1341 = vunpack.c.l.s4 1934713408
        %v1342 = vunpack.c.0.s8 %v1341
        %v1343 = vperm.slane %v1335, %v1342
        %v1344 = vrot.slane %v1339, 4
        %v1345 = vsel %vm1112, 0, %v1344
        %v1346 = vrot.slane %v1343, 4
        %v1347 = vsel %vm1112, 0, %v1346
        %v1350 = vpack.i.b16 %v1339, %v1311
        %v1352 = vshrl.u32 %v1311, 16
        %v1353 = vshrl.u32 %v1339, 16
        %v1354 = vpack.i.b16 %v1353, %v1352
        %v1358 = vpack.i.b16 %v1345, %v1317
        %v1360 = vshrl.u32 %v1317, 16
        %v1361 = vshrl.u32 %v1345, 16
        %v1362 = vpack.i.b16 %v1361, %v1360
        %v1366 = vpack.i.b16 %v1343, %v1315
        %v1368 = vshrl.u32 %v1315, 16
        %v1369 = vshrl.u32 %v1343, 16
        %v1370 = vpack.i.b16 %v1369, %v1368
        %v1374 = vpack.i.b16 %v1347, %v1319
        %v1376 = vshrl.u32 %v1319, 16
        %v1377 = vshrl.u32 %v1347, 16
        %v1378 = vpack.i.b16 %v1377, %v1376
        %1380 = vxpose.xlu0.c.b16.start [1/8] %v1350, 128
        %1381 = vxpose.xlu0.c.b16.cont [2/8] 0, 128
        %1382 = vxpose.xlu0.c.b16.cont [3/8] 0, 128
        %1383 = vxpose.xlu0.c.b16.cont [4/8] 0, 128
        %1384 = vxpose.xlu0.c.b16.cont [5/8] 0, 128
        %1385 = vxpose.xlu0.c.b16.cont [6/8] 0, 128
        %1386 = vxpose.xlu0.c.b16.cont [7/8] 0, 128
        %1387 = vxpose.xlu0.c.b16.end [8/8] 0, 128
        %v1388 = vpop.trf.xlu0
        %v1389 = vpop.trf.xlu0
        %v1390 = vpop.trf.xlu0
        %v1391 = vpop.trf.xlu0
        %v1392 = vpop.trf.xlu0
        %v1393 = vpop.trf.xlu0
        %v1394 = vpop.trf.xlu0
        %v1395 = vpop.trf.xlu0
        %1396 = vxpose.xlu0.c.b16.start [1/8] %v1354, 128
        %1397 = vxpose.xlu0.c.b16.cont [2/8] 0, 128
        %1398 = vxpose.xlu0.c.b16.cont [3/8] 0, 128
        %1399 = vxpose.xlu0.c.b16.cont [4/8] 0, 128
        %1400 = vxpose.xlu0.c.b16.cont [5/8] 0, 128
        %1401 = vxpose.xlu0.c.b16.cont [6/8] 0, 128
        %1402 = vxpose.xlu0.c.b16.cont [7/8] 0, 128
        %1403 = vxpose.xlu0.c.b16.end [8/8] 0, 128
        %v1404 = vpop.trf.xlu0
        %v1405 = vpop.trf.xlu0
        %v1406 = vpop.trf.xlu0
        %v1407 = vpop.trf.xlu0
        %v1408 = vpop.trf.xlu0
        %v1409 = vpop.trf.xlu0
        %v1410 = vpop.trf.xlu0
        %v1411 = vpop.trf.xlu0
        %1412 = vxpose.xlu0.c.b16.start [1/8] %v1358, 128
        %1413 = vxpose.xlu0.c.b16.cont [2/8] 0, 128
        %1414 = vxpose.xlu0.c.b16.cont [3/8] 0, 128
        %1415 = vxpose.xlu0.c.b16.cont [4/8] 0, 128
        %1416 = vxpose.xlu0.c.b16.cont [5/8] 0, 128
        %1417 = vxpose.xlu0.c.b16.cont [6/8] 0, 128
        %1418 = vxpose.xlu0.c.b16.cont [7/8] 0, 128
        %1419 = vxpose.xlu0.c.b16.end [8/8] 0, 128
        %v1420 = vpop.trf.xlu0
        %v1421 = vpop.trf.xlu0
        %v1422 = vpop.trf.xlu0
        %v1423 = vpop.trf.xlu0
        %v1424 = vpop.trf.xlu0
        %v1425 = vpop.trf.xlu0
        %v1426 = vpop.trf.xlu0
        %v1427 = vpop.trf.xlu0
        %1428 = vxpose.xlu0.c.b16.start [1/8] %v1362, 128
        %1429 = vxpose.xlu0.c.b16.cont [2/8] 0, 128
        %1430 = vxpose.xlu0.c.b16.cont [3/8] 0, 128
        %1431 = vxpose.xlu0.c.b16.cont [4/8] 0, 128
        %1432 = vxpose.xlu0.c.b16.cont [5/8] 0, 128
        %1433 = vxpose.xlu0.c.b16.cont [6/8] 0, 128
        %1434 = vxpose.xlu0.c.b16.cont [7/8] 0, 128
        %1435 = vxpose.xlu0.c.b16.end [8/8] 0, 128
        %v1436 = vpop.trf.xlu0
        %v1437 = vpop.trf.xlu0
        %v1438 = vpop.trf.xlu0
        %v1439 = vpop.trf.xlu0
        %v1440 = vpop.trf.xlu0
        %v1441 = vpop.trf.xlu0
        %v1442 = vpop.trf.xlu0
        %v1443 = vpop.trf.xlu0
        %1444 = vxpose.xlu0.c.b16.start [1/8] %v1366, 128
        %1445 = vxpose.xlu0.c.b16.cont [2/8] 0, 128
        %1446 = vxpose.xlu0.c.b16.cont [3/8] 0, 128
        %1447 = vxpose.xlu0.c.b16.cont [4/8] 0, 128
        %1448 = vxpose.xlu0.c.b16.cont [5/8] 0, 128
        %1449 = vxpose.xlu0.c.b16.cont [6/8] 0, 128
        %1450 = vxpose.xlu0.c.b16.cont [7/8] 0, 128
        %1451 = vxpose.xlu0.c.b16.end [8/8] 0, 128
        %v1452 = vpop.trf.xlu0
        %v1453 = vpop.trf.xlu0
        %v1454 = vpop.trf.xlu0
        %v1455 = vpop.trf.xlu0
        %v1456 = vpop.trf.xlu0
        %v1457 = vpop.trf.xlu0
        %v1458 = vpop.trf.xlu0
        %v1459 = vpop.trf.xlu0
        %1460 = vxpose.xlu0.c.b16.start [1/8] %v1370, 128
        %1461 = vxpose.xlu0.c.b16.cont [2/8] 0, 128
        %1462 = vxpose.xlu0.c.b16.cont [3/8] 0, 128
        %1463 = vxpose.xlu0.c.b16.cont [4/8] 0, 128
        %1464 = vxpose.xlu0.c.b16.cont [5/8] 0, 128
        %1465 = vxpose.xlu0.c.b16.cont [6/8] 0, 128
        %1466 = vxpose.xlu0.c.b16.cont [7/8] 0, 128
        %1467 = vxpose.xlu0.c.b16.end [8/8] 0, 128
        %v1468 = vpop.trf.xlu0
        %v1469 = vpop.trf.xlu0
        %v1470 = vpop.trf.xlu0
        %v1471 = vpop.trf.xlu0
        %v1472 = vpop.trf.xlu0
        %v1473 = vpop.trf.xlu0
        %v1474 = vpop.trf.xlu0
        %v1475 = vpop.trf.xlu0
        %1476 = vxpose.xlu0.c.b16.start [1/8] %v1374, 128
        %1477 = vxpose.xlu0.c.b16.cont [2/8] 0, 128
        %1478 = vxpose.xlu0.c.b16.cont [3/8] 0, 128
        %1479 = vxpose.xlu0.c.b16.cont [4/8] 0, 128
        %1480 = vxpose.xlu0.c.b16.cont [5/8] 0, 128
        %1481 = vxpose.xlu0.c.b16.cont [6/8] 0, 128
        %1482 = vxpose.xlu0.c.b16.cont [7/8] 0, 128
        %1483 = vxpose.xlu0.c.b16.end [8/8] 0, 128
        %v1484 = vpop.trf.xlu0
        %v1485 = vpop.trf.xlu0
        %v1486 = vpop.trf.xlu0
        %v1487 = vpop.trf.xlu0
        %v1488 = vpop.trf.xlu0
        %v1489 = vpop.trf.xlu0
        %v1490 = vpop.trf.xlu0
        %v1491 = vpop.trf.xlu0
        %1492 = vxpose.xlu0.c.b16.start [1/8] %v1378, 128
        %1493 = vxpose.xlu0.c.b16.cont [2/8] 0, 128
        %1494 = vxpose.xlu0.c.b16.cont [3/8] 0, 128
        %1495 = vxpose.xlu0.c.b16.cont [4/8] 0, 128
        %1496 = vxpose.xlu0.c.b16.cont [5/8] 0, 128
        %1497 = vxpose.xlu0.c.b16.cont [6/8] 0, 128
        %1498 = vxpose.xlu0.c.b16.cont [7/8] 0, 128
        %1499 = vxpose.xlu0.c.b16.end [8/8] 0, 128
        %v1500 = vpop.trf.xlu0
        %v1501 = vpop.trf.xlu0
        %v1502 = vpop.trf.xlu0
        %v1503 = vpop.trf.xlu0
        %v1504 = vpop.trf.xlu0
        %v1505 = vpop.trf.xlu0
        %v1506 = vpop.trf.xlu0
        %v1507 = vpop.trf.xlu0
        %v1508 = vrot.slane %v1452, 4
        %v1509 = vsel %vm1112, %v1508, %v1388
        %v1511 = vunpack.c.l.s4 1983009808
        %v1512 = vunpack.c.0.s8 %v1511
        %v1513 = vperm.slane %v1509, %v1512
        %v1514 = vrot.slane %v1484, 4
        %v1515 = vsel %vm1112, %v1514, %v1420
        %v1517 = vunpack.c.l.s4 1983009808
        %v1518 = vunpack.c.0.s8 %v1517
        %v1519 = vperm.slane %v1515, %v1518
        %v1520 = vrot.slane %v1519, 4
        %v1521 = vsel %vm1112, %v1520, %v1513
        %v1523 = vunpack.c.l.s4 1934713408
        %v1524 = vunpack.c.0.s8 %v1523
        %v1525 = vperm.slane %v1521, %v1524
        %v1526 = vrot.slane %v1525, 4
        %v1527 = vsel %vm1112, 0, %v1526
        %v1528 = vrot.slane %v1468, 4
        %v1529 = vsel %vm1112, %v1528, %v1404
        %v1531 = vunpack.c.l.s4 1983009808
        %v1532 = vunpack.c.0.s8 %v1531
        %v1533 = vperm.slane %v1529, %v1532
        %v1534 = vrot.slane %v1500, 4
        %v1535 = vsel %vm1112, %v1534, %v1436
        %v1537 = vunpack.c.l.s4 1983009808
        %v1538 = vunpack.c.0.s8 %v1537
        %v1539 = vperm.slane %v1535, %v1538
        %v1540 = vrot.slane %v1539, 4
        %v1541 = vsel %vm1112, %v1540, %v1533
        %v1543 = vunpack.c.l.s4 1934713408
        %v1544 = vunpack.c.0.s8 %v1543
        %v1545 = vperm.slane %v1541, %v1544
        %v1546 = vrot.slane %v1545, 4
        %v1547 = vsel %vm1112, 0, %v1546
        %v1550 = vpack.i.b16 %v1545, %v1525
        %v1551 = vshrl.u32 %v1525, 16
        %v1552 = vshrl.u32 %v1545, 16
        %v1553 = vpack.i.b16 %v1552, %v1551
        %v1556 = vpack.i.b16 %v1547, %v1527
        %v1557 = vshrl.u32 %v1527, 16
        %v1558 = vshrl.u32 %v1547, 16
        %v1559 = vpack.i.b16 %v1558, %v1557
        %vm1560 = vcmask 64512
        %v1562 = vsel %vm1560, %v1154, 0
        %vm1564 = vcmask 1043456
        %v1566 = vsel %vm1564, %v1550, 0
        %1568 = vmatpush.bf16.msra.mxu0 0
        %1569 = vmatpush.bf16.msra.mxu0 0
        %1570 = vmatpush.bf16.msra.mxu0 0
        %1571 = vmatpush.bf16.msra.mxu0 0
        %1572 = vmatpush.bf16.msra.mxu0 0
        %1573 = vmatpush.bf16.msra.mxu0 0
        %1574 = vmatpush.bf16.msra.mxu0 0
        %1575 = vmatpush.bf16.msra.mxu0 %v1566
        %1576 = vmatmul.bf16.gmra.mxu0 %v1562
        %v1577 = vpop.f32.mrf.mxu0
        %v1578 = vadd.f32 0.0, %v1577
        %v1579 = vpop.f32.mrf.mxu0
        %1580 = vdwg.mxu0
        %v1582 = vsel %vm1560, %v1157, 0
        %v1585 = vsel %vm1564, %v1553, 0
        %1587 = vmatpush.bf16.msra.mxu0 0
        %1588 = vmatpush.bf16.msra.mxu0 0
        %1589 = vmatpush.bf16.msra.mxu0 0
        %1590 = vmatpush.bf16.msra.mxu0 0
        %1591 = vmatpush.bf16.msra.mxu0 0
        %1592 = vmatpush.bf16.msra.mxu0 0
        %1593 = vmatpush.bf16.msra.mxu0 0
        %1594 = vmatpush.bf16.msra.mxu0 %v1585
        %1595 = vmatmul.bf16.gmra.mxu0 %v1582
        %v1596 = vpop.f32.mrf.mxu0
        %v1597 = vadd.f32 0.0, %v1596
        %v1598 = vpop.f32.mrf.mxu0
        %1599 = vdwg.mxu0
        %v1601 = vsel %vm1560, %v1160, 0
        %v1604 = vsel %vm1564, %v1556, 0
        %1606 = vmatpush.bf16.msra.mxu0 0
        %1607 = vmatpush.bf16.msra.mxu0 0
        %1608 = vmatpush.bf16.msra.mxu0 0
        %1609 = vmatpush.bf16.msra.mxu0 0
        %1610 = vmatpush.bf16.msra.mxu0 0
        %1611 = vmatpush.bf16.msra.mxu0 0
        %1612 = vmatpush.bf16.msra.mxu0 0
        %1613 = vmatpush.bf16.msra.mxu0 %v1604
        %1614 = vmatmul.bf16.gmra.mxu0 %v1601
        %v1615 = vpop.f32.mrf.mxu0
        %v1616 = vadd.f32 0.0, %v1615
        %v1617 = vpop.f32.mrf.mxu0
        %1618 = vdwg.mxu0
        %v1620 = vsel %vm1560, %v1163, 0
        %v1623 = vsel %vm1564, %v1559, 0
        %1625 = vmatpush.bf16.msra.mxu0 0
        %1626 = vmatpush.bf16.msra.mxu0 0
        %1627 = vmatpush.bf16.msra.mxu0 0
        %1628 = vmatpush.bf16.msra.mxu0 0
        %1629 = vmatpush.bf16.msra.mxu0 0
        %1630 = vmatpush.bf16.msra.mxu0 0
        %1631 = vmatpush.bf16.msra.mxu0 0
        %1632 = vmatpush.bf16.msra.mxu0 %v1623
        %1633 = vmatmul.bf16.gmra.mxu0 %v1620
        %v1634 = vpop.f32.mrf.mxu0
        %v1635 = vadd.f32 0.0, %v1634
        %v1636 = vpop.f32.mrf.mxu0
        %1637 = vdwg.mxu0
        %v1638 = vsel %vm1560, %v1578, -inf
        %1639 = vmax.xlane.f32.xlu0 %v1638
        %v1640 = vpop.xlane.xlu0 %1639
        %v1641 = vsel %vm1560, %v1597, -inf
        %1642 = vmax.xlane.f32.xlu0 %v1641
        %v1643 = vpop.xlane.xlu0 %1642
        %v1644 = vsel %vm1560, %v1616, -inf
        %1645 = vmax.xlane.f32.xlu0 %v1644
        %v1646 = vpop.xlane.xlu0 %1645
        %v1647 = vsel %vm1560, %v1635, -inf
        %1648 = vmax.xlane.f32.xlu0 %v1647
        %v1649 = vpop.xlane.xlu0 %1648
        %v1650 = vsub.f32 %v1578, %v1640
        %v1651 = vsub.f32 %v1597, %v1643
        %v1652 = vsub.f32 %v1616, %v1646
        %v1653 = vsub.f32 %v1635, %v1649
        %v1654 = vmul.f32 %v1650, 1.442695
        %v1655 = vpow.pop %v1654
        %v1656 = vmul.f32 %v1651, 1.442695
        %v1657 = vpow.pop %v1656
        %v1658 = vmul.f32 %v1652, 1.442695
        %v1659 = vpow.pop %v1658
        %v1660 = vmul.f32 %v1653, 1.442695
        %v1661 = vpow.pop %v1660
        %v1662 = vsel %vm1560, %v1655, 0.0
        %1663 = vadd.xlane.f32.xlu0 %v1662
        %v1664 = vpop.xlane.xlu0 %1663
        %v1665 = vsel %vm1560, %v1657, 0.0
        %1666 = vadd.xlane.f32.xlu0 %v1665
        %v1667 = vpop.xlane.xlu0 %1666
        %v1668 = vsel %vm1560, %v1659, 0.0
        %1669 = vadd.xlane.f32.xlu0 %v1668
        %v1670 = vpop.xlane.xlu0 %1669
        %v1671 = vsel %vm1560, %v1661, 0.0
        %1672 = vadd.xlane.f32.xlu0 %v1671
        %v1673 = vpop.xlane.xlu0 %1672
        %v1674 = vrcp.pop %v1664
        %v1675 = vrcp.pop %v1667
        %v1676 = vrcp.pop %v1670
        %v1677 = vrcp.pop %v1673
        %v1678 = vpack.c.bf16 %v1655, %v1655
        %v1679 = vpack.c.bf16 %v1657, %v1657
        %v1680 = vpack.c.bf16 %v1659, %v1659
        %v1681 = vpack.c.bf16 %v1661, %v1661
        %1682 = vxpose.xlu0.c.b16.start [1/8] %v1103, 128
        %1683 = vxpose.xlu0.c.b16.cont [2/8] 0, 128
        %1684 = vxpose.xlu0.c.b16.cont [3/8] 0, 128
        %1685 = vxpose.xlu0.c.b16.cont [4/8] 0, 128
        %1686 = vxpose.xlu0.c.b16.cont [5/8] 0, 128
        %1687 = vxpose.xlu0.c.b16.cont [6/8] 0, 128
        %1688 = vxpose.xlu0.c.b16.cont [7/8] 0, 128
        %1689 = vxpose.xlu0.c.b16.end [8/8] 0, 128
        %v1690 = vpop.trf.xlu0
        %v1691 = vpop.trf.xlu0
        %v1692 = vpop.trf.xlu0
        %v1693 = vpop.trf.xlu0
        %v1694 = vpop.trf.xlu0
        %v1695 = vpop.trf.xlu0
        %v1696 = vpop.trf.xlu0
        %v1697 = vpop.trf.xlu0
        %1698 = vxpose.xlu0.c.b16.start [1/8] %v1104, 128
        %1699 = vxpose.xlu0.c.b16.cont [2/8] 0, 128
        %1700 = vxpose.xlu0.c.b16.cont [3/8] 0, 128
        %1701 = vxpose.xlu0.c.b16.cont [4/8] 0, 128
        %1702 = vxpose.xlu0.c.b16.cont [5/8] 0, 128
        %1703 = vxpose.xlu0.c.b16.cont [6/8] 0, 128
        %1704 = vxpose.xlu0.c.b16.cont [7/8] 0, 128
        %1705 = vxpose.xlu0.c.b16.end [8/8] 0, 128
        %v1706 = vpop.trf.xlu0
        %v1707 = vpop.trf.xlu0
        %v1708 = vpop.trf.xlu0
        %v1709 = vpop.trf.xlu0
        %v1710 = vpop.trf.xlu0
        %v1711 = vpop.trf.xlu0
        %v1712 = vpop.trf.xlu0
        %v1713 = vpop.trf.xlu0
        %1714 = vxpose.xlu0.c.b16.start [1/8] %v1105, 128
        %1715 = vxpose.xlu0.c.b16.cont [2/8] 0, 128
        %1716 = vxpose.xlu0.c.b16.cont [3/8] 0, 128
        %1717 = vxpose.xlu0.c.b16.cont [4/8] 0, 128
        %1718 = vxpose.xlu0.c.b16.cont [5/8] 0, 128
        %1719 = vxpose.xlu0.c.b16.cont [6/8] 0, 128
        %1720 = vxpose.xlu0.c.b16.cont [7/8] 0, 128
        %1721 = vxpose.xlu0.c.b16.end [8/8] 0, 128
        %v1722 = vpop.trf.xlu0
        %v1723 = vpop.trf.xlu0
        %v1724 = vpop.trf.xlu0
        %v1725 = vpop.trf.xlu0
        %v1726 = vpop.trf.xlu0
        %v1727 = vpop.trf.xlu0
        %v1728 = vpop.trf.xlu0
        %v1729 = vpop.trf.xlu0
        %1730 = vxpose.xlu0.c.b16.start [1/8] %v1106, 128
        %1731 = vxpose.xlu0.c.b16.cont [2/8] 0, 128
        %1732 = vxpose.xlu0.c.b16.cont [3/8] 0, 128
        %1733 = vxpose.xlu0.c.b16.cont [4/8] 0, 128
        %1734 = vxpose.xlu0.c.b16.cont [5/8] 0, 128
        %1735 = vxpose.xlu0.c.b16.cont [6/8] 0, 128
        %1736 = vxpose.xlu0.c.b16.cont [7/8] 0, 128
        %1737 = vxpose.xlu0.c.b16.end [8/8] 0, 128
        %v1738 = vpop.trf.xlu0
        %v1739 = vpop.trf.xlu0
        %v1740 = vpop.trf.xlu0
        %v1741 = vpop.trf.xlu0
        %v1742 = vpop.trf.xlu0
        %v1743 = vpop.trf.xlu0
        %v1744 = vpop.trf.xlu0
        %v1745 = vpop.trf.xlu0
        %1746 = vxpose.xlu0.c.b16.start [1/8] %v1107, 128
        %1747 = vxpose.xlu0.c.b16.cont [2/8] 0, 128
        %1748 = vxpose.xlu0.c.b16.cont [3/8] 0, 128
        %1749 = vxpose.xlu0.c.b16.cont [4/8] 0, 128
        %1750 = vxpose.xlu0.c.b16.cont [5/8] 0, 128
        %1751 = vxpose.xlu0.c.b16.cont [6/8] 0, 128
        %1752 = vxpose.xlu0.c.b16.cont [7/8] 0, 128
        %1753 = vxpose.xlu0.c.b16.end [8/8] 0, 128
        %v1754 = vpop.trf.xlu0
        %v1755 = vpop.trf.xlu0
        %v1756 = vpop.trf.xlu0
        %v1757 = vpop.trf.xlu0
        %v1758 = vpop.trf.xlu0
        %v1759 = vpop.trf.xlu0
        %v1760 = vpop.trf.xlu0
        %v1761 = vpop.trf.xlu0
        %1762 = vxpose.xlu0.c.b16.start [1/8] %v1108, 128
        %1763 = vxpose.xlu0.c.b16.cont [2/8] 0, 128
        %1764 = vxpose.xlu0.c.b16.cont [3/8] 0, 128
        %1765 = vxpose.xlu0.c.b16.cont [4/8] 0, 128
        %1766 = vxpose.xlu0.c.b16.cont [5/8] 0, 128
        %1767 = vxpose.xlu0.c.b16.cont [6/8] 0, 128
        %1768 = vxpose.xlu0.c.b16.cont [7/8] 0, 128
        %1769 = vxpose.xlu0.c.b16.end [8/8] 0, 128
        %v1770 = vpop.trf.xlu0
        %v1771 = vpop.trf.xlu0
        %v1772 = vpop.trf.xlu0
        %v1773 = vpop.trf.xlu0
        %v1774 = vpop.trf.xlu0
        %v1775 = vpop.trf.xlu0
        %v1776 = vpop.trf.xlu0
        %v1777 = vpop.trf.xlu0
        %1778 = vxpose.xlu0.c.b16.start [1/8] %v1109, 128
        %1779 = vxpose.xlu0.c.b16.cont [2/8] 0, 128
        %1780 = vxpose.xlu0.c.b16.cont [3/8] 0, 128
        %1781 = vxpose.xlu0.c.b16.cont [4/8] 0, 128
        %1782 = vxpose.xlu0.c.b16.cont [5/8] 0, 128
        %1783 = vxpose.xlu0.c.b16.cont [6/8] 0, 128
        %1784 = vxpose.xlu0.c.b16.cont [7/8] 0, 128
        %1785 = vxpose.xlu0.c.b16.end [8/8] 0, 128
        %v1786 = vpop.trf.xlu0
        %v1787 = vpop.trf.xlu0
        %v1788 = vpop.trf.xlu0
        %v1789 = vpop.trf.xlu0
        %v1790 = vpop.trf.xlu0
        %v1791 = vpop.trf.xlu0
        %v1792 = vpop.trf.xlu0
        %v1793 = vpop.trf.xlu0
        %1794 = vxpose.xlu0.c.b16.start [1/8] %v1110, 128
        %1795 = vxpose.xlu0.c.b16.cont [2/8] 0, 128
        %1796 = vxpose.xlu0.c.b16.cont [3/8] 0, 128
        %1797 = vxpose.xlu0.c.b16.cont [4/8] 0, 128
        %1798 = vxpose.xlu0.c.b16.cont [5/8] 0, 128
        %1799 = vxpose.xlu0.c.b16.cont [6/8] 0, 128
        %1800 = vxpose.xlu0.c.b16.cont [7/8] 0, 128
        %1801 = vxpose.xlu0.c.b16.end [8/8] 0, 128
        %v1802 = vpop.trf.xlu0
        %v1803 = vpop.trf.xlu0
        %v1804 = vpop.trf.xlu0
        %v1805 = vpop.trf.xlu0
        %v1806 = vpop.trf.xlu0
        %v1807 = vpop.trf.xlu0
        %v1808 = vpop.trf.xlu0
        %v1809 = vpop.trf.xlu0
        %v1810 = vrot.slane %v1754, 4
        %v1811 = vsel %vm1112, %v1810, %v1690
        %v1813 = vunpack.c.l.s4 1983009808
        %v1814 = vunpack.c.0.s8 %v1813
        %v1815 = vperm.slane %v1811, %v1814
        %v1816 = vrot.slane %v1786, 4
        %v1817 = vsel %vm1112, %v1816, %v1722
        %v1819 = vunpack.c.l.s4 1983009808
        %v1820 = vunpack.c.0.s8 %v1819
        %v1821 = vperm.slane %v1817, %v1820
        %v1822 = vrot.slane %v1821, 4
        %v1823 = vsel %vm1112, %v1822, %v1815
        %v1824 = vrot.slane %v1815, 4
        %v1825 = vsel %vm1112, %v1821, %v1824
        %v1827 = vunpack.c.l.s4 1934713408
        %v1828 = vunpack.c.0.s8 %v1827
        %v1829 = vperm.slane %v1823, %v1828
        %v1831 = vunpack.c.l.s4 1934713408
        %v1832 = vunpack.c.0.s8 %v1831
        %v1833 = vperm.slane %v1825, %v1832
        %v1834 = vrot.slane %v1829, 4
        %v1835 = vsel %vm1112, 0, %v1834
        %v1836 = vrot.slane %v1833, 4
        %v1837 = vsel %vm1112, 0, %v1836
        %v1838 = vrot.slane %v1770, 4
        %v1839 = vsel %vm1112, %v1838, %v1706
        %v1841 = vunpack.c.l.s4 1983009808
        %v1842 = vunpack.c.0.s8 %v1841
        %v1843 = vperm.slane %v1839, %v1842
        %v1844 = vrot.slane %v1802, 4
        %v1845 = vsel %vm1112, %v1844, %v1738
        %v1847 = vunpack.c.l.s4 1983009808
        %v1848 = vunpack.c.0.s8 %v1847
        %v1849 = vperm.slane %v1845, %v1848
        %v1850 = vrot.slane %v1849, 4
        %v1851 = vsel %vm1112, %v1850, %v1843
        %v1852 = vrot.slane %v1843, 4
        %v1853 = vsel %vm1112, %v1849, %v1852
        %v1855 = vunpack.c.l.s4 1934713408
        %v1856 = vunpack.c.0.s8 %v1855
        %v1857 = vperm.slane %v1851, %v1856
        %v1859 = vunpack.c.l.s4 1934713408
        %v1860 = vunpack.c.0.s8 %v1859
        %v1861 = vperm.slane %v1853, %v1860
        %v1862 = vrot.slane %v1857, 4
        %v1863 = vsel %vm1112, 0, %v1862
        %v1864 = vrot.slane %v1861, 4
        %v1865 = vsel %vm1112, 0, %v1864
        %v1868 = vpack.i.b16 %v1857, %v1829
        %v1870 = vshrl.u32 %v1829, 16
        %v1871 = vshrl.u32 %v1857, 16
        %v1872 = vpack.i.b16 %v1871, %v1870
        %v1876 = vpack.i.b16 %v1863, %v1835
        %v1878 = vshrl.u32 %v1835, 16
        %v1879 = vshrl.u32 %v1863, 16
        %v1880 = vpack.i.b16 %v1879, %v1878
        %v1884 = vpack.i.b16 %v1861, %v1833
        %v1886 = vshrl.u32 %v1833, 16
        %v1887 = vshrl.u32 %v1861, 16
        %v1888 = vpack.i.b16 %v1887, %v1886
        %v1892 = vpack.i.b16 %v1865, %v1837
        %v1894 = vshrl.u32 %v1837, 16
        %v1895 = vshrl.u32 %v1865, 16
        %v1896 = vpack.i.b16 %v1895, %v1894
        %1898 = vxpose.xlu0.c.b16.start [1/8] %v1868, 128
        %1899 = vxpose.xlu0.c.b16.cont [2/8] 0, 128
        %1900 = vxpose.xlu0.c.b16.cont [3/8] 0, 128
        %1901 = vxpose.xlu0.c.b16.cont [4/8] 0, 128
        %1902 = vxpose.xlu0.c.b16.cont [5/8] 0, 128
        %1903 = vxpose.xlu0.c.b16.cont [6/8] 0, 128
        %1904 = vxpose.xlu0.c.b16.cont [7/8] 0, 128
        %1905 = vxpose.xlu0.c.b16.end [8/8] 0, 128
        %v1906 = vpop.trf.xlu0
        %v1907 = vpop.trf.xlu0
        %v1908 = vpop.trf.xlu0
        %v1909 = vpop.trf.xlu0
        %v1910 = vpop.trf.xlu0
        %v1911 = vpop.trf.xlu0
        %v1912 = vpop.trf.xlu0
        %v1913 = vpop.trf.xlu0
        %1914 = vxpose.xlu0.c.b16.start [1/8] %v1872, 128
        %1915 = vxpose.xlu0.c.b16.cont [2/8] 0, 128
        %1916 = vxpose.xlu0.c.b16.cont [3/8] 0, 128
        %1917 = vxpose.xlu0.c.b16.cont [4/8] 0, 128
        %1918 = vxpose.xlu0.c.b16.cont [5/8] 0, 128
        %1919 = vxpose.xlu0.c.b16.cont [6/8] 0, 128
        %1920 = vxpose.xlu0.c.b16.cont [7/8] 0, 128
        %1921 = vxpose.xlu0.c.b16.end [8/8] 0, 128
        %v1922 = vpop.trf.xlu0
        %v1923 = vpop.trf.xlu0
        %v1924 = vpop.trf.xlu0
        %v1925 = vpop.trf.xlu0
        %v1926 = vpop.trf.xlu0
        %v1927 = vpop.trf.xlu0
        %v1928 = vpop.trf.xlu0
        %v1929 = vpop.trf.xlu0
        %1930 = vxpose.xlu0.c.b16.start [1/8] %v1876, 128
        %1931 = vxpose.xlu0.c.b16.cont [2/8] 0, 128
        %1932 = vxpose.xlu0.c.b16.cont [3/8] 0, 128
        %1933 = vxpose.xlu0.c.b16.cont [4/8] 0, 128
        %1934 = vxpose.xlu0.c.b16.cont [5/8] 0, 128
        %1935 = vxpose.xlu0.c.b16.cont [6/8] 0, 128
        %1936 = vxpose.xlu0.c.b16.cont [7/8] 0, 128
        %1937 = vxpose.xlu0.c.b16.end [8/8] 0, 128
        %v1938 = vpop.trf.xlu0
        %v1939 = vpop.trf.xlu0
        %v1940 = vpop.trf.xlu0
        %v1941 = vpop.trf.xlu0
        %v1942 = vpop.trf.xlu0
        %v1943 = vpop.trf.xlu0
        %v1944 = vpop.trf.xlu0
        %v1945 = vpop.trf.xlu0
        %1946 = vxpose.xlu0.c.b16.start [1/8] %v1880, 128
        %1947 = vxpose.xlu0.c.b16.cont [2/8] 0, 128
        %1948 = vxpose.xlu0.c.b16.cont [3/8] 0, 128
        %1949 = vxpose.xlu0.c.b16.cont [4/8] 0, 128
        %1950 = vxpose.xlu0.c.b16.cont [5/8] 0, 128
        %1951 = vxpose.xlu0.c.b16.cont [6/8] 0, 128
        %1952 = vxpose.xlu0.c.b16.cont [7/8] 0, 128
        %1953 = vxpose.xlu0.c.b16.end [8/8] 0, 128
        %v1954 = vpop.trf.xlu0
        %v1955 = vpop.trf.xlu0
        %v1956 = vpop.trf.xlu0
        %v1957 = vpop.trf.xlu0
        %v1958 = vpop.trf.xlu0
        %v1959 = vpop.trf.xlu0
        %v1960 = vpop.trf.xlu0
        %v1961 = vpop.trf.xlu0
        %1962 = vxpose.xlu0.c.b16.start [1/8] %v1884, 128
        %1963 = vxpose.xlu0.c.b16.cont [2/8] 0, 128
        %1964 = vxpose.xlu0.c.b16.cont [3/8] 0, 128
        %1965 = vxpose.xlu0.c.b16.cont [4/8] 0, 128
        %1966 = vxpose.xlu0.c.b16.cont [5/8] 0, 128
        %1967 = vxpose.xlu0.c.b16.cont [6/8] 0, 128
        %1968 = vxpose.xlu0.c.b16.cont [7/8] 0, 128
        %1969 = vxpose.xlu0.c.b16.end [8/8] 0, 128
        %v1970 = vpop.trf.xlu0
        %v1971 = vpop.trf.xlu0
        %v1972 = vpop.trf.xlu0
        %v1973 = vpop.trf.xlu0
        %v1974 = vpop.trf.xlu0
        %v1975 = vpop.trf.xlu0
        %v1976 = vpop.trf.xlu0
        %v1977 = vpop.trf.xlu0
        %1978 = vxpose.xlu0.c.b16.start [1/8] %v1888, 128
        %1979 = vxpose.xlu0.c.b16.cont [2/8] 0, 128
        %1980 = vxpose.xlu0.c.b16.cont [3/8] 0, 128
        %1981 = vxpose.xlu0.c.b16.cont [4/8] 0, 128
        %1982 = vxpose.xlu0.c.b16.cont [5/8] 0, 128
        %1983 = vxpose.xlu0.c.b16.cont [6/8] 0, 128
        %1984 = vxpose.xlu0.c.b16.cont [7/8] 0, 128
        %1985 = vxpose.xlu0.c.b16.end [8/8] 0, 128
        %v1986 = vpop.trf.xlu0
        %v1987 = vpop.trf.xlu0
        %v1988 = vpop.trf.xlu0
        %v1989 = vpop.trf.xlu0
        %v1990 = vpop.trf.xlu0
        %v1991 = vpop.trf.xlu0
        %v1992 = vpop.trf.xlu0
        %v1993 = vpop.trf.xlu0
        %1994 = vxpose.xlu0.c.b16.start [1/8] %v1892, 128
        %1995 = vxpose.xlu0.c.b16.cont [2/8] 0, 128
        %1996 = vxpose.xlu0.c.b16.cont [3/8] 0, 128
        %1997 = vxpose.xlu0.c.b16.cont [4/8] 0, 128
        %1998 = vxpose.xlu0.c.b16.cont [5/8] 0, 128
        %1999 = vxpose.xlu0.c.b16.cont [6/8] 0, 128
        %2000 = vxpose.xlu0.c.b16.cont [7/8] 0, 128
        %2001 = vxpose.xlu0.c.b16.end [8/8] 0, 128
        %v2002 = vpop.trf.xlu0
        %v2003 = vpop.trf.xlu0
        %v2004 = vpop.trf.xlu0
        %v2005 = vpop.trf.xlu0
        %v2006 = vpop.trf.xlu0
        %v2007 = vpop.trf.xlu0
        %v2008 = vpop.trf.xlu0
        %v2009 = vpop.trf.xlu0
        %2010 = vxpose.xlu0.c.b16.start [1/8] %v1896, 128
        %2011 = vxpose.xlu0.c.b16.cont [2/8] 0, 128
        %2012 = vxpose.xlu0.c.b16.cont [3/8] 0, 128
        %2013 = vxpose.xlu0.c.b16.cont [4/8] 0, 128
        %2014 = vxpose.xlu0.c.b16.cont [5/8] 0, 128
        %2015 = vxpose.xlu0.c.b16.cont [6/8] 0, 128
        %2016 = vxpose.xlu0.c.b16.cont [7/8] 0, 128
        %2017 = vxpose.xlu0.c.b16.end [8/8] 0, 128
        %v2018 = vpop.trf.xlu0
        %v2019 = vpop.trf.xlu0
        %v2020 = vpop.trf.xlu0
        %v2021 = vpop.trf.xlu0
        %v2022 = vpop.trf.xlu0
        %v2023 = vpop.trf.xlu0
        %v2024 = vpop.trf.xlu0
        %v2025 = vpop.trf.xlu0
        %v2026 = vrot.slane %v1970, 4
        %v2027 = vsel %vm1112, %v2026, %v1906
        %v2029 = vunpack.c.l.s4 1983009808
        %v2030 = vunpack.c.0.s8 %v2029
        %v2031 = vperm.slane %v2027, %v2030
        %v2032 = vrot.slane %v2002, 4
        %v2033 = vsel %vm1112, %v2032, %v1938
        %v2035 = vunpack.c.l.s4 1983009808
        %v2036 = vunpack.c.0.s8 %v2035
        %v2037 = vperm.slane %v2033, %v2036
        %v2038 = vrot.slane %v2037, 4
        %v2039 = vsel %vm1112, %v2038, %v2031
        %v2041 = vunpack.c.l.s4 1934713408
        %v2042 = vunpack.c.0.s8 %v2041
        %v2043 = vperm.slane %v2039, %v2042
        %v2044 = vrot.slane %v2043, 4
        %v2045 = vsel %vm1112, 0, %v2044
        %v2046 = vrot.slane %v1986, 4
        %v2047 = vsel %vm1112, %v2046, %v1922
        %v2049 = vunpack.c.l.s4 1983009808
        %v2050 = vunpack.c.0.s8 %v2049
        %v2051 = vperm.slane %v2047, %v2050
        %v2052 = vrot.slane %v2018, 4
        %v2053 = vsel %vm1112, %v2052, %v1954
        %v2055 = vunpack.c.l.s4 1983009808
        %v2056 = vunpack.c.0.s8 %v2055
        %v2057 = vperm.slane %v2053, %v2056
        %v2058 = vrot.slane %v2057, 4
        %v2059 = vsel %vm1112, %v2058, %v2051
        %v2061 = vunpack.c.l.s4 1934713408
        %v2062 = vunpack.c.0.s8 %v2061
        %v2063 = vperm.slane %v2059, %v2062
        %v2064 = vrot.slane %v2063, 4
        %v2065 = vsel %vm1112, 0, %v2064
        %v2068 = vpack.i.b16 %v2063, %v2043
        %v2069 = vshrl.u32 %v2043, 16
        %v2070 = vshrl.u32 %v2063, 16
        %v2071 = vpack.i.b16 %v2070, %v2069
        %v2074 = vpack.i.b16 %v2065, %v2045
        %v2075 = vshrl.u32 %v2045, 16
        %v2076 = vshrl.u32 %v2065, 16
        %v2077 = vpack.i.b16 %v2076, %v2075
        %v2079 = vsel %vm1560, %v2068, 0
        %v2082 = vsel %vm1560, %v1678, 0
        %2084 = vmatpush.bf16.xpose.msra.mxu0 0
        %2085 = vmatpush.bf16.xpose.msra.mxu0 0
        %2086 = vmatpush.bf16.xpose.msra.mxu0 0
        %2087 = vmatpush.bf16.xpose.msra.mxu0 0
        %2088 = vmatpush.bf16.xpose.msra.mxu0 0
        %2089 = vmatpush.bf16.xpose.msra.mxu0 0
        %2090 = vmatpush.bf16.xpose.msra.mxu0 0
        %2091 = vmatpush.bf16.xpose.msra.mxu0 %v2082
        %2092 = vmatmul.bf16.gmra.mxu0 %v2079
        %v2093 = vpop.f32.mrf.mxu0
        %v2094 = vadd.f32 0.0, %v2093
        %v2095 = vpop.f32.mrf.mxu0
        %2096 = vdwg.mxu0
        %v2098 = vsel %vm1560, %v2071, 0
        %v2101 = vsel %vm1560, %v1679, 0
        %2103 = vmatpush.bf16.xpose.msra.mxu0 0
        %2104 = vmatpush.bf16.xpose.msra.mxu0 0
        %2105 = vmatpush.bf16.xpose.msra.mxu0 0
        %2106 = vmatpush.bf16.xpose.msra.mxu0 0
        %2107 = vmatpush.bf16.xpose.msra.mxu0 0
        %2108 = vmatpush.bf16.xpose.msra.mxu0 0
        %2109 = vmatpush.bf16.xpose.msra.mxu0 0
        %2110 = vmatpush.bf16.xpose.msra.mxu0 %v2101
        %2111 = vmatmul.bf16.gmra.mxu0 %v2098
        %v2112 = vpop.f32.mrf.mxu0
        %v2113 = vadd.f32 0.0, %v2112
        %v2114 = vpop.f32.mrf.mxu0
        %2115 = vdwg.mxu0
        %v2117 = vsel %vm1560, %v2074, 0
        %v2120 = vsel %vm1560, %v1680, 0
        %2122 = vmatpush.bf16.xpose.msra.mxu0 0
        %2123 = vmatpush.bf16.xpose.msra.mxu0 0
        %2124 = vmatpush.bf16.xpose.msra.mxu0 0
        %2125 = vmatpush.bf16.xpose.msra.mxu0 0
        %2126 = vmatpush.bf16.xpose.msra.mxu0 0
        %2127 = vmatpush.bf16.xpose.msra.mxu0 0
        %2128 = vmatpush.bf16.xpose.msra.mxu0 0
        %2129 = vmatpush.bf16.xpose.msra.mxu0 %v2120
        %2130 = vmatmul.bf16.gmra.mxu0 %v2117
        %v2131 = vpop.f32.mrf.mxu0
        %v2132 = vadd.f32 0.0, %v2131
        %v2133 = vpop.f32.mrf.mxu0
        %2134 = vdwg.mxu0
        %v2136 = vsel %vm1560, %v2077, 0
        %v2139 = vsel %vm1560, %v1681, 0
        %2141 = vmatpush.bf16.xpose.msra.mxu0 0
        %2142 = vmatpush.bf16.xpose.msra.mxu0 0
        %2143 = vmatpush.bf16.xpose.msra.mxu0 0
        %2144 = vmatpush.bf16.xpose.msra.mxu0 0
        %2145 = vmatpush.bf16.xpose.msra.mxu0 0
        %2146 = vmatpush.bf16.xpose.msra.mxu0 0
        %2147 = vmatpush.bf16.xpose.msra.mxu0 0
        %2148 = vmatpush.bf16.xpose.msra.mxu0 %v2139
        %2149 = vmatmul.bf16.gmra.mxu0 %v2136
        %v2150 = vpop.f32.mrf.mxu0
        %v2151 = vadd.f32 0.0, %v2150
        %v2152 = vpop.f32.mrf.mxu0
        %2153 = vdwg.mxu0
        %2154 = vxpose.xlu0.b32.start [1/16] %v2094, 128
        %2155 = vxpose.xlu0.b32.cont [2/16] 0.0, 128
        %2156 = vxpose.xlu0.b32.cont [3/16] 0.0, 128
        %2157 = vxpose.xlu0.b32.cont [4/16] 0.0, 128
        %2158 = vxpose.xlu0.b32.cont [5/16] 0.0, 128
        %2159 = vxpose.xlu0.b32.cont [6/16] 0.0, 128
        %2160 = vxpose.xlu0.b32.cont [7/16] 0.0, 128
        %2161 = vxpose.xlu0.b32.cont [8/16] 0.0, 128
        %2162 = vxpose.xlu0.b32.cont [9/16] 0.0, 128
        %2163 = vxpose.xlu0.b32.cont [10/16] 0.0, 128
        %2164 = vxpose.xlu0.b32.cont [11/16] 0.0, 128
        %2165 = vxpose.xlu0.b32.cont [12/16] 0.0, 128
        %2166 = vxpose.xlu0.b32.cont [13/16] 0.0, 128
        %2167 = vxpose.xlu0.b32.cont [14/16] 0.0, 128
        %2168 = vxpose.xlu0.b32.cont [15/16] 0.0, 128
        %2169 = vxpose.xlu0.b32.end [16/16] 0.0, 128
        %v2170 = vpop.trf.xlu0
        %v2171 = vpop.trf.xlu0
        %v2172 = vpop.trf.xlu0
        %v2173 = vpop.trf.xlu0
        %v2174 = vpop.trf.xlu0
        %v2175 = vpop.trf.xlu0
        %v2176 = vpop.trf.xlu0
        %v2177 = vpop.trf.xlu0
        %v2178 = vpop.trf.xlu0
        %v2179 = vpop.trf.xlu0
        %v2180 = vpop.trf.xlu0
        %v2181 = vpop.trf.xlu0
        %v2182 = vpop.trf.xlu0
        %v2183 = vpop.trf.xlu0
        %v2184 = vpop.trf.xlu0
        %v2185 = vpop.trf.xlu0
        %2186 = vxpose.xlu0.b32.start [1/16] %v2113, 128
        %2187 = vxpose.xlu0.b32.cont [2/16] 0.0, 128
        %2188 = vxpose.xlu0.b32.cont [3/16] 0.0, 128
        %2189 = vxpose.xlu0.b32.cont [4/16] 0.0, 128
        %2190 = vxpose.xlu0.b32.cont [5/16] 0.0, 128
        %2191 = vxpose.xlu0.b32.cont [6/16] 0.0, 128
        %2192 = vxpose.xlu0.b32.cont [7/16] 0.0, 128
        %2193 = vxpose.xlu0.b32.cont [8/16] 0.0, 128
        %2194 = vxpose.xlu0.b32.cont [9/16] 0.0, 128
        %2195 = vxpose.xlu0.b32.cont [10/16] 0.0, 128
        %2196 = vxpose.xlu0.b32.cont [11/16] 0.0, 128
        %2197 = vxpose.xlu0.b32.cont [12/16] 0.0, 128
        %2198 = vxpose.xlu0.b32.cont [13/16] 0.0, 128
        %2199 = vxpose.xlu0.b32.cont [14/16] 0.0, 128
        %2200 = vxpose.xlu0.b32.cont [15/16] 0.0, 128
        %2201 = vxpose.xlu0.b32.end [16/16] 0.0, 128
        %v2202 = vpop.trf.xlu0
        %v2203 = vpop.trf.xlu0
        %v2204 = vpop.trf.xlu0
        %v2205 = vpop.trf.xlu0
        %v2206 = vpop.trf.xlu0
        %v2207 = vpop.trf.xlu0
        %v2208 = vpop.trf.xlu0
        %v2209 = vpop.trf.xlu0
        %v2210 = vpop.trf.xlu0
        %v2211 = vpop.trf.xlu0
        %v2212 = vpop.trf.xlu0
        %v2213 = vpop.trf.xlu0
        %v2214 = vpop.trf.xlu0
        %v2215 = vpop.trf.xlu0
        %v2216 = vpop.trf.xlu0
        %v2217 = vpop.trf.xlu0
        %2218 = vxpose.xlu0.b32.start [1/16] %v2132, 128
        %2219 = vxpose.xlu0.b32.cont [2/16] 0.0, 128
        %2220 = vxpose.xlu0.b32.cont [3/16] 0.0, 128
        %2221 = vxpose.xlu0.b32.cont [4/16] 0.0, 128
        %2222 = vxpose.xlu0.b32.cont [5/16] 0.0, 128
        %2223 = vxpose.xlu0.b32.cont [6/16] 0.0, 128
        %2224 = vxpose.xlu0.b32.cont [7/16] 0.0, 128
        %2225 = vxpose.xlu0.b32.cont [8/16] 0.0, 128
        %2226 = vxpose.xlu0.b32.cont [9/16] 0.0, 128
        %2227 = vxpose.xlu0.b32.cont [10/16] 0.0, 128
        %2228 = vxpose.xlu0.b32.cont [11/16] 0.0, 128
        %2229 = vxpose.xlu0.b32.cont [12/16] 0.0, 128
        %2230 = vxpose.xlu0.b32.cont [13/16] 0.0, 128
        %2231 = vxpose.xlu0.b32.cont [14/16] 0.0, 128
        %2232 = vxpose.xlu0.b32.cont [15/16] 0.0, 128
        %2233 = vxpose.xlu0.b32.end [16/16] 0.0, 128
        %v2234 = vpop.trf.xlu0
        %v2235 = vpop.trf.xlu0
        %v2236 = vpop.trf.xlu0
        %v2237 = vpop.trf.xlu0
        %v2238 = vpop.trf.xlu0
        %v2239 = vpop.trf.xlu0
        %v2240 = vpop.trf.xlu0
        %v2241 = vpop.trf.xlu0
        %v2242 = vpop.trf.xlu0
        %v2243 = vpop.trf.xlu0
        %v2244 = vpop.trf.xlu0
        %v2245 = vpop.trf.xlu0
        %v2246 = vpop.trf.xlu0
        %v2247 = vpop.trf.xlu0
        %v2248 = vpop.trf.xlu0
        %v2249 = vpop.trf.xlu0
        %2250 = vxpose.xlu0.b32.start [1/16] %v2151, 128
        %2251 = vxpose.xlu0.b32.cont [2/16] 0.0, 128
        %2252 = vxpose.xlu0.b32.cont [3/16] 0.0, 128
        %2253 = vxpose.xlu0.b32.cont [4/16] 0.0, 128
        %2254 = vxpose.xlu0.b32.cont [5/16] 0.0, 128
        %2255 = vxpose.xlu0.b32.cont [6/16] 0.0, 128
        %2256 = vxpose.xlu0.b32.cont [7/16] 0.0, 128
        %2257 = vxpose.xlu0.b32.cont [8/16] 0.0, 128
        %2258 = vxpose.xlu0.b32.cont [9/16] 0.0, 128
        %2259 = vxpose.xlu0.b32.cont [10/16] 0.0, 128
        %2260 = vxpose.xlu0.b32.cont [11/16] 0.0, 128
        %2261 = vxpose.xlu0.b32.cont [12/16] 0.0, 128
        %2262 = vxpose.xlu0.b32.cont [13/16] 0.0, 128
        %2263 = vxpose.xlu0.b32.cont [14/16] 0.0, 128
        %2264 = vxpose.xlu0.b32.cont [15/16] 0.0, 128
        %2265 = vxpose.xlu0.b32.end [16/16] 0.0, 128
        %v2266 = vpop.trf.xlu0
        %v2267 = vpop.trf.xlu0
        %v2268 = vpop.trf.xlu0
        %v2269 = vpop.trf.xlu0
        %v2270 = vpop.trf.xlu0
        %v2271 = vpop.trf.xlu0
        %v2272 = vpop.trf.xlu0
        %v2273 = vpop.trf.xlu0
        %v2274 = vpop.trf.xlu0
        %v2275 = vpop.trf.xlu0
        %v2276 = vpop.trf.xlu0
        %v2277 = vpop.trf.xlu0
        %v2278 = vpop.trf.xlu0
        %v2279 = vpop.trf.xlu0
        %v2280 = vpop.trf.xlu0
        %v2281 = vpop.trf.xlu0
        %v2282 = vrot.slane %v2234, 4
        %v2283 = vsel %vm899, %v2282, %v2170
        %v2284 = vrot.slane %v2170, 4
        %v2285 = vsel %vm899, %v2234, %v2284
        %v2287 = vunpack.c.l.s4 1983009808
        %v2288 = vunpack.c.0.s8 %v2287
        %v2289 = vperm.slane %v2283, %v2288
        %v2291 = vunpack.c.l.s4 1983009808
        %v2292 = vunpack.c.0.s8 %v2291
        %v2293 = vperm.slane %v2285, %v2292
        %v2294 = vrot.slane %v2266, 4
        %v2295 = vsel %vm899, %v2294, %v2202
        %v2296 = vrot.slane %v2202, 4
        %v2297 = vsel %vm899, %v2266, %v2296
        %v2299 = vunpack.c.l.s4 1983009808
        %v2300 = vunpack.c.0.s8 %v2299
        %v2301 = vperm.slane %v2295, %v2300
        %v2303 = vunpack.c.l.s4 1983009808
        %v2304 = vunpack.c.0.s8 %v2303
        %v2305 = vperm.slane %v2297, %v2304
        %v2306 = vrot.slane %v2301, 4
        %v2307 = vsel %vm899, %v2306, %v2289
        %v2308 = vrot.slane %v2289, 4
        %v2309 = vsel %vm899, %v2301, %v2308
        %v2311 = vunpack.c.l.s4 1934713408
        %v2312 = vunpack.c.0.s8 %v2311
        %v2313 = vperm.slane %v2307, %v2312
        %v2315 = vunpack.c.l.s4 1934713408
        %v2316 = vunpack.c.0.s8 %v2315
        %v2317 = vperm.slane %v2309, %v2316
        %v2318 = vrot.slane %v2305, 4
        %v2319 = vsel %vm899, %v2318, %v2293
        %v2320 = vrot.slane %v2293, 4
        %v2321 = vsel %vm899, %v2305, %v2320
        %v2323 = vunpack.c.l.s4 1934713408
        %v2324 = vunpack.c.0.s8 %v2323
        %v2325 = vperm.slane %v2319, %v2324
        %v2327 = vunpack.c.l.s4 1934713408
        %v2328 = vunpack.c.0.s8 %v2327
        %v2329 = vperm.slane %v2321, %v2328
        %v2330 = vrot.slane %v2313, 4
        %v2331 = vsel %vm899, 0.0, %v2330
        %v2332 = vrot.slane %v2317, 4
        %v2333 = vsel %vm899, 0.0, %v2332
        %v2334 = vrot.slane %v2325, 4
        %v2335 = vsel %vm899, 0.0, %v2334
        %v2336 = vrot.slane %v2329, 4
        %v2337 = vsel %vm899, 0.0, %v2336
        %v2342 = vlaneseq
        %v2343 = vand.u32 %v2342, 127
        %v2344 = vperm.slane %v1674, %v2343
        %v2345 = vperm.slane %v1675, %v2343
        %v2346 = vperm.slane %v1676, %v2343
        %v2347 = vperm.slane %v1677, %v2343
        %vm2348 = vcmask 1041409
        %v2349 = vsel %vm2348, %v2345, %v2344
        %vm2350 = vcmask 1042434
        %v2351 = vsel %vm2350, %v2346, %v2349
        %vm2352 = vcmask 1043459
        %v2353 = vsel %vm2352, %v2347, %v2351
        %2355 = vxpose.xlu0.b32.start [1/16] %v2353, 128
        %2356 = vxpose.xlu0.b32.cont [2/16] 0.0, 128
        %2357 = vxpose.xlu0.b32.cont [3/16] 0.0, 128
        %2358 = vxpose.xlu0.b32.cont [4/16] 0.0, 128
        %2359 = vxpose.xlu0.b32.cont [5/16] 0.0, 128
        %2360 = vxpose.xlu0.b32.cont [6/16] 0.0, 128
        %2361 = vxpose.xlu0.b32.cont [7/16] 0.0, 128
        %2362 = vxpose.xlu0.b32.cont [8/16] 0.0, 128
        %2363 = vxpose.xlu0.b32.cont [9/16] 0.0, 128
        %2364 = vxpose.xlu0.b32.cont [10/16] 0.0, 128
        %2365 = vxpose.xlu0.b32.cont [11/16] 0.0, 128
        %2366 = vxpose.xlu0.b32.cont [12/16] 0.0, 128
        %2367 = vxpose.xlu0.b32.cont [13/16] 0.0, 128
        %2368 = vxpose.xlu0.b32.cont [14/16] 0.0, 128
        %2369 = vxpose.xlu0.b32.cont [15/16] 0.0, 128
        %2370 = vxpose.xlu0.b32.end [16/16] 0.0, 128
        %v2371 = vpop.trf.xlu0
        %v2372 = vpop.trf.xlu0
        %v2373 = vpop.trf.xlu0
        %v2374 = vpop.trf.xlu0
        %v2375 = vpop.trf.xlu0
        %v2376 = vpop.trf.xlu0
        %v2377 = vpop.trf.xlu0
        %v2378 = vpop.trf.xlu0
        %v2379 = vpop.trf.xlu0
        %v2380 = vpop.trf.xlu0
        %v2381 = vpop.trf.xlu0
        %v2382 = vpop.trf.xlu0
        %v2383 = vpop.trf.xlu0
        %v2384 = vpop.trf.xlu0
        %v2385 = vpop.trf.xlu0
        %v2386 = vpop.trf.xlu0
        %v2387 = vperm.slane %v2371, 0
        %v2388 = vlaneseq
        %v2389 = vshrl.u32 %v2388, 7
        %2391 = vset.pattern.permute.xlu0 %v2389
        %2392 = vperm.xlu0 %2391, %v2387
        %v2393 = vpop.permute.xlu0 %2392
        %v2394 = vperm.slane %v2371, 1
        %v2395 = vlaneseq
        %v2396 = vshrl.u32 %v2395, 7
        %2398 = vset.pattern.permute.xlu0 %v2396
        %2399 = vperm.xlu0 %2398, %v2394
        %v2400 = vpop.permute.xlu0 %2399
        %v2401 = vperm.slane %v2371, 2
        %v2402 = vlaneseq
        %v2403 = vshrl.u32 %v2402, 7
        %2405 = vset.pattern.permute.xlu0 %v2403
        %2406 = vperm.xlu0 %2405, %v2401
        %v2407 = vpop.permute.xlu0 %2406
        %v2408 = vperm.slane %v2371, 3
        %v2409 = vlaneseq
        %v2410 = vshrl.u32 %v2409, 7
        %2412 = vset.pattern.permute.xlu0 %v2410
        %2413 = vperm.xlu0 %2412, %v2408
        %v2414 = vpop.permute.xlu0 %2413
        %v2415 = vperm.slane %v2371, 4
        %v2416 = vlaneseq
        %v2417 = vshrl.u32 %v2416, 7
        %2419 = vset.pattern.permute.xlu0 %v2417
        %2420 = vperm.xlu0 %2419, %v2415
        %v2421 = vpop.permute.xlu0 %2420
        %v2422 = vperm.slane %v2371, 5
        %v2423 = vlaneseq
        %v2424 = vshrl.u32 %v2423, 7
        %2426 = vset.pattern.permute.xlu0 %v2424
        %2427 = vperm.xlu0 %2426, %v2422
        %v2428 = vpop.permute.xlu0 %2427
        %v2429 = vperm.slane %v2371, 6
        %v2430 = vlaneseq
        %v2431 = vshrl.u32 %v2430, 7
        %2433 = vset.pattern.permute.xlu0 %v2431
        %2434 = vperm.xlu0 %2433, %v2429
        %v2435 = vpop.permute.xlu0 %2434
        %v2436 = vperm.slane %v2371, 7
        %v2437 = vlaneseq
        %v2438 = vshrl.u32 %v2437, 7
        %2440 = vset.pattern.permute.xlu0 %v2438
        %2441 = vperm.xlu0 %2440, %v2436
        %v2442 = vpop.permute.xlu0 %2441
        %v2443 = vmul.f32 %v2313, %v2393
        %v2444 = vmul.f32 %v2331, %v2400
        %v2445 = vmul.f32 %v2317, %v2407
        %v2446 = vmul.f32 %v2333, %v2414
        %v2447 = vmul.f32 %v2325, %v2421
        %v2448 = vmul.f32 %v2335, %v2428
        %v2449 = vmul.f32 %v2329, %v2435
        %v2450 = vmul.f32 %v2337, %v2442
        %v2451 = vrot.slane %v2445, 4
        %v2452 = vsel %vm899, %v2451, %v2443
        %v2454 = vunpack.c.l.s4 1983009808
        %v2455 = vunpack.c.0.s8 %v2454
        %v2456 = vperm.slane %v2452, %v2455
        %v2457 = vrot.slane %v2446, 4
        %v2458 = vsel %vm899, %v2457, %v2444
        %v2460 = vunpack.c.l.s4 1983009808
        %v2461 = vunpack.c.0.s8 %v2460
        %v2462 = vperm.slane %v2458, %v2461
        %v2463 = vrot.slane %v2449, 4
        %v2464 = vsel %vm899, %v2463, %v2447
        %v2466 = vunpack.c.l.s4 1983009808
        %v2467 = vunpack.c.0.s8 %v2466
        %v2468 = vperm.slane %v2464, %v2467
        %v2469 = vrot.slane %v2450, 4
        %v2470 = vsel %vm899, %v2469, %v2448
        %v2472 = vunpack.c.l.s4 1983009808
        %v2473 = vunpack.c.0.s8 %v2472
        %v2474 = vperm.slane %v2470, %v2473
        %v2475 = vrot.slane %v2462, 4
        %v2476 = vsel %vm899, %v2475, %v2456
        %v2477 = vrot.slane %v2456, 4
        %v2478 = vsel %vm899, %v2462, %v2477
        %v2480 = vunpack.c.l.s4 1934713408
        %v2481 = vunpack.c.0.s8 %v2480
        %v2482 = vperm.slane %v2476, %v2481
        %v2484 = vunpack.c.l.s4 1934713408
        %v2485 = vunpack.c.0.s8 %v2484
        %v2486 = vperm.slane %v2478, %v2485
        %v2487 = vrot.slane %v2474, 4
        %v2488 = vsel %vm899, %v2487, %v2468
        %v2489 = vrot.slane %v2468, 4
        %v2490 = vsel %vm899, %v2474, %v2489
        %v2492 = vunpack.c.l.s4 1934713408
        %v2493 = vunpack.c.0.s8 %v2492
        %v2494 = vperm.slane %v2488, %v2493
        %v2496 = vunpack.c.l.s4 1934713408
        %v2497 = vunpack.c.0.s8 %v2496
        %v2498 = vperm.slane %v2490, %v2497
        %v2499 = vrot.slane %v2494, 4
        %v2500 = vsel %vm899, %v2499, %v2482
        %v2501 = vrot.slane %v2482, 4
        %v2502 = vsel %vm899, %v2494, %v2501
        %v2503 = vrot.slane %v2498, 4
        %v2504 = vsel %vm899, %v2503, %v2486
        %v2505 = vrot.slane %v2486, 4
        %v2506 = vsel %vm899, %v2498, %v2505
        %2508 = vrot.lane.b32.xlu0 %v2502, 8
        %v2509 = vpop.permute.xlu0 %2508
        %2512 = vrot.lane.b32.xlu0 %v2504, 16
        %v2513 = vpop.permute.xlu0 %2512
        %2516 = vrot.lane.b32.xlu0 %v2506, 24
        %v2517 = vpop.permute.xlu0 %2516
        %v2519 = vsel %vm1560, %v2500, %v2509
        %vm2520 = vcmask 130048
        %v2521 = vsel %vm2520, %v2519, %v2513
        %vm2522 = vcmask 195584
        %v2523 = vsel %vm2522, %v2521, %v2517
        %v2524 = vpack.c.bf16 %v2523, %v2523
        %v2525 = vld [vmem:[#allocation8] sm:$0xf]
        %v2526 = vld [vmem:[#allocation8 + $0x4] sm:$0xf]
        %v2527 = vld [vmem:[#allocation8 + $0x8] sm:$0xf]
        %v2528 = vld [vmem:[#allocation8 + $0xc] sm:$0xf]
        %v2529 = vld [vmem:[#allocation10] sm:$0x1]
        %v2531 = vperm.slane %v2529, 0
        %v2537 = vunpack.c.l.b16 %v2525
        %v2538 = vunpack.c.l.b16 %v2526
        %v2539 = vunpack.c.l.b16 %v2527
        %v2540 = vunpack.c.l.b16 %v2528
        %v2541 = vpack.c.b16 %v2538, %v2537
        %v2542 = vpack.c.b16 %v2540, %v2539
        %v2546 = vsel %vm798, %v2524, 0
        %2548 = vmatpush.bf16.msra.mxu0 0
        %2549 = vmatpush.bf16.msra.mxu0 0
        %2550 = vmatpush.bf16.msra.mxu0 0
        %2551 = vmatpush.bf16.msra.mxu0 0
        %2552 = vmatpush.bf16.msra.mxu0 0
        %2553 = vmatpush.bf16.msra.mxu0 0
        %2554 = vmatpush.bf16.msra.mxu0 %v2542
        %2555 = vmatpush.bf16.msra.mxu0 %v2541
        %2556 = vmatmul.bf16.gmra.mxu0 %v2546
        %v2557 = vpop.f32.mrf.mxu0
        %v2558 = vadd.f32 %v2531, %v2557
        %v2559 = vpop.f32.mrf.mxu0
        %2560 = vdwg.mxu0
        %v2561 = vadd.f32 %v771, %v2558
        %v2562 = vsel %vm798, %v2561, 0.0
        %2563 = vadd.xlane.f32.xlu0 %v2562
        %v2564 = vpop.xlane.xlu0 %2563
        %v2565 = vrcp.pop 32.0
        %v2566 = vmul.f32 32.0, %v2565
        %v2567 = vsub.f32 1.0, %v2566
        %v2568 = vmul.f32 %v2565, %v2567
        %v2569 = vadd.f32 %v2565, %v2568
        %vm2570 = vweird.f32 %v2565
        %v2571 = vsel %vm2570, %v2565, %v2569
        %v2572 = vmul.f32 %v2564, %v2571
        %v2573 = vsub.f32 %v2561, %v2572
        %v2574 = vmul.f32 %v2573, %v2573
        %v2575 = vsel %vm798, %v2574, 0.0
        %2576 = vadd.xlane.f32.xlu0 %v2575
        %v2577 = vpop.xlane.xlu0 %2576
        %v2578 = vmul.f32 %v2577, %v2571
        %v2579 = vadd.f32 %v2578, 1e-05
        %v2580 = vrsqrt.pop %v2579
        %v2581 = vmul.f32 %v2580, %v2579
        %v2582 = vmul.f32 %v2581, %v2580
        %v2583 = vmul.f32 0.5, %v2582
        %v2584 = vsub.f32 1.5, %v2583
        %v2585 = vmul.f32 %v2580, %v2584
        %vm2586 = vweird.f32 %v2579
        %vm2587 = vweird.f32 %v2580
        %vm2588 = vmor %vm2586, %vm2587
        %v2589 = vsel %vm2588, %v2580, %v2585
        %v2590 = vmul.f32 %v2573, %v2589
        %v2591 = vld [vmem:[%s11] sm:$0x1]
        %v2593 = vperm.slane %v2591, 0
        %v2595 = vmul.f32 %v2590, %v2593
        %v2596 = vld [vmem:[#allocation16] sm:$0x1]
        %v2598 = vperm.slane %v2596, 0
        %v2600 = vadd.f32 %v2595, %v2598
        %v2601 = vadd.f32 %v2600, %v772
        %v2602 = vpack.c.bf16 %v2601, %v2601
        %v2603 = vpack.c.bf16 %v774, %v773
        %v2604 = vld [vmem:[#allocation11] sm:$0xf]
        %v2605 = vld [vmem:[#allocation11 + $0x4] sm:$0xf]
        %v2606 = vld [vmem:[#allocation11 + $0x8] sm:$0xf]
        %v2607 = vld [vmem:[#allocation11 + $0xc] sm:$0xf]
        %v2608 = vld [vmem:[%s8] sm:$0x1]
        %v2610 = vperm.slane %v2608, 0
        %v2616 = vunpack.c.l.b16 %v2604
        %v2617 = vunpack.c.l.b16 %v2605
        %v2618 = vunpack.c.l.b16 %v2606
        %v2619 = vunpack.c.l.b16 %v2607
        %v2620 = vpack.c.b16 %v2617, %v2616
        %v2621 = vpack.c.b16 %v2619, %v2618
        %v2625 = vsel %vm798, %v2602, 0
        %2627 = vmatpush.bf16.msra.mxu0 0
        %2628 = vmatpush.bf16.msra.mxu0 0
        %2629 = vmatpush.bf16.msra.mxu0 0
        %2630 = vmatpush.bf16.msra.mxu0 0
        %2631 = vmatpush.bf16.msra.mxu0 0
        %2632 = vmatpush.bf16.msra.mxu0 0
        %2633 = vmatpush.bf16.msra.mxu0 %v2621
        %2634 = vmatpush.bf16.msra.mxu0 %v2620
        %2635 = vmatmul.bf16.gmra.mxu0 %v2625
        %v2636 = vpop.f32.mrf.mxu0
        %v2637 = vadd.f32 %v2610, %v2636
        %v2638 = vpop.f32.mrf.mxu0
        %2639 = vdwg.mxu0
        %s2640 = scalar_lea.vmem [#allocation11], 16
        %v2641 = vld [vmem:[%s2640] sm:$0xf]
        %v2642 = vld [vmem:[%s2640 + $0x4] sm:$0xf]
        %v2643 = vld [vmem:[%s2640 + $0x8] sm:$0xf]
        %v2644 = vld [vmem:[%s2640 + $0xc] sm:$0xf]
        %s2645 = scalar_lea.vmem %s8, 1
        %v2646 = vld [vmem:[%s2645] sm:$0x1]
        %v2648 = vperm.slane %v2646, 0
        %v2654 = vunpack.c.l.b16 %v2641
        %v2655 = vunpack.c.l.b16 %v2642
        %v2656 = vunpack.c.l.b16 %v2643
        %v2657 = vunpack.c.l.b16 %v2644
        %v2658 = vpack.c.b16 %v2655, %v2654
        %v2659 = vpack.c.b16 %v2657, %v2656
        %v2663 = vsel %vm798, %v2603, 0
        %2665 = vmatpush.bf16.msra.mxu0 0
        %2666 = vmatpush.bf16.msra.mxu0 0
        %2667 = vmatpush.bf16.msra.mxu0 0
        %2668 = vmatpush.bf16.msra.mxu0 0
        %2669 = vmatpush.bf16.msra.mxu0 0
        %2670 = vmatpush.bf16.msra.mxu0 0
        %2671 = vmatpush.bf16.msra.mxu0 %v2659
        %2672 = vmatpush.bf16.msra.mxu0 %v2658
        %2673 = vmatmul.bf16.gmra.mxu0 %v2663
        %v2674 = vpop.f32.mrf.mxu0
        %v2675 = vadd.f32 %v2648, %v2674
        %v2676 = vpop.f32.mrf.mxu0
        %v2677 = vadd.f32 %v2648, %v2676
        %2678 = vdwg.mxu0
        %s2679 = scalar_lea.vmem [#allocation11], 32
        %v2680 = vld [vmem:[%s2679] sm:$0xf]
        %v2681 = vld [vmem:[%s2679 + $0x4] sm:$0xf]
        %v2682 = vld [vmem:[%s2679 + $0x8] sm:$0xf]
        %v2683 = vld [vmem:[%s2679 + $0xc] sm:$0xf]
        %s2684 = scalar_lea.vmem %s8, 2
        %v2685 = vld [vmem:[%s2684] sm:$0x1]
        %v2687 = vperm.slane %v2685, 0
        %v2693 = vunpack.c.l.b16 %v2680
        %v2694 = vunpack.c.l.b16 %v2681
        %v2695 = vunpack.c.l.b16 %v2682
        %v2696 = vunpack.c.l.b16 %v2683
        %v2697 = vpack.c.b16 %v2694, %v2693
        %v2698 = vpack.c.b16 %v2696, %v2695
        %2701 = vmatpush.bf16.msra.mxu0 0
        %2702 = vmatpush.bf16.msra.mxu0 0
        %2703 = vmatpush.bf16.msra.mxu0 0
        %2704 = vmatpush.bf16.msra.mxu0 0
        %2705 = vmatpush.bf16.msra.mxu0 0
        %2706 = vmatpush.bf16.msra.mxu0 0
        %2707 = vmatpush.bf16.msra.mxu0 %v2698
        %2708 = vmatpush.bf16.msra.mxu0 %v2697
        %2709 = vmatmul.bf16.gmra.mxu0 %v2663
        %v2710 = vpop.f32.mrf.mxu0
        %v2711 = vadd.f32 %v2687, %v2710
        %v2712 = vpop.f32.mrf.mxu0
        %v2713 = vadd.f32 %v2687, %v2712
        %2714 = vdwg.mxu0
        %2716 = vrot.lane.b32.xlu0 %v2637, 120
        %v2717 = vpop.permute.xlu0 %2716
        %2719 = vrot.lane.b32.xlu0 %v2637, 112
        %v2720 = vpop.permute.xlu0 %2719
        %2722 = vrot.lane.b32.xlu0 %v2637, 104
        %v2723 = vpop.permute.xlu0 %2722
        %v2725 = vrot.slane %v2720, 4
        %v2726 = vsel %vm899, %v2725, %v2637
        %v2727 = vrot.slane %v2637, 4
        %v2728 = vsel %vm899, %v2720, %v2727
        %v2730 = vunpack.c.l.s4 1983009808
        %v2731 = vunpack.c.0.s8 %v2730
        %v2732 = vperm.slane %v2726, %v2731
        %v2734 = vunpack.c.l.s4 1983009808
        %v2735 = vunpack.c.0.s8 %v2734
        %v2736 = vperm.slane %v2728, %v2735
        %v2737 = vrot.slane %v2723, 4
        %v2738 = vsel %vm899, %v2737, %v2717
        %v2739 = vrot.slane %v2717, 4
        %v2740 = vsel %vm899, %v2723, %v2739
        %v2742 = vunpack.c.l.s4 1983009808
        %v2743 = vunpack.c.0.s8 %v2742
        %v2744 = vperm.slane %v2738, %v2743
        %v2746 = vunpack.c.l.s4 1983009808
        %v2747 = vunpack.c.0.s8 %v2746
        %v2748 = vperm.slane %v2740, %v2747
        %v2749 = vrot.slane %v2744, 4
        %v2750 = vsel %vm899, %v2749, %v2732
        %v2751 = vrot.slane %v2732, 4
        %v2752 = vsel %vm899, %v2744, %v2751
        %v2754 = vunpack.c.l.s4 1934713408
        %v2755 = vunpack.c.0.s8 %v2754
        %v2756 = vperm.slane %v2750, %v2755
        %v2758 = vunpack.c.l.s4 1934713408
        %v2759 = vunpack.c.0.s8 %v2758
        %v2760 = vperm.slane %v2752, %v2759
        %v2761 = vrot.slane %v2748, 4
        %v2762 = vsel %vm899, %v2761, %v2736
        %v2763 = vrot.slane %v2736, 4
        %v2764 = vsel %vm899, %v2748, %v2763
        %v2766 = vunpack.c.l.s4 1934713408
        %v2767 = vunpack.c.0.s8 %v2766
        %v2768 = vperm.slane %v2762, %v2767
        %v2770 = vunpack.c.l.s4 1934713408
        %v2771 = vunpack.c.0.s8 %v2770
        %v2772 = vperm.slane %v2764, %v2771
        %v2773 = vrot.slane %v2756, 4
        %v2774 = vsel %vm899, 0.0, %v2773
        %v2775 = vrot.slane %v2760, 4
        %v2776 = vsel %vm899, 0.0, %v2775
        %v2777 = vrot.slane %v2768, 4
        %v2778 = vsel %vm899, 0.0, %v2777
        %v2779 = vrot.slane %v2772, 4
        %v2780 = vsel %vm899, 0.0, %v2779
        %v2781 = vpack.c.bf16 %v2756, %v2756
        %v2782 = vpack.c.bf16 %v2774, %v2774
        %v2783 = vpack.c.bf16 %v2760, %v2760
        %v2784 = vpack.c.bf16 %v2776, %v2776
        %v2785 = vpack.c.bf16 %v2768, %v2768
        %v2786 = vpack.c.bf16 %v2778, %v2778
        %v2787 = vpack.c.bf16 %v2772, %v2772
        %v2788 = vpack.c.bf16 %v2780, %v2780
        %2791 = vrot.lane.b32.xlu0 %v2675, 120
        %v2792 = vpop.permute.xlu0 %2791
        %2793 = vrot.lane.b32.xlu0 %v2677, 120
        %v2794 = vpop.permute.xlu0 %2793
        %2797 = vrot.lane.b32.xlu0 %v2675, 112
        %v2798 = vpop.permute.xlu0 %2797
        %2799 = vrot.lane.b32.xlu0 %v2677, 112
        %v2800 = vpop.permute.xlu0 %2799
        %2803 = vrot.lane.b32.xlu0 %v2675, 104
        %v2804 = vpop.permute.xlu0 %2803
        %2805 = vrot.lane.b32.xlu0 %v2677, 104
        %v2806 = vpop.permute.xlu0 %2805
        %v2809 = vrot.slane %v2798, 4
        %v2810 = vsel %vm899, %v2809, %v2675
        %v2811 = vrot.slane %v2675, 4
        %v2812 = vsel %vm899, %v2798, %v2811
        %v2814 = vunpack.c.l.s4 1983009808
        %v2815 = vunpack.c.0.s8 %v2814
        %v2816 = vperm.slane %v2810, %v2815
        %v2818 = vunpack.c.l.s4 1983009808
        %v2819 = vunpack.c.0.s8 %v2818
        %v2820 = vperm.slane %v2812, %v2819
        %v2821 = vrot.slane %v2804, 4
        %v2822 = vsel %vm899, %v2821, %v2792
        %v2823 = vrot.slane %v2792, 4
        %v2824 = vsel %vm899, %v2804, %v2823
        %v2826 = vunpack.c.l.s4 1983009808
        %v2827 = vunpack.c.0.s8 %v2826
        %v2828 = vperm.slane %v2822, %v2827
        %v2830 = vunpack.c.l.s4 1983009808
        %v2831 = vunpack.c.0.s8 %v2830
        %v2832 = vperm.slane %v2824, %v2831
        %v2833 = vrot.slane %v2828, 4
        %v2834 = vsel %vm899, %v2833, %v2816
        %v2835 = vrot.slane %v2816, 4
        %v2836 = vsel %vm899, %v2828, %v2835
        %v2838 = vunpack.c.l.s4 1934713408
        %v2839 = vunpack.c.0.s8 %v2838
        %v2840 = vperm.slane %v2834, %v2839
        %v2842 = vunpack.c.l.s4 1934713408
        %v2843 = vunpack.c.0.s8 %v2842
        %v2844 = vperm.slane %v2836, %v2843
        %v2845 = vrot.slane %v2832, 4
        %v2846 = vsel %vm899, %v2845, %v2820
        %v2847 = vrot.slane %v2820, 4
        %v2848 = vsel %vm899, %v2832, %v2847
        %v2850 = vunpack.c.l.s4 1934713408
        %v2851 = vunpack.c.0.s8 %v2850
        %v2852 = vperm.slane %v2846, %v2851
        %v2854 = vunpack.c.l.s4 1934713408
        %v2855 = vunpack.c.0.s8 %v2854
        %v2856 = vperm.slane %v2848, %v2855
        %v2857 = vrot.slane %v2840, 4
        %v2858 = vsel %vm899, 0.0, %v2857
        %v2859 = vrot.slane %v2844, 4
        %v2860 = vsel %vm899, 0.0, %v2859
        %v2861 = vrot.slane %v2852, 4
        %v2862 = vsel %vm899, 0.0, %v2861
        %v2863 = vrot.slane %v2856, 4
        %v2864 = vsel %vm899, 0.0, %v2863
        %v2865 = vrot.slane %v2800, 4
        %v2866 = vsel %vm899, %v2865, %v2677
        %v2867 = vrot.slane %v2677, 4
        %v2868 = vsel %vm899, %v2800, %v2867
        %v2870 = vunpack.c.l.s4 1983009808
        %v2871 = vunpack.c.0.s8 %v2870
        %v2872 = vperm.slane %v2866, %v2871
        %v2874 = vunpack.c.l.s4 1983009808
        %v2875 = vunpack.c.0.s8 %v2874
        %v2876 = vperm.slane %v2868, %v2875
        %v2877 = vrot.slane %v2806, 4
        %v2878 = vsel %vm899, %v2877, %v2794
        %v2879 = vrot.slane %v2794, 4
        %v2880 = vsel %vm899, %v2806, %v2879
        %v2882 = vunpack.c.l.s4 1983009808
        %v2883 = vunpack.c.0.s8 %v2882
        %v2884 = vperm.slane %v2878, %v2883
        %v2886 = vunpack.c.l.s4 1983009808
        %v2887 = vunpack.c.0.s8 %v2886
        %v2888 = vperm.slane %v2880, %v2887
        %v2889 = vrot.slane %v2884, 4
        %v2890 = vsel %vm899, %v2889, %v2872
        %v2891 = vrot.slane %v2872, 4
        %v2892 = vsel %vm899, %v2884, %v2891
        %v2894 = vunpack.c.l.s4 1934713408
        %v2895 = vunpack.c.0.s8 %v2894
        %v2896 = vperm.slane %v2890, %v2895
        %v2898 = vunpack.c.l.s4 1934713408
        %v2899 = vunpack.c.0.s8 %v2898
        %v2900 = vperm.slane %v2892, %v2899
        %v2901 = vrot.slane %v2888, 4
        %v2902 = vsel %vm899, %v2901, %v2876
        %v2903 = vrot.slane %v2876, 4
        %v2904 = vsel %vm899, %v2888, %v2903
        %v2906 = vunpack.c.l.s4 1934713408
        %v2907 = vunpack.c.0.s8 %v2906
        %v2908 = vperm.slane %v2902, %v2907
        %v2910 = vunpack.c.l.s4 1934713408
        %v2911 = vunpack.c.0.s8 %v2910
        %v2912 = vperm.slane %v2904, %v2911
        %v2913 = vrot.slane %v2896, 4
        %v2914 = vsel %vm899, 0.0, %v2913
        %v2915 = vrot.slane %v2900, 4
        %v2916 = vsel %vm899, 0.0, %v2915
        %v2917 = vrot.slane %v2908, 4
        %v2918 = vsel %vm899, 0.0, %v2917
        %v2919 = vrot.slane %v2912, 4
        %v2920 = vsel %vm899, 0.0, %v2919
        %v2921 = vpack.c.bf16 %v2840, %v2840
        %v2922 = vpack.c.bf16 %v2858, %v2858
        %v2923 = vpack.c.bf16 %v2844, %v2844
        %v2924 = vpack.c.bf16 %v2860, %v2860
        %v2925 = vpack.c.bf16 %v2852, %v2852
        %v2926 = vpack.c.bf16 %v2862, %v2862
        %v2927 = vpack.c.bf16 %v2856, %v2856
        %v2928 = vpack.c.bf16 %v2864, %v2864
        %v2929 = vpack.c.bf16 %v2896, %v2896
        %v2930 = vpack.c.bf16 %v2914, %v2914
        %v2931 = vpack.c.bf16 %v2900, %v2900
        %v2932 = vpack.c.bf16 %v2916, %v2916
        %v2933 = vpack.c.bf16 %v2908, %v2908
        %v2934 = vpack.c.bf16 %v2918, %v2918
        %v2935 = vpack.c.bf16 %v2912, %v2912
        %v2936 = vpack.c.bf16 %v2920, %v2920
        %2939 = vrot.lane.b32.xlu0 %v2711, 120
        %v2940 = vpop.permute.xlu0 %2939
        %2941 = vrot.lane.b32.xlu0 %v2713, 120
        %v2942 = vpop.permute.xlu0 %2941
        %2945 = vrot.lane.b32.xlu0 %v2711, 112
        %v2946 = vpop.permute.xlu0 %2945
        %2947 = vrot.lane.b32.xlu0 %v2713, 112
        %v2948 = vpop.permute.xlu0 %2947
        %2951 = vrot.lane.b32.xlu0 %v2711, 104
        %v2952 = vpop.permute.xlu0 %2951
        %2953 = vrot.lane.b32.xlu0 %v2713, 104
        %v2954 = vpop.permute.xlu0 %2953
        %v2957 = vrot.slane %v2946, 4
        %v2958 = vsel %vm899, %v2957, %v2711
        %v2959 = vrot.slane %v2711, 4
        %v2960 = vsel %vm899, %v2946, %v2959
        %v2962 = vunpack.c.l.s4 1983009808
        %v2963 = vunpack.c.0.s8 %v2962
        %v2964 = vperm.slane %v2958, %v2963
        %v2966 = vunpack.c.l.s4 1983009808
        %v2967 = vunpack.c.0.s8 %v2966
        %v2968 = vperm.slane %v2960, %v2967
        %v2969 = vrot.slane %v2952, 4
        %v2970 = vsel %vm899, %v2969, %v2940
        %v2971 = vrot.slane %v2940, 4
        %v2972 = vsel %vm899, %v2952, %v2971
        %v2974 = vunpack.c.l.s4 1983009808
        %v2975 = vunpack.c.0.s8 %v2974
        %v2976 = vperm.slane %v2970, %v2975
        %v2978 = vunpack.c.l.s4 1983009808
        %v2979 = vunpack.c.0.s8 %v2978
        %v2980 = vperm.slane %v2972, %v2979
        %v2981 = vrot.slane %v2976, 4
        %v2982 = vsel %vm899, %v2981, %v2964
        %v2983 = vrot.slane %v2964, 4
        %v2984 = vsel %vm899, %v2976, %v2983
        %v2986 = vunpack.c.l.s4 1934713408
        %v2987 = vunpack.c.0.s8 %v2986
        %v2988 = vperm.slane %v2982, %v2987
        %v2990 = vunpack.c.l.s4 1934713408
        %v2991 = vunpack.c.0.s8 %v2990
        %v2992 = vperm.slane %v2984, %v2991
        %v2993 = vrot.slane %v2980, 4
        %v2994 = vsel %vm899, %v2993, %v2968
        %v2995 = vrot.slane %v2968, 4
        %v2996 = vsel %vm899, %v2980, %v2995
        %v2998 = vunpack.c.l.s4 1934713408
        %v2999 = vunpack.c.0.s8 %v2998
        %v3000 = vperm.slane %v2994, %v2999
        %v3002 = vunpack.c.l.s4 1934713408
        %v3003 = vunpack.c.0.s8 %v3002
        %v3004 = vperm.slane %v2996, %v3003
        %v3005 = vrot.slane %v2988, 4
        %v3006 = vsel %vm899, 0.0, %v3005
        %v3007 = vrot.slane %v2992, 4
        %v3008 = vsel %vm899, 0.0, %v3007
        %v3009 = vrot.slane %v3000, 4
        %v3010 = vsel %vm899, 0.0, %v3009
        %v3011 = vrot.slane %v3004, 4
        %v3012 = vsel %vm899, 0.0, %v3011
        %v3013 = vrot.slane %v2948, 4
        %v3014 = vsel %vm899, %v3013, %v2713
        %v3015 = vrot.slane %v2713, 4
        %v3016 = vsel %vm899, %v2948, %v3015
        %v3018 = vunpack.c.l.s4 1983009808
        %v3019 = vunpack.c.0.s8 %v3018
        %v3020 = vperm.slane %v3014, %v3019
        %v3022 = vunpack.c.l.s4 1983009808
        %v3023 = vunpack.c.0.s8 %v3022
        %v3024 = vperm.slane %v3016, %v3023
        %v3025 = vrot.slane %v2954, 4
        %v3026 = vsel %vm899, %v3025, %v2942
        %v3027 = vrot.slane %v2942, 4
        %v3028 = vsel %vm899, %v2954, %v3027
        %v3030 = vunpack.c.l.s4 1983009808
        %v3031 = vunpack.c.0.s8 %v3030
        %v3032 = vperm.slane %v3026, %v3031
        %v3034 = vunpack.c.l.s4 1983009808
        %v3035 = vunpack.c.0.s8 %v3034
        %v3036 = vperm.slane %v3028, %v3035
        %v3037 = vrot.slane %v3032, 4
        %v3038 = vsel %vm899, %v3037, %v3020
        %v3039 = vrot.slane %v3020, 4
        %v3040 = vsel %vm899, %v3032, %v3039
        %v3042 = vunpack.c.l.s4 1934713408
        %v3043 = vunpack.c.0.s8 %v3042
        %v3044 = vperm.slane %v3038, %v3043
        %v3046 = vunpack.c.l.s4 1934713408
        %v3047 = vunpack.c.0.s8 %v3046
        %v3048 = vperm.slane %v3040, %v3047
        %v3049 = vrot.slane %v3036, 4
        %v3050 = vsel %vm899, %v3049, %v3024
        %v3051 = vrot.slane %v3024, 4
        %v3052 = vsel %vm899, %v3036, %v3051
        %v3054 = vunpack.c.l.s4 1934713408
        %v3055 = vunpack.c.0.s8 %v3054
        %v3056 = vperm.slane %v3050, %v3055
        %v3058 = vunpack.c.l.s4 1934713408
        %v3059 = vunpack.c.0.s8 %v3058
        %v3060 = vperm.slane %v3052, %v3059
        %v3061 = vrot.slane %v3044, 4
        %v3062 = vsel %vm899, 0.0, %v3061
        %v3063 = vrot.slane %v3048, 4
        %v3064 = vsel %vm899, 0.0, %v3063
        %v3065 = vrot.slane %v3056, 4
        %v3066 = vsel %vm899, 0.0, %v3065
        %v3067 = vrot.slane %v3060, 4
        %v3068 = vsel %vm899, 0.0, %v3067
        %v3069 = vpack.c.bf16 %v2988, %v2988
        %v3070 = vpack.c.bf16 %v3006, %v3006
        %v3071 = vpack.c.bf16 %v2992, %v2992
        %v3072 = vpack.c.bf16 %v3008, %v3008
        %v3073 = vpack.c.bf16 %v3000, %v3000
        %v3074 = vpack.c.bf16 %v3010, %v3010
        %v3075 = vpack.c.bf16 %v3004, %v3004
        %v3076 = vpack.c.bf16 %v3012, %v3012
        %v3077 = vpack.c.bf16 %v3044, %v3044
        %v3078 = vpack.c.bf16 %v3062, %v3062
        %v3079 = vpack.c.bf16 %v3048, %v3048
        %v3080 = vpack.c.bf16 %v3064, %v3064
        %v3081 = vpack.c.bf16 %v3056, %v3056
        %v3082 = vpack.c.bf16 %v3066, %v3066
        %v3083 = vpack.c.bf16 %v3060, %v3060
        %v3084 = vpack.c.bf16 %v3068, %v3068
        %v3085 = vrot.slane %v2785, 4
        %v3086 = vsel %vm1112, %v3085, %v2781
        %v3088 = vunpack.c.l.s4 1983009808
        %v3089 = vunpack.c.0.s8 %v3088
        %v3090 = vperm.slane %v3086, %v3089
        %v3091 = vrot.slane %v2787, 4
        %v3092 = vsel %vm1112, %v3091, %v2783
        %v3094 = vunpack.c.l.s4 1983009808
        %v3095 = vunpack.c.0.s8 %v3094
        %v3096 = vperm.slane %v3092, %v3095
        %v3097 = vrot.slane %v3096, 4
        %v3098 = vsel %vm1112, %v3097, %v3090
        %v3100 = vunpack.c.l.s4 1934713408
        %v3101 = vunpack.c.0.s8 %v3100
        %v3102 = vperm.slane %v3098, %v3101
        %v3103 = vrot.slane %v3102, 4
        %v3104 = vsel %vm1112, 0, %v3103
        %v3105 = vrot.slane %v2786, 4
        %v3106 = vsel %vm1112, %v3105, %v2782
        %v3108 = vunpack.c.l.s4 1983009808
        %v3109 = vunpack.c.0.s8 %v3108
        %v3110 = vperm.slane %v3106, %v3109
        %v3111 = vrot.slane %v2788, 4
        %v3112 = vsel %vm1112, %v3111, %v2784
        %v3114 = vunpack.c.l.s4 1983009808
        %v3115 = vunpack.c.0.s8 %v3114
        %v3116 = vperm.slane %v3112, %v3115
        %v3117 = vrot.slane %v3116, 4
        %v3118 = vsel %vm1112, %v3117, %v3110
        %v3120 = vunpack.c.l.s4 1934713408
        %v3121 = vunpack.c.0.s8 %v3120
        %v3122 = vperm.slane %v3118, %v3121
        %v3123 = vrot.slane %v3122, 4
        %v3124 = vsel %vm1112, 0, %v3123
        %v3127 = vpack.i.b16 %v3122, %v3102
        %v3128 = vshrl.u32 %v3102, 16
        %v3129 = vshrl.u32 %v3122, 16
        %v3130 = vpack.i.b16 %v3129, %v3128
        %v3133 = vpack.i.b16 %v3124, %v3104
        %v3134 = vshrl.u32 %v3104, 16
        %v3135 = vshrl.u32 %v3124, 16
        %v3136 = vpack.i.b16 %v3135, %v3134
        %3137 = vxpose.xlu0.c.b16.start [1/8] %v2921, 128
        %3138 = vxpose.xlu0.c.b16.cont [2/8] 0, 128
        %3139 = vxpose.xlu0.c.b16.cont [3/8] 0, 128
        %3140 = vxpose.xlu0.c.b16.cont [4/8] 0, 128
        %3141 = vxpose.xlu0.c.b16.cont [5/8] 0, 128
        %3142 = vxpose.xlu0.c.b16.cont [6/8] 0, 128
        %3143 = vxpose.xlu0.c.b16.cont [7/8] 0, 128
        %3144 = vxpose.xlu0.c.b16.end [8/8] 0, 128
        %v3145 = vpop.trf.xlu0
        %v3146 = vpop.trf.xlu0
        %v3147 = vpop.trf.xlu0
        %v3148 = vpop.trf.xlu0
        %v3149 = vpop.trf.xlu0
        %v3150 = vpop.trf.xlu0
        %v3151 = vpop.trf.xlu0
        %v3152 = vpop.trf.xlu0
        %3153 = vxpose.xlu0.c.b16.start [1/8] %v2922, 128
        %3154 = vxpose.xlu0.c.b16.cont [2/8] 0, 128
        %3155 = vxpose.xlu0.c.b16.cont [3/8] 0, 128
        %3156 = vxpose.xlu0.c.b16.cont [4/8] 0, 128
        %3157 = vxpose.xlu0.c.b16.cont [5/8] 0, 128
        %3158 = vxpose.xlu0.c.b16.cont [6/8] 0, 128
        %3159 = vxpose.xlu0.c.b16.cont [7/8] 0, 128
        %3160 = vxpose.xlu0.c.b16.end [8/8] 0, 128
        %v3161 = vpop.trf.xlu0
        %v3162 = vpop.trf.xlu0
        %v3163 = vpop.trf.xlu0
        %v3164 = vpop.trf.xlu0
        %v3165 = vpop.trf.xlu0
        %v3166 = vpop.trf.xlu0
        %v3167 = vpop.trf.xlu0
        %v3168 = vpop.trf.xlu0
        %3169 = vxpose.xlu0.c.b16.start [1/8] %v2923, 128
        %3170 = vxpose.xlu0.c.b16.cont [2/8] 0, 128
        %3171 = vxpose.xlu0.c.b16.cont [3/8] 0, 128
        %3172 = vxpose.xlu0.c.b16.cont [4/8] 0, 128
        %3173 = vxpose.xlu0.c.b16.cont [5/8] 0, 128
        %3174 = vxpose.xlu0.c.b16.cont [6/8] 0, 128
        %3175 = vxpose.xlu0.c.b16.cont [7/8] 0, 128
        %3176 = vxpose.xlu0.c.b16.end [8/8] 0, 128
        %v3177 = vpop.trf.xlu0
        %v3178 = vpop.trf.xlu0
        %v3179 = vpop.trf.xlu0
        %v3180 = vpop.trf.xlu0
        %v3181 = vpop.trf.xlu0
        %v3182 = vpop.trf.xlu0
        %v3183 = vpop.trf.xlu0
        %v3184 = vpop.trf.xlu0
        %3185 = vxpose.xlu0.c.b16.start [1/8] %v2924, 128
        %3186 = vxpose.xlu0.c.b16.cont [2/8] 0, 128
        %3187 = vxpose.xlu0.c.b16.cont [3/8] 0, 128
        %3188 = vxpose.xlu0.c.b16.cont [4/8] 0, 128
        %3189 = vxpose.xlu0.c.b16.cont [5/8] 0, 128
        %3190 = vxpose.xlu0.c.b16.cont [6/8] 0, 128
        %3191 = vxpose.xlu0.c.b16.cont [7/8] 0, 128
        %3192 = vxpose.xlu0.c.b16.end [8/8] 0, 128
        %v3193 = vpop.trf.xlu0
        %v3194 = vpop.trf.xlu0
        %v3195 = vpop.trf.xlu0
        %v3196 = vpop.trf.xlu0
        %v3197 = vpop.trf.xlu0
        %v3198 = vpop.trf.xlu0
        %v3199 = vpop.trf.xlu0
        %v3200 = vpop.trf.xlu0
        %3201 = vxpose.xlu0.c.b16.start [1/8] %v2925, 128
        %3202 = vxpose.xlu0.c.b16.cont [2/8] 0, 128
        %3203 = vxpose.xlu0.c.b16.cont [3/8] 0, 128
        %3204 = vxpose.xlu0.c.b16.cont [4/8] 0, 128
        %3205 = vxpose.xlu0.c.b16.cont [5/8] 0, 128
        %3206 = vxpose.xlu0.c.b16.cont [6/8] 0, 128
        %3207 = vxpose.xlu0.c.b16.cont [7/8] 0, 128
        %3208 = vxpose.xlu0.c.b16.end [8/8] 0, 128
        %v3209 = vpop.trf.xlu0
        %v3210 = vpop.trf.xlu0
        %v3211 = vpop.trf.xlu0
        %v3212 = vpop.trf.xlu0
        %v3213 = vpop.trf.xlu0
        %v3214 = vpop.trf.xlu0
        %v3215 = vpop.trf.xlu0
        %v3216 = vpop.trf.xlu0
        %3217 = vxpose.xlu0.c.b16.start [1/8] %v2926, 128
        %3218 = vxpose.xlu0.c.b16.cont [2/8] 0, 128
        %3219 = vxpose.xlu0.c.b16.cont [3/8] 0, 128
        %3220 = vxpose.xlu0.c.b16.cont [4/8] 0, 128
        %3221 = vxpose.xlu0.c.b16.cont [5/8] 0, 128
        %3222 = vxpose.xlu0.c.b16.cont [6/8] 0, 128
        %3223 = vxpose.xlu0.c.b16.cont [7/8] 0, 128
        %3224 = vxpose.xlu0.c.b16.end [8/8] 0, 128
        %v3225 = vpop.trf.xlu0
        %v3226 = vpop.trf.xlu0
        %v3227 = vpop.trf.xlu0
        %v3228 = vpop.trf.xlu0
        %v3229 = vpop.trf.xlu0
        %v3230 = vpop.trf.xlu0
        %v3231 = vpop.trf.xlu0
        %v3232 = vpop.trf.xlu0
        %3233 = vxpose.xlu0.c.b16.start [1/8] %v2927, 128
        %3234 = vxpose.xlu0.c.b16.cont [2/8] 0, 128
        %3235 = vxpose.xlu0.c.b16.cont [3/8] 0, 128
        %3236 = vxpose.xlu0.c.b16.cont [4/8] 0, 128
        %3237 = vxpose.xlu0.c.b16.cont [5/8] 0, 128
        %3238 = vxpose.xlu0.c.b16.cont [6/8] 0, 128
        %3239 = vxpose.xlu0.c.b16.cont [7/8] 0, 128
        %3240 = vxpose.xlu0.c.b16.end [8/8] 0, 128
        %v3241 = vpop.trf.xlu0
        %v3242 = vpop.trf.xlu0
        %v3243 = vpop.trf.xlu0
        %v3244 = vpop.trf.xlu0
        %v3245 = vpop.trf.xlu0
        %v3246 = vpop.trf.xlu0
        %v3247 = vpop.trf.xlu0
        %v3248 = vpop.trf.xlu0
        %3249 = vxpose.xlu0.c.b16.start [1/8] %v2928, 128
        %3250 = vxpose.xlu0.c.b16.cont [2/8] 0, 128
        %3251 = vxpose.xlu0.c.b16.cont [3/8] 0, 128
        %3252 = vxpose.xlu0.c.b16.cont [4/8] 0, 128
        %3253 = vxpose.xlu0.c.b16.cont [5/8] 0, 128
        %3254 = vxpose.xlu0.c.b16.cont [6/8] 0, 128
        %3255 = vxpose.xlu0.c.b16.cont [7/8] 0, 128
        %3256 = vxpose.xlu0.c.b16.end [8/8] 0, 128
        %v3257 = vpop.trf.xlu0
        %v3258 = vpop.trf.xlu0
        %v3259 = vpop.trf.xlu0
        %v3260 = vpop.trf.xlu0
        %v3261 = vpop.trf.xlu0
        %v3262 = vpop.trf.xlu0
        %v3263 = vpop.trf.xlu0
        %v3264 = vpop.trf.xlu0
        %3265 = vxpose.xlu0.c.b16.start [1/8] %v2929, 128
        %3266 = vxpose.xlu0.c.b16.cont [2/8] 0, 128
        %3267 = vxpose.xlu0.c.b16.cont [3/8] 0, 128
        %3268 = vxpose.xlu0.c.b16.cont [4/8] 0, 128
        %3269 = vxpose.xlu0.c.b16.cont [5/8] 0, 128
        %3270 = vxpose.xlu0.c.b16.cont [6/8] 0, 128
        %3271 = vxpose.xlu0.c.b16.cont [7/8] 0, 128
        %3272 = vxpose.xlu0.c.b16.end [8/8] 0, 128
        %v3273 = vpop.trf.xlu0
        %v3274 = vpop.trf.xlu0
        %v3275 = vpop.trf.xlu0
        %v3276 = vpop.trf.xlu0
        %v3277 = vpop.trf.xlu0
        %v3278 = vpop.trf.xlu0
        %v3279 = vpop.trf.xlu0
        %v3280 = vpop.trf.xlu0
        %3281 = vxpose.xlu0.c.b16.start [1/8] %v2930, 128
        %3282 = vxpose.xlu0.c.b16.cont [2/8] 0, 128
        %3283 = vxpose.xlu0.c.b16.cont [3/8] 0, 128
        %3284 = vxpose.xlu0.c.b16.cont [4/8] 0, 128
        %3285 = vxpose.xlu0.c.b16.cont [5/8] 0, 128
        %3286 = vxpose.xlu0.c.b16.cont [6/8] 0, 128
        %3287 = vxpose.xlu0.c.b16.cont [7/8] 0, 128
        %3288 = vxpose.xlu0.c.b16.end [8/8] 0, 128
        %v3289 = vpop.trf.xlu0
        %v3290 = vpop.trf.xlu0
        %v3291 = vpop.trf.xlu0
        %v3292 = vpop.trf.xlu0
        %v3293 = vpop.trf.xlu0
        %v3294 = vpop.trf.xlu0
        %v3295 = vpop.trf.xlu0
        %v3296 = vpop.trf.xlu0
        %3297 = vxpose.xlu0.c.b16.start [1/8] %v2931, 128
        %3298 = vxpose.xlu0.c.b16.cont [2/8] 0, 128
        %3299 = vxpose.xlu0.c.b16.cont [3/8] 0, 128
        %3300 = vxpose.xlu0.c.b16.cont [4/8] 0, 128
        %3301 = vxpose.xlu0.c.b16.cont [5/8] 0, 128
        %3302 = vxpose.xlu0.c.b16.cont [6/8] 0, 128
        %3303 = vxpose.xlu0.c.b16.cont [7/8] 0, 128
        %3304 = vxpose.xlu0.c.b16.end [8/8] 0, 128
        %v3305 = vpop.trf.xlu0
        %v3306 = vpop.trf.xlu0
        %v3307 = vpop.trf.xlu0
        %v3308 = vpop.trf.xlu0
        %v3309 = vpop.trf.xlu0
        %v3310 = vpop.trf.xlu0
        %v3311 = vpop.trf.xlu0
        %v3312 = vpop.trf.xlu0
        %3313 = vxpose.xlu0.c.b16.start [1/8] %v2932, 128
        %3314 = vxpose.xlu0.c.b16.cont [2/8] 0, 128
        %3315 = vxpose.xlu0.c.b16.cont [3/8] 0, 128
        %3316 = vxpose.xlu0.c.b16.cont [4/8] 0, 128
        %3317 = vxpose.xlu0.c.b16.cont [5/8] 0, 128
        %3318 = vxpose.xlu0.c.b16.cont [6/8] 0, 128
        %3319 = vxpose.xlu0.c.b16.cont [7/8] 0, 128
        %3320 = vxpose.xlu0.c.b16.end [8/8] 0, 128
        %v3321 = vpop.trf.xlu0
        %v3322 = vpop.trf.xlu0
        %v3323 = vpop.trf.xlu0
        %v3324 = vpop.trf.xlu0
        %v3325 = vpop.trf.xlu0
        %v3326 = vpop.trf.xlu0
        %v3327 = vpop.trf.xlu0
        %v3328 = vpop.trf.xlu0
        %3329 = vxpose.xlu0.c.b16.start [1/8] %v2933, 128
        %3330 = vxpose.xlu0.c.b16.cont [2/8] 0, 128
        %3331 = vxpose.xlu0.c.b16.cont [3/8] 0, 128
        %3332 = vxpose.xlu0.c.b16.cont [4/8] 0, 128
        %3333 = vxpose.xlu0.c.b16.cont [5/8] 0, 128
        %3334 = vxpose.xlu0.c.b16.cont [6/8] 0, 128
        %3335 = vxpose.xlu0.c.b16.cont [7/8] 0, 128
        %3336 = vxpose.xlu0.c.b16.end [8/8] 0, 128
        %v3337 = vpop.trf.xlu0
        %v3338 = vpop.trf.xlu0
        %v3339 = vpop.trf.xlu0
        %v3340 = vpop.trf.xlu0
        %v3341 = vpop.trf.xlu0
        %v3342 = vpop.trf.xlu0
        %v3343 = vpop.trf.xlu0
        %v3344 = vpop.trf.xlu0
        %3345 = vxpose.xlu0.c.b16.start [1/8] %v2934, 128
        %3346 = vxpose.xlu0.c.b16.cont [2/8] 0, 128
        %3347 = vxpose.xlu0.c.b16.cont [3/8] 0, 128
        %3348 = vxpose.xlu0.c.b16.cont [4/8] 0, 128
        %3349 = vxpose.xlu0.c.b16.cont [5/8] 0, 128
        %3350 = vxpose.xlu0.c.b16.cont [6/8] 0, 128
        %3351 = vxpose.xlu0.c.b16.cont [7/8] 0, 128
        %3352 = vxpose.xlu0.c.b16.end [8/8] 0, 128
        %v3353 = vpop.trf.xlu0
        %v3354 = vpop.trf.xlu0
        %v3355 = vpop.trf.xlu0
        %v3356 = vpop.trf.xlu0
        %v3357 = vpop.trf.xlu0
        %v3358 = vpop.trf.xlu0
        %v3359 = vpop.trf.xlu0
        %v3360 = vpop.trf.xlu0
        %3361 = vxpose.xlu0.c.b16.start [1/8] %v2935, 128
        %3362 = vxpose.xlu0.c.b16.cont [2/8] 0, 128
        %3363 = vxpose.xlu0.c.b16.cont [3/8] 0, 128
        %3364 = vxpose.xlu0.c.b16.cont [4/8] 0, 128
        %3365 = vxpose.xlu0.c.b16.cont [5/8] 0, 128
        %3366 = vxpose.xlu0.c.b16.cont [6/8] 0, 128
        %3367 = vxpose.xlu0.c.b16.cont [7/8] 0, 128
        %3368 = vxpose.xlu0.c.b16.end [8/8] 0, 128
        %v3369 = vpop.trf.xlu0
        %v3370 = vpop.trf.xlu0
        %v3371 = vpop.trf.xlu0
        %v3372 = vpop.trf.xlu0
        %v3373 = vpop.trf.xlu0
        %v3374 = vpop.trf.xlu0
        %v3375 = vpop.trf.xlu0
        %v3376 = vpop.trf.xlu0
        %3377 = vxpose.xlu0.c.b16.start [1/8] %v2936, 128
        %3378 = vxpose.xlu0.c.b16.cont [2/8] 0, 128
        %3379 = vxpose.xlu0.c.b16.cont [3/8] 0, 128
        %3380 = vxpose.xlu0.c.b16.cont [4/8] 0, 128
        %3381 = vxpose.xlu0.c.b16.cont [5/8] 0, 128
        %3382 = vxpose.xlu0.c.b16.cont [6/8] 0, 128
        %3383 = vxpose.xlu0.c.b16.cont [7/8] 0, 128
        %3384 = vxpose.xlu0.c.b16.end [8/8] 0, 128
        %v3385 = vpop.trf.xlu0
        %v3386 = vpop.trf.xlu0
        %v3387 = vpop.trf.xlu0
        %v3388 = vpop.trf.xlu0
        %v3389 = vpop.trf.xlu0
        %v3390 = vpop.trf.xlu0
        %v3391 = vpop.trf.xlu0
        %v3392 = vpop.trf.xlu0
        %v3393 = vrot.slane %v3209, 4
        %v3394 = vsel %vm1112, %v3393, %v3145
        %v3396 = vunpack.c.l.s4 1983009808
        %v3397 = vunpack.c.0.s8 %v3396
        %v3398 = vperm.slane %v3394, %v3397
        %v3399 = vrot.slane %v3241, 4
        %v3400 = vsel %vm1112, %v3399, %v3177
        %v3402 = vunpack.c.l.s4 1983009808
        %v3403 = vunpack.c.0.s8 %v3402
        %v3404 = vperm.slane %v3400, %v3403
        %v3405 = vrot.slane %v3337, 4
        %v3406 = vsel %vm1112, %v3405, %v3273
        %v3408 = vunpack.c.l.s4 1983009808
        %v3409 = vunpack.c.0.s8 %v3408
        %v3410 = vperm.slane %v3406, %v3409
        %v3411 = vrot.slane %v3369, 4
        %v3412 = vsel %vm1112, %v3411, %v3305
        %v3414 = vunpack.c.l.s4 1983009808
        %v3415 = vunpack.c.0.s8 %v3414
        %v3416 = vperm.slane %v3412, %v3415
        %v3417 = vrot.slane %v3404, 4
        %v3418 = vsel %vm1112, %v3417, %v3398
        %v3419 = vrot.slane %v3398, 4
        %v3420 = vsel %vm1112, %v3404, %v3419
        %v3422 = vunpack.c.l.s4 1934713408
        %v3423 = vunpack.c.0.s8 %v3422
        %v3424 = vperm.slane %v3418, %v3423
        %v3426 = vunpack.c.l.s4 1934713408
        %v3427 = vunpack.c.0.s8 %v3426
        %v3428 = vperm.slane %v3420, %v3427
        %v3429 = vrot.slane %v3416, 4
        %v3430 = vsel %vm1112, %v3429, %v3410
        %v3431 = vrot.slane %v3410, 4
        %v3432 = vsel %vm1112, %v3416, %v3431
        %v3434 = vunpack.c.l.s4 1934713408
        %v3435 = vunpack.c.0.s8 %v3434
        %v3436 = vperm.slane %v3430, %v3435
        %v3438 = vunpack.c.l.s4 1934713408
        %v3439 = vunpack.c.0.s8 %v3438
        %v3440 = vperm.slane %v3432, %v3439
        %v3441 = vrot.slane %v3436, 4
        %v3442 = vsel %vm1112, %v3441, %v3424
        %v3443 = vrot.slane %v3424, 4
        %v3444 = vsel %vm1112, %v3436, %v3443
        %v3445 = vrot.slane %v3440, 4
        %v3446 = vsel %vm1112, %v3445, %v3428
        %v3447 = vrot.slane %v3428, 4
        %v3448 = vsel %vm1112, %v3440, %v3447
        %v3449 = vrot.slane %v3225, 4
        %v3450 = vsel %vm1112, %v3449, %v3161
        %v3452 = vunpack.c.l.s4 1983009808
        %v3453 = vunpack.c.0.s8 %v3452
        %v3454 = vperm.slane %v3450, %v3453
        %v3455 = vrot.slane %v3257, 4
        %v3456 = vsel %vm1112, %v3455, %v3193
        %v3458 = vunpack.c.l.s4 1983009808
        %v3459 = vunpack.c.0.s8 %v3458
        %v3460 = vperm.slane %v3456, %v3459
        %v3461 = vrot.slane %v3353, 4
        %v3462 = vsel %vm1112, %v3461, %v3289
        %v3464 = vunpack.c.l.s4 1983009808
        %v3465 = vunpack.c.0.s8 %v3464
        %v3466 = vperm.slane %v3462, %v3465
        %v3467 = vrot.slane %v3385, 4
        %v3468 = vsel %vm1112, %v3467, %v3321
        %v3470 = vunpack.c.l.s4 1983009808
        %v3471 = vunpack.c.0.s8 %v3470
        %v3472 = vperm.slane %v3468, %v3471
        %v3473 = vrot.slane %v3460, 4
        %v3474 = vsel %vm1112, %v3473, %v3454
        %v3475 = vrot.slane %v3454, 4
        %v3476 = vsel %vm1112, %v3460, %v3475
        %v3478 = vunpack.c.l.s4 1934713408
        %v3479 = vunpack.c.0.s8 %v3478
        %v3480 = vperm.slane %v3474, %v3479
        %v3482 = vunpack.c.l.s4 1934713408
        %v3483 = vunpack.c.0.s8 %v3482
        %v3484 = vperm.slane %v3476, %v3483
        %v3485 = vrot.slane %v3472, 4
        %v3486 = vsel %vm1112, %v3485, %v3466
        %v3487 = vrot.slane %v3466, 4
        %v3488 = vsel %vm1112, %v3472, %v3487
        %v3490 = vunpack.c.l.s4 1934713408
        %v3491 = vunpack.c.0.s8 %v3490
        %v3492 = vperm.slane %v3486, %v3491
        %v3494 = vunpack.c.l.s4 1934713408
        %v3495 = vunpack.c.0.s8 %v3494
        %v3496 = vperm.slane %v3488, %v3495
        %v3497 = vrot.slane %v3492, 4
        %v3498 = vsel %vm1112, %v3497, %v3480
        %v3499 = vrot.slane %v3480, 4
        %v3500 = vsel %vm1112, %v3492, %v3499
        %v3501 = vrot.slane %v3496, 4
        %v3502 = vsel %vm1112, %v3501, %v3484
        %v3503 = vrot.slane %v3484, 4
        %v3504 = vsel %vm1112, %v3496, %v3503
        %v3507 = vpack.i.b16 %v3498, %v3442
        %v3509 = vshrl.u32 %v3442, 16
        %v3510 = vshrl.u32 %v3498, 16
        %v3511 = vpack.i.b16 %v3510, %v3509
        %v3515 = vpack.i.b16 %v3500, %v3444
        %v3517 = vshrl.u32 %v3444, 16
        %v3518 = vshrl.u32 %v3500, 16
        %v3519 = vpack.i.b16 %v3518, %v3517
        %v3523 = vpack.i.b16 %v3502, %v3446
        %v3525 = vshrl.u32 %v3446, 16
        %v3526 = vshrl.u32 %v3502, 16
        %v3527 = vpack.i.b16 %v3526, %v3525
        %v3531 = vpack.i.b16 %v3504, %v3448
        %v3533 = vshrl.u32 %v3448, 16
        %v3534 = vshrl.u32 %v3504, 16
        %v3535 = vpack.i.b16 %v3534, %v3533
        %3537 = vxpose.xlu0.c.b16.start [1/8] %v3507, 128
        %3538 = vxpose.xlu0.c.b16.cont [2/8] 0, 128
        %3539 = vxpose.xlu0.c.b16.cont [3/8] 0, 128
        %3540 = vxpose.xlu0.c.b16.cont [4/8] 0, 128
        %3541 = vxpose.xlu0.c.b16.cont [5/8] 0, 128
        %3542 = vxpose.xlu0.c.b16.cont [6/8] 0, 128
        %3543 = vxpose.xlu0.c.b16.cont [7/8] 0, 128
        %3544 = vxpose.xlu0.c.b16.end [8/8] 0, 128
        %v3545 = vpop.trf.xlu0
        %v3546 = vpop.trf.xlu0
        %v3547 = vpop.trf.xlu0
        %v3548 = vpop.trf.xlu0
        %v3549 = vpop.trf.xlu0
        %v3550 = vpop.trf.xlu0
        %v3551 = vpop.trf.xlu0
        %v3552 = vpop.trf.xlu0
        %3553 = vxpose.xlu0.c.b16.start [1/8] %v3511, 128
        %3554 = vxpose.xlu0.c.b16.cont [2/8] 0, 128
        %3555 = vxpose.xlu0.c.b16.cont [3/8] 0, 128
        %3556 = vxpose.xlu0.c.b16.cont [4/8] 0, 128
        %3557 = vxpose.xlu0.c.b16.cont [5/8] 0, 128
        %3558 = vxpose.xlu0.c.b16.cont [6/8] 0, 128
        %3559 = vxpose.xlu0.c.b16.cont [7/8] 0, 128
        %3560 = vxpose.xlu0.c.b16.end [8/8] 0, 128
        %v3561 = vpop.trf.xlu0
        %v3562 = vpop.trf.xlu0
        %v3563 = vpop.trf.xlu0
        %v3564 = vpop.trf.xlu0
        %v3565 = vpop.trf.xlu0
        %v3566 = vpop.trf.xlu0
        %v3567 = vpop.trf.xlu0
        %v3568 = vpop.trf.xlu0
        %3569 = vxpose.xlu0.c.b16.start [1/8] %v3515, 128
        %3570 = vxpose.xlu0.c.b16.cont [2/8] 0, 128
        %3571 = vxpose.xlu0.c.b16.cont [3/8] 0, 128
        %3572 = vxpose.xlu0.c.b16.cont [4/8] 0, 128
        %3573 = vxpose.xlu0.c.b16.cont [5/8] 0, 128
        %3574 = vxpose.xlu0.c.b16.cont [6/8] 0, 128
        %3575 = vxpose.xlu0.c.b16.cont [7/8] 0, 128
        %3576 = vxpose.xlu0.c.b16.end [8/8] 0, 128
        %v3577 = vpop.trf.xlu0
        %v3578 = vpop.trf.xlu0
        %v3579 = vpop.trf.xlu0
        %v3580 = vpop.trf.xlu0
        %v3581 = vpop.trf.xlu0
        %v3582 = vpop.trf.xlu0
        %v3583 = vpop.trf.xlu0
        %v3584 = vpop.trf.xlu0
        %3585 = vxpose.xlu0.c.b16.start [1/8] %v3519, 128
        %3586 = vxpose.xlu0.c.b16.cont [2/8] 0, 128
        %3587 = vxpose.xlu0.c.b16.cont [3/8] 0, 128
        %3588 = vxpose.xlu0.c.b16.cont [4/8] 0, 128
        %3589 = vxpose.xlu0.c.b16.cont [5/8] 0, 128
        %3590 = vxpose.xlu0.c.b16.cont [6/8] 0, 128
        %3591 = vxpose.xlu0.c.b16.cont [7/8] 0, 128
        %3592 = vxpose.xlu0.c.b16.end [8/8] 0, 128
        %v3593 = vpop.trf.xlu0
        %v3594 = vpop.trf.xlu0
        %v3595 = vpop.trf.xlu0
        %v3596 = vpop.trf.xlu0
        %v3597 = vpop.trf.xlu0
        %v3598 = vpop.trf.xlu0
        %v3599 = vpop.trf.xlu0
        %v3600 = vpop.trf.xlu0
        %3601 = vxpose.xlu0.c.b16.start [1/8] %v3523, 128
        %3602 = vxpose.xlu0.c.b16.cont [2/8] 0, 128
        %3603 = vxpose.xlu0.c.b16.cont [3/8] 0, 128
        %3604 = vxpose.xlu0.c.b16.cont [4/8] 0, 128
        %3605 = vxpose.xlu0.c.b16.cont [5/8] 0, 128
        %3606 = vxpose.xlu0.c.b16.cont [6/8] 0, 128
        %3607 = vxpose.xlu0.c.b16.cont [7/8] 0, 128
        %3608 = vxpose.xlu0.c.b16.end [8/8] 0, 128
        %v3609 = vpop.trf.xlu0
        %v3610 = vpop.trf.xlu0
        %v3611 = vpop.trf.xlu0
        %v3612 = vpop.trf.xlu0
        %v3613 = vpop.trf.xlu0
        %v3614 = vpop.trf.xlu0
        %v3615 = vpop.trf.xlu0
        %v3616 = vpop.trf.xlu0
        %3617 = vxpose.xlu0.c.b16.start [1/8] %v3527, 128
        %3618 = vxpose.xlu0.c.b16.cont [2/8] 0, 128
        %3619 = vxpose.xlu0.c.b16.cont [3/8] 0, 128
        %3620 = vxpose.xlu0.c.b16.cont [4/8] 0, 128
        %3621 = vxpose.xlu0.c.b16.cont [5/8] 0, 128
        %3622 = vxpose.xlu0.c.b16.cont [6/8] 0, 128
        %3623 = vxpose.xlu0.c.b16.cont [7/8] 0, 128
        %3624 = vxpose.xlu0.c.b16.end [8/8] 0, 128
        %v3625 = vpop.trf.xlu0
        %v3626 = vpop.trf.xlu0
        %v3627 = vpop.trf.xlu0
        %v3628 = vpop.trf.xlu0
        %v3629 = vpop.trf.xlu0
        %v3630 = vpop.trf.xlu0
        %v3631 = vpop.trf.xlu0
        %v3632 = vpop.trf.xlu0
        %3633 = vxpose.xlu0.c.b16.start [1/8] %v3531, 128
        %3634 = vxpose.xlu0.c.b16.cont [2/8] 0, 128
        %3635 = vxpose.xlu0.c.b16.cont [3/8] 0, 128
        %3636 = vxpose.xlu0.c.b16.cont [4/8] 0, 128
        %3637 = vxpose.xlu0.c.b16.cont [5/8] 0, 128
        %3638 = vxpose.xlu0.c.b16.cont [6/8] 0, 128
        %3639 = vxpose.xlu0.c.b16.cont [7/8] 0, 128
        %3640 = vxpose.xlu0.c.b16.end [8/8] 0, 128
        %v3641 = vpop.trf.xlu0
        %v3642 = vpop.trf.xlu0
        %v3643 = vpop.trf.xlu0
        %v3644 = vpop.trf.xlu0
        %v3645 = vpop.trf.xlu0
        %v3646 = vpop.trf.xlu0
        %v3647 = vpop.trf.xlu0
        %v3648 = vpop.trf.xlu0
        %3649 = vxpose.xlu0.c.b16.start [1/8] %v3535, 128
        %3650 = vxpose.xlu0.c.b16.cont [2/8] 0, 128
        %3651 = vxpose.xlu0.c.b16.cont [3/8] 0, 128
        %3652 = vxpose.xlu0.c.b16.cont [4/8] 0, 128
        %3653 = vxpose.xlu0.c.b16.cont [5/8] 0, 128
        %3654 = vxpose.xlu0.c.b16.cont [6/8] 0, 128
        %3655 = vxpose.xlu0.c.b16.cont [7/8] 0, 128
        %3656 = vxpose.xlu0.c.b16.end [8/8] 0, 128
        %v3657 = vpop.trf.xlu0
        %v3658 = vpop.trf.xlu0
        %v3659 = vpop.trf.xlu0
        %v3660 = vpop.trf.xlu0
        %v3661 = vpop.trf.xlu0
        %v3662 = vpop.trf.xlu0
        %v3663 = vpop.trf.xlu0
        %v3664 = vpop.trf.xlu0
        %v3665 = vrot.slane %v3609, 4
        %v3666 = vsel %vm1112, %v3665, %v3545
        %v3668 = vunpack.c.l.s4 1983009808
        %v3669 = vunpack.c.0.s8 %v3668
        %v3670 = vperm.slane %v3666, %v3669
        %v3671 = vrot.slane %v3641, 4
        %v3672 = vsel %vm1112, %v3671, %v3577
        %v3674 = vunpack.c.l.s4 1983009808
        %v3675 = vunpack.c.0.s8 %v3674
        %v3676 = vperm.slane %v3672, %v3675
        %v3677 = vrot.slane %v3676, 4
        %v3678 = vsel %vm1112, %v3677, %v3670
        %v3680 = vunpack.c.l.s4 1934713408
        %v3681 = vunpack.c.0.s8 %v3680
        %v3682 = vperm.slane %v3678, %v3681
        %v3683 = vrot.slane %v3682, 4
        %v3684 = vsel %vm1112, 0, %v3683
        %v3685 = vrot.slane %v3625, 4
        %v3686 = vsel %vm1112, %v3685, %v3561
        %v3688 = vunpack.c.l.s4 1983009808
        %v3689 = vunpack.c.0.s8 %v3688
        %v3690 = vperm.slane %v3686, %v3689
        %v3691 = vrot.slane %v3657, 4
        %v3692 = vsel %vm1112, %v3691, %v3593
        %v3694 = vunpack.c.l.s4 1983009808
        %v3695 = vunpack.c.0.s8 %v3694
        %v3696 = vperm.slane %v3692, %v3695
        %v3697 = vrot.slane %v3696, 4
        %v3698 = vsel %vm1112, %v3697, %v3690
        %v3700 = vunpack.c.l.s4 1934713408
        %v3701 = vunpack.c.0.s8 %v3700
        %v3702 = vperm.slane %v3698, %v3701
        %v3703 = vrot.slane %v3702, 4
        %v3704 = vsel %vm1112, 0, %v3703
        %v3707 = vpack.i.b16 %v3702, %v3682
        %v3708 = vshrl.u32 %v3682, 16
        %v3709 = vshrl.u32 %v3702, 16
        %v3710 = vpack.i.b16 %v3709, %v3708
        %v3713 = vpack.i.b16 %v3704, %v3684
        %v3714 = vshrl.u32 %v3684, 16
        %v3715 = vshrl.u32 %v3704, 16
        %v3716 = vpack.i.b16 %v3715, %v3714
        %v3718 = vsel %vm1560, %v3127, 0
        %v3721 = vsel %vm1564, %v3707, 0
        %3723 = vmatpush.bf16.msra.mxu0 0
        %3724 = vmatpush.bf16.msra.mxu0 0
        %3725 = vmatpush.bf16.msra.mxu0 0
        %3726 = vmatpush.bf16.msra.mxu0 0
        %3727 = vmatpush.bf16.msra.mxu0 0
        %3728 = vmatpush.bf16.msra.mxu0 0
        %3729 = vmatpush.bf16.msra.mxu0 0
        %3730 = vmatpush.bf16.msra.mxu0 %v3721
        %3731 = vmatmul.bf16.gmra.mxu0 %v3718
        %v3732 = vpop.f32.mrf.mxu0
        %v3733 = vadd.f32 0.0, %v3732
        %v3734 = vpop.f32.mrf.mxu0
        %3735 = vdwg.mxu0
        %v3737 = vsel %vm1560, %v3130, 0
        %v3740 = vsel %vm1564, %v3710, 0
        %3742 = vmatpush.bf16.msra.mxu0 0
        %3743 = vmatpush.bf16.msra.mxu0 0
        %3744 = vmatpush.bf16.msra.mxu0 0
        %3745 = vmatpush.bf16.msra.mxu0 0
        %3746 = vmatpush.bf16.msra.mxu0 0
        %3747 = vmatpush.bf16.msra.mxu0 0
        %3748 = vmatpush.bf16.msra.mxu0 0
        %3749 = vmatpush.bf16.msra.mxu0 %v3740
        %3750 = vmatmul.bf16.gmra.mxu0 %v3737
        %v3751 = vpop.f32.mrf.mxu0
        %v3752 = vadd.f32 0.0, %v3751
        %v3753 = vpop.f32.mrf.mxu0
        %3754 = vdwg.mxu0
        %v3756 = vsel %vm1560, %v3133, 0
        %v3759 = vsel %vm1564, %v3713, 0
        %3761 = vmatpush.bf16.msra.mxu0 0
        %3762 = vmatpush.bf16.msra.mxu0 0
        %3763 = vmatpush.bf16.msra.mxu0 0
        %3764 = vmatpush.bf16.msra.mxu0 0
        %3765 = vmatpush.bf16.msra.mxu0 0
        %3766 = vmatpush.bf16.msra.mxu0 0
        %3767 = vmatpush.bf16.msra.mxu0 0
        %3768 = vmatpush.bf16.msra.mxu0 %v3759
        %3769 = vmatmul.bf16.gmra.mxu0 %v3756
        %v3770 = vpop.f32.mrf.mxu0
        %v3771 = vadd.f32 0.0, %v3770
        %v3772 = vpop.f32.mrf.mxu0
        %3773 = vdwg.mxu0
        %v3775 = vsel %vm1560, %v3136, 0
        %v3778 = vsel %vm1564, %v3716, 0
        %3780 = vmatpush.bf16.msra.mxu0 0
        %3781 = vmatpush.bf16.msra.mxu0 0
        %3782 = vmatpush.bf16.msra.mxu0 0
        %3783 = vmatpush.bf16.msra.mxu0 0
        %3784 = vmatpush.bf16.msra.mxu0 0
        %3785 = vmatpush.bf16.msra.mxu0 0
        %3786 = vmatpush.bf16.msra.mxu0 0
        %3787 = vmatpush.bf16.msra.mxu0 %v3778
        %3788 = vmatmul.bf16.gmra.mxu0 %v3775
        %v3789 = vpop.f32.mrf.mxu0
        %v3790 = vadd.f32 0.0, %v3789
        %v3791 = vpop.f32.mrf.mxu0
        %3792 = vdwg.mxu0
        %v3793 = vsel %vm2520, %v3733, -inf
        %3794 = vmax.xlane.f32.xlu0 %v3793
        %v3795 = vpop.xlane.xlu0 %3794
        %v3796 = vsel %vm2520, %v3752, -inf
        %3797 = vmax.xlane.f32.xlu0 %v3796
        %v3798 = vpop.xlane.xlu0 %3797
        %v3799 = vsel %vm2520, %v3771, -inf
        %3800 = vmax.xlane.f32.xlu0 %v3799
        %v3801 = vpop.xlane.xlu0 %3800
        %v3802 = vsel %vm2520, %v3790, -inf
        %3803 = vmax.xlane.f32.xlu0 %v3802
        %v3804 = vpop.xlane.xlu0 %3803
        %v3805 = vsub.f32 %v3733, %v3795
        %v3806 = vsub.f32 %v3752, %v3798
        %v3807 = vsub.f32 %v3771, %v3801
        %v3808 = vsub.f32 %v3790, %v3804
        %v3809 = vmul.f32 %v3805, 1.442695
        %v3810 = vpow.pop %v3809
        %v3811 = vmul.f32 %v3806, 1.442695
        %v3812 = vpow.pop %v3811
        %v3813 = vmul.f32 %v3807, 1.442695
        %v3814 = vpow.pop %v3813
        %v3815 = vmul.f32 %v3808, 1.442695
        %v3816 = vpow.pop %v3815
        %v3817 = vsel %vm2520, %v3810, 0.0
        %3818 = vadd.xlane.f32.xlu0 %v3817
        %v3819 = vpop.xlane.xlu0 %3818
        %v3820 = vsel %vm2520, %v3812, 0.0
        %3821 = vadd.xlane.f32.xlu0 %v3820
        %v3822 = vpop.xlane.xlu0 %3821
        %v3823 = vsel %vm2520, %v3814, 0.0
        %3824 = vadd.xlane.f32.xlu0 %v3823
        %v3825 = vpop.xlane.xlu0 %3824
        %v3826 = vsel %vm2520, %v3816, 0.0
        %3827 = vadd.xlane.f32.xlu0 %v3826
        %v3828 = vpop.xlane.xlu0 %3827
        %v3829 = vrcp.pop %v3819
        %v3830 = vrcp.pop %v3822
        %v3831 = vrcp.pop %v3825
        %v3832 = vrcp.pop %v3828
        %v3833 = vpack.c.bf16 %v3810, %v3810
        %v3834 = vpack.c.bf16 %v3812, %v3812
        %v3835 = vpack.c.bf16 %v3814, %v3814
        %v3836 = vpack.c.bf16 %v3816, %v3816
        %3837 = vxpose.xlu0.c.b16.start [1/8] %v3069, 128
        %3838 = vxpose.xlu0.c.b16.cont [2/8] 0, 128
        %3839 = vxpose.xlu0.c.b16.cont [3/8] 0, 128
        %3840 = vxpose.xlu0.c.b16.cont [4/8] 0, 128
        %3841 = vxpose.xlu0.c.b16.cont [5/8] 0, 128
        %3842 = vxpose.xlu0.c.b16.cont [6/8] 0, 128
        %3843 = vxpose.xlu0.c.b16.cont [7/8] 0, 128
        %3844 = vxpose.xlu0.c.b16.end [8/8] 0, 128
        %v3845 = vpop.trf.xlu0
        %v3846 = vpop.trf.xlu0
        %v3847 = vpop.trf.xlu0
        %v3848 = vpop.trf.xlu0
        %v3849 = vpop.trf.xlu0
        %v3850 = vpop.trf.xlu0
        %v3851 = vpop.trf.xlu0
        %v3852 = vpop.trf.xlu0
        %3853 = vxpose.xlu0.c.b16.start [1/8] %v3070, 128
        %3854 = vxpose.xlu0.c.b16.cont [2/8] 0, 128
        %3855 = vxpose.xlu0.c.b16.cont [3/8] 0, 128
        %3856 = vxpose.xlu0.c.b16.cont [4/8] 0, 128
        %3857 = vxpose.xlu0.c.b16.cont [5/8] 0, 128
        %3858 = vxpose.xlu0.c.b16.cont [6/8] 0, 128
        %3859 = vxpose.xlu0.c.b16.cont [7/8] 0, 128
        %3860 = vxpose.xlu0.c.b16.end [8/8] 0, 128
        %v3861 = vpop.trf.xlu0
        %v3862 = vpop.trf.xlu0
        %v3863 = vpop.trf.xlu0
        %v3864 = vpop.trf.xlu0
        %v3865 = vpop.trf.xlu0
        %v3866 = vpop.trf.xlu0
        %v3867 = vpop.trf.xlu0
        %v3868 = vpop.trf.xlu0
        %3869 = vxpose.xlu0.c.b16.start [1/8] %v3071, 128
        %3870 = vxpose.xlu0.c.b16.cont [2/8] 0, 128
        %3871 = vxpose.xlu0.c.b16.cont [3/8] 0, 128
        %3872 = vxpose.xlu0.c.b16.cont [4/8] 0, 128
        %3873 = vxpose.xlu0.c.b16.cont [5/8] 0, 128
        %3874 = vxpose.xlu0.c.b16.cont [6/8] 0, 128
        %3875 = vxpose.xlu0.c.b16.cont [7/8] 0, 128
        %3876 = vxpose.xlu0.c.b16.end [8/8] 0, 128
        %v3877 = vpop.trf.xlu0
        %v3878 = vpop.trf.xlu0
        %v3879 = vpop.trf.xlu0
        %v3880 = vpop.trf.xlu0
        %v3881 = vpop.trf.xlu0
        %v3882 = vpop.trf.xlu0
        %v3883 = vpop.trf.xlu0
        %v3884 = vpop.trf.xlu0
        %3885 = vxpose.xlu0.c.b16.start [1/8] %v3072, 128
        %3886 = vxpose.xlu0.c.b16.cont [2/8] 0, 128
        %3887 = vxpose.xlu0.c.b16.cont [3/8] 0, 128
        %3888 = vxpose.xlu0.c.b16.cont [4/8] 0, 128
        %3889 = vxpose.xlu0.c.b16.cont [5/8] 0, 128
        %3890 = vxpose.xlu0.c.b16.cont [6/8] 0, 128
        %3891 = vxpose.xlu0.c.b16.cont [7/8] 0, 128
        %3892 = vxpose.xlu0.c.b16.end [8/8] 0, 128
        %v3893 = vpop.trf.xlu0
        %v3894 = vpop.trf.xlu0
        %v3895 = vpop.trf.xlu0
        %v3896 = vpop.trf.xlu0
        %v3897 = vpop.trf.xlu0
        %v3898 = vpop.trf.xlu0
        %v3899 = vpop.trf.xlu0
        %v3900 = vpop.trf.xlu0
        %3901 = vxpose.xlu0.c.b16.start [1/8] %v3073, 128
        %3902 = vxpose.xlu0.c.b16.cont [2/8] 0, 128
        %3903 = vxpose.xlu0.c.b16.cont [3/8] 0, 128
        %3904 = vxpose.xlu0.c.b16.cont [4/8] 0, 128
        %3905 = vxpose.xlu0.c.b16.cont [5/8] 0, 128
        %3906 = vxpose.xlu0.c.b16.cont [6/8] 0, 128
        %3907 = vxpose.xlu0.c.b16.cont [7/8] 0, 128
        %3908 = vxpose.xlu0.c.b16.end [8/8] 0, 128
        %v3909 = vpop.trf.xlu0
        %v3910 = vpop.trf.xlu0
        %v3911 = vpop.trf.xlu0
        %v3912 = vpop.trf.xlu0
        %v3913 = vpop.trf.xlu0
        %v3914 = vpop.trf.xlu0
        %v3915 = vpop.trf.xlu0
        %v3916 = vpop.trf.xlu0
        %3917 = vxpose.xlu0.c.b16.start [1/8] %v3074, 128
        %3918 = vxpose.xlu0.c.b16.cont [2/8] 0, 128
        %3919 = vxpose.xlu0.c.b16.cont [3/8] 0, 128
        %3920 = vxpose.xlu0.c.b16.cont [4/8] 0, 128
        %3921 = vxpose.xlu0.c.b16.cont [5/8] 0, 128
        %3922 = vxpose.xlu0.c.b16.cont [6/8] 0, 128
        %3923 = vxpose.xlu0.c.b16.cont [7/8] 0, 128
        %3924 = vxpose.xlu0.c.b16.end [8/8] 0, 128
        %v3925 = vpop.trf.xlu0
        %v3926 = vpop.trf.xlu0
        %v3927 = vpop.trf.xlu0
        %v3928 = vpop.trf.xlu0
        %v3929 = vpop.trf.xlu0
        %v3930 = vpop.trf.xlu0
        %v3931 = vpop.trf.xlu0
        %v3932 = vpop.trf.xlu0
        %3933 = vxpose.xlu0.c.b16.start [1/8] %v3075, 128
        %3934 = vxpose.xlu0.c.b16.cont [2/8] 0, 128
        %3935 = vxpose.xlu0.c.b16.cont [3/8] 0, 128
        %3936 = vxpose.xlu0.c.b16.cont [4/8] 0, 128
        %3937 = vxpose.xlu0.c.b16.cont [5/8] 0, 128
        %3938 = vxpose.xlu0.c.b16.cont [6/8] 0, 128
        %3939 = vxpose.xlu0.c.b16.cont [7/8] 0, 128
        %3940 = vxpose.xlu0.c.b16.end [8/8] 0, 128
        %v3941 = vpop.trf.xlu0
        %v3942 = vpop.trf.xlu0
        %v3943 = vpop.trf.xlu0
        %v3944 = vpop.trf.xlu0
        %v3945 = vpop.trf.xlu0
        %v3946 = vpop.trf.xlu0
        %v3947 = vpop.trf.xlu0
        %v3948 = vpop.trf.xlu0
        %3949 = vxpose.xlu0.c.b16.start [1/8] %v3076, 128
        %3950 = vxpose.xlu0.c.b16.cont [2/8] 0, 128
        %3951 = vxpose.xlu0.c.b16.cont [3/8] 0, 128
        %3952 = vxpose.xlu0.c.b16.cont [4/8] 0, 128
        %3953 = vxpose.xlu0.c.b16.cont [5/8] 0, 128
        %3954 = vxpose.xlu0.c.b16.cont [6/8] 0, 128
        %3955 = vxpose.xlu0.c.b16.cont [7/8] 0, 128
        %3956 = vxpose.xlu0.c.b16.end [8/8] 0, 128
        %v3957 = vpop.trf.xlu0
        %v3958 = vpop.trf.xlu0
        %v3959 = vpop.trf.xlu0
        %v3960 = vpop.trf.xlu0
        %v3961 = vpop.trf.xlu0
        %v3962 = vpop.trf.xlu0
        %v3963 = vpop.trf.xlu0
        %v3964 = vpop.trf.xlu0
        %3965 = vxpose.xlu0.c.b16.start [1/8] %v3077, 128
        %3966 = vxpose.xlu0.c.b16.cont [2/8] 0, 128
        %3967 = vxpose.xlu0.c.b16.cont [3/8] 0, 128
        %3968 = vxpose.xlu0.c.b16.cont [4/8] 0, 128
        %3969 = vxpose.xlu0.c.b16.cont [5/8] 0, 128
        %3970 = vxpose.xlu0.c.b16.cont [6/8] 0, 128
        %3971 = vxpose.xlu0.c.b16.cont [7/8] 0, 128
        %3972 = vxpose.xlu0.c.b16.end [8/8] 0, 128
        %v3973 = vpop.trf.xlu0
        %v3974 = vpop.trf.xlu0
        %v3975 = vpop.trf.xlu0
        %v3976 = vpop.trf.xlu0
        %v3977 = vpop.trf.xlu0
        %v3978 = vpop.trf.xlu0
        %v3979 = vpop.trf.xlu0
        %v3980 = vpop.trf.xlu0
        %3981 = vxpose.xlu0.c.b16.start [1/8] %v3078, 128
        %3982 = vxpose.xlu0.c.b16.cont [2/8] 0, 128
        %3983 = vxpose.xlu0.c.b16.cont [3/8] 0, 128
        %3984 = vxpose.xlu0.c.b16.cont [4/8] 0, 128
        %3985 = vxpose.xlu0.c.b16.cont [5/8] 0, 128
        %3986 = vxpose.xlu0.c.b16.cont [6/8] 0, 128
        %3987 = vxpose.xlu0.c.b16.cont [7/8] 0, 128
        %3988 = vxpose.xlu0.c.b16.end [8/8] 0, 128
        %v3989 = vpop.trf.xlu0
        %v3990 = vpop.trf.xlu0
        %v3991 = vpop.trf.xlu0
        %v3992 = vpop.trf.xlu0
        %v3993 = vpop.trf.xlu0
        %v3994 = vpop.trf.xlu0
        %v3995 = vpop.trf.xlu0
        %v3996 = vpop.trf.xlu0
        %3997 = vxpose.xlu0.c.b16.start [1/8] %v3079, 128
        %3998 = vxpose.xlu0.c.b16.cont [2/8] 0, 128
        %3999 = vxpose.xlu0.c.b16.cont [3/8] 0, 128
        %4000 = vxpose.xlu0.c.b16.cont [4/8] 0, 128
        %4001 = vxpose.xlu0.c.b16.cont [5/8] 0, 128
        %4002 = vxpose.xlu0.c.b16.cont [6/8] 0, 128
        %4003 = vxpose.xlu0.c.b16.cont [7/8] 0, 128
        %4004 = vxpose.xlu0.c.b16.end [8/8] 0, 128
        %v4005 = vpop.trf.xlu0
        %v4006 = vpop.trf.xlu0
        %v4007 = vpop.trf.xlu0
        %v4008 = vpop.trf.xlu0
        %v4009 = vpop.trf.xlu0
        %v4010 = vpop.trf.xlu0
        %v4011 = vpop.trf.xlu0
        %v4012 = vpop.trf.xlu0
        %4013 = vxpose.xlu0.c.b16.start [1/8] %v3080, 128
        %4014 = vxpose.xlu0.c.b16.cont [2/8] 0, 128
        %4015 = vxpose.xlu0.c.b16.cont [3/8] 0, 128
        %4016 = vxpose.xlu0.c.b16.cont [4/8] 0, 128
        %4017 = vxpose.xlu0.c.b16.cont [5/8] 0, 128
        %4018 = vxpose.xlu0.c.b16.cont [6/8] 0, 128
        %4019 = vxpose.xlu0.c.b16.cont [7/8] 0, 128
        %4020 = vxpose.xlu0.c.b16.end [8/8] 0, 128
        %v4021 = vpop.trf.xlu0
        %v4022 = vpop.trf.xlu0
        %v4023 = vpop.trf.xlu0
        %v4024 = vpop.trf.xlu0
        %v4025 = vpop.trf.xlu0
        %v4026 = vpop.trf.xlu0
        %v4027 = vpop.trf.xlu0
        %v4028 = vpop.trf.xlu0
        %4029 = vxpose.xlu0.c.b16.start [1/8] %v3081, 128
        %4030 = vxpose.xlu0.c.b16.cont [2/8] 0, 128
        %4031 = vxpose.xlu0.c.b16.cont [3/8] 0, 128
        %4032 = vxpose.xlu0.c.b16.cont [4/8] 0, 128
        %4033 = vxpose.xlu0.c.b16.cont [5/8] 0, 128
        %4034 = vxpose.xlu0.c.b16.cont [6/8] 0, 128
        %4035 = vxpose.xlu0.c.b16.cont [7/8] 0, 128
        %4036 = vxpose.xlu0.c.b16.end [8/8] 0, 128
        %v4037 = vpop.trf.xlu0
        %v4038 = vpop.trf.xlu0
        %v4039 = vpop.trf.xlu0
        %v4040 = vpop.trf.xlu0
        %v4041 = vpop.trf.xlu0
        %v4042 = vpop.trf.xlu0
        %v4043 = vpop.trf.xlu0
        %v4044 = vpop.trf.xlu0
        %4045 = vxpose.xlu0.c.b16.start [1/8] %v3082, 128
        %4046 = vxpose.xlu0.c.b16.cont [2/8] 0, 128
        %4047 = vxpose.xlu0.c.b16.cont [3/8] 0, 128
        %4048 = vxpose.xlu0.c.b16.cont [4/8] 0, 128
        %4049 = vxpose.xlu0.c.b16.cont [5/8] 0, 128
        %4050 = vxpose.xlu0.c.b16.cont [6/8] 0, 128
        %4051 = vxpose.xlu0.c.b16.cont [7/8] 0, 128
        %4052 = vxpose.xlu0.c.b16.end [8/8] 0, 128
        %v4053 = vpop.trf.xlu0
        %v4054 = vpop.trf.xlu0
        %v4055 = vpop.trf.xlu0
        %v4056 = vpop.trf.xlu0
        %v4057 = vpop.trf.xlu0
        %v4058 = vpop.trf.xlu0
        %v4059 = vpop.trf.xlu0
        %v4060 = vpop.trf.xlu0
        %4061 = vxpose.xlu0.c.b16.start [1/8] %v3083, 128
        %4062 = vxpose.xlu0.c.b16.cont [2/8] 0, 128
        %4063 = vxpose.xlu0.c.b16.cont [3/8] 0, 128
        %4064 = vxpose.xlu0.c.b16.cont [4/8] 0, 128
        %4065 = vxpose.xlu0.c.b16.cont [5/8] 0, 128
        %4066 = vxpose.xlu0.c.b16.cont [6/8] 0, 128
        %4067 = vxpose.xlu0.c.b16.cont [7/8] 0, 128
        %4068 = vxpose.xlu0.c.b16.end [8/8] 0, 128
        %v4069 = vpop.trf.xlu0
        %v4070 = vpop.trf.xlu0
        %v4071 = vpop.trf.xlu0
        %v4072 = vpop.trf.xlu0
        %v4073 = vpop.trf.xlu0
        %v4074 = vpop.trf.xlu0
        %v4075 = vpop.trf.xlu0
        %v4076 = vpop.trf.xlu0
        %4077 = vxpose.xlu0.c.b16.start [1/8] %v3084, 128
        %4078 = vxpose.xlu0.c.b16.cont [2/8] 0, 128
        %4079 = vxpose.xlu0.c.b16.cont [3/8] 0, 128
        %4080 = vxpose.xlu0.c.b16.cont [4/8] 0, 128
        %4081 = vxpose.xlu0.c.b16.cont [5/8] 0, 128
        %4082 = vxpose.xlu0.c.b16.cont [6/8] 0, 128
        %4083 = vxpose.xlu0.c.b16.cont [7/8] 0, 128
        %4084 = vxpose.xlu0.c.b16.end [8/8] 0, 128
        %v4085 = vpop.trf.xlu0
        %v4086 = vpop.trf.xlu0
        %v4087 = vpop.trf.xlu0
        %v4088 = vpop.trf.xlu0
        %v4089 = vpop.trf.xlu0
        %v4090 = vpop.trf.xlu0
        %v4091 = vpop.trf.xlu0
        %v4092 = vpop.trf.xlu0
        %v4093 = vrot.slane %v3909, 4
        %v4094 = vsel %vm1112, %v4093, %v3845
        %v4096 = vunpack.c.l.s4 1983009808
        %v4097 = vunpack.c.0.s8 %v4096
        %v4098 = vperm.slane %v4094, %v4097
        %v4099 = vrot.slane %v3941, 4
        %v4100 = vsel %vm1112, %v4099, %v3877
        %v4102 = vunpack.c.l.s4 1983009808
        %v4103 = vunpack.c.0.s8 %v4102
        %v4104 = vperm.slane %v4100, %v4103
        %v4105 = vrot.slane %v4037, 4
        %v4106 = vsel %vm1112, %v4105, %v3973
        %v4108 = vunpack.c.l.s4 1983009808
        %v4109 = vunpack.c.0.s8 %v4108
        %v4110 = vperm.slane %v4106, %v4109
        %v4111 = vrot.slane %v4069, 4
        %v4112 = vsel %vm1112, %v4111, %v4005
        %v4114 = vunpack.c.l.s4 1983009808
        %v4115 = vunpack.c.0.s8 %v4114
        %v4116 = vperm.slane %v4112, %v4115
        %v4117 = vrot.slane %v4104, 4
        %v4118 = vsel %vm1112, %v4117, %v4098
        %v4119 = vrot.slane %v4098, 4
        %v4120 = vsel %vm1112, %v4104, %v4119
        %v4122 = vunpack.c.l.s4 1934713408
        %v4123 = vunpack.c.0.s8 %v4122
        %v4124 = vperm.slane %v4118, %v4123
        %v4126 = vunpack.c.l.s4 1934713408
        %v4127 = vunpack.c.0.s8 %v4126
        %v4128 = vperm.slane %v4120, %v4127
        %v4129 = vrot.slane %v4116, 4
        %v4130 = vsel %vm1112, %v4129, %v4110
        %v4131 = vrot.slane %v4110, 4
        %v4132 = vsel %vm1112, %v4116, %v4131
        %v4134 = vunpack.c.l.s4 1934713408
        %v4135 = vunpack.c.0.s8 %v4134
        %v4136 = vperm.slane %v4130, %v4135
        %v4138 = vunpack.c.l.s4 1934713408
        %v4139 = vunpack.c.0.s8 %v4138
        %v4140 = vperm.slane %v4132, %v4139
        %v4141 = vrot.slane %v4136, 4
        %v4142 = vsel %vm1112, %v4141, %v4124
        %v4143 = vrot.slane %v4124, 4
        %v4144 = vsel %vm1112, %v4136, %v4143
        %v4145 = vrot.slane %v4140, 4
        %v4146 = vsel %vm1112, %v4145, %v4128
        %v4147 = vrot.slane %v4128, 4
        %v4148 = vsel %vm1112, %v4140, %v4147
        %v4149 = vrot.slane %v3925, 4
        %v4150 = vsel %vm1112, %v4149, %v3861
        %v4152 = vunpack.c.l.s4 1983009808
        %v4153 = vunpack.c.0.s8 %v4152
        %v4154 = vperm.slane %v4150, %v4153
        %v4155 = vrot.slane %v3957, 4
        %v4156 = vsel %vm1112, %v4155, %v3893
        %v4158 = vunpack.c.l.s4 1983009808
        %v4159 = vunpack.c.0.s8 %v4158
        %v4160 = vperm.slane %v4156, %v4159
        %v4161 = vrot.slane %v4053, 4
        %v4162 = vsel %vm1112, %v4161, %v3989
        %v4164 = vunpack.c.l.s4 1983009808
        %v4165 = vunpack.c.0.s8 %v4164
        %v4166 = vperm.slane %v4162, %v4165
        %v4167 = vrot.slane %v4085, 4
        %v4168 = vsel %vm1112, %v4167, %v4021
        %v4170 = vunpack.c.l.s4 1983009808
        %v4171 = vunpack.c.0.s8 %v4170
        %v4172 = vperm.slane %v4168, %v4171
        %v4173 = vrot.slane %v4160, 4
        %v4174 = vsel %vm1112, %v4173, %v4154
        %v4175 = vrot.slane %v4154, 4
        %v4176 = vsel %vm1112, %v4160, %v4175
        %v4178 = vunpack.c.l.s4 1934713408
        %v4179 = vunpack.c.0.s8 %v4178
        %v4180 = vperm.slane %v4174, %v4179
        %v4182 = vunpack.c.l.s4 1934713408
        %v4183 = vunpack.c.0.s8 %v4182
        %v4184 = vperm.slane %v4176, %v4183
        %v4185 = vrot.slane %v4172, 4
        %v4186 = vsel %vm1112, %v4185, %v4166
        %v4187 = vrot.slane %v4166, 4
        %v4188 = vsel %vm1112, %v4172, %v4187
        %v4190 = vunpack.c.l.s4 1934713408
        %v4191 = vunpack.c.0.s8 %v4190
        %v4192 = vperm.slane %v4186, %v4191
        %v4194 = vunpack.c.l.s4 1934713408
        %v4195 = vunpack.c.0.s8 %v4194
        %v4196 = vperm.slane %v4188, %v4195
        %v4197 = vrot.slane %v4192, 4
        %v4198 = vsel %vm1112, %v4197, %v4180
        %v4199 = vrot.slane %v4180, 4
        %v4200 = vsel %vm1112, %v4192, %v4199
        %v4201 = vrot.slane %v4196, 4
        %v4202 = vsel %vm1112, %v4201, %v4184
        %v4203 = vrot.slane %v4184, 4
        %v4204 = vsel %vm1112, %v4196, %v4203
        %v4207 = vpack.i.b16 %v4198, %v4142
        %v4209 = vshrl.u32 %v4142, 16
        %v4210 = vshrl.u32 %v4198, 16
        %v4211 = vpack.i.b16 %v4210, %v4209
        %v4215 = vpack.i.b16 %v4200, %v4144
        %v4217 = vshrl.u32 %v4144, 16
        %v4218 = vshrl.u32 %v4200, 16
        %v4219 = vpack.i.b16 %v4218, %v4217
        %v4223 = vpack.i.b16 %v4202, %v4146
        %v4225 = vshrl.u32 %v4146, 16
        %v4226 = vshrl.u32 %v4202, 16
        %v4227 = vpack.i.b16 %v4226, %v4225
        %v4231 = vpack.i.b16 %v4204, %v4148
        %v4233 = vshrl.u32 %v4148, 16
        %v4234 = vshrl.u32 %v4204, 16
        %v4235 = vpack.i.b16 %v4234, %v4233
        %4237 = vxpose.xlu0.c.b16.start [1/8] %v4207, 128
        %4238 = vxpose.xlu0.c.b16.cont [2/8] 0, 128
        %4239 = vxpose.xlu0.c.b16.cont [3/8] 0, 128
        %4240 = vxpose.xlu0.c.b16.cont [4/8] 0, 128
        %4241 = vxpose.xlu0.c.b16.cont [5/8] 0, 128
        %4242 = vxpose.xlu0.c.b16.cont [6/8] 0, 128
        %4243 = vxpose.xlu0.c.b16.cont [7/8] 0, 128
        %4244 = vxpose.xlu0.c.b16.end [8/8] 0, 128
        %v4245 = vpop.trf.xlu0
        %v4246 = vpop.trf.xlu0
        %v4247 = vpop.trf.xlu0
        %v4248 = vpop.trf.xlu0
        %v4249 = vpop.trf.xlu0
        %v4250 = vpop.trf.xlu0
        %v4251 = vpop.trf.xlu0
        %v4252 = vpop.trf.xlu0
        %4253 = vxpose.xlu0.c.b16.start [1/8] %v4211, 128
        %4254 = vxpose.xlu0.c.b16.cont [2/8] 0, 128
        %4255 = vxpose.xlu0.c.b16.cont [3/8] 0, 128
        %4256 = vxpose.xlu0.c.b16.cont [4/8] 0, 128
        %4257 = vxpose.xlu0.c.b16.cont [5/8] 0, 128
        %4258 = vxpose.xlu0.c.b16.cont [6/8] 0, 128
        %4259 = vxpose.xlu0.c.b16.cont [7/8] 0, 128
        %4260 = vxpose.xlu0.c.b16.end [8/8] 0, 128
        %v4261 = vpop.trf.xlu0
        %v4262 = vpop.trf.xlu0
        %v4263 = vpop.trf.xlu0
        %v4264 = vpop.trf.xlu0
        %v4265 = vpop.trf.xlu0
        %v4266 = vpop.trf.xlu0
        %v4267 = vpop.trf.xlu0
        %v4268 = vpop.trf.xlu0
        %4269 = vxpose.xlu0.c.b16.start [1/8] %v4215, 128
        %4270 = vxpose.xlu0.c.b16.cont [2/8] 0, 128
        %4271 = vxpose.xlu0.c.b16.cont [3/8] 0, 128
        %4272 = vxpose.xlu0.c.b16.cont [4/8] 0, 128
        %4273 = vxpose.xlu0.c.b16.cont [5/8] 0, 128
        %4274 = vxpose.xlu0.c.b16.cont [6/8] 0, 128
        %4275 = vxpose.xlu0.c.b16.cont [7/8] 0, 128
        %4276 = vxpose.xlu0.c.b16.end [8/8] 0, 128
        %v4277 = vpop.trf.xlu0
        %v4278 = vpop.trf.xlu0
        %v4279 = vpop.trf.xlu0
        %v4280 = vpop.trf.xlu0
        %v4281 = vpop.trf.xlu0
        %v4282 = vpop.trf.xlu0
        %v4283 = vpop.trf.xlu0
        %v4284 = vpop.trf.xlu0
        %4285 = vxpose.xlu0.c.b16.start [1/8] %v4219, 128
        %4286 = vxpose.xlu0.c.b16.cont [2/8] 0, 128
        %4287 = vxpose.xlu0.c.b16.cont [3/8] 0, 128
        %4288 = vxpose.xlu0.c.b16.cont [4/8] 0, 128
        %4289 = vxpose.xlu0.c.b16.cont [5/8] 0, 128
        %4290 = vxpose.xlu0.c.b16.cont [6/8] 0, 128
        %4291 = vxpose.xlu0.c.b16.cont [7/8] 0, 128
        %4292 = vxpose.xlu0.c.b16.end [8/8] 0, 128
        %v4293 = vpop.trf.xlu0
        %v4294 = vpop.trf.xlu0
        %v4295 = vpop.trf.xlu0
        %v4296 = vpop.trf.xlu0
        %v4297 = vpop.trf.xlu0
        %v4298 = vpop.trf.xlu0
        %v4299 = vpop.trf.xlu0
        %v4300 = vpop.trf.xlu0
        %4301 = vxpose.xlu0.c.b16.start [1/8] %v4223, 128
        %4302 = vxpose.xlu0.c.b16.cont [2/8] 0, 128
        %4303 = vxpose.xlu0.c.b16.cont [3/8] 0, 128
        %4304 = vxpose.xlu0.c.b16.cont [4/8] 0, 128
        %4305 = vxpose.xlu0.c.b16.cont [5/8] 0, 128
        %4306 = vxpose.xlu0.c.b16.cont [6/8] 0, 128
        %4307 = vxpose.xlu0.c.b16.cont [7/8] 0, 128
        %4308 = vxpose.xlu0.c.b16.end [8/8] 0, 128
        %v4309 = vpop.trf.xlu0
        %v4310 = vpop.trf.xlu0
        %v4311 = vpop.trf.xlu0
        %v4312 = vpop.trf.xlu0
        %v4313 = vpop.trf.xlu0
        %v4314 = vpop.trf.xlu0
        %v4315 = vpop.trf.xlu0
        %v4316 = vpop.trf.xlu0
        %4317 = vxpose.xlu0.c.b16.start [1/8] %v4227, 128
        %4318 = vxpose.xlu0.c.b16.cont [2/8] 0, 128
        %4319 = vxpose.xlu0.c.b16.cont [3/8] 0, 128
        %4320 = vxpose.xlu0.c.b16.cont [4/8] 0, 128
        %4321 = vxpose.xlu0.c.b16.cont [5/8] 0, 128
        %4322 = vxpose.xlu0.c.b16.cont [6/8] 0, 128
        %4323 = vxpose.xlu0.c.b16.cont [7/8] 0, 128
        %4324 = vxpose.xlu0.c.b16.end [8/8] 0, 128
        %v4325 = vpop.trf.xlu0
        %v4326 = vpop.trf.xlu0
        %v4327 = vpop.trf.xlu0
        %v4328 = vpop.trf.xlu0
        %v4329 = vpop.trf.xlu0
        %v4330 = vpop.trf.xlu0
        %v4331 = vpop.trf.xlu0
        %v4332 = vpop.trf.xlu0
        %4333 = vxpose.xlu0.c.b16.start [1/8] %v4231, 128
        %4334 = vxpose.xlu0.c.b16.cont [2/8] 0, 128
        %4335 = vxpose.xlu0.c.b16.cont [3/8] 0, 128
        %4336 = vxpose.xlu0.c.b16.cont [4/8] 0, 128
        %4337 = vxpose.xlu0.c.b16.cont [5/8] 0, 128
        %4338 = vxpose.xlu0.c.b16.cont [6/8] 0, 128
        %4339 = vxpose.xlu0.c.b16.cont [7/8] 0, 128
        %4340 = vxpose.xlu0.c.b16.end [8/8] 0, 128
        %v4341 = vpop.trf.xlu0
        %v4342 = vpop.trf.xlu0
        %v4343 = vpop.trf.xlu0
        %v4344 = vpop.trf.xlu0
        %v4345 = vpop.trf.xlu0
        %v4346 = vpop.trf.xlu0
        %v4347 = vpop.trf.xlu0
        %v4348 = vpop.trf.xlu0
        %4349 = vxpose.xlu0.c.b16.start [1/8] %v4235, 128
        %4350 = vxpose.xlu0.c.b16.cont [2/8] 0, 128
        %4351 = vxpose.xlu0.c.b16.cont [3/8] 0, 128
        %4352 = vxpose.xlu0.c.b16.cont [4/8] 0, 128
        %4353 = vxpose.xlu0.c.b16.cont [5/8] 0, 128
        %4354 = vxpose.xlu0.c.b16.cont [6/8] 0, 128
        %4355 = vxpose.xlu0.c.b16.cont [7/8] 0, 128
        %4356 = vxpose.xlu0.c.b16.end [8/8] 0, 128
        %v4357 = vpop.trf.xlu0
        %v4358 = vpop.trf.xlu0
        %v4359 = vpop.trf.xlu0
        %v4360 = vpop.trf.xlu0
        %v4361 = vpop.trf.xlu0
        %v4362 = vpop.trf.xlu0
        %v4363 = vpop.trf.xlu0
        %v4364 = vpop.trf.xlu0
        %v4365 = vrot.slane %v4309, 4
        %v4366 = vsel %vm1112, %v4365, %v4245
        %v4368 = vunpack.c.l.s4 1983009808
        %v4369 = vunpack.c.0.s8 %v4368
        %v4370 = vperm.slane %v4366, %v4369
        %v4371 = vrot.slane %v4341, 4
        %v4372 = vsel %vm1112, %v4371, %v4277
        %v4374 = vunpack.c.l.s4 1983009808
        %v4375 = vunpack.c.0.s8 %v4374
        %v4376 = vperm.slane %v4372, %v4375
        %v4377 = vrot.slane %v4376, 4
        %v4378 = vsel %vm1112, %v4377, %v4370
        %v4380 = vunpack.c.l.s4 1934713408
        %v4381 = vunpack.c.0.s8 %v4380
        %v4382 = vperm.slane %v4378, %v4381
        %v4383 = vrot.slane %v4382, 4
        %v4384 = vsel %vm1112, 0, %v4383
        %v4385 = vrot.slane %v4325, 4
        %v4386 = vsel %vm1112, %v4385, %v4261
        %v4388 = vunpack.c.l.s4 1983009808
        %v4389 = vunpack.c.0.s8 %v4388
        %v4390 = vperm.slane %v4386, %v4389
        %v4391 = vrot.slane %v4357, 4
        %v4392 = vsel %vm1112, %v4391, %v4293
        %v4394 = vunpack.c.l.s4 1983009808
        %v4395 = vunpack.c.0.s8 %v4394
        %v4396 = vperm.slane %v4392, %v4395
        %v4397 = vrot.slane %v4396, 4
        %v4398 = vsel %vm1112, %v4397, %v4390
        %v4400 = vunpack.c.l.s4 1934713408
        %v4401 = vunpack.c.0.s8 %v4400
        %v4402 = vperm.slane %v4398, %v4401
        %v4403 = vrot.slane %v4402, 4
        %v4404 = vsel %vm1112, 0, %v4403
        %v4407 = vpack.i.b16 %v4402, %v4382
        %v4408 = vshrl.u32 %v4382, 16
        %v4409 = vshrl.u32 %v4402, 16
        %v4410 = vpack.i.b16 %v4409, %v4408
        %v4413 = vpack.i.b16 %v4404, %v4384
        %v4414 = vshrl.u32 %v4384, 16
        %v4415 = vshrl.u32 %v4404, 16
        %v4416 = vpack.i.b16 %v4415, %v4414
        %v4418 = vsel %vm2520, %v4407, 0
        %v4421 = vsel %vm2520, %v3833, 0
        %4423 = vmatpush.bf16.xpose.msra.mxu0 0
        %4424 = vmatpush.bf16.xpose.msra.mxu0 0
        %4425 = vmatpush.bf16.xpose.msra.mxu0 0
        %4426 = vmatpush.bf16.xpose.msra.mxu0 0
        %4427 = vmatpush.bf16.xpose.msra.mxu0 0
        %4428 = vmatpush.bf16.xpose.msra.mxu0 0
        %4429 = vmatpush.bf16.xpose.msra.mxu0 0
        %4430 = vmatpush.bf16.xpose.msra.mxu0 %v4421
        %4431 = vmatmul.bf16.gmra.mxu0 %v4418
        %v4432 = vpop.f32.mrf.mxu0
        %v4433 = vadd.f32 0.0, %v4432
        %v4434 = vpop.f32.mrf.mxu0
        %4435 = vdwg.mxu0
        %v4437 = vsel %vm2520, %v4410, 0
        %v4440 = vsel %vm2520, %v3834, 0
        %4442 = vmatpush.bf16.xpose.msra.mxu0 0
        %4443 = vmatpush.bf16.xpose.msra.mxu0 0
        %4444 = vmatpush.bf16.xpose.msra.mxu0 0
        %4445 = vmatpush.bf16.xpose.msra.mxu0 0
        %4446 = vmatpush.bf16.xpose.msra.mxu0 0
        %4447 = vmatpush.bf16.xpose.msra.mxu0 0
        %4448 = vmatpush.bf16.xpose.msra.mxu0 0
        %4449 = vmatpush.bf16.xpose.msra.mxu0 %v4440
        %4450 = vmatmul.bf16.gmra.mxu0 %v4437
        %v4451 = vpop.f32.mrf.mxu0
        %v4452 = vadd.f32 0.0, %v4451
        %v4453 = vpop.f32.mrf.mxu0
        %4454 = vdwg.mxu0
        %v4456 = vsel %vm2520, %v4413, 0
        %v4459 = vsel %vm2520, %v3835, 0
        %4461 = vmatpush.bf16.xpose.msra.mxu0 0
        %4462 = vmatpush.bf16.xpose.msra.mxu0 0
        %4463 = vmatpush.bf16.xpose.msra.mxu0 0
        %4464 = vmatpush.bf16.xpose.msra.mxu0 0
        %4465 = vmatpush.bf16.xpose.msra.mxu0 0
        %4466 = vmatpush.bf16.xpose.msra.mxu0 0
        %4467 = vmatpush.bf16.xpose.msra.mxu0 0
        %4468 = vmatpush.bf16.xpose.msra.mxu0 %v4459
        %4469 = vmatmul.bf16.gmra.mxu0 %v4456
        %v4470 = vpop.f32.mrf.mxu0
        %v4471 = vadd.f32 0.0, %v4470
        %v4472 = vpop.f32.mrf.mxu0
        %4473 = vdwg.mxu0
        %v4475 = vsel %vm2520, %v4416, 0
        %v4478 = vsel %vm2520, %v3836, 0
        %4480 = vmatpush.bf16.xpose.msra.mxu0 0
        %4481 = vmatpush.bf16.xpose.msra.mxu0 0
        %4482 = vmatpush.bf16.xpose.msra.mxu0 0
        %4483 = vmatpush.bf16.xpose.msra.mxu0 0
        %4484 = vmatpush.bf16.xpose.msra.mxu0 0
        %4485 = vmatpush.bf16.xpose.msra.mxu0 0
        %4486 = vmatpush.bf16.xpose.msra.mxu0 0
        %4487 = vmatpush.bf16.xpose.msra.mxu0 %v4478
        %4488 = vmatmul.bf16.gmra.mxu0 %v4475
        %v4489 = vpop.f32.mrf.mxu0
        %v4490 = vadd.f32 0.0, %v4489
        %v4491 = vpop.f32.mrf.mxu0
        %4492 = vdwg.mxu0
        %4493 = vxpose.xlu0.b32.start [1/16] %v4433, 128
        %4494 = vxpose.xlu0.b32.cont [2/16] 0.0, 128
        %4495 = vxpose.xlu0.b32.cont [3/16] 0.0, 128
        %4496 = vxpose.xlu0.b32.cont [4/16] 0.0, 128
        %4497 = vxpose.xlu0.b32.cont [5/16] 0.0, 128
        %4498 = vxpose.xlu0.b32.cont [6/16] 0.0, 128
        %4499 = vxpose.xlu0.b32.cont [7/16] 0.0, 128
        %4500 = vxpose.xlu0.b32.cont [8/16] 0.0, 128
        %4501 = vxpose.xlu0.b32.cont [9/16] 0.0, 128
        %4502 = vxpose.xlu0.b32.cont [10/16] 0.0, 128
        %4503 = vxpose.xlu0.b32.cont [11/16] 0.0, 128
        %4504 = vxpose.xlu0.b32.cont [12/16] 0.0, 128
        %4505 = vxpose.xlu0.b32.cont [13/16] 0.0, 128
        %4506 = vxpose.xlu0.b32.cont [14/16] 0.0, 128
        %4507 = vxpose.xlu0.b32.cont [15/16] 0.0, 128
        %4508 = vxpose.xlu0.b32.end [16/16] 0.0, 128
        %v4509 = vpop.trf.xlu0
        %v4510 = vpop.trf.xlu0
        %v4511 = vpop.trf.xlu0
        %v4512 = vpop.trf.xlu0
        %v4513 = vpop.trf.xlu0
        %v4514 = vpop.trf.xlu0
        %v4515 = vpop.trf.xlu0
        %v4516 = vpop.trf.xlu0
        %v4517 = vpop.trf.xlu0
        %v4518 = vpop.trf.xlu0
        %v4519 = vpop.trf.xlu0
        %v4520 = vpop.trf.xlu0
        %v4521 = vpop.trf.xlu0
        %v4522 = vpop.trf.xlu0
        %v4523 = vpop.trf.xlu0
        %v4524 = vpop.trf.xlu0
        %4525 = vxpose.xlu0.b32.start [1/16] %v4452, 128
        %4526 = vxpose.xlu0.b32.cont [2/16] 0.0, 128
        %4527 = vxpose.xlu0.b32.cont [3/16] 0.0, 128
        %4528 = vxpose.xlu0.b32.cont [4/16] 0.0, 128
        %4529 = vxpose.xlu0.b32.cont [5/16] 0.0, 128
        %4530 = vxpose.xlu0.b32.cont [6/16] 0.0, 128
        %4531 = vxpose.xlu0.b32.cont [7/16] 0.0, 128
        %4532 = vxpose.xlu0.b32.cont [8/16] 0.0, 128
        %4533 = vxpose.xlu0.b32.cont [9/16] 0.0, 128
        %4534 = vxpose.xlu0.b32.cont [10/16] 0.0, 128
        %4535 = vxpose.xlu0.b32.cont [11/16] 0.0, 128
        %4536 = vxpose.xlu0.b32.cont [12/16] 0.0, 128
        %4537 = vxpose.xlu0.b32.cont [13/16] 0.0, 128
        %4538 = vxpose.xlu0.b32.cont [14/16] 0.0, 128
        %4539 = vxpose.xlu0.b32.cont [15/16] 0.0, 128
        %4540 = vxpose.xlu0.b32.end [16/16] 0.0, 128
        %v4541 = vpop.trf.xlu0
        %v4542 = vpop.trf.xlu0
        %v4543 = vpop.trf.xlu0
        %v4544 = vpop.trf.xlu0
        %v4545 = vpop.trf.xlu0
        %v4546 = vpop.trf.xlu0
        %v4547 = vpop.trf.xlu0
        %v4548 = vpop.trf.xlu0
        %v4549 = vpop.trf.xlu0
        %v4550 = vpop.trf.xlu0
        %v4551 = vpop.trf.xlu0
        %v4552 = vpop.trf.xlu0
        %v4553 = vpop.trf.xlu0
        %v4554 = vpop.trf.xlu0
        %v4555 = vpop.trf.xlu0
        %v4556 = vpop.trf.xlu0
        %4557 = vxpose.xlu0.b32.start [1/16] %v4471, 128
        %4558 = vxpose.xlu0.b32.cont [2/16] 0.0, 128
        %4559 = vxpose.xlu0.b32.cont [3/16] 0.0, 128
        %4560 = vxpose.xlu0.b32.cont [4/16] 0.0, 128
        %4561 = vxpose.xlu0.b32.cont [5/16] 0.0, 128
        %4562 = vxpose.xlu0.b32.cont [6/16] 0.0, 128
        %4563 = vxpose.xlu0.b32.cont [7/16] 0.0, 128
        %4564 = vxpose.xlu0.b32.cont [8/16] 0.0, 128
        %4565 = vxpose.xlu0.b32.cont [9/16] 0.0, 128
        %4566 = vxpose.xlu0.b32.cont [10/16] 0.0, 128
        %4567 = vxpose.xlu0.b32.cont [11/16] 0.0, 128
        %4568 = vxpose.xlu0.b32.cont [12/16] 0.0, 128
        %4569 = vxpose.xlu0.b32.cont [13/16] 0.0, 128
        %4570 = vxpose.xlu0.b32.cont [14/16] 0.0, 128
        %4571 = vxpose.xlu0.b32.cont [15/16] 0.0, 128
        %4572 = vxpose.xlu0.b32.end [16/16] 0.0, 128
        %v4573 = vpop.trf.xlu0
        %v4574 = vpop.trf.xlu0
        %v4575 = vpop.trf.xlu0
        %v4576 = vpop.trf.xlu0
        %v4577 = vpop.trf.xlu0
        %v4578 = vpop.trf.xlu0
        %v4579 = vpop.trf.xlu0
        %v4580 = vpop.trf.xlu0
        %v4581 = vpop.trf.xlu0
        %v4582 = vpop.trf.xlu0
        %v4583 = vpop.trf.xlu0
        %v4584 = vpop.trf.xlu0
        %v4585 = vpop.trf.xlu0
        %v4586 = vpop.trf.xlu0
        %v4587 = vpop.trf.xlu0
        %v4588 = vpop.trf.xlu0
        %4589 = vxpose.xlu0.b32.start [1/16] %v4490, 128
        %4590 = vxpose.xlu0.b32.cont [2/16] 0.0, 128
        %4591 = vxpose.xlu0.b32.cont [3/16] 0.0, 128
        %4592 = vxpose.xlu0.b32.cont [4/16] 0.0, 128
        %4593 = vxpose.xlu0.b32.cont [5/16] 0.0, 128
        %4594 = vxpose.xlu0.b32.cont [6/16] 0.0, 128
        %4595 = vxpose.xlu0.b32.cont [7/16] 0.0, 128
        %4596 = vxpose.xlu0.b32.cont [8/16] 0.0, 128
        %4597 = vxpose.xlu0.b32.cont [9/16] 0.0, 128
        %4598 = vxpose.xlu0.b32.cont [10/16] 0.0, 128
        %4599 = vxpose.xlu0.b32.cont [11/16] 0.0, 128
        %4600 = vxpose.xlu0.b32.cont [12/16] 0.0, 128
        %4601 = vxpose.xlu0.b32.cont [13/16] 0.0, 128
        %4602 = vxpose.xlu0.b32.cont [14/16] 0.0, 128
        %4603 = vxpose.xlu0.b32.cont [15/16] 0.0, 128
        %4604 = vxpose.xlu0.b32.end [16/16] 0.0, 128
        %v4605 = vpop.trf.xlu0
        %v4606 = vpop.trf.xlu0
        %v4607 = vpop.trf.xlu0
        %v4608 = vpop.trf.xlu0
        %v4609 = vpop.trf.xlu0
        %v4610 = vpop.trf.xlu0
        %v4611 = vpop.trf.xlu0
        %v4612 = vpop.trf.xlu0
        %v4613 = vpop.trf.xlu0
        %v4614 = vpop.trf.xlu0
        %v4615 = vpop.trf.xlu0
        %v4616 = vpop.trf.xlu0
        %v4617 = vpop.trf.xlu0
        %v4618 = vpop.trf.xlu0
        %v4619 = vpop.trf.xlu0
        %v4620 = vpop.trf.xlu0
        %v4621 = vrot.slane %v4573, 4
        %v4622 = vsel %vm899, %v4621, %v4509
        %v4623 = vrot.slane %v4509, 4
        %v4624 = vsel %vm899, %v4573, %v4623
        %v4626 = vunpack.c.l.s4 1983009808
        %v4627 = vunpack.c.0.s8 %v4626
        %v4628 = vperm.slane %v4622, %v4627
        %v4630 = vunpack.c.l.s4 1983009808
        %v4631 = vunpack.c.0.s8 %v4630
        %v4632 = vperm.slane %v4624, %v4631
        %v4633 = vrot.slane %v4605, 4
        %v4634 = vsel %vm899, %v4633, %v4541
        %v4635 = vrot.slane %v4541, 4
        %v4636 = vsel %vm899, %v4605, %v4635
        %v4638 = vunpack.c.l.s4 1983009808
        %v4639 = vunpack.c.0.s8 %v4638
        %v4640 = vperm.slane %v4634, %v4639
        %v4642 = vunpack.c.l.s4 1983009808
        %v4643 = vunpack.c.0.s8 %v4642
        %v4644 = vperm.slane %v4636, %v4643
        %v4645 = vrot.slane %v4640, 4
        %v4646 = vsel %vm899, %v4645, %v4628
        %v4647 = vrot.slane %v4628, 4
        %v4648 = vsel %vm899, %v4640, %v4647
        %v4650 = vunpack.c.l.s4 1934713408
        %v4651 = vunpack.c.0.s8 %v4650
        %v4652 = vperm.slane %v4646, %v4651
        %v4654 = vunpack.c.l.s4 1934713408
        %v4655 = vunpack.c.0.s8 %v4654
        %v4656 = vperm.slane %v4648, %v4655
        %v4657 = vrot.slane %v4644, 4
        %v4658 = vsel %vm899, %v4657, %v4632
        %v4659 = vrot.slane %v4632, 4
        %v4660 = vsel %vm899, %v4644, %v4659
        %v4662 = vunpack.c.l.s4 1934713408
        %v4663 = vunpack.c.0.s8 %v4662
        %v4664 = vperm.slane %v4658, %v4663
        %v4666 = vunpack.c.l.s4 1934713408
        %v4667 = vunpack.c.0.s8 %v4666
        %v4668 = vperm.slane %v4660, %v4667
        %v4669 = vrot.slane %v4652, 4
        %v4670 = vsel %vm899, 0.0, %v4669
        %v4671 = vrot.slane %v4656, 4
        %v4672 = vsel %vm899, 0.0, %v4671
        %v4673 = vrot.slane %v4664, 4
        %v4674 = vsel %vm899, 0.0, %v4673
        %v4675 = vrot.slane %v4668, 4
        %v4676 = vsel %vm899, 0.0, %v4675
        %v4681 = vperm.slane %v3829, %v2343
        %v4682 = vperm.slane %v3830, %v2343
        %v4683 = vperm.slane %v3831, %v2343
        %v4684 = vperm.slane %v3832, %v2343
        %v4685 = vsel %vm2348, %v4682, %v4681
        %v4686 = vsel %vm2350, %v4683, %v4685
        %v4687 = vsel %vm2352, %v4684, %v4686
        %4689 = vxpose.xlu0.b32.start [1/16] %v4687, 128
        %4690 = vxpose.xlu0.b32.cont [2/16] 0.0, 128
        %4691 = vxpose.xlu0.b32.cont [3/16] 0.0, 128
        %4692 = vxpose.xlu0.b32.cont [4/16] 0.0, 128
        %4693 = vxpose.xlu0.b32.cont [5/16] 0.0, 128
        %4694 = vxpose.xlu0.b32.cont [6/16] 0.0, 128
        %4695 = vxpose.xlu0.b32.cont [7/16] 0.0, 128
        %4696 = vxpose.xlu0.b32.cont [8/16] 0.0, 128
        %4697 = vxpose.xlu0.b32.cont [9/16] 0.0, 128
        %4698 = vxpose.xlu0.b32.cont [10/16] 0.0, 128
        %4699 = vxpose.xlu0.b32.cont [11/16] 0.0, 128
        %4700 = vxpose.xlu0.b32.cont [12/16] 0.0, 128
        %4701 = vxpose.xlu0.b32.cont [13/16] 0.0, 128
        %4702 = vxpose.xlu0.b32.cont [14/16] 0.0, 128
        %4703 = vxpose.xlu0.b32.cont [15/16] 0.0, 128
        %4704 = vxpose.xlu0.b32.end [16/16] 0.0, 128
        %v4705 = vpop.trf.xlu0
        %v4706 = vpop.trf.xlu0
        %v4707 = vpop.trf.xlu0
        %v4708 = vpop.trf.xlu0
        %v4709 = vpop.trf.xlu0
        %v4710 = vpop.trf.xlu0
        %v4711 = vpop.trf.xlu0
        %v4712 = vpop.trf.xlu0
        %v4713 = vpop.trf.xlu0
        %v4714 = vpop.trf.xlu0
        %v4715 = vpop.trf.xlu0
        %v4716 = vpop.trf.xlu0
        %v4717 = vpop.trf.xlu0
        %v4718 = vpop.trf.xlu0
        %v4719 = vpop.trf.xlu0
        %v4720 = vpop.trf.xlu0
        %v4721 = vperm.slane %v4705, 0
        %v4722 = vlaneseq
        %v4723 = vshrl.u32 %v4722, 7
        %4725 = vset.pattern.permute.xlu0 %v4723
        %4726 = vperm.xlu0 %4725, %v4721
        %v4727 = vpop.permute.xlu0 %4726
        %v4728 = vperm.slane %v4705, 1
        %v4729 = vlaneseq
        %v4730 = vshrl.u32 %v4729, 7
        %4732 = vset.pattern.permute.xlu0 %v4730
        %4733 = vperm.xlu0 %4732, %v4728
        %v4734 = vpop.permute.xlu0 %4733
        %v4735 = vperm.slane %v4705, 2
        %v4736 = vlaneseq
        %v4737 = vshrl.u32 %v4736, 7
        %4739 = vset.pattern.permute.xlu0 %v4737
        %4740 = vperm.xlu0 %4739, %v4735
        %v4741 = vpop.permute.xlu0 %4740
        %v4742 = vperm.slane %v4705, 3
        %v4743 = vlaneseq
        %v4744 = vshrl.u32 %v4743, 7
        %4746 = vset.pattern.permute.xlu0 %v4744
        %4747 = vperm.xlu0 %4746, %v4742
        %v4748 = vpop.permute.xlu0 %4747
        %v4749 = vperm.slane %v4705, 4
        %v4750 = vlaneseq
        %v4751 = vshrl.u32 %v4750, 7
        %4753 = vset.pattern.permute.xlu0 %v4751
        %4754 = vperm.xlu0 %4753, %v4749
        %v4755 = vpop.permute.xlu0 %4754
        %v4756 = vperm.slane %v4705, 5
        %v4757 = vlaneseq
        %v4758 = vshrl.u32 %v4757, 7
        %4760 = vset.pattern.permute.xlu0 %v4758
        %4761 = vperm.xlu0 %4760, %v4756
        %v4762 = vpop.permute.xlu0 %4761
        %v4763 = vperm.slane %v4705, 6
        %v4764 = vlaneseq
        %v4765 = vshrl.u32 %v4764, 7
        %4767 = vset.pattern.permute.xlu0 %v4765
        %4768 = vperm.xlu0 %4767, %v4763
        %v4769 = vpop.permute.xlu0 %4768
        %v4770 = vperm.slane %v4705, 7
        %v4771 = vlaneseq
        %v4772 = vshrl.u32 %v4771, 7
        %4774 = vset.pattern.permute.xlu0 %v4772
        %4775 = vperm.xlu0 %4774, %v4770
        %v4776 = vpop.permute.xlu0 %4775
        %v4777 = vmul.f32 %v4652, %v4727
        %v4778 = vmul.f32 %v4670, %v4734
        %v4779 = vmul.f32 %v4656, %v4741
        %v4780 = vmul.f32 %v4672, %v4748
        %v4781 = vmul.f32 %v4664, %v4755
        %v4782 = vmul.f32 %v4674, %v4762
        %v4783 = vmul.f32 %v4668, %v4769
        %v4784 = vmul.f32 %v4676, %v4776
        %v4785 = vrot.slane %v4779, 4
        %v4786 = vsel %vm899, %v4785, %v4777
        %v4788 = vunpack.c.l.s4 1983009808
        %v4789 = vunpack.c.0.s8 %v4788
        %v4790 = vperm.slane %v4786, %v4789
        %v4791 = vrot.slane %v4780, 4
        %v4792 = vsel %vm899, %v4791, %v4778
        %v4794 = vunpack.c.l.s4 1983009808
        %v4795 = vunpack.c.0.s8 %v4794
        %v4796 = vperm.slane %v4792, %v4795
        %v4797 = vrot.slane %v4783, 4
        %v4798 = vsel %vm899, %v4797, %v4781
        %v4800 = vunpack.c.l.s4 1983009808
        %v4801 = vunpack.c.0.s8 %v4800
        %v4802 = vperm.slane %v4798, %v4801
        %v4803 = vrot.slane %v4784, 4
        %v4804 = vsel %vm899, %v4803, %v4782
        %v4806 = vunpack.c.l.s4 1983009808
        %v4807 = vunpack.c.0.s8 %v4806
        %v4808 = vperm.slane %v4804, %v4807
        %v4809 = vrot.slane %v4796, 4
        %v4810 = vsel %vm899, %v4809, %v4790
        %v4811 = vrot.slane %v4790, 4
        %v4812 = vsel %vm899, %v4796, %v4811
        %v4814 = vunpack.c.l.s4 1934713408
        %v4815 = vunpack.c.0.s8 %v4814
        %v4816 = vperm.slane %v4810, %v4815
        %v4818 = vunpack.c.l.s4 1934713408
        %v4819 = vunpack.c.0.s8 %v4818
        %v4820 = vperm.slane %v4812, %v4819
        %v4821 = vrot.slane %v4808, 4
        %v4822 = vsel %vm899, %v4821, %v4802
        %v4823 = vrot.slane %v4802, 4
        %v4824 = vsel %vm899, %v4808, %v4823
        %v4826 = vunpack.c.l.s4 1934713408
        %v4827 = vunpack.c.0.s8 %v4826
        %v4828 = vperm.slane %v4822, %v4827
        %v4830 = vunpack.c.l.s4 1934713408
        %v4831 = vunpack.c.0.s8 %v4830
        %v4832 = vperm.slane %v4824, %v4831
        %v4833 = vrot.slane %v4828, 4
        %v4834 = vsel %vm899, %v4833, %v4816
        %v4835 = vrot.slane %v4816, 4
        %v4836 = vsel %vm899, %v4828, %v4835
        %v4837 = vrot.slane %v4832, 4
        %v4838 = vsel %vm899, %v4837, %v4820
        %v4839 = vrot.slane %v4820, 4
        %v4840 = vsel %vm899, %v4832, %v4839
        %4842 = vrot.lane.b32.xlu0 %v4836, 8
        %v4843 = vpop.permute.xlu0 %4842
        %4846 = vrot.lane.b32.xlu0 %v4838, 16
        %v4847 = vpop.permute.xlu0 %4846
        %4850 = vrot.lane.b32.xlu0 %v4840, 24
        %v4851 = vpop.permute.xlu0 %4850
        %v4853 = vsel %vm1560, %v4834, %v4843
        %v4854 = vsel %vm2520, %v4853, %v4847
        %v4855 = vsel %vm2522, %v4854, %v4851
        %v4856 = vpack.c.bf16 %v4855, %v4855
        %v4857 = vld [vmem:[#allocation13] sm:$0xf]
        %v4858 = vld [vmem:[#allocation13 + $0x4] sm:$0xf]
        %v4859 = vld [vmem:[#allocation13 + $0x8] sm:$0xf]
        %v4860 = vld [vmem:[#allocation13 + $0xc] sm:$0xf]
        %v4861 = vld [vmem:[#allocation14] sm:$0x1]
        %v4863 = vperm.slane %v4861, 0
        %v4869 = vunpack.c.l.b16 %v4857
        %v4870 = vunpack.c.l.b16 %v4858
        %v4871 = vunpack.c.l.b16 %v4859
        %v4872 = vunpack.c.l.b16 %v4860
        %v4873 = vpack.c.b16 %v4870, %v4869
        %v4874 = vpack.c.b16 %v4872, %v4871
        %v4878 = vsel %vm798, %v4856, 0
        %4880 = vmatpush.bf16.msra.mxu0 0
        %4881 = vmatpush.bf16.msra.mxu0 0
        %4882 = vmatpush.bf16.msra.mxu0 0
        %4883 = vmatpush.bf16.msra.mxu0 0
        %4884 = vmatpush.bf16.msra.mxu0 0
        %4885 = vmatpush.bf16.msra.mxu0 0
        %4886 = vmatpush.bf16.msra.mxu0 %v4874
        %4887 = vmatpush.bf16.msra.mxu0 %v4873
        %4888 = vmatmul.bf16.gmra.mxu0 %v4878
        %v4889 = vpop.f32.mrf.mxu0
        %v4890 = vadd.f32 %v4863, %v4889
        %v4891 = vpop.f32.mrf.mxu0
        %4892 = vdwg.mxu0
        %v4893 = vadd.f32 %v2600, %v4890
        %v4894 = vsel %vm798, %v4893, 0.0
        %4895 = vadd.xlane.f32.xlu0 %v4894
        %v4896 = vpop.xlane.xlu0 %4895
        %v4897 = vmul.f32 %v4896, %v2571
        %v4898 = vsub.f32 %v4893, %v4897
        %v4899 = vmul.f32 %v4898, %v4898
        %v4900 = vsel %vm798, %v4899, 0.0
        %4901 = vadd.xlane.f32.xlu0 %v4900
        %v4902 = vpop.xlane.xlu0 %4901
        %v4903 = vmul.f32 %v4902, %v2571
        %v4904 = vadd.f32 %v4903, 1e-05
        %v4905 = vrsqrt.pop %v4904
        %v4906 = vmul.f32 %v4905, %v4904
        %v4907 = vmul.f32 %v4906, %v4905
        %v4908 = vmul.f32 0.5, %v4907
        %v4909 = vsub.f32 1.5, %v4908
        %v4910 = vmul.f32 %v4905, %v4909
        %vm4911 = vweird.f32 %v4904
        %vm4912 = vweird.f32 %v4905
        %vm4913 = vmor %vm4911, %vm4912
        %v4914 = vsel %vm4913, %v4905, %v4910
        %v4915 = vmul.f32 %v4898, %v4914
        %s4916 = scalar_lea.vmem %s11, 1
        %v4917 = vld [vmem:[%s4916] sm:$0x1]
        %v4919 = vperm.slane %v4917, 0
        %v4921 = vmul.f32 %v4915, %v4919
        %s4922 = scalar_lea.vmem [#allocation16], 1
        %v4923 = vld [vmem:[%s4922] sm:$0x1]
        %v4925 = vperm.slane %v4923, 0
        %v4927 = vadd.f32 %v4921, %v4925
        %v4928 = vpack.c.bf16 %v4927, %v4927
        %v4929 = vld [vmem:[#allocation17] sm:$0xf]
        %v4930 = vld [vmem:[#allocation17 + $0x4] sm:$0xf]
        %v4931 = vld [vmem:[#allocation17 + $0x8] sm:$0xf]
        %v4932 = vld [vmem:[#allocation17 + $0xc] sm:$0xf]
        %v4933 = vld [vmem:[%s14] sm:$0x1]
        %v4935 = vperm.slane %v4933, 0
        %v4941 = vunpack.c.l.b16 %v4929
        %v4942 = vunpack.c.l.b16 %v4930
        %v4943 = vunpack.c.l.b16 %v4931
        %v4944 = vunpack.c.l.b16 %v4932
        %v4945 = vpack.c.b16 %v4942, %v4941
        %v4946 = vpack.c.b16 %v4944, %v4943
        %v4950 = vsel %vm798, %v4928, 0
        %4952 = vmatpush.bf16.msra.mxu0 0
        %4953 = vmatpush.bf16.msra.mxu0 0
        %4954 = vmatpush.bf16.msra.mxu0 0
        %4955 = vmatpush.bf16.msra.mxu0 0
        %4956 = vmatpush.bf16.msra.mxu0 0
        %4957 = vmatpush.bf16.msra.mxu0 0
        %4958 = vmatpush.bf16.msra.mxu0 %v4946
        %4959 = vmatpush.bf16.msra.mxu0 %v4945
        %4960 = vmatmul.bf16.gmra.mxu0 %v4950
        %v4961 = vpop.f32.mrf.mxu0
        %v4962 = vadd.f32 %v4935, %v4961
        %v4963 = vpop.f32.mrf.mxu0
        %4964 = vdwg.mxu0
        %v4965 = vmax.f32 %v4962, 0.0
        %v4966 = vpack.c.bf16 %v4965, %v4965
        %v4967 = vld [vmem:[%s15] sm:$0xf]
        %v4968 = vld [vmem:[%s15 + $0x4] sm:$0xf]
        %v4969 = vld [vmem:[%s15 + $0x8] sm:$0xf]
        %v4970 = vld [vmem:[%s15 + $0xc] sm:$0xf]
        %v4971 = vld [vmem:[%s15 + $0x10] sm:$0xf]
        %v4972 = vld [vmem:[%s15 + $0x14] sm:$0xf]
        %v4973 = vld [vmem:[%s15 + $0x18] sm:$0xf]
        %v4974 = vld [vmem:[%s15 + $0x1c] sm:$0xf]
        %v4975 = vld [vmem:[%s16] sm:$0x1]
        %v4977 = vperm.slane %v4975, 0
        %v4987 = vunpack.c.l.b16 %v4967
        %v4988 = vunpack.c.l.b16 %v4968
        %v4989 = vunpack.c.l.b16 %v4969
        %v4990 = vunpack.c.l.b16 %v4970
        %v4991 = vunpack.c.l.b16 %v4971
        %v4992 = vunpack.c.l.b16 %v4972
        %v4993 = vunpack.c.l.b16 %v4973
        %v4994 = vunpack.c.l.b16 %v4974
        %v4995 = vpack.c.b16 %v4988, %v4987
        %v4996 = vpack.c.b16 %v4990, %v4989
        %v4997 = vpack.c.b16 %v4992, %v4991
        %v4998 = vpack.c.b16 %v4994, %v4993
        %vm5003 = vcmask 523264
        %v5005 = vsel %vm5003, %v4966, 0
        %5007 = vmatpush.bf16.msra.mxu0 0
        %5008 = vmatpush.bf16.msra.mxu0 0
        %5009 = vmatpush.bf16.msra.mxu0 0
        %5010 = vmatpush.bf16.msra.mxu0 0
        %5011 = vmatpush.bf16.msra.mxu0 %v4998
        %5012 = vmatpush.bf16.msra.mxu0 %v4997
        %5013 = vmatpush.bf16.msra.mxu0 %v4996
        %5014 = vmatpush.bf16.msra.mxu0 %v4995
        %5015 = vmatmul.bf16.gmra.mxu0 %v5005
        %v5016 = vpop.f32.mrf.mxu0
        %v5017 = vadd.f32 %v4977, %v5016
        %v5018 = vpop.f32.mrf.mxu0
        %5019 = vdwg.mxu0
        %v5020 = vadd.f32 %v4927, %v5017
        %v5021 = vsel %vm798, %v5020, 0.0
        %5022 = vadd.xlane.f32.xlu0 %v5021
        %v5023 = vpop.xlane.xlu0 %5022
        %v5024 = vmul.f32 %v5023, %v2571
        %v5025 = vsub.f32 %v5020, %v5024
        %v5026 = vmul.f32 %v5025, %v5025
        %v5027 = vsel %vm798, %v5026, 0.0
        %5028 = vadd.xlane.f32.xlu0 %v5027
        %v5029 = vpop.xlane.xlu0 %5028
        %v5030 = vmul.f32 %v5029, %v2571
        %v5031 = vadd.f32 %v5030, 1e-05
        %v5032 = vrsqrt.pop %v5031
        %v5033 = vmul.f32 %v5032, %v5031
        %v5034 = vmul.f32 %v5033, %v5032
        %v5035 = vmul.f32 0.5, %v5034
        %v5036 = vsub.f32 1.5, %v5035
        %v5037 = vmul.f32 %v5032, %v5036
        %vm5038 = vweird.f32 %v5031
        %vm5039 = vweird.f32 %v5032
        %vm5040 = vmor %vm5038, %vm5039
        %v5041 = vsel %vm5040, %v5032, %v5037
        %v5042 = vmul.f32 %v5025, %v5041
        %s5043 = scalar_lea.vmem %s11, 2
        %v5044 = vld [vmem:[%s5043] sm:$0x1]
        %v5046 = vperm.slane %v5044, 0
        %v5048 = vmul.f32 %v5042, %v5046
        %s5049 = scalar_lea.vmem [#allocation16], 2
        %v5050 = vld [vmem:[%s5049] sm:$0x1]
        %v5052 = vperm.slane %v5050, 0
        %v5054 = vadd.f32 %v5048, %v5052
        %5055 = vst.msk [vmem:[%s769] sm:$0xff] %vm798, %v5054
        %s5056 = sand.u32 %s435, 1
        %s5057 = scalar_lea.sflag [#allocation4], %s5056
        %s5058 = sand.u32 %s435, 1
        %s5059 = smul.addr %s5058, 8
        %s5060 = scalar_lea.vmem [#allocation19], %s5059
        // Predicated region
        $region129: #{tpu_custom_call.1} parent=87 // pred_check
          %p5061 = pneg %p445
        $region130: #{tpu_custom_call.1} parent=87 // pred_check_branch
          %5063 = sbr.rel (%p5061) target = $region132
        $region131: #{tpu_custom_call.1} parent=87 // pred_region
          %5065 = vsyncadd %s5057, 0
          %s5066 = sadd.s32 %s46, %s45
          %s5067 = smul.addr %s5066, 8
          %s5068 = scalar_lea.hbm %s17, %s5067
          %s5070 = sshll.u32 %s5060, 4
          %s5071 = int_to_ptr.vmem [resolvable:$true] %s5070
          %s5072 = sshll.u32 %s5068, 4
          %s5073 = int_to_ptr.hbm [resolvable:$true] %s5072
          %5075 = dma.vmem_to_hbm [thread:$0]  %s5071, 128, %s5073, %s5057
        $region132: #{tpu_custom_call.1} parent=87 // pred_fallthru
          _
      $region88: #{tpu_custom_call.1} parent=5 // pred_fallthru
        _
      %p5076 = scmp.le.s32.totalorder 2, %s36
      // Predicated region
      $region133: #{tpu_custom_call.1} parent=5 // pred_check
        %p5077 = pneg %p5076
      $region134: #{tpu_custom_call.1} parent=5 // pred_check_branch
        %5079 = sbr.rel (%p5077) target = $region136
      $region135: #{tpu_custom_call.1} parent=5 // pred_region
        %s5080 = ssub.s32 %s36, 2
        // Predicated region
        $region137: #{tpu_custom_call.1} parent=135 // pred_check
          %p5081 = pneg %p451
        $region138: #{tpu_custom_call.1} parent=135 // pred_check_branch
          %5083 = sbr.rel (%p5081) target = $region140
        $region139: #{tpu_custom_call.1} parent=135 // pred_region
          %s5084 = sand.u32 %s436, 1
          %s5085 = scalar_lea.sflag [#allocation4], %s5084
          %s5086 = sand.u32 %s436, 1
          %s5087 = smul.addr %s5086, 8
          %s5088 = scalar_lea.vmem [#allocation19], %s5087
          %5090 = dma.done %s5085, 128
        $region140: #{tpu_custom_call.1} parent=135 // pred_fallthru
          _
      $region136: #{tpu_custom_call.1} parent=5 // pred_fallthru
        _
    $region6: #{tpu_custom_call.1} parent=1 // loop_footer
      %s40 = sadd.s32 1, %s36
    $region7: #{tpu_custom_call.1} parent=1 // loop_footer_branch
      %35 = sbr.rel target = $region3
    $region8: #{tpu_custom_call.1} parent=1 // loop_exit
      _
    %5091 = vsyncpa [#allocation3], 1
    %s5092 = scalar_lea.sflag [#allocation3], 1
    %5093 = vsyncpa %s5092, 1
    %5094 = vsyncpa [#allocation6], 1
    %s5095 = scalar_lea.sflag [#allocation6], 1
    %5096 = vsyncpa %s5095, 1
    %5097 = vsyncpa [#allocation9], 1
    %5098 = vsyncpa [#allocation12], 1
    %5099 = vsyncpa [#allocation15], 1
    %5100 = vsyncpa [#allocation18], 1
    %5101 = vsyncpa [#allocation4], 1
    %s5102 = scalar_lea.sflag [#allocation4], 1
    %5103 = vsyncpa %s5102, 1

</llo_original>
